<compile_context>
chip_gen: v5e
topology: v5e:2x2
jax: 0.10.0
libtpu: 0.0.40
codegen_flags: <defaults>
</compile_context>

<pallas_src>
import jax
import jax.numpy as jnp
from jax.experimental import pallas as pl
from jax.experimental.pallas import tpu as pltpu


def mlp_kernel(x_ref, w1_ref, b1_ref, w2_ref, b2_ref, o_ref):
    # Cast the streamed f32 activation tile to bf16 on the VPU (hidden under
    # the MXU); weights already arrive as bf16.
    x_bf = x_ref[...].astype(jnp.bfloat16)
    # Fc1 on the MXU: bf16 x bf16 -> f32 accumulation.
    h = jnp.dot(x_bf, w1_ref[...], preferred_element_type=jnp.float32)
    # Bias + ReLU on the VPU in f32 ((tb, hidden) + (1, hidden) broadcast).
    h = jnp.maximum(h + b1_ref[...], 0.0)
    # Fc2: round the hidden activation to bf16 for the MXU, accumulate in f32.
    out = jnp.dot(h.astype(jnp.bfloat16), w2_ref[...],
                  preferred_element_type=jnp.float32)
    o_ref[...] = (out + b2_ref[...]).astype(o_ref.dtype)


def prepare_mlp_params(w1, b1, w2, b2):
    """One-time (init-time) parameter prep: bf16 weights, f32 biases.

    Keeps the per-call wrapper free of weight casts so the kernel's ~3.5 MiB
    of HBM traffic is not doubled by an extra cast pass every forward call.
    """
    return (w1.astype(jnp.bfloat16), b1.astype(jnp.float32),
            w2.astype(jnp.bfloat16), b2.astype(jnp.float32))


def _round_up(n, m):
    return ((n + m - 1) // m) * m


def mlp_forward(x, w1_bf, b1, w2_bf, b2, *, tb=256):
    """x: [B, in] (f32), w1_bf: [in, hidden] bf16, b1: [1, hidden] f32,
    w2_bf: [hidden, classes] bf16, b2: [1, classes] f32.

    Returns [B, classes] in x.dtype. Matmuls run in bf16 on the MXU with f32
    accumulation; x is cast to bf16 inside the kernel.
    """
    B, d_in = x.shape
    hidden = w1_bf.shape[1]
    classes = w2_bf.shape[1]

    # Tile the batch: tb a multiple of 8 sublanes, clamped for small batches.
    tb_eff = min(tb, _round_up(B, 8))
    n_tiles = pl.cdiv(B, tb_eff)
    Bp = n_tiles * tb_eff
    if Bp != B:
        x = jnp.pad(x, ((0, Bp - B), (0, 0)))

    x_isz = x.dtype.itemsize
    out_isz = x.dtype.itemsize

    # Honest VMEM budget: resident weights/biases + double-buffered x/out
    # tiles, plus headroom for compiler-internal scratch (h intermediate etc.).
    resident_bytes = (d_in * hidden * 2 + hidden * classes * 2
                      + hidden * 4 + classes * 4)
    streamed_bytes = 2 * (tb_eff * d_in * x_isz + tb_eff * classes * out_isz)
    vmem_limit = int((resident_bytes + streamed_bytes) * 1.5) + (4 << 20)

    cost = pl.CostEstimate(
        flops=2 * Bp * (d_in * hidden + hidden * classes),
        transcendentals=0,
        bytes_accessed=(Bp * d_in * x_isz            # x
                        + d_in * hidden * 2          # W1 (bf16)
                        + hidden * classes * 2       # W2 (bf16)
                        + hidden * 4 + classes * 4   # biases
                        + Bp * classes * out_isz),   # output
    )

    # Constant-index (weight / bias) blocks only need a single VMEM buffer.
    resident = dict(pipeline_mode=pl.Buffered(1))

    out = pl.pallas_call(
        mlp_kernel,
        out_shape=jax.ShapeDtypeStruct((Bp, classes), x.dtype),
        grid_spec=pltpu.PrefetchScalarGridSpec(
            num_scalar_prefetch=0,
            grid=(n_tiles,),
            in_specs=[
                pl.BlockSpec((tb_eff, d_in), lambda i: (i, 0)),                  # x tile (streamed f32)
                pl.BlockSpec((d_in, hidden), lambda i: (0, 0), **resident),      # W1 (resident bf16)
                pl.BlockSpec((1, hidden), lambda i: (0, 0), **resident),         # b1
                pl.BlockSpec((hidden, classes), lambda i: (0, 0), **resident),   # W2 (resident bf16)
                pl.BlockSpec((1, classes), lambda i: (0, 0), **resident),        # b2
            ],
            out_specs=pl.BlockSpec((tb_eff, classes), lambda i: (i, 0)),
        ),
        compiler_params=pltpu.CompilerParams(
            dimension_semantics=("parallel",),   # batch tiles shard across TCs
            vmem_limit_bytes=vmem_limit,
        ),
        cost_estimate=cost,
    )(x, w1_bf, b1, w2_bf, b2)

    return out[:B]


if __name__ == "__main__":
    # Shapes consistent with the module: input=1024, hidden=1024, classNum=128.
    # B=512 keeps the run small while giving 2 grid steps at tb=256 (one per
    # TensorCore on v7x).
    B, d_in, hidden, classes = 512, 1024, 1024, 128

    key = jax.random.PRNGKey(0)
    kx, kw1, kb1, kw2, kb2 = jax.random.split(key, 5)

    x = jax.random.normal(kx, (B, d_in), dtype=jnp.float32)
    # Deterministic params; stored as [in, out] (transpose of PyTorch's [out, in]).
    w1 = jax.random.normal(kw1, (d_in, hidden), dtype=jnp.float32) * 0.02
    b1 = jax.random.normal(kb1, (1, hidden), dtype=jnp.float32) * 0.02
    w2 = jax.random.normal(kw2, (hidden, classes), dtype=jnp.float32) * 0.02
    b2 = jax.random.normal(kb2, (1, classes), dtype=jnp.float32) * 0.02

    # One-time parameter prep (bf16 weights), outside the per-call path.
    w1_bf, b1_f, w2_bf, b2_f = prepare_mlp_params(w1, b1, w2, b2)
    w1_bf, b1_f, w2_bf, b2_f = jax.block_until_ready((w1_bf, b1_f, w2_bf, b2_f))

    out = mlp_forward(x, w1_bf, b1_f, w2_bf, b2_f, tb=256)
    out = jax.block_until_ready(out)
    assert out.shape == (B, classes)

    # Pure-JAX reference, mirroring the kernel's bf16 rounding of inputs/weights
    # and of the hidden activation (accumulation in f32).
    xb = x.astype(jnp.bfloat16).astype(jnp.float32)
    w1b = w1.astype(jnp.bfloat16).astype(jnp.float32)
    w2b = w2.astype(jnp.bfloat16).astype(jnp.float32)
    h_ref = jnp.maximum(xb @ w1b + b1, 0.0).astype(jnp.bfloat16).astype(jnp.float32)
    ref = h_ref @ w2b + b2

    assert jnp.allclose(out, ref, atol=2e-2, rtol=2e-2), (
        float(jnp.max(jnp.abs(out - ref))))

    print("KERNEL_OK")
</pallas_src>

<mosaic_0001>
module attributes {stable_mosaic.version = 11 : i64} {
  func.func @mlp_kernel(%arg0: i32, %arg1: memref<256x1024xf32, #tpu.memory_space<vmem>>, %arg2: memref<1024x1024xbf16, #tpu.memory_space<vmem>>, %arg3: memref<1x1024xf32, #tpu.memory_space<vmem>>, %arg4: memref<1024x128xbf16, #tpu.memory_space<vmem>>, %arg5: memref<1x128xf32, #tpu.memory_space<vmem>>, %arg6: memref<256x128xf32, #tpu.memory_space<vmem>>) attributes {dimension_semantics = [#tpu.dimension_semantics<parallel>], iteration_bounds = array<i64: 2>, scalar_prefetch = 0 : i64, scratch_operands = 0 : i64, tpu.core_type = #tpu.core_type<tc>, window_params = [{transform_indices = @transform_0, window_bounds = array<i64: 256, 1024>}, {pipeline_mode = #tpu.pipeline_mode<synchronous>, transform_indices = @transform_1, window_bounds = array<i64: 1024, 1024>}, {pipeline_mode = #tpu.pipeline_mode<synchronous>, transform_indices = @transform_2, window_bounds = array<i64: 1, 1024>}, {pipeline_mode = #tpu.pipeline_mode<synchronous>, transform_indices = @transform_3, window_bounds = array<i64: 1024, 128>}, {pipeline_mode = #tpu.pipeline_mode<synchronous>, transform_indices = @transform_4, window_bounds = array<i64: 1, 128>}, {transform_indices = @transform_5, window_bounds = array<i64: 256, 128>}]} {
    %c0 = arith.constant 0 : index
    %c0_0 = arith.constant 0 : index
    %0 = vector.load %arg1[%c0, %c0_0] : memref<256x1024xf32, #tpu.memory_space<vmem>>, vector<256x1024xf32>
    %1 = arith.truncf %0 : vector<256x1024xf32> to vector<256x1024xbf16>
    %c0_1 = arith.constant 0 : index
    %c0_2 = arith.constant 0 : index
    %2 = vector.load %arg2[%c0_1, %c0_2] : memref<1024x1024xbf16, #tpu.memory_space<vmem>>, vector<1024x1024xbf16>
    %cst = arith.constant dense<0.000000e+00> : vector<256x1024xf32>
    %3 = tpu.matmul %1, %2, %cst {dimension_numbers = #tpu.dot_dimension_numbers<[1], [0], [0], [1], [0, 0, 1, 1], [], []>} : vector<256x1024xbf16>, vector<1024x1024xbf16>, vector<256x1024xf32> -> vector<256x1024xf32>
    %c0_3 = arith.constant 0 : index
    %c0_4 = arith.constant 0 : index
    %4 = vector.load %arg3[%c0_3, %c0_4] : memref<1x1024xf32, #tpu.memory_space<vmem>>, vector<1x1024xf32>
    %5 = vector.broadcast %4 : vector<1x1024xf32> to vector<256x1024xf32>
    %6 = arith.addf %3, %5 : vector<256x1024xf32>
    %cst_5 = arith.constant 0.000000e+00 : f32
    %7 = vector.broadcast %cst_5 : f32 to vector<256x1024xf32>
    %8 = arith.maximumf %6, %7 : vector<256x1024xf32>
    %9 = arith.truncf %8 : vector<256x1024xf32> to vector<256x1024xbf16>
    %c0_6 = arith.constant 0 : index
    %c0_7 = arith.constant 0 : index
    %10 = vector.load %arg4[%c0_6, %c0_7] : memref<1024x128xbf16, #tpu.memory_space<vmem>>, vector<1024x128xbf16>
    %cst_8 = arith.constant dense<0.000000e+00> : vector<256x128xf32>
    %11 = tpu.matmul %9, %10, %cst_8 {dimension_numbers = #tpu.dot_dimension_numbers<[1], [0], [0], [1], [0, 0, 1, 1], [], []>} : vector<256x1024xbf16>, vector<1024x128xbf16>, vector<256x128xf32> -> vector<256x128xf32>
    %c0_9 = arith.constant 0 : index
    %c0_10 = arith.constant 0 : index
    %12 = vector.load %arg5[%c0_9, %c0_10] : memref<1x128xf32, #tpu.memory_space<vmem>>, vector<1x128xf32>
    %13 = vector.broadcast %12 : vector<1x128xf32> to vector<256x128xf32>
    %14 = arith.addf %11, %13 : vector<256x128xf32>
    %c0_11 = arith.constant 0 : index
    %c0_12 = arith.constant 0 : index
    %15 = vector.load %arg6[%c0_11, %c0_12] : memref<256x128xf32, #tpu.memory_space<vmem>>, vector<256x128xf32>
    tpu.vector_store %arg6[%c0_11, %c0_12], %14 {strides = array<i32>} : memref<256x128xf32, #tpu.memory_space<vmem>>, vector<256x128xf32>,
    return
  }
  func.func @transform_0(%arg0: i32) -> (i32, i32) {
    %c0_i32 = arith.constant 0 : i32
    %c0_i32_0 = arith.constant 0 : i32
    return %arg0, %c0_i32 : i32, i32
  }
  func.func @transform_1(%arg0: i32) -> (i32, i32) {
    %c0_i32 = arith.constant 0 : i32
    %c0_i32_0 = arith.constant 0 : i32
    %c0_i32_1 = arith.constant 0 : i32
    return %c0_i32, %c0_i32_0 : i32, i32
  }
  func.func @transform_2(%arg0: i32) -> (i32, i32) {
    %c0_i32 = arith.constant 0 : i32
    %c0_i32_0 = arith.constant 0 : i32
    %c0_i32_1 = arith.constant 0 : i32
    return %c0_i32, %c0_i32_0 : i32, i32
  }
  func.func @transform_3(%arg0: i32) -> (i32, i32) {
    %c0_i32 = arith.constant 0 : i32
    %c0_i32_0 = arith.constant 0 : i32
    %c0_i32_1 = arith.constant 0 : i32
    return %c0_i32, %c0_i32_0 : i32, i32
  }
  func.func @transform_4(%arg0: i32) -> (i32, i32) {
    %c0_i32 = arith.constant 0 : i32
    %c0_i32_0 = arith.constant 0 : i32
    %c0_i32_1 = arith.constant 0 : i32
    return %c0_i32, %c0_i32_0 : i32, i32
  }
  func.func @transform_5(%arg0: i32) -> (i32, i32) {
    %c0_i32 = arith.constant 0 : i32
    %c0_i32_0 = arith.constant 0 : i32
    return %arg0, %c0_i32 : i32, i32
  }
}

</mosaic_0001>

<llo_original>
// kernel: tpu_custom_call.1
$region0: #{tpu_custom_call.1}
  #allocation0 [shape = 'u32[]', space=smem, size = 0x4, offset = 0x4, fixed_abs, tag = 'smem constant byte address 0x4 - core index']
  #allocation1 [shape = 'u32[72,128]{1,0:T(1,128)}', space=vmem, size = 0x9000, scoped, tag = 'internal scratch']
  %s0 = inlined_call_operand.hbm [shape: f32[512,1024], index: 0, kind: input, shape index: {}]
  %s1 = inlined_call_operand.hbm [shape: bf16[1024,1024], index: 1, kind: input, shape index: {}]
  %s2 = inlined_call_operand.hbm [shape: f32[1,1024], index: 2, kind: input, shape index: {}]
  %s3 = inlined_call_operand.hbm [shape: bf16[1024,128], index: 3, kind: input, shape index: {}]
  %s4 = inlined_call_operand.hbm [shape: f32[1,128], index: 4, kind: input, shape index: {}]
  %s5 = inlined_call_operand.hbm [shape: f32[512,128], index: 5, kind: output, shape index: {}]
  %s6 = sld [smem:[#allocation0]]
  $region73: #{tpu_custom_call.1} parent=0
    _
  %s8 = ssub.s32 1, %s6
  %s9 = scalar_select 0, %s8, %s6
  $region1: #{tpu_custom_call.1} parent=0
    #allocation2 [shape = 'u8[2097152]{0}', space=vmem, size = 0x200000, scoped, tag = 'input window, operand 0']
    #allocation3 [shape = 's32[2]{0}', space=sflag, size = 0x8, scoped, tag = 'scoped memory for tpu_custom_call.1']
    #allocation4 [shape = 's32[2]{0}', space=sflag, size = 0x8, scoped, tag = 'scoped memory for tpu_custom_call.1']
    #allocation5 [shape = 'u8[2097152]{0}', space=vmem, size = 0x200000, scoped, tag = 'input window, operand 1, single buffered']
    #allocation6 [shape = 's32[1]{0}', space=sflag, size = 0x4, scoped, tag = 'scoped memory for tpu_custom_call.1']
    #allocation7 [shape = 'u8[4096]{0}', space=vmem, size = 0x1000, scoped, tag = 'input window, operand 2, single buffered']
    #allocation8 [shape = 'u8[262144]{0}', space=vmem, size = 0x40000, scoped, tag = 'input window, operand 3, single buffered']
    #allocation9 [shape = 's32[1]{0}', space=sflag, size = 0x4, scoped, tag = 'scoped memory for tpu_custom_call.1']
    #allocation10 [shape = 'u8[512]{0}', space=vmem, size = 0x400, scoped, tag = 'input window, operand 4, single buffered']
    #allocation11 [shape = 'u8[262144]{0}', space=vmem, size = 0x40000, scoped, tag = 'output window, operand 0']
    %10 = vsyncpa [#allocation3], 0
    %s11 = scalar_lea.sflag [#allocation3], 1
    %12 = vsyncpa %s11, 0
    %13 = vsyncpa [#allocation6], 0
    %14 = vsyncpa [#allocation9], 0
    %15 = vsyncpa [#allocation4], 0
    %s16 = scalar_lea.sflag [#allocation4], 1
    %17 = vsyncpa %s16, 0
    loop: start=0, step=1, limit=4
    $region2: #{tpu_custom_call.1} parent=1 // loop_pre_header
      _
    $region3: #{tpu_custom_call.1} parent=1 // loop_header
      %s19 = sphi 0, %s23
      %p20 = scmp.ge.s32.totalorder %s19, 4
      %s29 = sphi 0, %s31
      %s32 = sphi 0, %s29
      %s33 = sphi 0, %s32
      %s49 = sphi 0, %s33
      %s53 = sphi 0, %s53
      %s55 = sphi 0, %s53
      %s56 = sphi 0, %s55
      %s70 = sphi 0, %s56
      %s74 = sphi 0, %s74
      %s76 = sphi 0, %s74
      %s77 = sphi 0, %s76
      %s91 = sphi 0, %s77
      %s95 = sphi 0, %s95
      %s97 = sphi 0, %s95
      %s98 = sphi 0, %s97
      %s112 = sphi 0, %s98
      %s116 = sphi 0, %s116
      %s118 = sphi 0, %s116
      %s119 = sphi 0, %s118
      %s133 = sphi 0, %s119
      %s139 = sphi 0, %s141
      %s142 = sphi 0, %s139
      %s143 = sphi 0, %s142
      %s159 = sphi 0, %s143
    $region4: #{tpu_custom_call.1} parent=1 // loop_header_branch
      %22 = sbr.rel (%p20) target = $region8
    $region5: #{tpu_custom_call.1} parent=1 // loop_body
      %s24 = ssub.s32 %s19, 1
      %s25 = ssub.s32 %s19, 2
      %s26 = sadd.s32 %s19, 1
      %s27 = ssub.s32 %s19, %s26
      %p28 = scmp.eq.s32.totalorder %s27, 0
      %s30 = sadd.s32 %s29, 1
      %s31 = scalar_select %p28, %s29, %s30
      %p34 = pneg %p28
      %p35 = scmp.eq.s32.totalorder %s19, 1
      %p36 = por %p34, %p35
      %p37 = scmp.ne.s32.totalorder %s29, %s32
      %p38 = scmp.eq.s32.totalorder %s19, 0
      %p39 = por %p37, %p38
      %p40 = scmp.ne.s32.totalorder %s29, %s32
      %p41 = scmp.eq.s32.totalorder %s24, 1
      %p42 = por %p40, %p41
      %p43 = scmp.ne.s32.totalorder %s32, %s33
      %p44 = scmp.eq.s32.totalorder %s24, 0
      %p45 = por %p43, %p44
      %p46 = scmp.ne.s32.totalorder %s32, %s33
      %p47 = scmp.eq.s32.totalorder %s25, 1
      %p48 = por %p46, %p47
      %p50 = scmp.ne.s32.totalorder %s33, %s49
      %p51 = scmp.eq.s32.totalorder %s25, 0
      %p52 = por %p50, %p51
      %s54 = sadd.s32 %s53, 1
      %p57 = scmp.eq.s32.totalorder %s19, 1
      %p58 = scmp.ne.s32.totalorder %s53, %s55
      %p59 = scmp.eq.s32.totalorder %s19, 0
      %p60 = por %p58, %p59
      %p61 = scmp.ne.s32.totalorder %s53, %s55
      %p62 = scmp.eq.s32.totalorder %s24, 1
      %p63 = por %p61, %p62
      %p64 = scmp.ne.s32.totalorder %s55, %s56
      %p65 = scmp.eq.s32.totalorder %s24, 0
      %p66 = por %p64, %p65
      %p67 = scmp.ne.s32.totalorder %s55, %s56
      %p68 = scmp.eq.s32.totalorder %s25, 1
      %p69 = por %p67, %p68
      %p71 = scmp.ne.s32.totalorder %s56, %s70
      %p72 = scmp.eq.s32.totalorder %s25, 0
      %p73 = por %p71, %p72
      %s75 = sadd.s32 %s74, 1
      %p78 = scmp.eq.s32.totalorder %s19, 1
      %p79 = scmp.ne.s32.totalorder %s74, %s76
      %p80 = scmp.eq.s32.totalorder %s19, 0
      %p81 = por %p79, %p80
      %p82 = scmp.ne.s32.totalorder %s74, %s76
      %p83 = scmp.eq.s32.totalorder %s24, 1
      %p84 = por %p82, %p83
      %p85 = scmp.ne.s32.totalorder %s76, %s77
      %p86 = scmp.eq.s32.totalorder %s24, 0
      %p87 = por %p85, %p86
      %p88 = scmp.ne.s32.totalorder %s76, %s77
      %p89 = scmp.eq.s32.totalorder %s25, 1
      %p90 = por %p88, %p89
      %p92 = scmp.ne.s32.totalorder %s77, %s91
      %p93 = scmp.eq.s32.totalorder %s25, 0
      %p94 = por %p92, %p93
      %s96 = sadd.s32 %s95, 1
      %p99 = scmp.eq.s32.totalorder %s19, 1
      %p100 = scmp.ne.s32.totalorder %s95, %s97
      %p101 = scmp.eq.s32.totalorder %s19, 0
      %p102 = por %p100, %p101
      %p103 = scmp.ne.s32.totalorder %s95, %s97
      %p104 = scmp.eq.s32.totalorder %s24, 1
      %p105 = por %p103, %p104
      %p106 = scmp.ne.s32.totalorder %s97, %s98
      %p107 = scmp.eq.s32.totalorder %s24, 0
      %p108 = por %p106, %p107
      %p109 = scmp.ne.s32.totalorder %s97, %s98
      %p110 = scmp.eq.s32.totalorder %s25, 1
      %p111 = por %p109, %p110
      %p113 = scmp.ne.s32.totalorder %s98, %s112
      %p114 = scmp.eq.s32.totalorder %s25, 0
      %p115 = por %p113, %p114
      %s117 = sadd.s32 %s116, 1
      %p120 = scmp.eq.s32.totalorder %s19, 1
      %p121 = scmp.ne.s32.totalorder %s116, %s118
      %p122 = scmp.eq.s32.totalorder %s19, 0
      %p123 = por %p121, %p122
      %p124 = scmp.ne.s32.totalorder %s116, %s118
      %p125 = scmp.eq.s32.totalorder %s24, 1
      %p126 = por %p124, %p125
      %p127 = scmp.ne.s32.totalorder %s118, %s119
      %p128 = scmp.eq.s32.totalorder %s24, 0
      %p129 = por %p127, %p128
      %p130 = scmp.ne.s32.totalorder %s118, %s119
      %p131 = scmp.eq.s32.totalorder %s25, 1
      %p132 = por %p130, %p131
      %p134 = scmp.ne.s32.totalorder %s119, %s133
      %p135 = scmp.eq.s32.totalorder %s25, 0
      %p136 = por %p134, %p135
      %s137 = ssub.s32 %s19, %s26
      %p138 = scmp.eq.s32.totalorder %s137, 0
      %s140 = sadd.s32 %s139, 1
      %s141 = scalar_select %p138, %s139, %s140
      %p144 = pneg %p138
      %p145 = scmp.eq.s32.totalorder %s19, 1
      %p146 = por %p144, %p145
      %p147 = scmp.ne.s32.totalorder %s139, %s142
      %p148 = scmp.eq.s32.totalorder %s19, 0
      %p149 = por %p147, %p148
      %p150 = scmp.ne.s32.totalorder %s139, %s142
      %p151 = scmp.eq.s32.totalorder %s24, 1
      %p152 = por %p150, %p151
      %p153 = scmp.ne.s32.totalorder %s142, %s143
      %p154 = scmp.eq.s32.totalorder %s24, 0
      %p155 = por %p153, %p154
      %p156 = scmp.ne.s32.totalorder %s142, %s143
      %p157 = scmp.eq.s32.totalorder %s25, 1
      %p158 = por %p156, %p157
      %p160 = scmp.ne.s32.totalorder %s143, %s159
      %p161 = scmp.eq.s32.totalorder %s25, 0
      %p162 = por %p160, %p161
      %p163 = scmp.le.s32.totalorder 1, %s19
      %p164 = scmp.lt.s32.totalorder %s19, 3
      %p165 = pnand %p163, %p164
      %p166 = pneg %p165
      // Predicated region
      $region9: #{tpu_custom_call.1} parent=5 // pred_check
        _
      $region10: #{tpu_custom_call.1} parent=5 // pred_check_branch
        %168 = sbr.rel (%p165) target = $region12
      $region11: #{tpu_custom_call.1} parent=5 // pred_region
        %s169 = ssub.s32 %s19, 1
        // Predicated region
        $region13: #{tpu_custom_call.1} parent=11 // pred_check
          %p170 = pneg %p66
        $region14: #{tpu_custom_call.1} parent=11 // pred_check_branch
          %172 = sbr.rel (%p170) target = $region16
        $region15: #{tpu_custom_call.1} parent=11 // pred_region
          %174 = vsyncadd [#allocation6], 0
          %s175 = sshll.u32 %s1, 4
          %s176 = int_to_ptr.hbm [resolvable:$true] %s175
          %s177 = sshll.u32 [#allocation5], 4
          %s178 = int_to_ptr.vmem [resolvable:$true] %s177
          %183 = dma.hbm_to_vmem [thread:$0]  %s176, 65536, %s178, [#allocation6], 512, 512, 32
        $region16: #{tpu_custom_call.1} parent=11 // pred_fallthru
          _
        // Predicated region
        $region17: #{tpu_custom_call.1} parent=11 // pred_check
          %p184 = pneg %p87
        $region18: #{tpu_custom_call.1} parent=11 // pred_check_branch
          %186 = sbr.rel (%p184) target = $region20
        $region19: #{tpu_custom_call.1} parent=11 // pred_region
          %188 = vsyncadd [#allocation6], 0
          %s190 = sshll.u32 %s2, 4
          %s191 = int_to_ptr.hbm [resolvable:$true] %s190
          %s192 = sshll.u32 [#allocation7], 4
          %s193 = int_to_ptr.vmem [resolvable:$true] %s192
          %195 = dma.hbm_to_vmem [thread:$0]  %s191, 128, %s193, [#allocation6]
        $region20: #{tpu_custom_call.1} parent=11 // pred_fallthru
          _
        // Predicated region
        $region21: #{tpu_custom_call.1} parent=11 // pred_check
          %p196 = pneg %p108
        $region22: #{tpu_custom_call.1} parent=11 // pred_check_branch
          %198 = sbr.rel (%p196) target = $region24
        $region23: #{tpu_custom_call.1} parent=11 // pred_region
          %200 = vsyncadd [#allocation9], 0
          %s201 = sshll.u32 %s3, 4
          %s202 = int_to_ptr.hbm [resolvable:$true] %s201
          %s203 = sshll.u32 [#allocation8], 4
          %s204 = int_to_ptr.vmem [resolvable:$true] %s203
          %209 = dma.hbm_to_vmem [thread:$0]  %s202, 8192, %s204, [#allocation9], 64, 64, 4
        $region24: #{tpu_custom_call.1} parent=11 // pred_fallthru
          _
        // Predicated region
        $region25: #{tpu_custom_call.1} parent=11 // pred_check
          %p210 = pneg %p129
        $region26: #{tpu_custom_call.1} parent=11 // pred_check_branch
          %212 = sbr.rel (%p210) target = $region28
        $region27: #{tpu_custom_call.1} parent=11 // pred_region
          %214 = vsyncadd [#allocation9], 0
          %s216 = sshll.u32 %s4, 4
          %s217 = int_to_ptr.hbm [resolvable:$true] %s216
          %s218 = sshll.u32 [#allocation10], 4
          %s219 = int_to_ptr.vmem [resolvable:$true] %s218
          %221 = dma.hbm_to_vmem [thread:$0]  %s217, 16, %s219, [#allocation9]
        $region28: #{tpu_custom_call.1} parent=11 // pred_fallthru
          _
      $region12: #{tpu_custom_call.1} parent=5 // pred_fallthru
        _
      %p222 = scmp.lt.s32.totalorder %s19, 2
      // Predicated region
      $region29: #{tpu_custom_call.1} parent=5 // pred_check
        %p223 = pneg %p222
      $region30: #{tpu_custom_call.1} parent=5 // pred_check_branch
        %225 = sbr.rel (%p223) target = $region32
      $region31: #{tpu_custom_call.1} parent=5 // pred_region
        // Predicated region
        $region33: #{tpu_custom_call.1} parent=31 // pred_check
          %p226 = pneg %p39
        $region34: #{tpu_custom_call.1} parent=31 // pred_check_branch
          %228 = sbr.rel (%p226) target = $region36
        $region35: #{tpu_custom_call.1} parent=31 // pred_region
          %s229 = sand.u32 %s29, 1
          %s230 = scalar_lea.sflag [#allocation3], %s229
          %s231 = sand.u32 %s29, 1
          %s232 = smul.addr %s231, 2048
          %s233 = scalar_lea.vmem [#allocation2], %s232
          %s234 = smul.u32 32, %s19
          %236 = vsyncadd %s230, 0
          %s237 = smul.addr %s234, 8
          %s238 = smul.addr %s237, 8
          %s239 = scalar_lea.hbm %s0, %s238
          %s240 = sshll.u32 %s239, 4
          %s241 = int_to_ptr.hbm [resolvable:$true] %s240
          %s242 = sshll.u32 %s233, 4
          %s243 = int_to_ptr.vmem [resolvable:$true] %s242
          %248 = dma.hbm_to_vmem [thread:$0]  %s241, 32768, %s243, %s230, 1024, 1024, 64
        $region36: #{tpu_custom_call.1} parent=31 // pred_fallthru
          _
      $region32: #{tpu_custom_call.1} parent=5 // pred_fallthru
        _
      %p249 = scmp.le.s32.totalorder 1, %s19
      %p250 = scmp.lt.s32.totalorder %s19, 3
      %p251 = pnand %p249, %p250
      %p252 = pneg %p251
      // Predicated region
      $region37: #{tpu_custom_call.1} parent=5 // pred_check
        _
      $region38: #{tpu_custom_call.1} parent=5 // pred_check_branch
        %254 = sbr.rel (%p251) target = $region40
      $region39: #{tpu_custom_call.1} parent=5 // pred_region
        %s255 = ssub.s32 %s19, 1
        %s256 = sand.u32 %s32, 1
        %s257 = scalar_lea.sflag [#allocation3], %s256
        %s258 = sand.u32 %s32, 1
        %s259 = smul.addr %s258, 2048
        %s260 = scalar_lea.vmem [#allocation2], %s259
        // Predicated region
        $region41: #{tpu_custom_call.1} parent=39 // pred_check
          %p261 = pneg %p45
        $region42: #{tpu_custom_call.1} parent=39 // pred_check_branch
          %263 = sbr.rel (%p261) target = $region44
        $region43: #{tpu_custom_call.1} parent=39 // pred_region
          %265 = dma.done %s257, 32768
        $region44: #{tpu_custom_call.1} parent=39 // pred_fallthru
          _
        // Predicated region
        $region45: #{tpu_custom_call.1} parent=39 // pred_check
          %p266 = pneg %p66
        $region46: #{tpu_custom_call.1} parent=39 // pred_check_branch
          %268 = sbr.rel (%p266) target = $region48
        $region47: #{tpu_custom_call.1} parent=39 // pred_region
          %270 = dma.done [#allocation6], 65536
        $region48: #{tpu_custom_call.1} parent=39 // pred_fallthru
          _
        // Predicated region
        $region49: #{tpu_custom_call.1} parent=39 // pred_check
          %p271 = pneg %p87
        $region50: #{tpu_custom_call.1} parent=39 // pred_check_branch
          %273 = sbr.rel (%p271) target = $region52
        $region51: #{tpu_custom_call.1} parent=39 // pred_region
          %275 = dma.done [#allocation6], 128
        $region52: #{tpu_custom_call.1} parent=39 // pred_fallthru
          _
        // Predicated region
        $region53: #{tpu_custom_call.1} parent=39 // pred_check
          %p276 = pneg %p108
        $region54: #{tpu_custom_call.1} parent=39 // pred_check_branch
          %278 = sbr.rel (%p276) target = $region56
        $region55: #{tpu_custom_call.1} parent=39 // pred_region
          %280 = dma.done [#allocation9], 8192
        $region56: #{tpu_custom_call.1} parent=39 // pred_fallthru
          _
        // Predicated region
        $region57: #{tpu_custom_call.1} parent=39 // pred_check
          %p281 = pneg %p129
        $region58: #{tpu_custom_call.1} parent=39 // pred_check_branch
          %283 = sbr.rel (%p281) target = $region60
        $region59: #{tpu_custom_call.1} parent=39 // pred_region
          %285 = dma.done [#allocation9], 16
        $region60: #{tpu_custom_call.1} parent=39 // pred_fallthru
          _
        %s286 = sand.u32 %s32, 1
        %s287 = scalar_lea.sflag [#allocation3], %s286
        %s288 = sand.u32 %s32, 1
        %s289 = smul.addr %s288, 2048
        %s290 = scalar_lea.vmem [#allocation2], %s289
        %p291 = pneg %p45
        %p292 = pneg %p42
        %p293 = pneg %p66
        %p294 = pneg %p63
        %p295 = pneg %p87
        %p296 = pneg %p84
        %p297 = pneg %p108
        %p298 = pneg %p105
        %p299 = pneg %p129
        %p300 = pneg %p126
        %p301 = pneg %p155
        %p302 = pneg %p152
        %s303 = sand.u32 %s142, 1
        %s304 = scalar_lea.sflag [#allocation4], %s303
        %s305 = sand.u32 %s142, 1
        %s306 = smul.addr %s305, 256
        %s307 = scalar_lea.vmem [#allocation11], %s306
        %s308 = smul.u32 32, %s24
        %s309 = smul.u32 32, %s24
        %v310 = vld [vmem:[%s260] sm:$0xff]
        %v311 = vld [vmem:[%s260 + $0x8] sm:$0xff]
        %v312 = vld [vmem:[%s260 + $0x10] sm:$0xff]
        %v313 = vld [vmem:[%s260 + $0x18] sm:$0xff]
        %v314 = vld [vmem:[%s260 + $0x20] sm:$0xff]
        %v315 = vld [vmem:[%s260 + $0x28] sm:$0xff]
        %v316 = vld [vmem:[%s260 + $0x30] sm:$0xff]
        %v317 = vld [vmem:[%s260 + $0x38] sm:$0xff]
        %v318 = vld [vmem:[%s260 + $0x40] sm:$0xff]
        %v319 = vld [vmem:[%s260 + $0x48] sm:$0xff]
        %v320 = vld [vmem:[%s260 + $0x50] sm:$0xff]
        %v321 = vld [vmem:[%s260 + $0x58] sm:$0xff]
        %v322 = vld [vmem:[%s260 + $0x60] sm:$0xff]
        %v323 = vld [vmem:[%s260 + $0x68] sm:$0xff]
        %v324 = vld [vmem:[%s260 + $0x70] sm:$0xff]
        %v325 = vld [vmem:[%s260 + $0x78] sm:$0xff]
        %v326 = vld [vmem:[%s260 + $0x80] sm:$0xff]
        %v327 = vld [vmem:[%s260 + $0x88] sm:$0xff]
        %v328 = vld [vmem:[%s260 + $0x90] sm:$0xff]
        %v329 = vld [vmem:[%s260 + $0x98] sm:$0xff]
        %v330 = vld [vmem:[%s260 + $0xa0] sm:$0xff]
        %v331 = vld [vmem:[%s260 + $0xa8] sm:$0xff]
        %v332 = vld [vmem:[%s260 + $0xb0] sm:$0xff]
        %v333 = vld [vmem:[%s260 + $0xb8] sm:$0xff]
        %v334 = vld [vmem:[%s260 + $0xc0] sm:$0xff]
        %v335 = vld [vmem:[%s260 + $0xc8] sm:$0xff]
        %v336 = vld [vmem:[%s260 + $0xd0] sm:$0xff]
        %v337 = vld [vmem:[%s260 + $0xd8] sm:$0xff]
        %v338 = vld [vmem:[%s260 + $0xe0] sm:$0xff]
        %v339 = vld [vmem:[%s260 + $0xe8] sm:$0xff]
        %v340 = vld [vmem:[%s260 + $0xf0] sm:$0xff]
        %v341 = vld [vmem:[%s260 + $0xf8] sm:$0xff]
        %v342 = vld [vmem:[%s260 + $0x100] sm:$0xff]
        %v343 = vld [vmem:[%s260 + $0x108] sm:$0xff]
        %v344 = vld [vmem:[%s260 + $0x110] sm:$0xff]
        %v345 = vld [vmem:[%s260 + $0x118] sm:$0xff]
        %v346 = vld [vmem:[%s260 + $0x120] sm:$0xff]
        %v347 = vld [vmem:[%s260 + $0x128] sm:$0xff]
        %v348 = vld [vmem:[%s260 + $0x130] sm:$0xff]
        %v349 = vld [vmem:[%s260 + $0x138] sm:$0xff]
        %v350 = vld [vmem:[%s260 + $0x140] sm:$0xff]
        %v351 = vld [vmem:[%s260 + $0x148] sm:$0xff]
        %v352 = vld [vmem:[%s260 + $0x150] sm:$0xff]
        %v353 = vld [vmem:[%s260 + $0x158] sm:$0xff]
        %v354 = vld [vmem:[%s260 + $0x160] sm:$0xff]
        %v355 = vld [vmem:[%s260 + $0x168] sm:$0xff]
        %v356 = vld [vmem:[%s260 + $0x170] sm:$0xff]
        %v357 = vld [vmem:[%s260 + $0x178] sm:$0xff]
        %v358 = vld [vmem:[%s260 + $0x180] sm:$0xff]
        %v359 = vld [vmem:[%s260 + $0x188] sm:$0xff]
        %v360 = vld [vmem:[%s260 + $0x190] sm:$0xff]
        %v361 = vld [vmem:[%s260 + $0x198] sm:$0xff]
        %v362 = vld [vmem:[%s260 + $0x1a0] sm:$0xff]
        %v363 = vld [vmem:[%s260 + $0x1a8] sm:$0xff]
        %v364 = vld [vmem:[%s260 + $0x1b0] sm:$0xff]
        %v365 = vld [vmem:[%s260 + $0x1b8] sm:$0xff]
        %v366 = vld [vmem:[%s260 + $0x1c0] sm:$0xff]
        %v367 = vld [vmem:[%s260 + $0x1c8] sm:$0xff]
        %v368 = vld [vmem:[%s260 + $0x1d0] sm:$0xff]
        %v369 = vld [vmem:[%s260 + $0x1d8] sm:$0xff]
        %v370 = vld [vmem:[%s260 + $0x1e0] sm:$0xff]
        %v371 = vld [vmem:[%s260 + $0x1e8] sm:$0xff]
        %v372 = vld [vmem:[%s260 + $0x1f0] sm:$0xff]
        %v373 = vld [vmem:[%s260 + $0x1f8] sm:$0xff]
        %v374 = vld [vmem:[%s260 + $0x200] sm:$0xff]
        %v375 = vld [vmem:[%s260 + $0x208] sm:$0xff]
        %v376 = vld [vmem:[%s260 + $0x210] sm:$0xff]
        %v377 = vld [vmem:[%s260 + $0x218] sm:$0xff]
        %v378 = vld [vmem:[%s260 + $0x220] sm:$0xff]
        %v379 = vld [vmem:[%s260 + $0x228] sm:$0xff]
        %v380 = vld [vmem:[%s260 + $0x230] sm:$0xff]
        %v381 = vld [vmem:[%s260 + $0x238] sm:$0xff]
        %v382 = vld [vmem:[%s260 + $0x240] sm:$0xff]
        %v383 = vld [vmem:[%s260 + $0x248] sm:$0xff]
        %v384 = vld [vmem:[%s260 + $0x250] sm:$0xff]
        %v385 = vld [vmem:[%s260 + $0x258] sm:$0xff]
        %v386 = vld [vmem:[%s260 + $0x260] sm:$0xff]
        %v387 = vld [vmem:[%s260 + $0x268] sm:$0xff]
        %v388 = vld [vmem:[%s260 + $0x270] sm:$0xff]
        %v389 = vld [vmem:[%s260 + $0x278] sm:$0xff]
        %v390 = vld [vmem:[%s260 + $0x280] sm:$0xff]
        %v391 = vld [vmem:[%s260 + $0x288] sm:$0xff]
        %v392 = vld [vmem:[%s260 + $0x290] sm:$0xff]
        %v393 = vld [vmem:[%s260 + $0x298] sm:$0xff]
        %v394 = vld [vmem:[%s260 + $0x2a0] sm:$0xff]
        %v395 = vld [vmem:[%s260 + $0x2a8] sm:$0xff]
        %v396 = vld [vmem:[%s260 + $0x2b0] sm:$0xff]
        %v397 = vld [vmem:[%s260 + $0x2b8] sm:$0xff]
        %v398 = vld [vmem:[%s260 + $0x2c0] sm:$0xff]
        %v399 = vld [vmem:[%s260 + $0x2c8] sm:$0xff]
        %v400 = vld [vmem:[%s260 + $0x2d0] sm:$0xff]
        %v401 = vld [vmem:[%s260 + $0x2d8] sm:$0xff]
        %v402 = vld [vmem:[%s260 + $0x2e0] sm:$0xff]
        %v403 = vld [vmem:[%s260 + $0x2e8] sm:$0xff]
        %v404 = vld [vmem:[%s260 + $0x2f0] sm:$0xff]
        %v405 = vld [vmem:[%s260 + $0x2f8] sm:$0xff]
        %v406 = vld [vmem:[%s260 + $0x300] sm:$0xff]
        %v407 = vld [vmem:[%s260 + $0x308] sm:$0xff]
        %v408 = vld [vmem:[%s260 + $0x310] sm:$0xff]
        %v409 = vld [vmem:[%s260 + $0x318] sm:$0xff]
        %v410 = vld [vmem:[%s260 + $0x320] sm:$0xff]
        %v411 = vld [vmem:[%s260 + $0x328] sm:$0xff]
        %v412 = vld [vmem:[%s260 + $0x330] sm:$0xff]
        %v413 = vld [vmem:[%s260 + $0x338] sm:$0xff]
        %v414 = vld [vmem:[%s260 + $0x340] sm:$0xff]
        %v415 = vld [vmem:[%s260 + $0x348] sm:$0xff]
        %v416 = vld [vmem:[%s260 + $0x350] sm:$0xff]
        %v417 = vld [vmem:[%s260 + $0x358] sm:$0xff]
        %v418 = vld [vmem:[%s260 + $0x360] sm:$0xff]
        %v419 = vld [vmem:[%s260 + $0x368] sm:$0xff]
        %v420 = vld [vmem:[%s260 + $0x370] sm:$0xff]
        %v421 = vld [vmem:[%s260 + $0x378] sm:$0xff]
        %v422 = vld [vmem:[%s260 + $0x380] sm:$0xff]
        %v423 = vld [vmem:[%s260 + $0x388] sm:$0xff]
        %v424 = vld [vmem:[%s260 + $0x390] sm:$0xff]
        %v425 = vld [vmem:[%s260 + $0x398] sm:$0xff]
        %v426 = vld [vmem:[%s260 + $0x3a0] sm:$0xff]
        %v427 = vld [vmem:[%s260 + $0x3a8] sm:$0xff]
        %v428 = vld [vmem:[%s260 + $0x3b0] sm:$0xff]
        %v429 = vld [vmem:[%s260 + $0x3b8] sm:$0xff]
        %v430 = vld [vmem:[%s260 + $0x3c0] sm:$0xff]
        %v431 = vld [vmem:[%s260 + $0x3c8] sm:$0xff]
        %v432 = vld [vmem:[%s260 + $0x3d0] sm:$0xff]
        %v433 = vld [vmem:[%s260 + $0x3d8] sm:$0xff]
        %v434 = vld [vmem:[%s260 + $0x3e0] sm:$0xff]
        %v435 = vld [vmem:[%s260 + $0x3e8] sm:$0xff]
        %v436 = vld [vmem:[%s260 + $0x3f0] sm:$0xff]
        %v437 = vld [vmem:[%s260 + $0x3f8] sm:$0xff]
        %v438 = vld [vmem:[%s260 + $0x400] sm:$0xff]
        %v439 = vld [vmem:[%s260 + $0x408] sm:$0xff]
        %v440 = vld [vmem:[%s260 + $0x410] sm:$0xff]
        %v441 = vld [vmem:[%s260 + $0x418] sm:$0xff]
        %v442 = vld [vmem:[%s260 + $0x420] sm:$0xff]
        %v443 = vld [vmem:[%s260 + $0x428] sm:$0xff]
        %v444 = vld [vmem:[%s260 + $0x430] sm:$0xff]
        %v445 = vld [vmem:[%s260 + $0x438] sm:$0xff]
        %v446 = vld [vmem:[%s260 + $0x440] sm:$0xff]
        %v447 = vld [vmem:[%s260 + $0x448] sm:$0xff]
        %v448 = vld [vmem:[%s260 + $0x450] sm:$0xff]
        %v449 = vld [vmem:[%s260 + $0x458] sm:$0xff]
        %v450 = vld [vmem:[%s260 + $0x460] sm:$0xff]
        %v451 = vld [vmem:[%s260 + $0x468] sm:$0xff]
        %v452 = vld [vmem:[%s260 + $0x470] sm:$0xff]
        %v453 = vld [vmem:[%s260 + $0x478] sm:$0xff]
        %v454 = vld [vmem:[%s260 + $0x480] sm:$0xff]
        %v455 = vld [vmem:[%s260 + $0x488] sm:$0xff]
        %v456 = vld [vmem:[%s260 + $0x490] sm:$0xff]
        %v457 = vld [vmem:[%s260 + $0x498] sm:$0xff]
        %v458 = vld [vmem:[%s260 + $0x4a0] sm:$0xff]
        %v459 = vld [vmem:[%s260 + $0x4a8] sm:$0xff]
        %v460 = vld [vmem:[%s260 + $0x4b0] sm:$0xff]
        %v461 = vld [vmem:[%s260 + $0x4b8] sm:$0xff]
        %v462 = vld [vmem:[%s260 + $0x4c0] sm:$0xff]
        %v463 = vld [vmem:[%s260 + $0x4c8] sm:$0xff]
        %v464 = vld [vmem:[%s260 + $0x4d0] sm:$0xff]
        %v465 = vld [vmem:[%s260 + $0x4d8] sm:$0xff]
        %v466 = vld [vmem:[%s260 + $0x4e0] sm:$0xff]
        %v467 = vld [vmem:[%s260 + $0x4e8] sm:$0xff]
        %v468 = vld [vmem:[%s260 + $0x4f0] sm:$0xff]
        %v469 = vld [vmem:[%s260 + $0x4f8] sm:$0xff]
        %v470 = vld [vmem:[%s260 + $0x500] sm:$0xff]
        %v471 = vld [vmem:[%s260 + $0x508] sm:$0xff]
        %v472 = vld [vmem:[%s260 + $0x510] sm:$0xff]
        %v473 = vld [vmem:[%s260 + $0x518] sm:$0xff]
        %v474 = vld [vmem:[%s260 + $0x520] sm:$0xff]
        %v475 = vld [vmem:[%s260 + $0x528] sm:$0xff]
        %v476 = vld [vmem:[%s260 + $0x530] sm:$0xff]
        %v477 = vld [vmem:[%s260 + $0x538] sm:$0xff]
        %v478 = vld [vmem:[%s260 + $0x540] sm:$0xff]
        %v479 = vld [vmem:[%s260 + $0x548] sm:$0xff]
        %v480 = vld [vmem:[%s260 + $0x550] sm:$0xff]
        %v481 = vld [vmem:[%s260 + $0x558] sm:$0xff]
        %v482 = vld [vmem:[%s260 + $0x560] sm:$0xff]
        %v483 = vld [vmem:[%s260 + $0x568] sm:$0xff]
        %v484 = vld [vmem:[%s260 + $0x570] sm:$0xff]
        %v485 = vld [vmem:[%s260 + $0x578] sm:$0xff]
        %v486 = vld [vmem:[%s260 + $0x580] sm:$0xff]
        %v487 = vld [vmem:[%s260 + $0x588] sm:$0xff]
        %v488 = vld [vmem:[%s260 + $0x590] sm:$0xff]
        %v489 = vld [vmem:[%s260 + $0x598] sm:$0xff]
        %v490 = vld [vmem:[%s260 + $0x5a0] sm:$0xff]
        %v491 = vld [vmem:[%s260 + $0x5a8] sm:$0xff]
        %v492 = vld [vmem:[%s260 + $0x5b0] sm:$0xff]
        %v493 = vld [vmem:[%s260 + $0x5b8] sm:$0xff]
        %v494 = vld [vmem:[%s260 + $0x5c0] sm:$0xff]
        %v495 = vld [vmem:[%s260 + $0x5c8] sm:$0xff]
        %v496 = vld [vmem:[%s260 + $0x5d0] sm:$0xff]
        %v497 = vld [vmem:[%s260 + $0x5d8] sm:$0xff]
        %v498 = vld [vmem:[%s260 + $0x5e0] sm:$0xff]
        %v499 = vld [vmem:[%s260 + $0x5e8] sm:$0xff]
        %v500 = vld [vmem:[%s260 + $0x5f0] sm:$0xff]
        %v501 = vld [vmem:[%s260 + $0x5f8] sm:$0xff]
        %v502 = vld [vmem:[%s260 + $0x600] sm:$0xff]
        %v503 = vld [vmem:[%s260 + $0x608] sm:$0xff]
        %v504 = vld [vmem:[%s260 + $0x610] sm:$0xff]
        %v505 = vld [vmem:[%s260 + $0x618] sm:$0xff]
        %v506 = vld [vmem:[%s260 + $0x620] sm:$0xff]
        %v507 = vld [vmem:[%s260 + $0x628] sm:$0xff]
        %v508 = vld [vmem:[%s260 + $0x630] sm:$0xff]
        %v509 = vld [vmem:[%s260 + $0x638] sm:$0xff]
        %v510 = vld [vmem:[%s260 + $0x640] sm:$0xff]
        %v511 = vld [vmem:[%s260 + $0x648] sm:$0xff]
        %v512 = vld [vmem:[%s260 + $0x650] sm:$0xff]
        %v513 = vld [vmem:[%s260 + $0x658] sm:$0xff]
        %v514 = vld [vmem:[%s260 + $0x660] sm:$0xff]
        %v515 = vld [vmem:[%s260 + $0x668] sm:$0xff]
        %v516 = vld [vmem:[%s260 + $0x670] sm:$0xff]
        %v517 = vld [vmem:[%s260 + $0x678] sm:$0xff]
        %v518 = vld [vmem:[%s260 + $0x680] sm:$0xff]
        %v519 = vld [vmem:[%s260 + $0x688] sm:$0xff]
        %v520 = vld [vmem:[%s260 + $0x690] sm:$0xff]
        %v521 = vld [vmem:[%s260 + $0x698] sm:$0xff]
        %v522 = vld [vmem:[%s260 + $0x6a0] sm:$0xff]
        %v523 = vld [vmem:[%s260 + $0x6a8] sm:$0xff]
        %v524 = vld [vmem:[%s260 + $0x6b0] sm:$0xff]
        %v525 = vld [vmem:[%s260 + $0x6b8] sm:$0xff]
        %v526 = vld [vmem:[%s260 + $0x6c0] sm:$0xff]
        %v527 = vld [vmem:[%s260 + $0x6c8] sm:$0xff]
        %v528 = vld [vmem:[%s260 + $0x6d0] sm:$0xff]
        %v529 = vld [vmem:[%s260 + $0x6d8] sm:$0xff]
        %v530 = vld [vmem:[%s260 + $0x6e0] sm:$0xff]
        %v531 = vld [vmem:[%s260 + $0x6e8] sm:$0xff]
        %v532 = vld [vmem:[%s260 + $0x6f0] sm:$0xff]
        %v533 = vld [vmem:[%s260 + $0x6f8] sm:$0xff]
        %v534 = vld [vmem:[%s260 + $0x700] sm:$0xff]
        %v535 = vld [vmem:[%s260 + $0x708] sm:$0xff]
        %v536 = vld [vmem:[%s260 + $0x710] sm:$0xff]
        %v537 = vld [vmem:[%s260 + $0x718] sm:$0xff]
        %v538 = vld [vmem:[%s260 + $0x720] sm:$0xff]
        %v539 = vld [vmem:[%s260 + $0x728] sm:$0xff]
        %v540 = vld [vmem:[%s260 + $0x730] sm:$0xff]
        %v541 = vld [vmem:[%s260 + $0x738] sm:$0xff]
        %v542 = vld [vmem:[%s260 + $0x740] sm:$0xff]
        %v543 = vld [vmem:[%s260 + $0x748] sm:$0xff]
        %v544 = vld [vmem:[%s260 + $0x750] sm:$0xff]
        %v545 = vld [vmem:[%s260 + $0x758] sm:$0xff]
        %v546 = vld [vmem:[%s260 + $0x760] sm:$0xff]
        %v547 = vld [vmem:[%s260 + $0x768] sm:$0xff]
        %v548 = vld [vmem:[%s260 + $0x770] sm:$0xff]
        %v549 = vld [vmem:[%s260 + $0x778] sm:$0xff]
        %v550 = vld [vmem:[%s260 + $0x780] sm:$0xff]
        %v551 = vld [vmem:[%s260 + $0x788] sm:$0xff]
        %v552 = vld [vmem:[%s260 + $0x790] sm:$0xff]
        %v553 = vld [vmem:[%s260 + $0x798] sm:$0xff]
        %v554 = vld [vmem:[%s260 + $0x7a0] sm:$0xff]
        %v555 = vld [vmem:[%s260 + $0x7a8] sm:$0xff]
        %v556 = vld [vmem:[%s260 + $0x7b0] sm:$0xff]
        %v557 = vld [vmem:[%s260 + $0x7b8] sm:$0xff]
        %v558 = vld [vmem:[%s260 + $0x7c0] sm:$0xff]
        %v559 = vld [vmem:[%s260 + $0x7c8] sm:$0xff]
        %v560 = vld [vmem:[%s260 + $0x7d0] sm:$0xff]
        %v561 = vld [vmem:[%s260 + $0x7d8] sm:$0xff]
        %v562 = vld [vmem:[%s260 + $0x7e0] sm:$0xff]
        %v563 = vld [vmem:[%s260 + $0x7e8] sm:$0xff]
        %v564 = vld [vmem:[%s260 + $0x7f0] sm:$0xff]
        %v565 = vld [vmem:[%s260 + $0x7f8] sm:$0xff]
        %v566 = vpack.c.bf16 %v318, %v310
        %v567 = vpack.c.bf16 %v319, %v311
        %v568 = vpack.c.bf16 %v320, %v312
        %v569 = vpack.c.bf16 %v321, %v313
        %v570 = vpack.c.bf16 %v322, %v314
        %v571 = vpack.c.bf16 %v323, %v315
        %v572 = vpack.c.bf16 %v324, %v316
        %v573 = vpack.c.bf16 %v325, %v317
        %v574 = vpack.c.bf16 %v334, %v326
        %v575 = vpack.c.bf16 %v335, %v327
        %v576 = vpack.c.bf16 %v336, %v328
        %v577 = vpack.c.bf16 %v337, %v329
        %v578 = vpack.c.bf16 %v338, %v330
        %v579 = vpack.c.bf16 %v339, %v331
        %v580 = vpack.c.bf16 %v340, %v332
        %v581 = vpack.c.bf16 %v341, %v333
        %v582 = vpack.c.bf16 %v350, %v342
        %v583 = vpack.c.bf16 %v351, %v343
        %v584 = vpack.c.bf16 %v352, %v344
        %v585 = vpack.c.bf16 %v353, %v345
        %v586 = vpack.c.bf16 %v354, %v346
        %v587 = vpack.c.bf16 %v355, %v347
        %v588 = vpack.c.bf16 %v356, %v348
        %v589 = vpack.c.bf16 %v357, %v349
        %v590 = vpack.c.bf16 %v366, %v358
        %v591 = vpack.c.bf16 %v367, %v359
        %v592 = vpack.c.bf16 %v368, %v360
        %v593 = vpack.c.bf16 %v369, %v361
        %v594 = vpack.c.bf16 %v370, %v362
        %v595 = vpack.c.bf16 %v371, %v363
        %v596 = vpack.c.bf16 %v372, %v364
        %v597 = vpack.c.bf16 %v373, %v365
        %v598 = vpack.c.bf16 %v382, %v374
        %v599 = vpack.c.bf16 %v383, %v375
        %v600 = vpack.c.bf16 %v384, %v376
        %v601 = vpack.c.bf16 %v385, %v377
        %v602 = vpack.c.bf16 %v386, %v378
        %v603 = vpack.c.bf16 %v387, %v379
        %v604 = vpack.c.bf16 %v388, %v380
        %v605 = vpack.c.bf16 %v389, %v381
        %v606 = vpack.c.bf16 %v398, %v390
        %v607 = vpack.c.bf16 %v399, %v391
        %v608 = vpack.c.bf16 %v400, %v392
        %v609 = vpack.c.bf16 %v401, %v393
        %v610 = vpack.c.bf16 %v402, %v394
        %v611 = vpack.c.bf16 %v403, %v395
        %v612 = vpack.c.bf16 %v404, %v396
        %v613 = vpack.c.bf16 %v405, %v397
        %v614 = vpack.c.bf16 %v414, %v406
        %v615 = vpack.c.bf16 %v415, %v407
        %v616 = vpack.c.bf16 %v416, %v408
        %v617 = vpack.c.bf16 %v417, %v409
        %v618 = vpack.c.bf16 %v418, %v410
        %v619 = vpack.c.bf16 %v419, %v411
        %v620 = vpack.c.bf16 %v420, %v412
        %v621 = vpack.c.bf16 %v421, %v413
        %v622 = vpack.c.bf16 %v430, %v422
        %v623 = vpack.c.bf16 %v431, %v423
        %v624 = vpack.c.bf16 %v432, %v424
        %v625 = vpack.c.bf16 %v433, %v425
        %v626 = vpack.c.bf16 %v434, %v426
        %v627 = vpack.c.bf16 %v435, %v427
        %v628 = vpack.c.bf16 %v436, %v428
        %v629 = vpack.c.bf16 %v437, %v429
        %v630 = vpack.c.bf16 %v446, %v438
        %v631 = vpack.c.bf16 %v447, %v439
        %v632 = vpack.c.bf16 %v448, %v440
        %v633 = vpack.c.bf16 %v449, %v441
        %v634 = vpack.c.bf16 %v450, %v442
        %v635 = vpack.c.bf16 %v451, %v443
        %v636 = vpack.c.bf16 %v452, %v444
        %v637 = vpack.c.bf16 %v453, %v445
        %v638 = vpack.c.bf16 %v462, %v454
        %v639 = vpack.c.bf16 %v463, %v455
        %v640 = vpack.c.bf16 %v464, %v456
        %v641 = vpack.c.bf16 %v465, %v457
        %v642 = vpack.c.bf16 %v466, %v458
        %v643 = vpack.c.bf16 %v467, %v459
        %v644 = vpack.c.bf16 %v468, %v460
        %v645 = vpack.c.bf16 %v469, %v461
        %v646 = vpack.c.bf16 %v478, %v470
        %v647 = vpack.c.bf16 %v479, %v471
        %v648 = vpack.c.bf16 %v480, %v472
        %v649 = vpack.c.bf16 %v481, %v473
        %v650 = vpack.c.bf16 %v482, %v474
        %v651 = vpack.c.bf16 %v483, %v475
        %v652 = vpack.c.bf16 %v484, %v476
        %v653 = vpack.c.bf16 %v485, %v477
        %v654 = vpack.c.bf16 %v494, %v486
        %v655 = vpack.c.bf16 %v495, %v487
        %v656 = vpack.c.bf16 %v496, %v488
        %v657 = vpack.c.bf16 %v497, %v489
        %v658 = vpack.c.bf16 %v498, %v490
        %v659 = vpack.c.bf16 %v499, %v491
        %v660 = vpack.c.bf16 %v500, %v492
        %v661 = vpack.c.bf16 %v501, %v493
        %v662 = vpack.c.bf16 %v510, %v502
        %v663 = vpack.c.bf16 %v511, %v503
        %v664 = vpack.c.bf16 %v512, %v504
        %v665 = vpack.c.bf16 %v513, %v505
        %v666 = vpack.c.bf16 %v514, %v506
        %v667 = vpack.c.bf16 %v515, %v507
        %v668 = vpack.c.bf16 %v516, %v508
        %v669 = vpack.c.bf16 %v517, %v509
        %v670 = vpack.c.bf16 %v526, %v518
        %v671 = vpack.c.bf16 %v527, %v519
        %v672 = vpack.c.bf16 %v528, %v520
        %v673 = vpack.c.bf16 %v529, %v521
        %v674 = vpack.c.bf16 %v530, %v522
        %v675 = vpack.c.bf16 %v531, %v523
        %v676 = vpack.c.bf16 %v532, %v524
        %v677 = vpack.c.bf16 %v533, %v525
        %v678 = vpack.c.bf16 %v542, %v534
        %v679 = vpack.c.bf16 %v543, %v535
        %v680 = vpack.c.bf16 %v544, %v536
        %v681 = vpack.c.bf16 %v545, %v537
        %v682 = vpack.c.bf16 %v546, %v538
        %v683 = vpack.c.bf16 %v547, %v539
        %v684 = vpack.c.bf16 %v548, %v540
        %v685 = vpack.c.bf16 %v549, %v541
        %v686 = vpack.c.bf16 %v558, %v550
        %v687 = vpack.c.bf16 %v559, %v551
        %v688 = vpack.c.bf16 %v560, %v552
        %v689 = vpack.c.bf16 %v561, %v553
        %v690 = vpack.c.bf16 %v562, %v554
        %v691 = vpack.c.bf16 %v563, %v555
        %v692 = vpack.c.bf16 %v564, %v556
        %v693 = vpack.c.bf16 %v565, %v557
        %v694 = vld [vmem:[#allocation5] sm:$0xff]
        %v695 = vld [vmem:[#allocation5 + $0x8] sm:$0xff]
        %v696 = vld [vmem:[#allocation5 + $0x10] sm:$0xff]
        %v697 = vld [vmem:[#allocation5 + $0x18] sm:$0xff]
        %v698 = vld [vmem:[#allocation5 + $0x20] sm:$0xff]
        %v699 = vld [vmem:[#allocation5 + $0x28] sm:$0xff]
        %v700 = vld [vmem:[#allocation5 + $0x30] sm:$0xff]
        %v701 = vld [vmem:[#allocation5 + $0x38] sm:$0xff]
        %v702 = vld [vmem:[#allocation5 + $0x40] sm:$0xff]
        %v703 = vld [vmem:[#allocation5 + $0x48] sm:$0xff]
        %v704 = vld [vmem:[#allocation5 + $0x50] sm:$0xff]
        %v705 = vld [vmem:[#allocation5 + $0x58] sm:$0xff]
        %v706 = vld [vmem:[#allocation5 + $0x60] sm:$0xff]
        %v707 = vld [vmem:[#allocation5 + $0x68] sm:$0xff]
        %v708 = vld [vmem:[#allocation5 + $0x70] sm:$0xff]
        %v709 = vld [vmem:[#allocation5 + $0x78] sm:$0xff]
        %v710 = vld [vmem:[#allocation5 + $0x80] sm:$0xff]
        %v711 = vld [vmem:[#allocation5 + $0x88] sm:$0xff]
        %v712 = vld [vmem:[#allocation5 + $0x90] sm:$0xff]
        %v713 = vld [vmem:[#allocation5 + $0x98] sm:$0xff]
        %v714 = vld [vmem:[#allocation5 + $0xa0] sm:$0xff]
        %v715 = vld [vmem:[#allocation5 + $0xa8] sm:$0xff]
        %v716 = vld [vmem:[#allocation5 + $0xb0] sm:$0xff]
        %v717 = vld [vmem:[#allocation5 + $0xb8] sm:$0xff]
        %v718 = vld [vmem:[#allocation5 + $0xc0] sm:$0xff]
        %v719 = vld [vmem:[#allocation5 + $0xc8] sm:$0xff]
        %v720 = vld [vmem:[#allocation5 + $0xd0] sm:$0xff]
        %v721 = vld [vmem:[#allocation5 + $0xd8] sm:$0xff]
        %v722 = vld [vmem:[#allocation5 + $0xe0] sm:$0xff]
        %v723 = vld [vmem:[#allocation5 + $0xe8] sm:$0xff]
        %v724 = vld [vmem:[#allocation5 + $0xf0] sm:$0xff]
        %v725 = vld [vmem:[#allocation5 + $0xf8] sm:$0xff]
        %v726 = vld [vmem:[#allocation5 + $0x100] sm:$0xff]
        %v727 = vld [vmem:[#allocation5 + $0x108] sm:$0xff]
        %v728 = vld [vmem:[#allocation5 + $0x110] sm:$0xff]
        %v729 = vld [vmem:[#allocation5 + $0x118] sm:$0xff]
        %v730 = vld [vmem:[#allocation5 + $0x120] sm:$0xff]
        %v731 = vld [vmem:[#allocation5 + $0x128] sm:$0xff]
        %v732 = vld [vmem:[#allocation5 + $0x130] sm:$0xff]
        %v733 = vld [vmem:[#allocation5 + $0x138] sm:$0xff]
        %v734 = vld [vmem:[#allocation5 + $0x140] sm:$0xff]
        %v735 = vld [vmem:[#allocation5 + $0x148] sm:$0xff]
        %v736 = vld [vmem:[#allocation5 + $0x150] sm:$0xff]
        %v737 = vld [vmem:[#allocation5 + $0x158] sm:$0xff]
        %v738 = vld [vmem:[#allocation5 + $0x160] sm:$0xff]
        %v739 = vld [vmem:[#allocation5 + $0x168] sm:$0xff]
        %v740 = vld [vmem:[#allocation5 + $0x170] sm:$0xff]
        %v741 = vld [vmem:[#allocation5 + $0x178] sm:$0xff]
        %v742 = vld [vmem:[#allocation5 + $0x180] sm:$0xff]
        %v743 = vld [vmem:[#allocation5 + $0x188] sm:$0xff]
        %v744 = vld [vmem:[#allocation5 + $0x190] sm:$0xff]
        %v745 = vld [vmem:[#allocation5 + $0x198] sm:$0xff]
        %v746 = vld [vmem:[#allocation5 + $0x1a0] sm:$0xff]
        %v747 = vld [vmem:[#allocation5 + $0x1a8] sm:$0xff]
        %v748 = vld [vmem:[#allocation5 + $0x1b0] sm:$0xff]
        %v749 = vld [vmem:[#allocation5 + $0x1b8] sm:$0xff]
        %v750 = vld [vmem:[#allocation5 + $0x1c0] sm:$0xff]
        %v751 = vld [vmem:[#allocation5 + $0x1c8] sm:$0xff]
        %v752 = vld [vmem:[#allocation5 + $0x1d0] sm:$0xff]
        %v753 = vld [vmem:[#allocation5 + $0x1d8] sm:$0xff]
        %v754 = vld [vmem:[#allocation5 + $0x1e0] sm:$0xff]
        %v755 = vld [vmem:[#allocation5 + $0x1e8] sm:$0xff]
        %v756 = vld [vmem:[#allocation5 + $0x1f0] sm:$0xff]
        %v757 = vld [vmem:[#allocation5 + $0x1f8] sm:$0xff]
        %v758 = vld [vmem:[#allocation5 + $0x200] sm:$0xff]
        %v759 = vld [vmem:[#allocation5 + $0x208] sm:$0xff]
        %v760 = vld [vmem:[#allocation5 + $0x210] sm:$0xff]
        %v761 = vld [vmem:[#allocation5 + $0x218] sm:$0xff]
        %v762 = vld [vmem:[#allocation5 + $0x220] sm:$0xff]
        %v763 = vld [vmem:[#allocation5 + $0x228] sm:$0xff]
        %v764 = vld [vmem:[#allocation5 + $0x230] sm:$0xff]
        %v765 = vld [vmem:[#allocation5 + $0x238] sm:$0xff]
        %v766 = vld [vmem:[#allocation5 + $0x240] sm:$0xff]
        %v767 = vld [vmem:[#allocation5 + $0x248] sm:$0xff]
        %v768 = vld [vmem:[#allocation5 + $0x250] sm:$0xff]
        %v769 = vld [vmem:[#allocation5 + $0x258] sm:$0xff]
        %v770 = vld [vmem:[#allocation5 + $0x260] sm:$0xff]
        %v771 = vld [vmem:[#allocation5 + $0x268] sm:$0xff]
        %v772 = vld [vmem:[#allocation5 + $0x270] sm:$0xff]
        %v773 = vld [vmem:[#allocation5 + $0x278] sm:$0xff]
        %v774 = vld [vmem:[#allocation5 + $0x280] sm:$0xff]
        %v775 = vld [vmem:[#allocation5 + $0x288] sm:$0xff]
        %v776 = vld [vmem:[#allocation5 + $0x290] sm:$0xff]
        %v777 = vld [vmem:[#allocation5 + $0x298] sm:$0xff]
        %v778 = vld [vmem:[#allocation5 + $0x2a0] sm:$0xff]
        %v779 = vld [vmem:[#allocation5 + $0x2a8] sm:$0xff]
        %v780 = vld [vmem:[#allocation5 + $0x2b0] sm:$0xff]
        %v781 = vld [vmem:[#allocation5 + $0x2b8] sm:$0xff]
        %v782 = vld [vmem:[#allocation5 + $0x2c0] sm:$0xff]
        %v783 = vld [vmem:[#allocation5 + $0x2c8] sm:$0xff]
        %v784 = vld [vmem:[#allocation5 + $0x2d0] sm:$0xff]
        %v785 = vld [vmem:[#allocation5 + $0x2d8] sm:$0xff]
        %v786 = vld [vmem:[#allocation5 + $0x2e0] sm:$0xff]
        %v787 = vld [vmem:[#allocation5 + $0x2e8] sm:$0xff]
        %v788 = vld [vmem:[#allocation5 + $0x2f0] sm:$0xff]
        %v789 = vld [vmem:[#allocation5 + $0x2f8] sm:$0xff]
        %v790 = vld [vmem:[#allocation5 + $0x300] sm:$0xff]
        %v791 = vld [vmem:[#allocation5 + $0x308] sm:$0xff]
        %v792 = vld [vmem:[#allocation5 + $0x310] sm:$0xff]
        %v793 = vld [vmem:[#allocation5 + $0x318] sm:$0xff]
        %v794 = vld [vmem:[#allocation5 + $0x320] sm:$0xff]
        %v795 = vld [vmem:[#allocation5 + $0x328] sm:$0xff]
        %v796 = vld [vmem:[#allocation5 + $0x330] sm:$0xff]
        %v797 = vld [vmem:[#allocation5 + $0x338] sm:$0xff]
        %v798 = vld [vmem:[#allocation5 + $0x340] sm:$0xff]
        %v799 = vld [vmem:[#allocation5 + $0x348] sm:$0xff]
        %v800 = vld [vmem:[#allocation5 + $0x350] sm:$0xff]
        %v801 = vld [vmem:[#allocation5 + $0x358] sm:$0xff]
        %v802 = vld [vmem:[#allocation5 + $0x360] sm:$0xff]
        %v803 = vld [vmem:[#allocation5 + $0x368] sm:$0xff]
        %v804 = vld [vmem:[#allocation5 + $0x370] sm:$0xff]
        %v805 = vld [vmem:[#allocation5 + $0x378] sm:$0xff]
        %v806 = vld [vmem:[#allocation5 + $0x380] sm:$0xff]
        %v807 = vld [vmem:[#allocation5 + $0x388] sm:$0xff]
        %v808 = vld [vmem:[#allocation5 + $0x390] sm:$0xff]
        %v809 = vld [vmem:[#allocation5 + $0x398] sm:$0xff]
        %v810 = vld [vmem:[#allocation5 + $0x3a0] sm:$0xff]
        %v811 = vld [vmem:[#allocation5 + $0x3a8] sm:$0xff]
        %v812 = vld [vmem:[#allocation5 + $0x3b0] sm:$0xff]
        %v813 = vld [vmem:[#allocation5 + $0x3b8] sm:$0xff]
        %v814 = vld [vmem:[#allocation5 + $0x3c0] sm:$0xff]
        %v815 = vld [vmem:[#allocation5 + $0x3c8] sm:$0xff]
        %v816 = vld [vmem:[#allocation5 + $0x3d0] sm:$0xff]
        %v817 = vld [vmem:[#allocation5 + $0x3d8] sm:$0xff]
        %v818 = vld [vmem:[#allocation5 + $0x3e0] sm:$0xff]
        %v819 = vld [vmem:[#allocation5 + $0x3e8] sm:$0xff]
        %v820 = vld [vmem:[#allocation5 + $0x3f0] sm:$0xff]
        %v821 = vld [vmem:[#allocation5 + $0x3f8] sm:$0xff]
        %v822 = vld [vmem:[#allocation5 + $0x400] sm:$0xff]
        %v823 = vld [vmem:[#allocation5 + $0x408] sm:$0xff]
        %v824 = vld [vmem:[#allocation5 + $0x410] sm:$0xff]
        %v825 = vld [vmem:[#allocation5 + $0x418] sm:$0xff]
        %v826 = vld [vmem:[#allocation5 + $0x420] sm:$0xff]
        %v827 = vld [vmem:[#allocation5 + $0x428] sm:$0xff]
        %v828 = vld [vmem:[#allocation5 + $0x430] sm:$0xff]
        %v829 = vld [vmem:[#allocation5 + $0x438] sm:$0xff]
        %v830 = vld [vmem:[#allocation5 + $0x440] sm:$0xff]
        %v831 = vld [vmem:[#allocation5 + $0x448] sm:$0xff]
        %v832 = vld [vmem:[#allocation5 + $0x450] sm:$0xff]
        %v833 = vld [vmem:[#allocation5 + $0x458] sm:$0xff]
        %v834 = vld [vmem:[#allocation5 + $0x460] sm:$0xff]
        %v835 = vld [vmem:[#allocation5 + $0x468] sm:$0xff]
        %v836 = vld [vmem:[#allocation5 + $0x470] sm:$0xff]
        %v837 = vld [vmem:[#allocation5 + $0x478] sm:$0xff]
        %v838 = vld [vmem:[#allocation5 + $0x480] sm:$0xff]
        %v839 = vld [vmem:[#allocation5 + $0x488] sm:$0xff]
        %v840 = vld [vmem:[#allocation5 + $0x490] sm:$0xff]
        %v841 = vld [vmem:[#allocation5 + $0x498] sm:$0xff]
        %v842 = vld [vmem:[#allocation5 + $0x4a0] sm:$0xff]
        %v843 = vld [vmem:[#allocation5 + $0x4a8] sm:$0xff]
        %v844 = vld [vmem:[#allocation5 + $0x4b0] sm:$0xff]
        %v845 = vld [vmem:[#allocation5 + $0x4b8] sm:$0xff]
        %v846 = vld [vmem:[#allocation5 + $0x4c0] sm:$0xff]
        %v847 = vld [vmem:[#allocation5 + $0x4c8] sm:$0xff]
        %v848 = vld [vmem:[#allocation5 + $0x4d0] sm:$0xff]
        %v849 = vld [vmem:[#allocation5 + $0x4d8] sm:$0xff]
        %v850 = vld [vmem:[#allocation5 + $0x4e0] sm:$0xff]
        %v851 = vld [vmem:[#allocation5 + $0x4e8] sm:$0xff]
        %v852 = vld [vmem:[#allocation5 + $0x4f0] sm:$0xff]
        %v853 = vld [vmem:[#allocation5 + $0x4f8] sm:$0xff]
        %v854 = vld [vmem:[#allocation5 + $0x500] sm:$0xff]
        %v855 = vld [vmem:[#allocation5 + $0x508] sm:$0xff]
        %v856 = vld [vmem:[#allocation5 + $0x510] sm:$0xff]
        %v857 = vld [vmem:[#allocation5 + $0x518] sm:$0xff]
        %v858 = vld [vmem:[#allocation5 + $0x520] sm:$0xff]
        %v859 = vld [vmem:[#allocation5 + $0x528] sm:$0xff]
        %v860 = vld [vmem:[#allocation5 + $0x530] sm:$0xff]
        %v861 = vld [vmem:[#allocation5 + $0x538] sm:$0xff]
        %v862 = vld [vmem:[#allocation5 + $0x540] sm:$0xff]
        %v863 = vld [vmem:[#allocation5 + $0x548] sm:$0xff]
        %v864 = vld [vmem:[#allocation5 + $0x550] sm:$0xff]
        %v865 = vld [vmem:[#allocation5 + $0x558] sm:$0xff]
        %v866 = vld [vmem:[#allocation5 + $0x560] sm:$0xff]
        %v867 = vld [vmem:[#allocation5 + $0x568] sm:$0xff]
        %v868 = vld [vmem:[#allocation5 + $0x570] sm:$0xff]
        %v869 = vld [vmem:[#allocation5 + $0x578] sm:$0xff]
        %v870 = vld [vmem:[#allocation5 + $0x580] sm:$0xff]
        %v871 = vld [vmem:[#allocation5 + $0x588] sm:$0xff]
        %v872 = vld [vmem:[#allocation5 + $0x590] sm:$0xff]
        %v873 = vld [vmem:[#allocation5 + $0x598] sm:$0xff]
        %v874 = vld [vmem:[#allocation5 + $0x5a0] sm:$0xff]
        %v875 = vld [vmem:[#allocation5 + $0x5a8] sm:$0xff]
        %v876 = vld [vmem:[#allocation5 + $0x5b0] sm:$0xff]
        %v877 = vld [vmem:[#allocation5 + $0x5b8] sm:$0xff]
        %v878 = vld [vmem:[#allocation5 + $0x5c0] sm:$0xff]
        %v879 = vld [vmem:[#allocation5 + $0x5c8] sm:$0xff]
        %v880 = vld [vmem:[#allocation5 + $0x5d0] sm:$0xff]
        %v881 = vld [vmem:[#allocation5 + $0x5d8] sm:$0xff]
        %v882 = vld [vmem:[#allocation5 + $0x5e0] sm:$0xff]
        %v883 = vld [vmem:[#allocation5 + $0x5e8] sm:$0xff]
        %v884 = vld [vmem:[#allocation5 + $0x5f0] sm:$0xff]
        %v885 = vld [vmem:[#allocation5 + $0x5f8] sm:$0xff]
        %v886 = vld [vmem:[#allocation5 + $0x600] sm:$0xff]
        %v887 = vld [vmem:[#allocation5 + $0x608] sm:$0xff]
        %v888 = vld [vmem:[#allocation5 + $0x610] sm:$0xff]
        %v889 = vld [vmem:[#allocation5 + $0x618] sm:$0xff]
        %v890 = vld [vmem:[#allocation5 + $0x620] sm:$0xff]
        %v891 = vld [vmem:[#allocation5 + $0x628] sm:$0xff]
        %v892 = vld [vmem:[#allocation5 + $0x630] sm:$0xff]
        %v893 = vld [vmem:[#allocation5 + $0x638] sm:$0xff]
        %v894 = vld [vmem:[#allocation5 + $0x640] sm:$0xff]
        %v895 = vld [vmem:[#allocation5 + $0x648] sm:$0xff]
        %v896 = vld [vmem:[#allocation5 + $0x650] sm:$0xff]
        %v897 = vld [vmem:[#allocation5 + $0x658] sm:$0xff]
        %v898 = vld [vmem:[#allocation5 + $0x660] sm:$0xff]
        %v899 = vld [vmem:[#allocation5 + $0x668] sm:$0xff]
        %v900 = vld [vmem:[#allocation5 + $0x670] sm:$0xff]
        %v901 = vld [vmem:[#allocation5 + $0x678] sm:$0xff]
        %v902 = vld [vmem:[#allocation5 + $0x680] sm:$0xff]
        %v903 = vld [vmem:[#allocation5 + $0x688] sm:$0xff]
        %v904 = vld [vmem:[#allocation5 + $0x690] sm:$0xff]
        %v905 = vld [vmem:[#allocation5 + $0x698] sm:$0xff]
        %v906 = vld [vmem:[#allocation5 + $0x6a0] sm:$0xff]
        %v907 = vld [vmem:[#allocation5 + $0x6a8] sm:$0xff]
        %v908 = vld [vmem:[#allocation5 + $0x6b0] sm:$0xff]
        %v909 = vld [vmem:[#allocation5 + $0x6b8] sm:$0xff]
        %v910 = vld [vmem:[#allocation5 + $0x6c0] sm:$0xff]
        %v911 = vld [vmem:[#allocation5 + $0x6c8] sm:$0xff]
        %v912 = vld [vmem:[#allocation5 + $0x6d0] sm:$0xff]
        %v913 = vld [vmem:[#allocation5 + $0x6d8] sm:$0xff]
        %v914 = vld [vmem:[#allocation5 + $0x6e0] sm:$0xff]
        %v915 = vld [vmem:[#allocation5 + $0x6e8] sm:$0xff]
        %v916 = vld [vmem:[#allocation5 + $0x6f0] sm:$0xff]
        %v917 = vld [vmem:[#allocation5 + $0x6f8] sm:$0xff]
        %v918 = vld [vmem:[#allocation5 + $0x700] sm:$0xff]
        %v919 = vld [vmem:[#allocation5 + $0x708] sm:$0xff]
        %v920 = vld [vmem:[#allocation5 + $0x710] sm:$0xff]
        %v921 = vld [vmem:[#allocation5 + $0x718] sm:$0xff]
        %v922 = vld [vmem:[#allocation5 + $0x720] sm:$0xff]
        %v923 = vld [vmem:[#allocation5 + $0x728] sm:$0xff]
        %v924 = vld [vmem:[#allocation5 + $0x730] sm:$0xff]
        %v925 = vld [vmem:[#allocation5 + $0x738] sm:$0xff]
        %v926 = vld [vmem:[#allocation5 + $0x740] sm:$0xff]
        %v927 = vld [vmem:[#allocation5 + $0x748] sm:$0xff]
        %v928 = vld [vmem:[#allocation5 + $0x750] sm:$0xff]
        %v929 = vld [vmem:[#allocation5 + $0x758] sm:$0xff]
        %v930 = vld [vmem:[#allocation5 + $0x760] sm:$0xff]
        %v931 = vld [vmem:[#allocation5 + $0x768] sm:$0xff]
        %v932 = vld [vmem:[#allocation5 + $0x770] sm:$0xff]
        %v933 = vld [vmem:[#allocation5 + $0x778] sm:$0xff]
        %v934 = vld [vmem:[#allocation5 + $0x780] sm:$0xff]
        %v935 = vld [vmem:[#allocation5 + $0x788] sm:$0xff]
        %v936 = vld [vmem:[#allocation5 + $0x790] sm:$0xff]
        %v937 = vld [vmem:[#allocation5 + $0x798] sm:$0xff]
        %v938 = vld [vmem:[#allocation5 + $0x7a0] sm:$0xff]
        %v939 = vld [vmem:[#allocation5 + $0x7a8] sm:$0xff]
        %v940 = vld [vmem:[#allocation5 + $0x7b0] sm:$0xff]
        %v941 = vld [vmem:[#allocation5 + $0x7b8] sm:$0xff]
        %v942 = vld [vmem:[#allocation5 + $0x7c0] sm:$0xff]
        %v943 = vld [vmem:[#allocation5 + $0x7c8] sm:$0xff]
        %v944 = vld [vmem:[#allocation5 + $0x7d0] sm:$0xff]
        %v945 = vld [vmem:[#allocation5 + $0x7d8] sm:$0xff]
        %v946 = vld [vmem:[#allocation5 + $0x7e0] sm:$0xff]
        %v947 = vld [vmem:[#allocation5 + $0x7e8] sm:$0xff]
        %v948 = vld [vmem:[#allocation5 + $0x7f0] sm:$0xff]
        %v949 = vld [vmem:[#allocation5 + $0x7f8] sm:$0xff]
        %v950 = vld [vmem:[#allocation5 + $0x800] sm:$0xff]
        %v951 = vld [vmem:[#allocation5 + $0x808] sm:$0xff]
        %v952 = vld [vmem:[#allocation5 + $0x810] sm:$0xff]
        %v953 = vld [vmem:[#allocation5 + $0x818] sm:$0xff]
        %v954 = vld [vmem:[#allocation5 + $0x820] sm:$0xff]
        %v955 = vld [vmem:[#allocation5 + $0x828] sm:$0xff]
        %v956 = vld [vmem:[#allocation5 + $0x830] sm:$0xff]
        %v957 = vld [vmem:[#allocation5 + $0x838] sm:$0xff]
        %v958 = vld [vmem:[#allocation5 + $0x840] sm:$0xff]
        %v959 = vld [vmem:[#allocation5 + $0x848] sm:$0xff]
        %v960 = vld [vmem:[#allocation5 + $0x850] sm:$0xff]
        %v961 = vld [vmem:[#allocation5 + $0x858] sm:$0xff]
        %v962 = vld [vmem:[#allocation5 + $0x860] sm:$0xff]
        %v963 = vld [vmem:[#allocation5 + $0x868] sm:$0xff]
        %v964 = vld [vmem:[#allocation5 + $0x870] sm:$0xff]
        %v965 = vld [vmem:[#allocation5 + $0x878] sm:$0xff]
        %v966 = vld [vmem:[#allocation5 + $0x880] sm:$0xff]
        %v967 = vld [vmem:[#allocation5 + $0x888] sm:$0xff]
        %v968 = vld [vmem:[#allocation5 + $0x890] sm:$0xff]
        %v969 = vld [vmem:[#allocation5 + $0x898] sm:$0xff]
        %v970 = vld [vmem:[#allocation5 + $0x8a0] sm:$0xff]
        %v971 = vld [vmem:[#allocation5 + $0x8a8] sm:$0xff]
        %v972 = vld [vmem:[#allocation5 + $0x8b0] sm:$0xff]
        %v973 = vld [vmem:[#allocation5 + $0x8b8] sm:$0xff]
        %v974 = vld [vmem:[#allocation5 + $0x8c0] sm:$0xff]
        %v975 = vld [vmem:[#allocation5 + $0x8c8] sm:$0xff]
        %v976 = vld [vmem:[#allocation5 + $0x8d0] sm:$0xff]
        %v977 = vld [vmem:[#allocation5 + $0x8d8] sm:$0xff]
        %v978 = vld [vmem:[#allocation5 + $0x8e0] sm:$0xff]
        %v979 = vld [vmem:[#allocation5 + $0x8e8] sm:$0xff]
        %v980 = vld [vmem:[#allocation5 + $0x8f0] sm:$0xff]
        %v981 = vld [vmem:[#allocation5 + $0x8f8] sm:$0xff]
        %v982 = vld [vmem:[#allocation5 + $0x900] sm:$0xff]
        %v983 = vld [vmem:[#allocation5 + $0x908] sm:$0xff]
        %v984 = vld [vmem:[#allocation5 + $0x910] sm:$0xff]
        %v985 = vld [vmem:[#allocation5 + $0x918] sm:$0xff]
        %v986 = vld [vmem:[#allocation5 + $0x920] sm:$0xff]
        %v987 = vld [vmem:[#allocation5 + $0x928] sm:$0xff]
        %v988 = vld [vmem:[#allocation5 + $0x930] sm:$0xff]
        %v989 = vld [vmem:[#allocation5 + $0x938] sm:$0xff]
        %v990 = vld [vmem:[#allocation5 + $0x940] sm:$0xff]
        %v991 = vld [vmem:[#allocation5 + $0x948] sm:$0xff]
        %v992 = vld [vmem:[#allocation5 + $0x950] sm:$0xff]
        %v993 = vld [vmem:[#allocation5 + $0x958] sm:$0xff]
        %v994 = vld [vmem:[#allocation5 + $0x960] sm:$0xff]
        %v995 = vld [vmem:[#allocation5 + $0x968] sm:$0xff]
        %v996 = vld [vmem:[#allocation5 + $0x970] sm:$0xff]
        %v997 = vld [vmem:[#allocation5 + $0x978] sm:$0xff]
        %v998 = vld [vmem:[#allocation5 + $0x980] sm:$0xff]
        %v999 = vld [vmem:[#allocation5 + $0x988] sm:$0xff]
        %v1000 = vld [vmem:[#allocation5 + $0x990] sm:$0xff]
        %v1001 = vld [vmem:[#allocation5 + $0x998] sm:$0xff]
        %v1002 = vld [vmem:[#allocation5 + $0x9a0] sm:$0xff]
        %v1003 = vld [vmem:[#allocation5 + $0x9a8] sm:$0xff]
        %v1004 = vld [vmem:[#allocation5 + $0x9b0] sm:$0xff]
        %v1005 = vld [vmem:[#allocation5 + $0x9b8] sm:$0xff]
        %v1006 = vld [vmem:[#allocation5 + $0x9c0] sm:$0xff]
        %v1007 = vld [vmem:[#allocation5 + $0x9c8] sm:$0xff]
        %v1008 = vld [vmem:[#allocation5 + $0x9d0] sm:$0xff]
        %v1009 = vld [vmem:[#allocation5 + $0x9d8] sm:$0xff]
        %v1010 = vld [vmem:[#allocation5 + $0x9e0] sm:$0xff]
        %v1011 = vld [vmem:[#allocation5 + $0x9e8] sm:$0xff]
        %v1012 = vld [vmem:[#allocation5 + $0x9f0] sm:$0xff]
        %v1013 = vld [vmem:[#allocation5 + $0x9f8] sm:$0xff]
        %v1014 = vld [vmem:[#allocation5 + $0xa00] sm:$0xff]
        %v1015 = vld [vmem:[#allocation5 + $0xa08] sm:$0xff]
        %v1016 = vld [vmem:[#allocation5 + $0xa10] sm:$0xff]
        %v1017 = vld [vmem:[#allocation5 + $0xa18] sm:$0xff]
        %v1018 = vld [vmem:[#allocation5 + $0xa20] sm:$0xff]
        %v1019 = vld [vmem:[#allocation5 + $0xa28] sm:$0xff]
        %v1020 = vld [vmem:[#allocation5 + $0xa30] sm:$0xff]
        %v1021 = vld [vmem:[#allocation5 + $0xa38] sm:$0xff]
        %v1022 = vld [vmem:[#allocation5 + $0xa40] sm:$0xff]
        %v1023 = vld [vmem:[#allocation5 + $0xa48] sm:$0xff]
        %v1024 = vld [vmem:[#allocation5 + $0xa50] sm:$0xff]
        %v1025 = vld [vmem:[#allocation5 + $0xa58] sm:$0xff]
        %v1026 = vld [vmem:[#allocation5 + $0xa60] sm:$0xff]
        %v1027 = vld [vmem:[#allocation5 + $0xa68] sm:$0xff]
        %v1028 = vld [vmem:[#allocation5 + $0xa70] sm:$0xff]
        %v1029 = vld [vmem:[#allocation5 + $0xa78] sm:$0xff]
        %v1030 = vld [vmem:[#allocation5 + $0xa80] sm:$0xff]
        %v1031 = vld [vmem:[#allocation5 + $0xa88] sm:$0xff]
        %v1032 = vld [vmem:[#allocation5 + $0xa90] sm:$0xff]
        %v1033 = vld [vmem:[#allocation5 + $0xa98] sm:$0xff]
        %v1034 = vld [vmem:[#allocation5 + $0xaa0] sm:$0xff]
        %v1035 = vld [vmem:[#allocation5 + $0xaa8] sm:$0xff]
        %v1036 = vld [vmem:[#allocation5 + $0xab0] sm:$0xff]
        %v1037 = vld [vmem:[#allocation5 + $0xab8] sm:$0xff]
        %v1038 = vld [vmem:[#allocation5 + $0xac0] sm:$0xff]
        %v1039 = vld [vmem:[#allocation5 + $0xac8] sm:$0xff]
        %v1040 = vld [vmem:[#allocation5 + $0xad0] sm:$0xff]
        %v1041 = vld [vmem:[#allocation5 + $0xad8] sm:$0xff]
        %v1042 = vld [vmem:[#allocation5 + $0xae0] sm:$0xff]
        %v1043 = vld [vmem:[#allocation5 + $0xae8] sm:$0xff]
        %v1044 = vld [vmem:[#allocation5 + $0xaf0] sm:$0xff]
        %v1045 = vld [vmem:[#allocation5 + $0xaf8] sm:$0xff]
        %v1046 = vld [vmem:[#allocation5 + $0xb00] sm:$0xff]
        %v1047 = vld [vmem:[#allocation5 + $0xb08] sm:$0xff]
        %v1048 = vld [vmem:[#allocation5 + $0xb10] sm:$0xff]
        %v1049 = vld [vmem:[#allocation5 + $0xb18] sm:$0xff]
        %v1050 = vld [vmem:[#allocation5 + $0xb20] sm:$0xff]
        %v1051 = vld [vmem:[#allocation5 + $0xb28] sm:$0xff]
        %v1052 = vld [vmem:[#allocation5 + $0xb30] sm:$0xff]
        %v1053 = vld [vmem:[#allocation5 + $0xb38] sm:$0xff]
        %v1054 = vld [vmem:[#allocation5 + $0xb40] sm:$0xff]
        %v1055 = vld [vmem:[#allocation5 + $0xb48] sm:$0xff]
        %v1056 = vld [vmem:[#allocation5 + $0xb50] sm:$0xff]
        %v1057 = vld [vmem:[#allocation5 + $0xb58] sm:$0xff]
        %v1058 = vld [vmem:[#allocation5 + $0xb60] sm:$0xff]
        %v1059 = vld [vmem:[#allocation5 + $0xb68] sm:$0xff]
        %v1060 = vld [vmem:[#allocation5 + $0xb70] sm:$0xff]
        %v1061 = vld [vmem:[#allocation5 + $0xb78] sm:$0xff]
        %v1062 = vld [vmem:[#allocation5 + $0xb80] sm:$0xff]
        %v1063 = vld [vmem:[#allocation5 + $0xb88] sm:$0xff]
        %v1064 = vld [vmem:[#allocation5 + $0xb90] sm:$0xff]
        %v1065 = vld [vmem:[#allocation5 + $0xb98] sm:$0xff]
        %v1066 = vld [vmem:[#allocation5 + $0xba0] sm:$0xff]
        %v1067 = vld [vmem:[#allocation5 + $0xba8] sm:$0xff]
        %v1068 = vld [vmem:[#allocation5 + $0xbb0] sm:$0xff]
        %v1069 = vld [vmem:[#allocation5 + $0xbb8] sm:$0xff]
        %v1070 = vld [vmem:[#allocation5 + $0xbc0] sm:$0xff]
        %v1071 = vld [vmem:[#allocation5 + $0xbc8] sm:$0xff]
        %v1072 = vld [vmem:[#allocation5 + $0xbd0] sm:$0xff]
        %v1073 = vld [vmem:[#allocation5 + $0xbd8] sm:$0xff]
        %v1074 = vld [vmem:[#allocation5 + $0xbe0] sm:$0xff]
        %v1075 = vld [vmem:[#allocation5 + $0xbe8] sm:$0xff]
        %v1076 = vld [vmem:[#allocation5 + $0xbf0] sm:$0xff]
        %v1077 = vld [vmem:[#allocation5 + $0xbf8] sm:$0xff]
        %v1078 = vld [vmem:[#allocation5 + $0xc00] sm:$0xff]
        %v1079 = vld [vmem:[#allocation5 + $0xc08] sm:$0xff]
        %v1080 = vld [vmem:[#allocation5 + $0xc10] sm:$0xff]
        %v1081 = vld [vmem:[#allocation5 + $0xc18] sm:$0xff]
        %v1082 = vld [vmem:[#allocation5 + $0xc20] sm:$0xff]
        %v1083 = vld [vmem:[#allocation5 + $0xc28] sm:$0xff]
        %v1084 = vld [vmem:[#allocation5 + $0xc30] sm:$0xff]
        %v1085 = vld [vmem:[#allocation5 + $0xc38] sm:$0xff]
        %v1086 = vld [vmem:[#allocation5 + $0xc40] sm:$0xff]
        %v1087 = vld [vmem:[#allocation5 + $0xc48] sm:$0xff]
        %v1088 = vld [vmem:[#allocation5 + $0xc50] sm:$0xff]
        %v1089 = vld [vmem:[#allocation5 + $0xc58] sm:$0xff]
        %v1090 = vld [vmem:[#allocation5 + $0xc60] sm:$0xff]
        %v1091 = vld [vmem:[#allocation5 + $0xc68] sm:$0xff]
        %v1092 = vld [vmem:[#allocation5 + $0xc70] sm:$0xff]
        %v1093 = vld [vmem:[#allocation5 + $0xc78] sm:$0xff]
        %v1094 = vld [vmem:[#allocation5 + $0xc80] sm:$0xff]
        %v1095 = vld [vmem:[#allocation5 + $0xc88] sm:$0xff]
        %v1096 = vld [vmem:[#allocation5 + $0xc90] sm:$0xff]
        %v1097 = vld [vmem:[#allocation5 + $0xc98] sm:$0xff]
        %v1098 = vld [vmem:[#allocation5 + $0xca0] sm:$0xff]
        %v1099 = vld [vmem:[#allocation5 + $0xca8] sm:$0xff]
        %v1100 = vld [vmem:[#allocation5 + $0xcb0] sm:$0xff]
        %v1101 = vld [vmem:[#allocation5 + $0xcb8] sm:$0xff]
        %v1102 = vld [vmem:[#allocation5 + $0xcc0] sm:$0xff]
        %v1103 = vld [vmem:[#allocation5 + $0xcc8] sm:$0xff]
        %v1104 = vld [vmem:[#allocation5 + $0xcd0] sm:$0xff]
        %v1105 = vld [vmem:[#allocation5 + $0xcd8] sm:$0xff]
        %v1106 = vld [vmem:[#allocation5 + $0xce0] sm:$0xff]
        %v1107 = vld [vmem:[#allocation5 + $0xce8] sm:$0xff]
        %v1108 = vld [vmem:[#allocation5 + $0xcf0] sm:$0xff]
        %v1109 = vld [vmem:[#allocation5 + $0xcf8] sm:$0xff]
        %v1110 = vld [vmem:[#allocation5 + $0xd00] sm:$0xff]
        %v1111 = vld [vmem:[#allocation5 + $0xd08] sm:$0xff]
        %v1112 = vld [vmem:[#allocation5 + $0xd10] sm:$0xff]
        %v1113 = vld [vmem:[#allocation5 + $0xd18] sm:$0xff]
        %v1114 = vld [vmem:[#allocation5 + $0xd20] sm:$0xff]
        %v1115 = vld [vmem:[#allocation5 + $0xd28] sm:$0xff]
        %v1116 = vld [vmem:[#allocation5 + $0xd30] sm:$0xff]
        %v1117 = vld [vmem:[#allocation5 + $0xd38] sm:$0xff]
        %v1118 = vld [vmem:[#allocation5 + $0xd40] sm:$0xff]
        %v1119 = vld [vmem:[#allocation5 + $0xd48] sm:$0xff]
        %v1120 = vld [vmem:[#allocation5 + $0xd50] sm:$0xff]
        %v1121 = vld [vmem:[#allocation5 + $0xd58] sm:$0xff]
        %v1122 = vld [vmem:[#allocation5 + $0xd60] sm:$0xff]
        %v1123 = vld [vmem:[#allocation5 + $0xd68] sm:$0xff]
        %v1124 = vld [vmem:[#allocation5 + $0xd70] sm:$0xff]
        %v1125 = vld [vmem:[#allocation5 + $0xd78] sm:$0xff]
        %v1126 = vld [vmem:[#allocation5 + $0xd80] sm:$0xff]
        %v1127 = vld [vmem:[#allocation5 + $0xd88] sm:$0xff]
        %v1128 = vld [vmem:[#allocation5 + $0xd90] sm:$0xff]
        %v1129 = vld [vmem:[#allocation5 + $0xd98] sm:$0xff]
        %v1130 = vld [vmem:[#allocation5 + $0xda0] sm:$0xff]
        %v1131 = vld [vmem:[#allocation5 + $0xda8] sm:$0xff]
        %v1132 = vld [vmem:[#allocation5 + $0xdb0] sm:$0xff]
        %v1133 = vld [vmem:[#allocation5 + $0xdb8] sm:$0xff]
        %v1134 = vld [vmem:[#allocation5 + $0xdc0] sm:$0xff]
        %v1135 = vld [vmem:[#allocation5 + $0xdc8] sm:$0xff]
        %v1136 = vld [vmem:[#allocation5 + $0xdd0] sm:$0xff]
        %v1137 = vld [vmem:[#allocation5 + $0xdd8] sm:$0xff]
        %v1138 = vld [vmem:[#allocation5 + $0xde0] sm:$0xff]
        %v1139 = vld [vmem:[#allocation5 + $0xde8] sm:$0xff]
        %v1140 = vld [vmem:[#allocation5 + $0xdf0] sm:$0xff]
        %v1141 = vld [vmem:[#allocation5 + $0xdf8] sm:$0xff]
        %v1142 = vld [vmem:[#allocation5 + $0xe00] sm:$0xff]
        %v1143 = vld [vmem:[#allocation5 + $0xe08] sm:$0xff]
        %v1144 = vld [vmem:[#allocation5 + $0xe10] sm:$0xff]
        %v1145 = vld [vmem:[#allocation5 + $0xe18] sm:$0xff]
        %v1146 = vld [vmem:[#allocation5 + $0xe20] sm:$0xff]
        %v1147 = vld [vmem:[#allocation5 + $0xe28] sm:$0xff]
        %v1148 = vld [vmem:[#allocation5 + $0xe30] sm:$0xff]
        %v1149 = vld [vmem:[#allocation5 + $0xe38] sm:$0xff]
        %v1150 = vld [vmem:[#allocation5 + $0xe40] sm:$0xff]
        %v1151 = vld [vmem:[#allocation5 + $0xe48] sm:$0xff]
        %v1152 = vld [vmem:[#allocation5 + $0xe50] sm:$0xff]
        %v1153 = vld [vmem:[#allocation5 + $0xe58] sm:$0xff]
        %v1154 = vld [vmem:[#allocation5 + $0xe60] sm:$0xff]
        %v1155 = vld [vmem:[#allocation5 + $0xe68] sm:$0xff]
        %v1156 = vld [vmem:[#allocation5 + $0xe70] sm:$0xff]
        %v1157 = vld [vmem:[#allocation5 + $0xe78] sm:$0xff]
        %v1158 = vld [vmem:[#allocation5 + $0xe80] sm:$0xff]
        %v1159 = vld [vmem:[#allocation5 + $0xe88] sm:$0xff]
        %v1160 = vld [vmem:[#allocation5 + $0xe90] sm:$0xff]
        %v1161 = vld [vmem:[#allocation5 + $0xe98] sm:$0xff]
        %v1162 = vld [vmem:[#allocation5 + $0xea0] sm:$0xff]
        %v1163 = vld [vmem:[#allocation5 + $0xea8] sm:$0xff]
        %v1164 = vld [vmem:[#allocation5 + $0xeb0] sm:$0xff]
        %v1165 = vld [vmem:[#allocation5 + $0xeb8] sm:$0xff]
        %v1166 = vld [vmem:[#allocation5 + $0xec0] sm:$0xff]
        %v1167 = vld [vmem:[#allocation5 + $0xec8] sm:$0xff]
        %v1168 = vld [vmem:[#allocation5 + $0xed0] sm:$0xff]
        %v1169 = vld [vmem:[#allocation5 + $0xed8] sm:$0xff]
        %v1170 = vld [vmem:[#allocation5 + $0xee0] sm:$0xff]
        %v1171 = vld [vmem:[#allocation5 + $0xee8] sm:$0xff]
        %v1172 = vld [vmem:[#allocation5 + $0xef0] sm:$0xff]
        %v1173 = vld [vmem:[#allocation5 + $0xef8] sm:$0xff]
        %v1174 = vld [vmem:[#allocation5 + $0xf00] sm:$0xff]
        %v1175 = vld [vmem:[#allocation5 + $0xf08] sm:$0xff]
        %v1176 = vld [vmem:[#allocation5 + $0xf10] sm:$0xff]
        %v1177 = vld [vmem:[#allocation5 + $0xf18] sm:$0xff]
        %v1178 = vld [vmem:[#allocation5 + $0xf20] sm:$0xff]
        %v1179 = vld [vmem:[#allocation5 + $0xf28] sm:$0xff]
        %v1180 = vld [vmem:[#allocation5 + $0xf30] sm:$0xff]
        %v1181 = vld [vmem:[#allocation5 + $0xf38] sm:$0xff]
        %v1182 = vld [vmem:[#allocation5 + $0xf40] sm:$0xff]
        %v1183 = vld [vmem:[#allocation5 + $0xf48] sm:$0xff]
        %v1184 = vld [vmem:[#allocation5 + $0xf50] sm:$0xff]
        %v1185 = vld [vmem:[#allocation5 + $0xf58] sm:$0xff]
        %v1186 = vld [vmem:[#allocation5 + $0xf60] sm:$0xff]
        %v1187 = vld [vmem:[#allocation5 + $0xf68] sm:$0xff]
        %v1188 = vld [vmem:[#allocation5 + $0xf70] sm:$0xff]
        %v1189 = vld [vmem:[#allocation5 + $0xf78] sm:$0xff]
        %v1190 = vld [vmem:[#allocation5 + $0xf80] sm:$0xff]
        %v1191 = vld [vmem:[#allocation5 + $0xf88] sm:$0xff]
        %v1192 = vld [vmem:[#allocation5 + $0xf90] sm:$0xff]
        %v1193 = vld [vmem:[#allocation5 + $0xf98] sm:$0xff]
        %v1194 = vld [vmem:[#allocation5 + $0xfa0] sm:$0xff]
        %v1195 = vld [vmem:[#allocation5 + $0xfa8] sm:$0xff]
        %v1196 = vld [vmem:[#allocation5 + $0xfb0] sm:$0xff]
        %v1197 = vld [vmem:[#allocation5 + $0xfb8] sm:$0xff]
        %v1198 = vld [vmem:[#allocation5 + $0xfc0] sm:$0xff]
        %v1199 = vld [vmem:[#allocation5 + $0xfc8] sm:$0xff]
        %v1200 = vld [vmem:[#allocation5 + $0xfd0] sm:$0xff]
        %v1201 = vld [vmem:[#allocation5 + $0xfd8] sm:$0xff]
        %v1202 = vld [vmem:[#allocation5 + $0xfe0] sm:$0xff]
        %v1203 = vld [vmem:[#allocation5 + $0xfe8] sm:$0xff]
        %v1204 = vld [vmem:[#allocation5 + $0xff0] sm:$0xff]
        %v1205 = vld [vmem:[#allocation5 + $0xff8] sm:$0xff]
        %v1206 = vld [vmem:[#allocation7] sm:$0xff]
        %v1208 = vperm.slane %v1206, 0
        %v1209 = vperm.slane %v1206, 1
        %v1210 = vperm.slane %v1206, 2
        %v1211 = vperm.slane %v1206, 3
        %v1212 = vperm.slane %v1206, 4
        %v1213 = vperm.slane %v1206, 5
        %v1214 = vperm.slane %v1206, 6
        %v1215 = vperm.slane %v1206, 7
        %v1736 = vunpack.c.l.b16 %v694
        %v1737 = vunpack.c.h.b16 %v694
        %v1738 = vunpack.c.l.b16 %v695
        %v1739 = vunpack.c.h.b16 %v695
        %v1740 = vunpack.c.l.b16 %v696
        %v1741 = vunpack.c.h.b16 %v696
        %v1742 = vunpack.c.l.b16 %v697
        %v1743 = vunpack.c.h.b16 %v697
        %v1744 = vunpack.c.l.b16 %v698
        %v1745 = vunpack.c.h.b16 %v698
        %v1746 = vunpack.c.l.b16 %v699
        %v1747 = vunpack.c.h.b16 %v699
        %v1748 = vunpack.c.l.b16 %v700
        %v1749 = vunpack.c.h.b16 %v700
        %v1750 = vunpack.c.l.b16 %v701
        %v1751 = vunpack.c.h.b16 %v701
        %v1752 = vunpack.c.l.b16 %v702
        %v1753 = vunpack.c.h.b16 %v702
        %v1754 = vunpack.c.l.b16 %v703
        %v1755 = vunpack.c.h.b16 %v703
        %v1756 = vunpack.c.l.b16 %v704
        %v1757 = vunpack.c.h.b16 %v704
        %v1758 = vunpack.c.l.b16 %v705
        %v1759 = vunpack.c.h.b16 %v705
        %v1760 = vunpack.c.l.b16 %v706
        %v1761 = vunpack.c.h.b16 %v706
        %v1762 = vunpack.c.l.b16 %v707
        %v1763 = vunpack.c.h.b16 %v707
        %v1764 = vunpack.c.l.b16 %v708
        %v1765 = vunpack.c.h.b16 %v708
        %v1766 = vunpack.c.l.b16 %v709
        %v1767 = vunpack.c.h.b16 %v709
        %v1768 = vunpack.c.l.b16 %v710
        %v1769 = vunpack.c.h.b16 %v710
        %v1770 = vunpack.c.l.b16 %v711
        %v1771 = vunpack.c.h.b16 %v711
        %v1772 = vunpack.c.l.b16 %v712
        %v1773 = vunpack.c.h.b16 %v712
        %v1774 = vunpack.c.l.b16 %v713
        %v1775 = vunpack.c.h.b16 %v713
        %v1776 = vunpack.c.l.b16 %v714
        %v1777 = vunpack.c.h.b16 %v714
        %v1778 = vunpack.c.l.b16 %v715
        %v1779 = vunpack.c.h.b16 %v715
        %v1780 = vunpack.c.l.b16 %v716
        %v1781 = vunpack.c.h.b16 %v716
        %v1782 = vunpack.c.l.b16 %v717
        %v1783 = vunpack.c.h.b16 %v717
        %v1784 = vunpack.c.l.b16 %v718
        %v1785 = vunpack.c.h.b16 %v718
        %v1786 = vunpack.c.l.b16 %v719
        %v1787 = vunpack.c.h.b16 %v719
        %v1788 = vunpack.c.l.b16 %v720
        %v1789 = vunpack.c.h.b16 %v720
        %v1790 = vunpack.c.l.b16 %v721
        %v1791 = vunpack.c.h.b16 %v721
        %v1792 = vunpack.c.l.b16 %v722
        %v1793 = vunpack.c.h.b16 %v722
        %v1794 = vunpack.c.l.b16 %v723
        %v1795 = vunpack.c.h.b16 %v723
        %v1796 = vunpack.c.l.b16 %v724
        %v1797 = vunpack.c.h.b16 %v724
        %v1798 = vunpack.c.l.b16 %v725
        %v1799 = vunpack.c.h.b16 %v725
        %v1800 = vunpack.c.l.b16 %v726
        %v1801 = vunpack.c.h.b16 %v726
        %v1802 = vunpack.c.l.b16 %v727
        %v1803 = vunpack.c.h.b16 %v727
        %v1804 = vunpack.c.l.b16 %v728
        %v1805 = vunpack.c.h.b16 %v728
        %v1806 = vunpack.c.l.b16 %v729
        %v1807 = vunpack.c.h.b16 %v729
        %v1808 = vunpack.c.l.b16 %v730
        %v1809 = vunpack.c.h.b16 %v730
        %v1810 = vunpack.c.l.b16 %v731
        %v1811 = vunpack.c.h.b16 %v731
        %v1812 = vunpack.c.l.b16 %v732
        %v1813 = vunpack.c.h.b16 %v732
        %v1814 = vunpack.c.l.b16 %v733
        %v1815 = vunpack.c.h.b16 %v733
        %v1816 = vunpack.c.l.b16 %v734
        %v1817 = vunpack.c.h.b16 %v734
        %v1818 = vunpack.c.l.b16 %v735
        %v1819 = vunpack.c.h.b16 %v735
        %v1820 = vunpack.c.l.b16 %v736
        %v1821 = vunpack.c.h.b16 %v736
        %v1822 = vunpack.c.l.b16 %v737
        %v1823 = vunpack.c.h.b16 %v737
        %v1824 = vunpack.c.l.b16 %v738
        %v1825 = vunpack.c.h.b16 %v738
        %v1826 = vunpack.c.l.b16 %v739
        %v1827 = vunpack.c.h.b16 %v739
        %v1828 = vunpack.c.l.b16 %v740
        %v1829 = vunpack.c.h.b16 %v740
        %v1830 = vunpack.c.l.b16 %v741
        %v1831 = vunpack.c.h.b16 %v741
        %v1832 = vunpack.c.l.b16 %v742
        %v1833 = vunpack.c.h.b16 %v742
        %v1834 = vunpack.c.l.b16 %v743
        %v1835 = vunpack.c.h.b16 %v743
        %v1836 = vunpack.c.l.b16 %v744
        %v1837 = vunpack.c.h.b16 %v744
        %v1838 = vunpack.c.l.b16 %v745
        %v1839 = vunpack.c.h.b16 %v745
        %v1840 = vunpack.c.l.b16 %v746
        %v1841 = vunpack.c.h.b16 %v746
        %v1842 = vunpack.c.l.b16 %v747
        %v1843 = vunpack.c.h.b16 %v747
        %v1844 = vunpack.c.l.b16 %v748
        %v1845 = vunpack.c.h.b16 %v748
        %v1846 = vunpack.c.l.b16 %v749
        %v1847 = vunpack.c.h.b16 %v749
        %v1848 = vunpack.c.l.b16 %v750
        %v1849 = vunpack.c.h.b16 %v750
        %v1850 = vunpack.c.l.b16 %v751
        %v1851 = vunpack.c.h.b16 %v751
        %v1852 = vunpack.c.l.b16 %v752
        %v1853 = vunpack.c.h.b16 %v752
        %v1854 = vunpack.c.l.b16 %v753
        %v1855 = vunpack.c.h.b16 %v753
        %v1856 = vunpack.c.l.b16 %v754
        %v1857 = vunpack.c.h.b16 %v754
        %v1858 = vunpack.c.l.b16 %v755
        %v1859 = vunpack.c.h.b16 %v755
        %v1860 = vunpack.c.l.b16 %v756
        %v1861 = vunpack.c.h.b16 %v756
        %v1862 = vunpack.c.l.b16 %v757
        %v1863 = vunpack.c.h.b16 %v757
        %v1864 = vunpack.c.l.b16 %v758
        %v1865 = vunpack.c.h.b16 %v758
        %v1866 = vunpack.c.l.b16 %v759
        %v1867 = vunpack.c.h.b16 %v759
        %v1868 = vunpack.c.l.b16 %v760
        %v1869 = vunpack.c.h.b16 %v760
        %v1870 = vunpack.c.l.b16 %v761
        %v1871 = vunpack.c.h.b16 %v761
        %v1872 = vunpack.c.l.b16 %v762
        %v1873 = vunpack.c.h.b16 %v762
        %v1874 = vunpack.c.l.b16 %v763
        %v1875 = vunpack.c.h.b16 %v763
        %v1876 = vunpack.c.l.b16 %v764
        %v1877 = vunpack.c.h.b16 %v764
        %v1878 = vunpack.c.l.b16 %v765
        %v1879 = vunpack.c.h.b16 %v765
        %v1880 = vunpack.c.l.b16 %v766
        %v1881 = vunpack.c.h.b16 %v766
        %v1882 = vunpack.c.l.b16 %v767
        %v1883 = vunpack.c.h.b16 %v767
        %v1884 = vunpack.c.l.b16 %v768
        %v1885 = vunpack.c.h.b16 %v768
        %v1886 = vunpack.c.l.b16 %v769
        %v1887 = vunpack.c.h.b16 %v769
        %v1888 = vunpack.c.l.b16 %v770
        %v1889 = vunpack.c.h.b16 %v770
        %v1890 = vunpack.c.l.b16 %v771
        %v1891 = vunpack.c.h.b16 %v771
        %v1892 = vunpack.c.l.b16 %v772
        %v1893 = vunpack.c.h.b16 %v772
        %v1894 = vunpack.c.l.b16 %v773
        %v1895 = vunpack.c.h.b16 %v773
        %v1896 = vunpack.c.l.b16 %v774
        %v1897 = vunpack.c.h.b16 %v774
        %v1898 = vunpack.c.l.b16 %v775
        %v1899 = vunpack.c.h.b16 %v775
        %v1900 = vunpack.c.l.b16 %v776
        %v1901 = vunpack.c.h.b16 %v776
        %v1902 = vunpack.c.l.b16 %v777
        %v1903 = vunpack.c.h.b16 %v777
        %v1904 = vunpack.c.l.b16 %v778
        %v1905 = vunpack.c.h.b16 %v778
        %v1906 = vunpack.c.l.b16 %v779
        %v1907 = vunpack.c.h.b16 %v779
        %v1908 = vunpack.c.l.b16 %v780
        %v1909 = vunpack.c.h.b16 %v780
        %v1910 = vunpack.c.l.b16 %v781
        %v1911 = vunpack.c.h.b16 %v781
        %v1912 = vunpack.c.l.b16 %v782
        %v1913 = vunpack.c.h.b16 %v782
        %v1914 = vunpack.c.l.b16 %v783
        %v1915 = vunpack.c.h.b16 %v783
        %v1916 = vunpack.c.l.b16 %v784
        %v1917 = vunpack.c.h.b16 %v784
        %v1918 = vunpack.c.l.b16 %v785
        %v1919 = vunpack.c.h.b16 %v785
        %v1920 = vunpack.c.l.b16 %v786
        %v1921 = vunpack.c.h.b16 %v786
        %v1922 = vunpack.c.l.b16 %v787
        %v1923 = vunpack.c.h.b16 %v787
        %v1924 = vunpack.c.l.b16 %v788
        %v1925 = vunpack.c.h.b16 %v788
        %v1926 = vunpack.c.l.b16 %v789
        %v1927 = vunpack.c.h.b16 %v789
        %v1928 = vunpack.c.l.b16 %v790
        %v1929 = vunpack.c.h.b16 %v790
        %v1930 = vunpack.c.l.b16 %v791
        %v1931 = vunpack.c.h.b16 %v791
        %v1932 = vunpack.c.l.b16 %v792
        %v1933 = vunpack.c.h.b16 %v792
        %v1934 = vunpack.c.l.b16 %v793
        %v1935 = vunpack.c.h.b16 %v793
        %v1936 = vunpack.c.l.b16 %v794
        %v1937 = vunpack.c.h.b16 %v794
        %v1938 = vunpack.c.l.b16 %v795
        %v1939 = vunpack.c.h.b16 %v795
        %v1940 = vunpack.c.l.b16 %v796
        %v1941 = vunpack.c.h.b16 %v796
        %v1942 = vunpack.c.l.b16 %v797
        %v1943 = vunpack.c.h.b16 %v797
        %v1944 = vunpack.c.l.b16 %v798
        %v1945 = vunpack.c.h.b16 %v798
        %v1946 = vunpack.c.l.b16 %v799
        %v1947 = vunpack.c.h.b16 %v799
        %v1948 = vunpack.c.l.b16 %v800
        %v1949 = vunpack.c.h.b16 %v800
        %v1950 = vunpack.c.l.b16 %v801
        %v1951 = vunpack.c.h.b16 %v801
        %v1952 = vunpack.c.l.b16 %v802
        %v1953 = vunpack.c.h.b16 %v802
        %v1954 = vunpack.c.l.b16 %v803
        %v1955 = vunpack.c.h.b16 %v803
        %v1956 = vunpack.c.l.b16 %v804
        %v1957 = vunpack.c.h.b16 %v804
        %v1958 = vunpack.c.l.b16 %v805
        %v1959 = vunpack.c.h.b16 %v805
        %v1960 = vunpack.c.l.b16 %v806
        %v1961 = vunpack.c.h.b16 %v806
        %v1962 = vunpack.c.l.b16 %v807
        %v1963 = vunpack.c.h.b16 %v807
        %v1964 = vunpack.c.l.b16 %v808
        %v1965 = vunpack.c.h.b16 %v808
        %v1966 = vunpack.c.l.b16 %v809
        %v1967 = vunpack.c.h.b16 %v809
        %v1968 = vunpack.c.l.b16 %v810
        %v1969 = vunpack.c.h.b16 %v810
        %v1970 = vunpack.c.l.b16 %v811
        %v1971 = vunpack.c.h.b16 %v811
        %v1972 = vunpack.c.l.b16 %v812
        %v1973 = vunpack.c.h.b16 %v812
        %v1974 = vunpack.c.l.b16 %v813
        %v1975 = vunpack.c.h.b16 %v813
        %v1976 = vunpack.c.l.b16 %v814
        %v1977 = vunpack.c.h.b16 %v814
        %v1978 = vunpack.c.l.b16 %v815
        %v1979 = vunpack.c.h.b16 %v815
        %v1980 = vunpack.c.l.b16 %v816
        %v1981 = vunpack.c.h.b16 %v816
        %v1982 = vunpack.c.l.b16 %v817
        %v1983 = vunpack.c.h.b16 %v817
        %v1984 = vunpack.c.l.b16 %v818
        %v1985 = vunpack.c.h.b16 %v818
        %v1986 = vunpack.c.l.b16 %v819
        %v1987 = vunpack.c.h.b16 %v819
        %v1988 = vunpack.c.l.b16 %v820
        %v1989 = vunpack.c.h.b16 %v820
        %v1990 = vunpack.c.l.b16 %v821
        %v1991 = vunpack.c.h.b16 %v821
        %v1992 = vunpack.c.l.b16 %v822
        %v1993 = vunpack.c.h.b16 %v822
        %v1994 = vunpack.c.l.b16 %v823
        %v1995 = vunpack.c.h.b16 %v823
        %v1996 = vunpack.c.l.b16 %v824
        %v1997 = vunpack.c.h.b16 %v824
        %v1998 = vunpack.c.l.b16 %v825
        %v1999 = vunpack.c.h.b16 %v825
        %v2000 = vunpack.c.l.b16 %v826
        %v2001 = vunpack.c.h.b16 %v826
        %v2002 = vunpack.c.l.b16 %v827
        %v2003 = vunpack.c.h.b16 %v827
        %v2004 = vunpack.c.l.b16 %v828
        %v2005 = vunpack.c.h.b16 %v828
        %v2006 = vunpack.c.l.b16 %v829
        %v2007 = vunpack.c.h.b16 %v829
        %v2008 = vunpack.c.l.b16 %v830
        %v2009 = vunpack.c.h.b16 %v830
        %v2010 = vunpack.c.l.b16 %v831
        %v2011 = vunpack.c.h.b16 %v831
        %v2012 = vunpack.c.l.b16 %v832
        %v2013 = vunpack.c.h.b16 %v832
        %v2014 = vunpack.c.l.b16 %v833
        %v2015 = vunpack.c.h.b16 %v833
        %v2016 = vunpack.c.l.b16 %v834
        %v2017 = vunpack.c.h.b16 %v834
        %v2018 = vunpack.c.l.b16 %v835
        %v2019 = vunpack.c.h.b16 %v835
        %v2020 = vunpack.c.l.b16 %v836
        %v2021 = vunpack.c.h.b16 %v836
        %v2022 = vunpack.c.l.b16 %v837
        %v2023 = vunpack.c.h.b16 %v837
        %v2024 = vunpack.c.l.b16 %v838
        %v2025 = vunpack.c.h.b16 %v838
        %v2026 = vunpack.c.l.b16 %v839
        %v2027 = vunpack.c.h.b16 %v839
        %v2028 = vunpack.c.l.b16 %v840
        %v2029 = vunpack.c.h.b16 %v840
        %v2030 = vunpack.c.l.b16 %v841
        %v2031 = vunpack.c.h.b16 %v841
        %v2032 = vunpack.c.l.b16 %v842
        %v2033 = vunpack.c.h.b16 %v842
        %v2034 = vunpack.c.l.b16 %v843
        %v2035 = vunpack.c.h.b16 %v843
        %v2036 = vunpack.c.l.b16 %v844
        %v2037 = vunpack.c.h.b16 %v844
        %v2038 = vunpack.c.l.b16 %v845
        %v2039 = vunpack.c.h.b16 %v845
        %v2040 = vunpack.c.l.b16 %v846
        %v2041 = vunpack.c.h.b16 %v846
        %v2042 = vunpack.c.l.b16 %v847
        %v2043 = vunpack.c.h.b16 %v847
        %v2044 = vunpack.c.l.b16 %v848
        %v2045 = vunpack.c.h.b16 %v848
        %v2046 = vunpack.c.l.b16 %v849
        %v2047 = vunpack.c.h.b16 %v849
        %v2048 = vunpack.c.l.b16 %v850
        %v2049 = vunpack.c.h.b16 %v850
        %v2050 = vunpack.c.l.b16 %v851
        %v2051 = vunpack.c.h.b16 %v851
        %v2052 = vunpack.c.l.b16 %v852
        %v2053 = vunpack.c.h.b16 %v852
        %v2054 = vunpack.c.l.b16 %v853
        %v2055 = vunpack.c.h.b16 %v853
        %v2056 = vunpack.c.l.b16 %v854
        %v2057 = vunpack.c.h.b16 %v854
        %v2058 = vunpack.c.l.b16 %v855
        %v2059 = vunpack.c.h.b16 %v855
        %v2060 = vunpack.c.l.b16 %v856
        %v2061 = vunpack.c.h.b16 %v856
        %v2062 = vunpack.c.l.b16 %v857
        %v2063 = vunpack.c.h.b16 %v857
        %v2064 = vunpack.c.l.b16 %v858
        %v2065 = vunpack.c.h.b16 %v858
        %v2066 = vunpack.c.l.b16 %v859
        %v2067 = vunpack.c.h.b16 %v859
        %v2068 = vunpack.c.l.b16 %v860
        %v2069 = vunpack.c.h.b16 %v860
        %v2070 = vunpack.c.l.b16 %v861
        %v2071 = vunpack.c.h.b16 %v861
        %v2072 = vunpack.c.l.b16 %v862
        %v2073 = vunpack.c.h.b16 %v862
        %v2074 = vunpack.c.l.b16 %v863
        %v2075 = vunpack.c.h.b16 %v863
        %v2076 = vunpack.c.l.b16 %v864
        %v2077 = vunpack.c.h.b16 %v864
        %v2078 = vunpack.c.l.b16 %v865
        %v2079 = vunpack.c.h.b16 %v865
        %v2080 = vunpack.c.l.b16 %v866
        %v2081 = vunpack.c.h.b16 %v866
        %v2082 = vunpack.c.l.b16 %v867
        %v2083 = vunpack.c.h.b16 %v867
        %v2084 = vunpack.c.l.b16 %v868
        %v2085 = vunpack.c.h.b16 %v868
        %v2086 = vunpack.c.l.b16 %v869
        %v2087 = vunpack.c.h.b16 %v869
        %v2088 = vunpack.c.l.b16 %v870
        %v2089 = vunpack.c.h.b16 %v870
        %v2090 = vunpack.c.l.b16 %v871
        %v2091 = vunpack.c.h.b16 %v871
        %v2092 = vunpack.c.l.b16 %v872
        %v2093 = vunpack.c.h.b16 %v872
        %v2094 = vunpack.c.l.b16 %v873
        %v2095 = vunpack.c.h.b16 %v873
        %v2096 = vunpack.c.l.b16 %v874
        %v2097 = vunpack.c.h.b16 %v874
        %v2098 = vunpack.c.l.b16 %v875
        %v2099 = vunpack.c.h.b16 %v875
        %v2100 = vunpack.c.l.b16 %v876
        %v2101 = vunpack.c.h.b16 %v876
        %v2102 = vunpack.c.l.b16 %v877
        %v2103 = vunpack.c.h.b16 %v877
        %v2104 = vunpack.c.l.b16 %v878
        %v2105 = vunpack.c.h.b16 %v878
        %v2106 = vunpack.c.l.b16 %v879
        %v2107 = vunpack.c.h.b16 %v879
        %v2108 = vunpack.c.l.b16 %v880
        %v2109 = vunpack.c.h.b16 %v880
        %v2110 = vunpack.c.l.b16 %v881
        %v2111 = vunpack.c.h.b16 %v881
        %v2112 = vunpack.c.l.b16 %v882
        %v2113 = vunpack.c.h.b16 %v882
        %v2114 = vunpack.c.l.b16 %v883
        %v2115 = vunpack.c.h.b16 %v883
        %v2116 = vunpack.c.l.b16 %v884
        %v2117 = vunpack.c.h.b16 %v884
        %v2118 = vunpack.c.l.b16 %v885
        %v2119 = vunpack.c.h.b16 %v885
        %v2120 = vunpack.c.l.b16 %v886
        %v2121 = vunpack.c.h.b16 %v886
        %v2122 = vunpack.c.l.b16 %v887
        %v2123 = vunpack.c.h.b16 %v887
        %v2124 = vunpack.c.l.b16 %v888
        %v2125 = vunpack.c.h.b16 %v888
        %v2126 = vunpack.c.l.b16 %v889
        %v2127 = vunpack.c.h.b16 %v889
        %v2128 = vunpack.c.l.b16 %v890
        %v2129 = vunpack.c.h.b16 %v890
        %v2130 = vunpack.c.l.b16 %v891
        %v2131 = vunpack.c.h.b16 %v891
        %v2132 = vunpack.c.l.b16 %v892
        %v2133 = vunpack.c.h.b16 %v892
        %v2134 = vunpack.c.l.b16 %v893
        %v2135 = vunpack.c.h.b16 %v893
        %v2136 = vunpack.c.l.b16 %v894
        %v2137 = vunpack.c.h.b16 %v894
        %v2138 = vunpack.c.l.b16 %v895
        %v2139 = vunpack.c.h.b16 %v895
        %v2140 = vunpack.c.l.b16 %v896
        %v2141 = vunpack.c.h.b16 %v896
        %v2142 = vunpack.c.l.b16 %v897
        %v2143 = vunpack.c.h.b16 %v897
        %v2144 = vunpack.c.l.b16 %v898
        %v2145 = vunpack.c.h.b16 %v898
        %v2146 = vunpack.c.l.b16 %v899
        %v2147 = vunpack.c.h.b16 %v899
        %v2148 = vunpack.c.l.b16 %v900
        %v2149 = vunpack.c.h.b16 %v900
        %v2150 = vunpack.c.l.b16 %v901
        %v2151 = vunpack.c.h.b16 %v901
        %v2152 = vunpack.c.l.b16 %v902
        %v2153 = vunpack.c.h.b16 %v902
        %v2154 = vunpack.c.l.b16 %v903
        %v2155 = vunpack.c.h.b16 %v903
        %v2156 = vunpack.c.l.b16 %v904
        %v2157 = vunpack.c.h.b16 %v904
        %v2158 = vunpack.c.l.b16 %v905
        %v2159 = vunpack.c.h.b16 %v905
        %v2160 = vunpack.c.l.b16 %v906
        %v2161 = vunpack.c.h.b16 %v906
        %v2162 = vunpack.c.l.b16 %v907
        %v2163 = vunpack.c.h.b16 %v907
        %v2164 = vunpack.c.l.b16 %v908
        %v2165 = vunpack.c.h.b16 %v908
        %v2166 = vunpack.c.l.b16 %v909
        %v2167 = vunpack.c.h.b16 %v909
        %v2168 = vunpack.c.l.b16 %v910
        %v2169 = vunpack.c.h.b16 %v910
        %v2170 = vunpack.c.l.b16 %v911
        %v2171 = vunpack.c.h.b16 %v911
        %v2172 = vunpack.c.l.b16 %v912
        %v2173 = vunpack.c.h.b16 %v912
        %v2174 = vunpack.c.l.b16 %v913
        %v2175 = vunpack.c.h.b16 %v913
        %v2176 = vunpack.c.l.b16 %v914
        %v2177 = vunpack.c.h.b16 %v914
        %v2178 = vunpack.c.l.b16 %v915
        %v2179 = vunpack.c.h.b16 %v915
        %v2180 = vunpack.c.l.b16 %v916
        %v2181 = vunpack.c.h.b16 %v916
        %v2182 = vunpack.c.l.b16 %v917
        %v2183 = vunpack.c.h.b16 %v917
        %v2184 = vunpack.c.l.b16 %v918
        %v2185 = vunpack.c.h.b16 %v918
        %v2186 = vunpack.c.l.b16 %v919
        %v2187 = vunpack.c.h.b16 %v919
        %v2188 = vunpack.c.l.b16 %v920
        %v2189 = vunpack.c.h.b16 %v920
        %v2190 = vunpack.c.l.b16 %v921
        %v2191 = vunpack.c.h.b16 %v921
        %v2192 = vunpack.c.l.b16 %v922
        %v2193 = vunpack.c.h.b16 %v922
        %v2194 = vunpack.c.l.b16 %v923
        %v2195 = vunpack.c.h.b16 %v923
        %v2196 = vunpack.c.l.b16 %v924
        %v2197 = vunpack.c.h.b16 %v924
        %v2198 = vunpack.c.l.b16 %v925
        %v2199 = vunpack.c.h.b16 %v925
        %v2200 = vunpack.c.l.b16 %v926
        %v2201 = vunpack.c.h.b16 %v926
        %v2202 = vunpack.c.l.b16 %v927
        %v2203 = vunpack.c.h.b16 %v927
        %v2204 = vunpack.c.l.b16 %v928
        %v2205 = vunpack.c.h.b16 %v928
        %v2206 = vunpack.c.l.b16 %v929
        %v2207 = vunpack.c.h.b16 %v929
        %v2208 = vunpack.c.l.b16 %v930
        %v2209 = vunpack.c.h.b16 %v930
        %v2210 = vunpack.c.l.b16 %v931
        %v2211 = vunpack.c.h.b16 %v931
        %v2212 = vunpack.c.l.b16 %v932
        %v2213 = vunpack.c.h.b16 %v932
        %v2214 = vunpack.c.l.b16 %v933
        %v2215 = vunpack.c.h.b16 %v933
        %v2216 = vunpack.c.l.b16 %v934
        %v2217 = vunpack.c.h.b16 %v934
        %v2218 = vunpack.c.l.b16 %v935
        %v2219 = vunpack.c.h.b16 %v935
        %v2220 = vunpack.c.l.b16 %v936
        %v2221 = vunpack.c.h.b16 %v936
        %v2222 = vunpack.c.l.b16 %v937
        %v2223 = vunpack.c.h.b16 %v937
        %v2224 = vunpack.c.l.b16 %v938
        %v2225 = vunpack.c.h.b16 %v938
        %v2226 = vunpack.c.l.b16 %v939
        %v2227 = vunpack.c.h.b16 %v939
        %v2228 = vunpack.c.l.b16 %v940
        %v2229 = vunpack.c.h.b16 %v940
        %v2230 = vunpack.c.l.b16 %v941
        %v2231 = vunpack.c.h.b16 %v941
        %v2232 = vunpack.c.l.b16 %v942
        %v2233 = vunpack.c.h.b16 %v942
        %v2234 = vunpack.c.l.b16 %v943
        %v2235 = vunpack.c.h.b16 %v943
        %v2236 = vunpack.c.l.b16 %v944
        %v2237 = vunpack.c.h.b16 %v944
        %v2238 = vunpack.c.l.b16 %v945
        %v2239 = vunpack.c.h.b16 %v945
        %v2240 = vunpack.c.l.b16 %v946
        %v2241 = vunpack.c.h.b16 %v946
        %v2242 = vunpack.c.l.b16 %v947
        %v2243 = vunpack.c.h.b16 %v947
        %v2244 = vunpack.c.l.b16 %v948
        %v2245 = vunpack.c.h.b16 %v948
        %v2246 = vunpack.c.l.b16 %v949
        %v2247 = vunpack.c.h.b16 %v949
        %v2248 = vunpack.c.l.b16 %v950
        %v2249 = vunpack.c.h.b16 %v950
        %v2250 = vunpack.c.l.b16 %v951
        %v2251 = vunpack.c.h.b16 %v951
        %v2252 = vunpack.c.l.b16 %v952
        %v2253 = vunpack.c.h.b16 %v952
        %v2254 = vunpack.c.l.b16 %v953
        %v2255 = vunpack.c.h.b16 %v953
        %v2256 = vunpack.c.l.b16 %v954
        %v2257 = vunpack.c.h.b16 %v954
        %v2258 = vunpack.c.l.b16 %v955
        %v2259 = vunpack.c.h.b16 %v955
        %v2260 = vunpack.c.l.b16 %v956
        %v2261 = vunpack.c.h.b16 %v956
        %v2262 = vunpack.c.l.b16 %v957
        %v2263 = vunpack.c.h.b16 %v957
        %v2264 = vunpack.c.l.b16 %v958
        %v2265 = vunpack.c.h.b16 %v958
        %v2266 = vunpack.c.l.b16 %v959
        %v2267 = vunpack.c.h.b16 %v959
        %v2268 = vunpack.c.l.b16 %v960
        %v2269 = vunpack.c.h.b16 %v960
        %v2270 = vunpack.c.l.b16 %v961
        %v2271 = vunpack.c.h.b16 %v961
        %v2272 = vunpack.c.l.b16 %v962
        %v2273 = vunpack.c.h.b16 %v962
        %v2274 = vunpack.c.l.b16 %v963
        %v2275 = vunpack.c.h.b16 %v963
        %v2276 = vunpack.c.l.b16 %v964
        %v2277 = vunpack.c.h.b16 %v964
        %v2278 = vunpack.c.l.b16 %v965
        %v2279 = vunpack.c.h.b16 %v965
        %v2280 = vunpack.c.l.b16 %v966
        %v2281 = vunpack.c.h.b16 %v966
        %v2282 = vunpack.c.l.b16 %v967
        %v2283 = vunpack.c.h.b16 %v967
        %v2284 = vunpack.c.l.b16 %v968
        %v2285 = vunpack.c.h.b16 %v968
        %v2286 = vunpack.c.l.b16 %v969
        %v2287 = vunpack.c.h.b16 %v969
        %v2288 = vunpack.c.l.b16 %v970
        %v2289 = vunpack.c.h.b16 %v970
        %v2290 = vunpack.c.l.b16 %v971
        %v2291 = vunpack.c.h.b16 %v971
        %v2292 = vunpack.c.l.b16 %v972
        %v2293 = vunpack.c.h.b16 %v972
        %v2294 = vunpack.c.l.b16 %v973
        %v2295 = vunpack.c.h.b16 %v973
        %v2296 = vunpack.c.l.b16 %v974
        %v2297 = vunpack.c.h.b16 %v974
        %v2298 = vunpack.c.l.b16 %v975
        %v2299 = vunpack.c.h.b16 %v975
        %v2300 = vunpack.c.l.b16 %v976
        %v2301 = vunpack.c.h.b16 %v976
        %v2302 = vunpack.c.l.b16 %v977
        %v2303 = vunpack.c.h.b16 %v977
        %v2304 = vunpack.c.l.b16 %v978
        %v2305 = vunpack.c.h.b16 %v978
        %v2306 = vunpack.c.l.b16 %v979
        %v2307 = vunpack.c.h.b16 %v979
        %v2308 = vunpack.c.l.b16 %v980
        %v2309 = vunpack.c.h.b16 %v980
        %v2310 = vunpack.c.l.b16 %v981
        %v2311 = vunpack.c.h.b16 %v981
        %v2312 = vunpack.c.l.b16 %v982
        %v2313 = vunpack.c.h.b16 %v982
        %v2314 = vunpack.c.l.b16 %v983
        %v2315 = vunpack.c.h.b16 %v983
        %v2316 = vunpack.c.l.b16 %v984
        %v2317 = vunpack.c.h.b16 %v984
        %v2318 = vunpack.c.l.b16 %v985
        %v2319 = vunpack.c.h.b16 %v985
        %v2320 = vunpack.c.l.b16 %v986
        %v2321 = vunpack.c.h.b16 %v986
        %v2322 = vunpack.c.l.b16 %v987
        %v2323 = vunpack.c.h.b16 %v987
        %v2324 = vunpack.c.l.b16 %v988
        %v2325 = vunpack.c.h.b16 %v988
        %v2326 = vunpack.c.l.b16 %v989
        %v2327 = vunpack.c.h.b16 %v989
        %v2328 = vunpack.c.l.b16 %v990
        %v2329 = vunpack.c.h.b16 %v990
        %v2330 = vunpack.c.l.b16 %v991
        %v2331 = vunpack.c.h.b16 %v991
        %v2332 = vunpack.c.l.b16 %v992
        %v2333 = vunpack.c.h.b16 %v992
        %v2334 = vunpack.c.l.b16 %v993
        %v2335 = vunpack.c.h.b16 %v993
        %v2336 = vunpack.c.l.b16 %v994
        %v2337 = vunpack.c.h.b16 %v994
        %v2338 = vunpack.c.l.b16 %v995
        %v2339 = vunpack.c.h.b16 %v995
        %v2340 = vunpack.c.l.b16 %v996
        %v2341 = vunpack.c.h.b16 %v996
        %v2342 = vunpack.c.l.b16 %v997
        %v2343 = vunpack.c.h.b16 %v997
        %v2344 = vunpack.c.l.b16 %v998
        %v2345 = vunpack.c.h.b16 %v998
        %v2346 = vunpack.c.l.b16 %v999
        %v2347 = vunpack.c.h.b16 %v999
        %v2348 = vunpack.c.l.b16 %v1000
        %v2349 = vunpack.c.h.b16 %v1000
        %v2350 = vunpack.c.l.b16 %v1001
        %v2351 = vunpack.c.h.b16 %v1001
        %v2352 = vunpack.c.l.b16 %v1002
        %v2353 = vunpack.c.h.b16 %v1002
        %v2354 = vunpack.c.l.b16 %v1003
        %v2355 = vunpack.c.h.b16 %v1003
        %v2356 = vunpack.c.l.b16 %v1004
        %v2357 = vunpack.c.h.b16 %v1004
        %v2358 = vunpack.c.l.b16 %v1005
        %v2359 = vunpack.c.h.b16 %v1005
        %v2360 = vunpack.c.l.b16 %v1006
        %v2361 = vunpack.c.h.b16 %v1006
        %v2362 = vunpack.c.l.b16 %v1007
        %v2363 = vunpack.c.h.b16 %v1007
        %v2364 = vunpack.c.l.b16 %v1008
        %v2365 = vunpack.c.h.b16 %v1008
        %v2366 = vunpack.c.l.b16 %v1009
        %v2367 = vunpack.c.h.b16 %v1009
        %v2368 = vunpack.c.l.b16 %v1010
        %v2369 = vunpack.c.h.b16 %v1010
        %v2370 = vunpack.c.l.b16 %v1011
        %v2371 = vunpack.c.h.b16 %v1011
        %v2372 = vunpack.c.l.b16 %v1012
        %v2373 = vunpack.c.h.b16 %v1012
        %v2374 = vunpack.c.l.b16 %v1013
        %v2375 = vunpack.c.h.b16 %v1013
        %v2376 = vunpack.c.l.b16 %v1014
        %v2377 = vunpack.c.h.b16 %v1014
        %v2378 = vunpack.c.l.b16 %v1015
        %v2379 = vunpack.c.h.b16 %v1015
        %v2380 = vunpack.c.l.b16 %v1016
        %v2381 = vunpack.c.h.b16 %v1016
        %v2382 = vunpack.c.l.b16 %v1017
        %v2383 = vunpack.c.h.b16 %v1017
        %v2384 = vunpack.c.l.b16 %v1018
        %v2385 = vunpack.c.h.b16 %v1018
        %v2386 = vunpack.c.l.b16 %v1019
        %v2387 = vunpack.c.h.b16 %v1019
        %v2388 = vunpack.c.l.b16 %v1020
        %v2389 = vunpack.c.h.b16 %v1020
        %v2390 = vunpack.c.l.b16 %v1021
        %v2391 = vunpack.c.h.b16 %v1021
        %v2392 = vunpack.c.l.b16 %v1022
        %v2393 = vunpack.c.h.b16 %v1022
        %v2394 = vunpack.c.l.b16 %v1023
        %v2395 = vunpack.c.h.b16 %v1023
        %v2396 = vunpack.c.l.b16 %v1024
        %v2397 = vunpack.c.h.b16 %v1024
        %v2398 = vunpack.c.l.b16 %v1025
        %v2399 = vunpack.c.h.b16 %v1025
        %v2400 = vunpack.c.l.b16 %v1026
        %v2401 = vunpack.c.h.b16 %v1026
        %v2402 = vunpack.c.l.b16 %v1027
        %v2403 = vunpack.c.h.b16 %v1027
        %v2404 = vunpack.c.l.b16 %v1028
        %v2405 = vunpack.c.h.b16 %v1028
        %v2406 = vunpack.c.l.b16 %v1029
        %v2407 = vunpack.c.h.b16 %v1029
        %v2408 = vunpack.c.l.b16 %v1030
        %v2409 = vunpack.c.h.b16 %v1030
        %v2410 = vunpack.c.l.b16 %v1031
        %v2411 = vunpack.c.h.b16 %v1031
        %v2412 = vunpack.c.l.b16 %v1032
        %v2413 = vunpack.c.h.b16 %v1032
        %v2414 = vunpack.c.l.b16 %v1033
        %v2415 = vunpack.c.h.b16 %v1033
        %v2416 = vunpack.c.l.b16 %v1034
        %v2417 = vunpack.c.h.b16 %v1034
        %v2418 = vunpack.c.l.b16 %v1035
        %v2419 = vunpack.c.h.b16 %v1035
        %v2420 = vunpack.c.l.b16 %v1036
        %v2421 = vunpack.c.h.b16 %v1036
        %v2422 = vunpack.c.l.b16 %v1037
        %v2423 = vunpack.c.h.b16 %v1037
        %v2424 = vunpack.c.l.b16 %v1038
        %v2425 = vunpack.c.h.b16 %v1038
        %v2426 = vunpack.c.l.b16 %v1039
        %v2427 = vunpack.c.h.b16 %v1039
        %v2428 = vunpack.c.l.b16 %v1040
        %v2429 = vunpack.c.h.b16 %v1040
        %v2430 = vunpack.c.l.b16 %v1041
        %v2431 = vunpack.c.h.b16 %v1041
        %v2432 = vunpack.c.l.b16 %v1042
        %v2433 = vunpack.c.h.b16 %v1042
        %v2434 = vunpack.c.l.b16 %v1043
        %v2435 = vunpack.c.h.b16 %v1043
        %v2436 = vunpack.c.l.b16 %v1044
        %v2437 = vunpack.c.h.b16 %v1044
        %v2438 = vunpack.c.l.b16 %v1045
        %v2439 = vunpack.c.h.b16 %v1045
        %v2440 = vunpack.c.l.b16 %v1046
        %v2441 = vunpack.c.h.b16 %v1046
        %v2442 = vunpack.c.l.b16 %v1047
        %v2443 = vunpack.c.h.b16 %v1047
        %v2444 = vunpack.c.l.b16 %v1048
        %v2445 = vunpack.c.h.b16 %v1048
        %v2446 = vunpack.c.l.b16 %v1049
        %v2447 = vunpack.c.h.b16 %v1049
        %v2448 = vunpack.c.l.b16 %v1050
        %v2449 = vunpack.c.h.b16 %v1050
        %v2450 = vunpack.c.l.b16 %v1051
        %v2451 = vunpack.c.h.b16 %v1051
        %v2452 = vunpack.c.l.b16 %v1052
        %v2453 = vunpack.c.h.b16 %v1052
        %v2454 = vunpack.c.l.b16 %v1053
        %v2455 = vunpack.c.h.b16 %v1053
        %v2456 = vunpack.c.l.b16 %v1054
        %v2457 = vunpack.c.h.b16 %v1054
        %v2458 = vunpack.c.l.b16 %v1055
        %v2459 = vunpack.c.h.b16 %v1055
        %v2460 = vunpack.c.l.b16 %v1056
        %v2461 = vunpack.c.h.b16 %v1056
        %v2462 = vunpack.c.l.b16 %v1057
        %v2463 = vunpack.c.h.b16 %v1057
        %v2464 = vunpack.c.l.b16 %v1058
        %v2465 = vunpack.c.h.b16 %v1058
        %v2466 = vunpack.c.l.b16 %v1059
        %v2467 = vunpack.c.h.b16 %v1059
        %v2468 = vunpack.c.l.b16 %v1060
        %v2469 = vunpack.c.h.b16 %v1060
        %v2470 = vunpack.c.l.b16 %v1061
        %v2471 = vunpack.c.h.b16 %v1061
        %v2472 = vunpack.c.l.b16 %v1062
        %v2473 = vunpack.c.h.b16 %v1062
        %v2474 = vunpack.c.l.b16 %v1063
        %v2475 = vunpack.c.h.b16 %v1063
        %v2476 = vunpack.c.l.b16 %v1064
        %v2477 = vunpack.c.h.b16 %v1064
        %v2478 = vunpack.c.l.b16 %v1065
        %v2479 = vunpack.c.h.b16 %v1065
        %v2480 = vunpack.c.l.b16 %v1066
        %v2481 = vunpack.c.h.b16 %v1066
        %v2482 = vunpack.c.l.b16 %v1067
        %v2483 = vunpack.c.h.b16 %v1067
        %v2484 = vunpack.c.l.b16 %v1068
        %v2485 = vunpack.c.h.b16 %v1068
        %v2486 = vunpack.c.l.b16 %v1069
        %v2487 = vunpack.c.h.b16 %v1069
        %v2488 = vunpack.c.l.b16 %v1070
        %v2489 = vunpack.c.h.b16 %v1070
        %v2490 = vunpack.c.l.b16 %v1071
        %v2491 = vunpack.c.h.b16 %v1071
        %v2492 = vunpack.c.l.b16 %v1072
        %v2493 = vunpack.c.h.b16 %v1072
        %v2494 = vunpack.c.l.b16 %v1073
        %v2495 = vunpack.c.h.b16 %v1073
        %v2496 = vunpack.c.l.b16 %v1074
        %v2497 = vunpack.c.h.b16 %v1074
        %v2498 = vunpack.c.l.b16 %v1075
        %v2499 = vunpack.c.h.b16 %v1075
        %v2500 = vunpack.c.l.b16 %v1076
        %v2501 = vunpack.c.h.b16 %v1076
        %v2502 = vunpack.c.l.b16 %v1077
        %v2503 = vunpack.c.h.b16 %v1077
        %v2504 = vunpack.c.l.b16 %v1078
        %v2505 = vunpack.c.h.b16 %v1078
        %v2506 = vunpack.c.l.b16 %v1079
        %v2507 = vunpack.c.h.b16 %v1079
        %v2508 = vunpack.c.l.b16 %v1080
        %v2509 = vunpack.c.h.b16 %v1080
        %v2510 = vunpack.c.l.b16 %v1081
        %v2511 = vunpack.c.h.b16 %v1081
        %v2512 = vunpack.c.l.b16 %v1082
        %v2513 = vunpack.c.h.b16 %v1082
        %v2514 = vunpack.c.l.b16 %v1083
        %v2515 = vunpack.c.h.b16 %v1083
        %v2516 = vunpack.c.l.b16 %v1084
        %v2517 = vunpack.c.h.b16 %v1084
        %v2518 = vunpack.c.l.b16 %v1085
        %v2519 = vunpack.c.h.b16 %v1085
        %v2520 = vunpack.c.l.b16 %v1086
        %v2521 = vunpack.c.h.b16 %v1086
        %v2522 = vunpack.c.l.b16 %v1087
        %v2523 = vunpack.c.h.b16 %v1087
        %v2524 = vunpack.c.l.b16 %v1088
        %v2525 = vunpack.c.h.b16 %v1088
        %v2526 = vunpack.c.l.b16 %v1089
        %v2527 = vunpack.c.h.b16 %v1089
        %v2528 = vunpack.c.l.b16 %v1090
        %v2529 = vunpack.c.h.b16 %v1090
        %v2530 = vunpack.c.l.b16 %v1091
        %v2531 = vunpack.c.h.b16 %v1091
        %v2532 = vunpack.c.l.b16 %v1092
        %v2533 = vunpack.c.h.b16 %v1092
        %v2534 = vunpack.c.l.b16 %v1093
        %v2535 = vunpack.c.h.b16 %v1093
        %v2536 = vunpack.c.l.b16 %v1094
        %v2537 = vunpack.c.h.b16 %v1094
        %v2538 = vunpack.c.l.b16 %v1095
        %v2539 = vunpack.c.h.b16 %v1095
        %v2540 = vunpack.c.l.b16 %v1096
        %v2541 = vunpack.c.h.b16 %v1096
        %v2542 = vunpack.c.l.b16 %v1097
        %v2543 = vunpack.c.h.b16 %v1097
        %v2544 = vunpack.c.l.b16 %v1098
        %v2545 = vunpack.c.h.b16 %v1098
        %v2546 = vunpack.c.l.b16 %v1099
        %v2547 = vunpack.c.h.b16 %v1099
        %v2548 = vunpack.c.l.b16 %v1100
        %v2549 = vunpack.c.h.b16 %v1100
        %v2550 = vunpack.c.l.b16 %v1101
        %v2551 = vunpack.c.h.b16 %v1101
        %v2552 = vunpack.c.l.b16 %v1102
        %v2553 = vunpack.c.h.b16 %v1102
        %v2554 = vunpack.c.l.b16 %v1103
        %v2555 = vunpack.c.h.b16 %v1103
        %v2556 = vunpack.c.l.b16 %v1104
        %v2557 = vunpack.c.h.b16 %v1104
        %v2558 = vunpack.c.l.b16 %v1105
        %v2559 = vunpack.c.h.b16 %v1105
        %v2560 = vunpack.c.l.b16 %v1106
        %v2561 = vunpack.c.h.b16 %v1106
        %v2562 = vunpack.c.l.b16 %v1107
        %v2563 = vunpack.c.h.b16 %v1107
        %v2564 = vunpack.c.l.b16 %v1108
        %v2565 = vunpack.c.h.b16 %v1108
        %v2566 = vunpack.c.l.b16 %v1109
        %v2567 = vunpack.c.h.b16 %v1109
        %v2568 = vunpack.c.l.b16 %v1110
        %v2569 = vunpack.c.h.b16 %v1110
        %v2570 = vunpack.c.l.b16 %v1111
        %v2571 = vunpack.c.h.b16 %v1111
        %v2572 = vunpack.c.l.b16 %v1112
        %v2573 = vunpack.c.h.b16 %v1112
        %v2574 = vunpack.c.l.b16 %v1113
        %v2575 = vunpack.c.h.b16 %v1113
        %v2576 = vunpack.c.l.b16 %v1114
        %v2577 = vunpack.c.h.b16 %v1114
        %v2578 = vunpack.c.l.b16 %v1115
        %v2579 = vunpack.c.h.b16 %v1115
        %v2580 = vunpack.c.l.b16 %v1116
        %v2581 = vunpack.c.h.b16 %v1116
        %v2582 = vunpack.c.l.b16 %v1117
        %v2583 = vunpack.c.h.b16 %v1117
        %v2584 = vunpack.c.l.b16 %v1118
        %v2585 = vunpack.c.h.b16 %v1118
        %v2586 = vunpack.c.l.b16 %v1119
        %v2587 = vunpack.c.h.b16 %v1119
        %v2588 = vunpack.c.l.b16 %v1120
        %v2589 = vunpack.c.h.b16 %v1120
        %v2590 = vunpack.c.l.b16 %v1121
        %v2591 = vunpack.c.h.b16 %v1121
        %v2592 = vunpack.c.l.b16 %v1122
        %v2593 = vunpack.c.h.b16 %v1122
        %v2594 = vunpack.c.l.b16 %v1123
        %v2595 = vunpack.c.h.b16 %v1123
        %v2596 = vunpack.c.l.b16 %v1124
        %v2597 = vunpack.c.h.b16 %v1124
        %v2598 = vunpack.c.l.b16 %v1125
        %v2599 = vunpack.c.h.b16 %v1125
        %v2600 = vunpack.c.l.b16 %v1126
        %v2601 = vunpack.c.h.b16 %v1126
        %v2602 = vunpack.c.l.b16 %v1127
        %v2603 = vunpack.c.h.b16 %v1127
        %v2604 = vunpack.c.l.b16 %v1128
        %v2605 = vunpack.c.h.b16 %v1128
        %v2606 = vunpack.c.l.b16 %v1129
        %v2607 = vunpack.c.h.b16 %v1129
        %v2608 = vunpack.c.l.b16 %v1130
        %v2609 = vunpack.c.h.b16 %v1130
        %v2610 = vunpack.c.l.b16 %v1131
        %v2611 = vunpack.c.h.b16 %v1131
        %v2612 = vunpack.c.l.b16 %v1132
        %v2613 = vunpack.c.h.b16 %v1132
        %v2614 = vunpack.c.l.b16 %v1133
        %v2615 = vunpack.c.h.b16 %v1133
        %v2616 = vunpack.c.l.b16 %v1134
        %v2617 = vunpack.c.h.b16 %v1134
        %v2618 = vunpack.c.l.b16 %v1135
        %v2619 = vunpack.c.h.b16 %v1135
        %v2620 = vunpack.c.l.b16 %v1136
        %v2621 = vunpack.c.h.b16 %v1136
        %v2622 = vunpack.c.l.b16 %v1137
        %v2623 = vunpack.c.h.b16 %v1137
        %v2624 = vunpack.c.l.b16 %v1138
        %v2625 = vunpack.c.h.b16 %v1138
        %v2626 = vunpack.c.l.b16 %v1139
        %v2627 = vunpack.c.h.b16 %v1139
        %v2628 = vunpack.c.l.b16 %v1140
        %v2629 = vunpack.c.h.b16 %v1140
        %v2630 = vunpack.c.l.b16 %v1141
        %v2631 = vunpack.c.h.b16 %v1141
        %v2632 = vunpack.c.l.b16 %v1142
        %v2633 = vunpack.c.h.b16 %v1142
        %v2634 = vunpack.c.l.b16 %v1143
        %v2635 = vunpack.c.h.b16 %v1143
        %v2636 = vunpack.c.l.b16 %v1144
        %v2637 = vunpack.c.h.b16 %v1144
        %v2638 = vunpack.c.l.b16 %v1145
        %v2639 = vunpack.c.h.b16 %v1145
        %v2640 = vunpack.c.l.b16 %v1146
        %v2641 = vunpack.c.h.b16 %v1146
        %v2642 = vunpack.c.l.b16 %v1147
        %v2643 = vunpack.c.h.b16 %v1147
        %v2644 = vunpack.c.l.b16 %v1148
        %v2645 = vunpack.c.h.b16 %v1148
        %v2646 = vunpack.c.l.b16 %v1149
        %v2647 = vunpack.c.h.b16 %v1149
        %v2648 = vunpack.c.l.b16 %v1150
        %v2649 = vunpack.c.h.b16 %v1150
        %v2650 = vunpack.c.l.b16 %v1151
        %v2651 = vunpack.c.h.b16 %v1151
        %v2652 = vunpack.c.l.b16 %v1152
        %v2653 = vunpack.c.h.b16 %v1152
        %v2654 = vunpack.c.l.b16 %v1153
        %v2655 = vunpack.c.h.b16 %v1153
        %v2656 = vunpack.c.l.b16 %v1154
        %v2657 = vunpack.c.h.b16 %v1154
        %v2658 = vunpack.c.l.b16 %v1155
        %v2659 = vunpack.c.h.b16 %v1155
        %v2660 = vunpack.c.l.b16 %v1156
        %v2661 = vunpack.c.h.b16 %v1156
        %v2662 = vunpack.c.l.b16 %v1157
        %v2663 = vunpack.c.h.b16 %v1157
        %v2664 = vunpack.c.l.b16 %v1158
        %v2665 = vunpack.c.h.b16 %v1158
        %v2666 = vunpack.c.l.b16 %v1159
        %v2667 = vunpack.c.h.b16 %v1159
        %v2668 = vunpack.c.l.b16 %v1160
        %v2669 = vunpack.c.h.b16 %v1160
        %v2670 = vunpack.c.l.b16 %v1161
        %v2671 = vunpack.c.h.b16 %v1161
        %v2672 = vunpack.c.l.b16 %v1162
        %v2673 = vunpack.c.h.b16 %v1162
        %v2674 = vunpack.c.l.b16 %v1163
        %v2675 = vunpack.c.h.b16 %v1163
        %v2676 = vunpack.c.l.b16 %v1164
        %v2677 = vunpack.c.h.b16 %v1164
        %v2678 = vunpack.c.l.b16 %v1165
        %v2679 = vunpack.c.h.b16 %v1165
        %v2680 = vunpack.c.l.b16 %v1166
        %v2681 = vunpack.c.h.b16 %v1166
        %v2682 = vunpack.c.l.b16 %v1167
        %v2683 = vunpack.c.h.b16 %v1167
        %v2684 = vunpack.c.l.b16 %v1168
        %v2685 = vunpack.c.h.b16 %v1168
        %v2686 = vunpack.c.l.b16 %v1169
        %v2687 = vunpack.c.h.b16 %v1169
        %v2688 = vunpack.c.l.b16 %v1170
        %v2689 = vunpack.c.h.b16 %v1170
        %v2690 = vunpack.c.l.b16 %v1171
        %v2691 = vunpack.c.h.b16 %v1171
        %v2692 = vunpack.c.l.b16 %v1172
        %v2693 = vunpack.c.h.b16 %v1172
        %v2694 = vunpack.c.l.b16 %v1173
        %v2695 = vunpack.c.h.b16 %v1173
        %v2696 = vunpack.c.l.b16 %v1174
        %v2697 = vunpack.c.h.b16 %v1174
        %v2698 = vunpack.c.l.b16 %v1175
        %v2699 = vunpack.c.h.b16 %v1175
        %v2700 = vunpack.c.l.b16 %v1176
        %v2701 = vunpack.c.h.b16 %v1176
        %v2702 = vunpack.c.l.b16 %v1177
        %v2703 = vunpack.c.h.b16 %v1177
        %v2704 = vunpack.c.l.b16 %v1178
        %v2705 = vunpack.c.h.b16 %v1178
        %v2706 = vunpack.c.l.b16 %v1179
        %v2707 = vunpack.c.h.b16 %v1179
        %v2708 = vunpack.c.l.b16 %v1180
        %v2709 = vunpack.c.h.b16 %v1180
        %v2710 = vunpack.c.l.b16 %v1181
        %v2711 = vunpack.c.h.b16 %v1181
        %v2712 = vunpack.c.l.b16 %v1182
        %v2713 = vunpack.c.h.b16 %v1182
        %v2714 = vunpack.c.l.b16 %v1183
        %v2715 = vunpack.c.h.b16 %v1183
        %v2716 = vunpack.c.l.b16 %v1184
        %v2717 = vunpack.c.h.b16 %v1184
        %v2718 = vunpack.c.l.b16 %v1185
        %v2719 = vunpack.c.h.b16 %v1185
        %v2720 = vunpack.c.l.b16 %v1186
        %v2721 = vunpack.c.h.b16 %v1186
        %v2722 = vunpack.c.l.b16 %v1187
        %v2723 = vunpack.c.h.b16 %v1187
        %v2724 = vunpack.c.l.b16 %v1188
        %v2725 = vunpack.c.h.b16 %v1188
        %v2726 = vunpack.c.l.b16 %v1189
        %v2727 = vunpack.c.h.b16 %v1189
        %v2728 = vunpack.c.l.b16 %v1190
        %v2729 = vunpack.c.h.b16 %v1190
        %v2730 = vunpack.c.l.b16 %v1191
        %v2731 = vunpack.c.h.b16 %v1191
        %v2732 = vunpack.c.l.b16 %v1192
        %v2733 = vunpack.c.h.b16 %v1192
        %v2734 = vunpack.c.l.b16 %v1193
        %v2735 = vunpack.c.h.b16 %v1193
        %v2736 = vunpack.c.l.b16 %v1194
        %v2737 = vunpack.c.h.b16 %v1194
        %v2738 = vunpack.c.l.b16 %v1195
        %v2739 = vunpack.c.h.b16 %v1195
        %v2740 = vunpack.c.l.b16 %v1196
        %v2741 = vunpack.c.h.b16 %v1196
        %v2742 = vunpack.c.l.b16 %v1197
        %v2743 = vunpack.c.h.b16 %v1197
        %v2744 = vunpack.c.l.b16 %v1198
        %v2745 = vunpack.c.h.b16 %v1198
        %v2746 = vunpack.c.l.b16 %v1199
        %v2747 = vunpack.c.h.b16 %v1199
        %v2748 = vunpack.c.l.b16 %v1200
        %v2749 = vunpack.c.h.b16 %v1200
        %v2750 = vunpack.c.l.b16 %v1201
        %v2751 = vunpack.c.h.b16 %v1201
        %v2752 = vunpack.c.l.b16 %v1202
        %v2753 = vunpack.c.h.b16 %v1202
        %v2754 = vunpack.c.l.b16 %v1203
        %v2755 = vunpack.c.h.b16 %v1203
        %v2756 = vunpack.c.l.b16 %v1204
        %v2757 = vunpack.c.h.b16 %v1204
        %v2758 = vunpack.c.l.b16 %v1205
        %v2759 = vunpack.c.h.b16 %v1205
        %v2760 = vpack.c.b16 %v1744, %v1736
        %v2761 = vpack.c.b16 %v1745, %v1737
        %v2762 = vpack.c.b16 %v1746, %v1738
        %v2763 = vpack.c.b16 %v1747, %v1739
        %v2764 = vpack.c.b16 %v1748, %v1740
        %v2765 = vpack.c.b16 %v1749, %v1741
        %v2766 = vpack.c.b16 %v1750, %v1742
        %v2767 = vpack.c.b16 %v1751, %v1743
        %v2768 = vpack.c.b16 %v1760, %v1752
        %v2769 = vpack.c.b16 %v1761, %v1753
        %v2770 = vpack.c.b16 %v1762, %v1754
        %v2771 = vpack.c.b16 %v1763, %v1755
        %v2772 = vpack.c.b16 %v1764, %v1756
        %v2773 = vpack.c.b16 %v1765, %v1757
        %v2774 = vpack.c.b16 %v1766, %v1758
        %v2775 = vpack.c.b16 %v1767, %v1759
        %v2776 = vpack.c.b16 %v1776, %v1768
        %v2777 = vpack.c.b16 %v1777, %v1769
        %v2778 = vpack.c.b16 %v1778, %v1770
        %v2779 = vpack.c.b16 %v1779, %v1771
        %v2780 = vpack.c.b16 %v1780, %v1772
        %v2781 = vpack.c.b16 %v1781, %v1773
        %v2782 = vpack.c.b16 %v1782, %v1774
        %v2783 = vpack.c.b16 %v1783, %v1775
        %v2784 = vpack.c.b16 %v1792, %v1784
        %v2785 = vpack.c.b16 %v1793, %v1785
        %v2786 = vpack.c.b16 %v1794, %v1786
        %v2787 = vpack.c.b16 %v1795, %v1787
        %v2788 = vpack.c.b16 %v1796, %v1788
        %v2789 = vpack.c.b16 %v1797, %v1789
        %v2790 = vpack.c.b16 %v1798, %v1790
        %v2791 = vpack.c.b16 %v1799, %v1791
        %v2792 = vpack.c.b16 %v1808, %v1800
        %v2793 = vpack.c.b16 %v1809, %v1801
        %v2794 = vpack.c.b16 %v1810, %v1802
        %v2795 = vpack.c.b16 %v1811, %v1803
        %v2796 = vpack.c.b16 %v1812, %v1804
        %v2797 = vpack.c.b16 %v1813, %v1805
        %v2798 = vpack.c.b16 %v1814, %v1806
        %v2799 = vpack.c.b16 %v1815, %v1807
        %v2800 = vpack.c.b16 %v1824, %v1816
        %v2801 = vpack.c.b16 %v1825, %v1817
        %v2802 = vpack.c.b16 %v1826, %v1818
        %v2803 = vpack.c.b16 %v1827, %v1819
        %v2804 = vpack.c.b16 %v1828, %v1820
        %v2805 = vpack.c.b16 %v1829, %v1821
        %v2806 = vpack.c.b16 %v1830, %v1822
        %v2807 = vpack.c.b16 %v1831, %v1823
        %v2808 = vpack.c.b16 %v1840, %v1832
        %v2809 = vpack.c.b16 %v1841, %v1833
        %v2810 = vpack.c.b16 %v1842, %v1834
        %v2811 = vpack.c.b16 %v1843, %v1835
        %v2812 = vpack.c.b16 %v1844, %v1836
        %v2813 = vpack.c.b16 %v1845, %v1837
        %v2814 = vpack.c.b16 %v1846, %v1838
        %v2815 = vpack.c.b16 %v1847, %v1839
        %v2816 = vpack.c.b16 %v1856, %v1848
        %v2817 = vpack.c.b16 %v1857, %v1849
        %v2818 = vpack.c.b16 %v1858, %v1850
        %v2819 = vpack.c.b16 %v1859, %v1851
        %v2820 = vpack.c.b16 %v1860, %v1852
        %v2821 = vpack.c.b16 %v1861, %v1853
        %v2822 = vpack.c.b16 %v1862, %v1854
        %v2823 = vpack.c.b16 %v1863, %v1855
        %v2824 = vpack.c.b16 %v1872, %v1864
        %v2825 = vpack.c.b16 %v1873, %v1865
        %v2826 = vpack.c.b16 %v1874, %v1866
        %v2827 = vpack.c.b16 %v1875, %v1867
        %v2828 = vpack.c.b16 %v1876, %v1868
        %v2829 = vpack.c.b16 %v1877, %v1869
        %v2830 = vpack.c.b16 %v1878, %v1870
        %v2831 = vpack.c.b16 %v1879, %v1871
        %v2832 = vpack.c.b16 %v1888, %v1880
        %v2833 = vpack.c.b16 %v1889, %v1881
        %v2834 = vpack.c.b16 %v1890, %v1882
        %v2835 = vpack.c.b16 %v1891, %v1883
        %v2836 = vpack.c.b16 %v1892, %v1884
        %v2837 = vpack.c.b16 %v1893, %v1885
        %v2838 = vpack.c.b16 %v1894, %v1886
        %v2839 = vpack.c.b16 %v1895, %v1887
        %v2840 = vpack.c.b16 %v1904, %v1896
        %v2841 = vpack.c.b16 %v1905, %v1897
        %v2842 = vpack.c.b16 %v1906, %v1898
        %v2843 = vpack.c.b16 %v1907, %v1899
        %v2844 = vpack.c.b16 %v1908, %v1900
        %v2845 = vpack.c.b16 %v1909, %v1901
        %v2846 = vpack.c.b16 %v1910, %v1902
        %v2847 = vpack.c.b16 %v1911, %v1903
        %v2848 = vpack.c.b16 %v1920, %v1912
        %v2849 = vpack.c.b16 %v1921, %v1913
        %v2850 = vpack.c.b16 %v1922, %v1914
        %v2851 = vpack.c.b16 %v1923, %v1915
        %v2852 = vpack.c.b16 %v1924, %v1916
        %v2853 = vpack.c.b16 %v1925, %v1917
        %v2854 = vpack.c.b16 %v1926, %v1918
        %v2855 = vpack.c.b16 %v1927, %v1919
        %v2856 = vpack.c.b16 %v1936, %v1928
        %v2857 = vpack.c.b16 %v1937, %v1929
        %v2858 = vpack.c.b16 %v1938, %v1930
        %v2859 = vpack.c.b16 %v1939, %v1931
        %v2860 = vpack.c.b16 %v1940, %v1932
        %v2861 = vpack.c.b16 %v1941, %v1933
        %v2862 = vpack.c.b16 %v1942, %v1934
        %v2863 = vpack.c.b16 %v1943, %v1935
        %v2864 = vpack.c.b16 %v1952, %v1944
        %v2865 = vpack.c.b16 %v1953, %v1945
        %v2866 = vpack.c.b16 %v1954, %v1946
        %v2867 = vpack.c.b16 %v1955, %v1947
        %v2868 = vpack.c.b16 %v1956, %v1948
        %v2869 = vpack.c.b16 %v1957, %v1949
        %v2870 = vpack.c.b16 %v1958, %v1950
        %v2871 = vpack.c.b16 %v1959, %v1951
        %v2872 = vpack.c.b16 %v1968, %v1960
        %v2873 = vpack.c.b16 %v1969, %v1961
        %v2874 = vpack.c.b16 %v1970, %v1962
        %v2875 = vpack.c.b16 %v1971, %v1963
        %v2876 = vpack.c.b16 %v1972, %v1964
        %v2877 = vpack.c.b16 %v1973, %v1965
        %v2878 = vpack.c.b16 %v1974, %v1966
        %v2879 = vpack.c.b16 %v1975, %v1967
        %v2880 = vpack.c.b16 %v1984, %v1976
        %v2881 = vpack.c.b16 %v1985, %v1977
        %v2882 = vpack.c.b16 %v1986, %v1978
        %v2883 = vpack.c.b16 %v1987, %v1979
        %v2884 = vpack.c.b16 %v1988, %v1980
        %v2885 = vpack.c.b16 %v1989, %v1981
        %v2886 = vpack.c.b16 %v1990, %v1982
        %v2887 = vpack.c.b16 %v1991, %v1983
        %v2888 = vpack.c.b16 %v2000, %v1992
        %v2889 = vpack.c.b16 %v2001, %v1993
        %v2890 = vpack.c.b16 %v2002, %v1994
        %v2891 = vpack.c.b16 %v2003, %v1995
        %v2892 = vpack.c.b16 %v2004, %v1996
        %v2893 = vpack.c.b16 %v2005, %v1997
        %v2894 = vpack.c.b16 %v2006, %v1998
        %v2895 = vpack.c.b16 %v2007, %v1999
        %v2896 = vpack.c.b16 %v2016, %v2008
        %v2897 = vpack.c.b16 %v2017, %v2009
        %v2898 = vpack.c.b16 %v2018, %v2010
        %v2899 = vpack.c.b16 %v2019, %v2011
        %v2900 = vpack.c.b16 %v2020, %v2012
        %v2901 = vpack.c.b16 %v2021, %v2013
        %v2902 = vpack.c.b16 %v2022, %v2014
        %v2903 = vpack.c.b16 %v2023, %v2015
        %v2904 = vpack.c.b16 %v2032, %v2024
        %v2905 = vpack.c.b16 %v2033, %v2025
        %v2906 = vpack.c.b16 %v2034, %v2026
        %v2907 = vpack.c.b16 %v2035, %v2027
        %v2908 = vpack.c.b16 %v2036, %v2028
        %v2909 = vpack.c.b16 %v2037, %v2029
        %v2910 = vpack.c.b16 %v2038, %v2030
        %v2911 = vpack.c.b16 %v2039, %v2031
        %v2912 = vpack.c.b16 %v2048, %v2040
        %v2913 = vpack.c.b16 %v2049, %v2041
        %v2914 = vpack.c.b16 %v2050, %v2042
        %v2915 = vpack.c.b16 %v2051, %v2043
        %v2916 = vpack.c.b16 %v2052, %v2044
        %v2917 = vpack.c.b16 %v2053, %v2045
        %v2918 = vpack.c.b16 %v2054, %v2046
        %v2919 = vpack.c.b16 %v2055, %v2047
        %v2920 = vpack.c.b16 %v2064, %v2056
        %v2921 = vpack.c.b16 %v2065, %v2057
        %v2922 = vpack.c.b16 %v2066, %v2058
        %v2923 = vpack.c.b16 %v2067, %v2059
        %v2924 = vpack.c.b16 %v2068, %v2060
        %v2925 = vpack.c.b16 %v2069, %v2061
        %v2926 = vpack.c.b16 %v2070, %v2062
        %v2927 = vpack.c.b16 %v2071, %v2063
        %v2928 = vpack.c.b16 %v2080, %v2072
        %v2929 = vpack.c.b16 %v2081, %v2073
        %v2930 = vpack.c.b16 %v2082, %v2074
        %v2931 = vpack.c.b16 %v2083, %v2075
        %v2932 = vpack.c.b16 %v2084, %v2076
        %v2933 = vpack.c.b16 %v2085, %v2077
        %v2934 = vpack.c.b16 %v2086, %v2078
        %v2935 = vpack.c.b16 %v2087, %v2079
        %v2936 = vpack.c.b16 %v2096, %v2088
        %v2937 = vpack.c.b16 %v2097, %v2089
        %v2938 = vpack.c.b16 %v2098, %v2090
        %v2939 = vpack.c.b16 %v2099, %v2091
        %v2940 = vpack.c.b16 %v2100, %v2092
        %v2941 = vpack.c.b16 %v2101, %v2093
        %v2942 = vpack.c.b16 %v2102, %v2094
        %v2943 = vpack.c.b16 %v2103, %v2095
        %v2944 = vpack.c.b16 %v2112, %v2104
        %v2945 = vpack.c.b16 %v2113, %v2105
        %v2946 = vpack.c.b16 %v2114, %v2106
        %v2947 = vpack.c.b16 %v2115, %v2107
        %v2948 = vpack.c.b16 %v2116, %v2108
        %v2949 = vpack.c.b16 %v2117, %v2109
        %v2950 = vpack.c.b16 %v2118, %v2110
        %v2951 = vpack.c.b16 %v2119, %v2111
        %v2952 = vpack.c.b16 %v2128, %v2120
        %v2953 = vpack.c.b16 %v2129, %v2121
        %v2954 = vpack.c.b16 %v2130, %v2122
        %v2955 = vpack.c.b16 %v2131, %v2123
        %v2956 = vpack.c.b16 %v2132, %v2124
        %v2957 = vpack.c.b16 %v2133, %v2125
        %v2958 = vpack.c.b16 %v2134, %v2126
        %v2959 = vpack.c.b16 %v2135, %v2127
        %v2960 = vpack.c.b16 %v2144, %v2136
        %v2961 = vpack.c.b16 %v2145, %v2137
        %v2962 = vpack.c.b16 %v2146, %v2138
        %v2963 = vpack.c.b16 %v2147, %v2139
        %v2964 = vpack.c.b16 %v2148, %v2140
        %v2965 = vpack.c.b16 %v2149, %v2141
        %v2966 = vpack.c.b16 %v2150, %v2142
        %v2967 = vpack.c.b16 %v2151, %v2143
        %v2968 = vpack.c.b16 %v2160, %v2152
        %v2969 = vpack.c.b16 %v2161, %v2153
        %v2970 = vpack.c.b16 %v2162, %v2154
        %v2971 = vpack.c.b16 %v2163, %v2155
        %v2972 = vpack.c.b16 %v2164, %v2156
        %v2973 = vpack.c.b16 %v2165, %v2157
        %v2974 = vpack.c.b16 %v2166, %v2158
        %v2975 = vpack.c.b16 %v2167, %v2159
        %v2976 = vpack.c.b16 %v2176, %v2168
        %v2977 = vpack.c.b16 %v2177, %v2169
        %v2978 = vpack.c.b16 %v2178, %v2170
        %v2979 = vpack.c.b16 %v2179, %v2171
        %v2980 = vpack.c.b16 %v2180, %v2172
        %v2981 = vpack.c.b16 %v2181, %v2173
        %v2982 = vpack.c.b16 %v2182, %v2174
        %v2983 = vpack.c.b16 %v2183, %v2175
        %v2984 = vpack.c.b16 %v2192, %v2184
        %v2985 = vpack.c.b16 %v2193, %v2185
        %v2986 = vpack.c.b16 %v2194, %v2186
        %v2987 = vpack.c.b16 %v2195, %v2187
        %v2988 = vpack.c.b16 %v2196, %v2188
        %v2989 = vpack.c.b16 %v2197, %v2189
        %v2990 = vpack.c.b16 %v2198, %v2190
        %v2991 = vpack.c.b16 %v2199, %v2191
        %v2992 = vpack.c.b16 %v2208, %v2200
        %v2993 = vpack.c.b16 %v2209, %v2201
        %v2994 = vpack.c.b16 %v2210, %v2202
        %v2995 = vpack.c.b16 %v2211, %v2203
        %v2996 = vpack.c.b16 %v2212, %v2204
        %v2997 = vpack.c.b16 %v2213, %v2205
        %v2998 = vpack.c.b16 %v2214, %v2206
        %v2999 = vpack.c.b16 %v2215, %v2207
        %v3000 = vpack.c.b16 %v2224, %v2216
        %v3001 = vpack.c.b16 %v2225, %v2217
        %v3002 = vpack.c.b16 %v2226, %v2218
        %v3003 = vpack.c.b16 %v2227, %v2219
        %v3004 = vpack.c.b16 %v2228, %v2220
        %v3005 = vpack.c.b16 %v2229, %v2221
        %v3006 = vpack.c.b16 %v2230, %v2222
        %v3007 = vpack.c.b16 %v2231, %v2223
        %v3008 = vpack.c.b16 %v2240, %v2232
        %v3009 = vpack.c.b16 %v2241, %v2233
        %v3010 = vpack.c.b16 %v2242, %v2234
        %v3011 = vpack.c.b16 %v2243, %v2235
        %v3012 = vpack.c.b16 %v2244, %v2236
        %v3013 = vpack.c.b16 %v2245, %v2237
        %v3014 = vpack.c.b16 %v2246, %v2238
        %v3015 = vpack.c.b16 %v2247, %v2239
        %v3016 = vpack.c.b16 %v2256, %v2248
        %v3017 = vpack.c.b16 %v2257, %v2249
        %v3018 = vpack.c.b16 %v2258, %v2250
        %v3019 = vpack.c.b16 %v2259, %v2251
        %v3020 = vpack.c.b16 %v2260, %v2252
        %v3021 = vpack.c.b16 %v2261, %v2253
        %v3022 = vpack.c.b16 %v2262, %v2254
        %v3023 = vpack.c.b16 %v2263, %v2255
        %v3024 = vpack.c.b16 %v2272, %v2264
        %v3025 = vpack.c.b16 %v2273, %v2265
        %v3026 = vpack.c.b16 %v2274, %v2266
        %v3027 = vpack.c.b16 %v2275, %v2267
        %v3028 = vpack.c.b16 %v2276, %v2268
        %v3029 = vpack.c.b16 %v2277, %v2269
        %v3030 = vpack.c.b16 %v2278, %v2270
        %v3031 = vpack.c.b16 %v2279, %v2271
        %v3032 = vpack.c.b16 %v2288, %v2280
        %v3033 = vpack.c.b16 %v2289, %v2281
        %v3034 = vpack.c.b16 %v2290, %v2282
        %v3035 = vpack.c.b16 %v2291, %v2283
        %v3036 = vpack.c.b16 %v2292, %v2284
        %v3037 = vpack.c.b16 %v2293, %v2285
        %v3038 = vpack.c.b16 %v2294, %v2286
        %v3039 = vpack.c.b16 %v2295, %v2287
        %v3040 = vpack.c.b16 %v2304, %v2296
        %v3041 = vpack.c.b16 %v2305, %v2297
        %v3042 = vpack.c.b16 %v2306, %v2298
        %v3043 = vpack.c.b16 %v2307, %v2299
        %v3044 = vpack.c.b16 %v2308, %v2300
        %v3045 = vpack.c.b16 %v2309, %v2301
        %v3046 = vpack.c.b16 %v2310, %v2302
        %v3047 = vpack.c.b16 %v2311, %v2303
        %v3048 = vpack.c.b16 %v2320, %v2312
        %v3049 = vpack.c.b16 %v2321, %v2313
        %v3050 = vpack.c.b16 %v2322, %v2314
        %v3051 = vpack.c.b16 %v2323, %v2315
        %v3052 = vpack.c.b16 %v2324, %v2316
        %v3053 = vpack.c.b16 %v2325, %v2317
        %v3054 = vpack.c.b16 %v2326, %v2318
        %v3055 = vpack.c.b16 %v2327, %v2319
        %v3056 = vpack.c.b16 %v2336, %v2328
        %v3057 = vpack.c.b16 %v2337, %v2329
        %v3058 = vpack.c.b16 %v2338, %v2330
        %v3059 = vpack.c.b16 %v2339, %v2331
        %v3060 = vpack.c.b16 %v2340, %v2332
        %v3061 = vpack.c.b16 %v2341, %v2333
        %v3062 = vpack.c.b16 %v2342, %v2334
        %v3063 = vpack.c.b16 %v2343, %v2335
        %v3064 = vpack.c.b16 %v2352, %v2344
        %v3065 = vpack.c.b16 %v2353, %v2345
        %v3066 = vpack.c.b16 %v2354, %v2346
        %v3067 = vpack.c.b16 %v2355, %v2347
        %v3068 = vpack.c.b16 %v2356, %v2348
        %v3069 = vpack.c.b16 %v2357, %v2349
        %v3070 = vpack.c.b16 %v2358, %v2350
        %v3071 = vpack.c.b16 %v2359, %v2351
        %v3072 = vpack.c.b16 %v2368, %v2360
        %v3073 = vpack.c.b16 %v2369, %v2361
        %v3074 = vpack.c.b16 %v2370, %v2362
        %v3075 = vpack.c.b16 %v2371, %v2363
        %v3076 = vpack.c.b16 %v2372, %v2364
        %v3077 = vpack.c.b16 %v2373, %v2365
        %v3078 = vpack.c.b16 %v2374, %v2366
        %v3079 = vpack.c.b16 %v2375, %v2367
        %v3080 = vpack.c.b16 %v2384, %v2376
        %v3081 = vpack.c.b16 %v2385, %v2377
        %v3082 = vpack.c.b16 %v2386, %v2378
        %v3083 = vpack.c.b16 %v2387, %v2379
        %v3084 = vpack.c.b16 %v2388, %v2380
        %v3085 = vpack.c.b16 %v2389, %v2381
        %v3086 = vpack.c.b16 %v2390, %v2382
        %v3087 = vpack.c.b16 %v2391, %v2383
        %v3088 = vpack.c.b16 %v2400, %v2392
        %v3089 = vpack.c.b16 %v2401, %v2393
        %v3090 = vpack.c.b16 %v2402, %v2394
        %v3091 = vpack.c.b16 %v2403, %v2395
        %v3092 = vpack.c.b16 %v2404, %v2396
        %v3093 = vpack.c.b16 %v2405, %v2397
        %v3094 = vpack.c.b16 %v2406, %v2398
        %v3095 = vpack.c.b16 %v2407, %v2399
        %v3096 = vpack.c.b16 %v2416, %v2408
        %v3097 = vpack.c.b16 %v2417, %v2409
        %v3098 = vpack.c.b16 %v2418, %v2410
        %v3099 = vpack.c.b16 %v2419, %v2411
        %v3100 = vpack.c.b16 %v2420, %v2412
        %v3101 = vpack.c.b16 %v2421, %v2413
        %v3102 = vpack.c.b16 %v2422, %v2414
        %v3103 = vpack.c.b16 %v2423, %v2415
        %v3104 = vpack.c.b16 %v2432, %v2424
        %v3105 = vpack.c.b16 %v2433, %v2425
        %v3106 = vpack.c.b16 %v2434, %v2426
        %v3107 = vpack.c.b16 %v2435, %v2427
        %v3108 = vpack.c.b16 %v2436, %v2428
        %v3109 = vpack.c.b16 %v2437, %v2429
        %v3110 = vpack.c.b16 %v2438, %v2430
        %v3111 = vpack.c.b16 %v2439, %v2431
        %v3112 = vpack.c.b16 %v2448, %v2440
        %v3113 = vpack.c.b16 %v2449, %v2441
        %v3114 = vpack.c.b16 %v2450, %v2442
        %v3115 = vpack.c.b16 %v2451, %v2443
        %v3116 = vpack.c.b16 %v2452, %v2444
        %v3117 = vpack.c.b16 %v2453, %v2445
        %v3118 = vpack.c.b16 %v2454, %v2446
        %v3119 = vpack.c.b16 %v2455, %v2447
        %v3120 = vpack.c.b16 %v2464, %v2456
        %v3121 = vpack.c.b16 %v2465, %v2457
        %v3122 = vpack.c.b16 %v2466, %v2458
        %v3123 = vpack.c.b16 %v2467, %v2459
        %v3124 = vpack.c.b16 %v2468, %v2460
        %v3125 = vpack.c.b16 %v2469, %v2461
        %v3126 = vpack.c.b16 %v2470, %v2462
        %v3127 = vpack.c.b16 %v2471, %v2463
        %v3128 = vpack.c.b16 %v2480, %v2472
        %v3129 = vpack.c.b16 %v2481, %v2473
        %v3130 = vpack.c.b16 %v2482, %v2474
        %v3131 = vpack.c.b16 %v2483, %v2475
        %v3132 = vpack.c.b16 %v2484, %v2476
        %v3133 = vpack.c.b16 %v2485, %v2477
        %v3134 = vpack.c.b16 %v2486, %v2478
        %v3135 = vpack.c.b16 %v2487, %v2479
        %v3136 = vpack.c.b16 %v2496, %v2488
        %v3137 = vpack.c.b16 %v2497, %v2489
        %v3138 = vpack.c.b16 %v2498, %v2490
        %v3139 = vpack.c.b16 %v2499, %v2491
        %v3140 = vpack.c.b16 %v2500, %v2492
        %v3141 = vpack.c.b16 %v2501, %v2493
        %v3142 = vpack.c.b16 %v2502, %v2494
        %v3143 = vpack.c.b16 %v2503, %v2495
        %v3144 = vpack.c.b16 %v2512, %v2504
        %v3145 = vpack.c.b16 %v2513, %v2505
        %v3146 = vpack.c.b16 %v2514, %v2506
        %v3147 = vpack.c.b16 %v2515, %v2507
        %v3148 = vpack.c.b16 %v2516, %v2508
        %v3149 = vpack.c.b16 %v2517, %v2509
        %v3150 = vpack.c.b16 %v2518, %v2510
        %v3151 = vpack.c.b16 %v2519, %v2511
        %v3152 = vpack.c.b16 %v2528, %v2520
        %v3153 = vpack.c.b16 %v2529, %v2521
        %v3154 = vpack.c.b16 %v2530, %v2522
        %v3155 = vpack.c.b16 %v2531, %v2523
        %v3156 = vpack.c.b16 %v2532, %v2524
        %v3157 = vpack.c.b16 %v2533, %v2525
        %v3158 = vpack.c.b16 %v2534, %v2526
        %v3159 = vpack.c.b16 %v2535, %v2527
        %v3160 = vpack.c.b16 %v2544, %v2536
        %v3161 = vpack.c.b16 %v2545, %v2537
        %v3162 = vpack.c.b16 %v2546, %v2538
        %v3163 = vpack.c.b16 %v2547, %v2539
        %v3164 = vpack.c.b16 %v2548, %v2540
        %v3165 = vpack.c.b16 %v2549, %v2541
        %v3166 = vpack.c.b16 %v2550, %v2542
        %v3167 = vpack.c.b16 %v2551, %v2543
        %v3168 = vpack.c.b16 %v2560, %v2552
        %v3169 = vpack.c.b16 %v2561, %v2553
        %v3170 = vpack.c.b16 %v2562, %v2554
        %v3171 = vpack.c.b16 %v2563, %v2555
        %v3172 = vpack.c.b16 %v2564, %v2556
        %v3173 = vpack.c.b16 %v2565, %v2557
        %v3174 = vpack.c.b16 %v2566, %v2558
        %v3175 = vpack.c.b16 %v2567, %v2559
        %v3176 = vpack.c.b16 %v2576, %v2568
        %v3177 = vpack.c.b16 %v2577, %v2569
        %v3178 = vpack.c.b16 %v2578, %v2570
        %v3179 = vpack.c.b16 %v2579, %v2571
        %v3180 = vpack.c.b16 %v2580, %v2572
        %v3181 = vpack.c.b16 %v2581, %v2573
        %v3182 = vpack.c.b16 %v2582, %v2574
        %v3183 = vpack.c.b16 %v2583, %v2575
        %v3184 = vpack.c.b16 %v2592, %v2584
        %v3185 = vpack.c.b16 %v2593, %v2585
        %v3186 = vpack.c.b16 %v2594, %v2586
        %v3187 = vpack.c.b16 %v2595, %v2587
        %v3188 = vpack.c.b16 %v2596, %v2588
        %v3189 = vpack.c.b16 %v2597, %v2589
        %v3190 = vpack.c.b16 %v2598, %v2590
        %v3191 = vpack.c.b16 %v2599, %v2591
        %v3192 = vpack.c.b16 %v2608, %v2600
        %v3193 = vpack.c.b16 %v2609, %v2601
        %v3194 = vpack.c.b16 %v2610, %v2602
        %v3195 = vpack.c.b16 %v2611, %v2603
        %v3196 = vpack.c.b16 %v2612, %v2604
        %v3197 = vpack.c.b16 %v2613, %v2605
        %v3198 = vpack.c.b16 %v2614, %v2606
        %v3199 = vpack.c.b16 %v2615, %v2607
        %v3200 = vpack.c.b16 %v2624, %v2616
        %v3201 = vpack.c.b16 %v2625, %v2617
        %v3202 = vpack.c.b16 %v2626, %v2618
        %v3203 = vpack.c.b16 %v2627, %v2619
        %v3204 = vpack.c.b16 %v2628, %v2620
        %v3205 = vpack.c.b16 %v2629, %v2621
        %v3206 = vpack.c.b16 %v2630, %v2622
        %v3207 = vpack.c.b16 %v2631, %v2623
        %v3208 = vpack.c.b16 %v2640, %v2632
        %v3209 = vpack.c.b16 %v2641, %v2633
        %v3210 = vpack.c.b16 %v2642, %v2634
        %v3211 = vpack.c.b16 %v2643, %v2635
        %v3212 = vpack.c.b16 %v2644, %v2636
        %v3213 = vpack.c.b16 %v2645, %v2637
        %v3214 = vpack.c.b16 %v2646, %v2638
        %v3215 = vpack.c.b16 %v2647, %v2639
        %v3216 = vpack.c.b16 %v2656, %v2648
        %v3217 = vpack.c.b16 %v2657, %v2649
        %v3218 = vpack.c.b16 %v2658, %v2650
        %v3219 = vpack.c.b16 %v2659, %v2651
        %v3220 = vpack.c.b16 %v2660, %v2652
        %v3221 = vpack.c.b16 %v2661, %v2653
        %v3222 = vpack.c.b16 %v2662, %v2654
        %v3223 = vpack.c.b16 %v2663, %v2655
        %v3224 = vpack.c.b16 %v2672, %v2664
        %v3225 = vpack.c.b16 %v2673, %v2665
        %v3226 = vpack.c.b16 %v2674, %v2666
        %v3227 = vpack.c.b16 %v2675, %v2667
        %v3228 = vpack.c.b16 %v2676, %v2668
        %v3229 = vpack.c.b16 %v2677, %v2669
        %v3230 = vpack.c.b16 %v2678, %v2670
        %v3231 = vpack.c.b16 %v2679, %v2671
        %v3232 = vpack.c.b16 %v2688, %v2680
        %v3233 = vpack.c.b16 %v2689, %v2681
        %v3234 = vpack.c.b16 %v2690, %v2682
        %v3235 = vpack.c.b16 %v2691, %v2683
        %v3236 = vpack.c.b16 %v2692, %v2684
        %v3237 = vpack.c.b16 %v2693, %v2685
        %v3238 = vpack.c.b16 %v2694, %v2686
        %v3239 = vpack.c.b16 %v2695, %v2687
        %v3240 = vpack.c.b16 %v2704, %v2696
        %v3241 = vpack.c.b16 %v2705, %v2697
        %v3242 = vpack.c.b16 %v2706, %v2698
        %v3243 = vpack.c.b16 %v2707, %v2699
        %v3244 = vpack.c.b16 %v2708, %v2700
        %v3245 = vpack.c.b16 %v2709, %v2701
        %v3246 = vpack.c.b16 %v2710, %v2702
        %v3247 = vpack.c.b16 %v2711, %v2703
        %v3248 = vpack.c.b16 %v2720, %v2712
        %v3249 = vpack.c.b16 %v2721, %v2713
        %v3250 = vpack.c.b16 %v2722, %v2714
        %v3251 = vpack.c.b16 %v2723, %v2715
        %v3252 = vpack.c.b16 %v2724, %v2716
        %v3253 = vpack.c.b16 %v2725, %v2717
        %v3254 = vpack.c.b16 %v2726, %v2718
        %v3255 = vpack.c.b16 %v2727, %v2719
        %v3256 = vpack.c.b16 %v2736, %v2728
        %v3257 = vpack.c.b16 %v2737, %v2729
        %v3258 = vpack.c.b16 %v2738, %v2730
        %v3259 = vpack.c.b16 %v2739, %v2731
        %v3260 = vpack.c.b16 %v2740, %v2732
        %v3261 = vpack.c.b16 %v2741, %v2733
        %v3262 = vpack.c.b16 %v2742, %v2734
        %v3263 = vpack.c.b16 %v2743, %v2735
        %v3264 = vpack.c.b16 %v2752, %v2744
        %v3265 = vpack.c.b16 %v2753, %v2745
        %v3266 = vpack.c.b16 %v2754, %v2746
        %v3267 = vpack.c.b16 %v2755, %v2747
        %v3268 = vpack.c.b16 %v2756, %v2748
        %v3269 = vpack.c.b16 %v2757, %v2749
        %v3270 = vpack.c.b16 %v2758, %v2750
        %v3271 = vpack.c.b16 %v2759, %v2751
        %3784 = vmatpush.bf16.msra.mxu0 %v2816
        %3785 = vmatpush.bf16.msra.mxu0 %v2808
        %3786 = vmatpush.bf16.msra.mxu0 %v2800
        %3787 = vmatpush.bf16.msra.mxu0 %v2792
        %3788 = vmatpush.bf16.msra.mxu0 %v2784
        %3789 = vmatpush.bf16.msra.mxu0 %v2776
        %3790 = vmatpush.bf16.msra.mxu0 %v2768
        %3791 = vmatpush.bf16.msra.mxu0 %v2760
        %3792 = vmatmul.bf16.gmra.mxu0 %v566
        %v3793 = vpop.f32.mrf.mxu0
        %v3794 = vadd.f32 %v1208, %v3793
        %v3795 = vpop.f32.mrf.mxu0
        %v3796 = vadd.f32 %v1208, %v3795
        %3797 = vmatmul.bf16.gmra.mxu0 %v574
        %v3798 = vpop.f32.mrf.mxu0
        %v3799 = vadd.f32 %v1208, %v3798
        %v3800 = vpop.f32.mrf.mxu0
        %v3801 = vadd.f32 %v1208, %v3800
        %3802 = vmatmul.bf16.gmra.mxu0 %v582
        %v3803 = vpop.f32.mrf.mxu0
        %v3804 = vadd.f32 %v1208, %v3803
        %v3805 = vpop.f32.mrf.mxu0
        %v3806 = vadd.f32 %v1208, %v3805
        %3807 = vmatmul.bf16.gmra.mxu0 %v590
        %v3808 = vpop.f32.mrf.mxu0
        %v3809 = vadd.f32 %v1208, %v3808
        %v3810 = vpop.f32.mrf.mxu0
        %v3811 = vadd.f32 %v1208, %v3810
        %3812 = vmatmul.bf16.gmra.mxu0 %v598
        %v3813 = vpop.f32.mrf.mxu0
        %v3814 = vadd.f32 %v1208, %v3813
        %v3815 = vpop.f32.mrf.mxu0
        %v3816 = vadd.f32 %v1208, %v3815
        %3817 = vmatmul.bf16.gmra.mxu0 %v606
        %v3818 = vpop.f32.mrf.mxu0
        %v3819 = vadd.f32 %v1208, %v3818
        %v3820 = vpop.f32.mrf.mxu0
        %v3821 = vadd.f32 %v1208, %v3820
        %3822 = vmatmul.bf16.gmra.mxu0 %v614
        %v3823 = vpop.f32.mrf.mxu0
        %v3824 = vadd.f32 %v1208, %v3823
        %v3825 = vpop.f32.mrf.mxu0
        %v3826 = vadd.f32 %v1208, %v3825
        %3827 = vmatmul.bf16.gmra.mxu0 %v622
        %v3828 = vpop.f32.mrf.mxu0
        %v3829 = vadd.f32 %v1208, %v3828
        %v3830 = vpop.f32.mrf.mxu0
        %v3831 = vadd.f32 %v1208, %v3830
        %3832 = vmatmul.bf16.gmra.mxu0 %v630
        %v3833 = vpop.f32.mrf.mxu0
        %v3834 = vadd.f32 %v1208, %v3833
        %v3835 = vpop.f32.mrf.mxu0
        %v3836 = vadd.f32 %v1208, %v3835
        %3837 = vmatmul.bf16.gmra.mxu0 %v638
        %v3838 = vpop.f32.mrf.mxu0
        %v3839 = vadd.f32 %v1208, %v3838
        %v3840 = vpop.f32.mrf.mxu0
        %v3841 = vadd.f32 %v1208, %v3840
        %3842 = vmatmul.bf16.gmra.mxu0 %v646
        %v3843 = vpop.f32.mrf.mxu0
        %v3844 = vadd.f32 %v1208, %v3843
        %v3845 = vpop.f32.mrf.mxu0
        %v3846 = vadd.f32 %v1208, %v3845
        %3847 = vmatmul.bf16.gmra.mxu0 %v654
        %v3848 = vpop.f32.mrf.mxu0
        %v3849 = vadd.f32 %v1208, %v3848
        %v3850 = vpop.f32.mrf.mxu0
        %v3851 = vadd.f32 %v1208, %v3850
        %3852 = vmatmul.bf16.gmra.mxu0 %v662
        %v3853 = vpop.f32.mrf.mxu0
        %v3854 = vadd.f32 %v1208, %v3853
        %v3855 = vpop.f32.mrf.mxu0
        %v3856 = vadd.f32 %v1208, %v3855
        %3857 = vmatmul.bf16.gmra.mxu0 %v670
        %v3858 = vpop.f32.mrf.mxu0
        %v3859 = vadd.f32 %v1208, %v3858
        %v3860 = vpop.f32.mrf.mxu0
        %v3861 = vadd.f32 %v1208, %v3860
        %3862 = vmatmul.bf16.gmra.mxu0 %v678
        %v3863 = vpop.f32.mrf.mxu0
        %v3864 = vadd.f32 %v1208, %v3863
        %v3865 = vpop.f32.mrf.mxu0
        %v3866 = vadd.f32 %v1208, %v3865
        %3867 = vmatmul.bf16.gmra.mxu0 %v686
        %v3868 = vpop.f32.mrf.mxu0
        %v3869 = vadd.f32 %v1208, %v3868
        %v3870 = vpop.f32.mrf.mxu0
        %v3871 = vadd.f32 %v1208, %v3870
        %3872 = vdwg.mxu0
        %3873 = vmatpush.bf16.msra.mxu0 %v2880
        %3874 = vmatpush.bf16.msra.mxu0 %v2872
        %3875 = vmatpush.bf16.msra.mxu0 %v2864
        %3876 = vmatpush.bf16.msra.mxu0 %v2856
        %3877 = vmatpush.bf16.msra.mxu0 %v2848
        %3878 = vmatpush.bf16.msra.mxu0 %v2840
        %3879 = vmatpush.bf16.msra.mxu0 %v2832
        %3880 = vmatpush.bf16.msra.mxu0 %v2824
        %3881 = vmatmul.bf16.gmra.mxu0 %v567
        %v3882 = vpop.f32.mrf.mxu0
        %v3883 = vadd.f32 %v3794, %v3882
        %v3884 = vpop.f32.mrf.mxu0
        %v3885 = vadd.f32 %v3796, %v3884
        %3886 = vmatmul.bf16.gmra.mxu0 %v575
        %v3887 = vpop.f32.mrf.mxu0
        %v3888 = vadd.f32 %v3799, %v3887
        %v3889 = vpop.f32.mrf.mxu0
        %v3890 = vadd.f32 %v3801, %v3889
        %3891 = vmatmul.bf16.gmra.mxu0 %v583
        %v3892 = vpop.f32.mrf.mxu0
        %v3893 = vadd.f32 %v3804, %v3892
        %v3894 = vpop.f32.mrf.mxu0
        %v3895 = vadd.f32 %v3806, %v3894
        %3896 = vmatmul.bf16.gmra.mxu0 %v591
        %v3897 = vpop.f32.mrf.mxu0
        %v3898 = vadd.f32 %v3809, %v3897
        %v3899 = vpop.f32.mrf.mxu0
        %v3900 = vadd.f32 %v3811, %v3899
        %3901 = vmatmul.bf16.gmra.mxu0 %v599
        %v3902 = vpop.f32.mrf.mxu0
        %v3903 = vadd.f32 %v3814, %v3902
        %v3904 = vpop.f32.mrf.mxu0
        %v3905 = vadd.f32 %v3816, %v3904
        %3906 = vmatmul.bf16.gmra.mxu0 %v607
        %v3907 = vpop.f32.mrf.mxu0
        %v3908 = vadd.f32 %v3819, %v3907
        %v3909 = vpop.f32.mrf.mxu0
        %v3910 = vadd.f32 %v3821, %v3909
        %3911 = vmatmul.bf16.gmra.mxu0 %v615
        %v3912 = vpop.f32.mrf.mxu0
        %v3913 = vadd.f32 %v3824, %v3912
        %v3914 = vpop.f32.mrf.mxu0
        %v3915 = vadd.f32 %v3826, %v3914
        %3916 = vmatmul.bf16.gmra.mxu0 %v623
        %v3917 = vpop.f32.mrf.mxu0
        %v3918 = vadd.f32 %v3829, %v3917
        %v3919 = vpop.f32.mrf.mxu0
        %v3920 = vadd.f32 %v3831, %v3919
        %3921 = vmatmul.bf16.gmra.mxu0 %v631
        %v3922 = vpop.f32.mrf.mxu0
        %v3923 = vadd.f32 %v3834, %v3922
        %v3924 = vpop.f32.mrf.mxu0
        %v3925 = vadd.f32 %v3836, %v3924
        %3926 = vmatmul.bf16.gmra.mxu0 %v639
        %v3927 = vpop.f32.mrf.mxu0
        %v3928 = vadd.f32 %v3839, %v3927
        %v3929 = vpop.f32.mrf.mxu0
        %v3930 = vadd.f32 %v3841, %v3929
        %3931 = vmatmul.bf16.gmra.mxu0 %v647
        %v3932 = vpop.f32.mrf.mxu0
        %v3933 = vadd.f32 %v3844, %v3932
        %v3934 = vpop.f32.mrf.mxu0
        %v3935 = vadd.f32 %v3846, %v3934
        %3936 = vmatmul.bf16.gmra.mxu0 %v655
        %v3937 = vpop.f32.mrf.mxu0
        %v3938 = vadd.f32 %v3849, %v3937
        %v3939 = vpop.f32.mrf.mxu0
        %v3940 = vadd.f32 %v3851, %v3939
        %3941 = vmatmul.bf16.gmra.mxu0 %v663
        %v3942 = vpop.f32.mrf.mxu0
        %v3943 = vadd.f32 %v3854, %v3942
        %v3944 = vpop.f32.mrf.mxu0
        %v3945 = vadd.f32 %v3856, %v3944
        %3946 = vmatmul.bf16.gmra.mxu0 %v671
        %v3947 = vpop.f32.mrf.mxu0
        %v3948 = vadd.f32 %v3859, %v3947
        %v3949 = vpop.f32.mrf.mxu0
        %v3950 = vadd.f32 %v3861, %v3949
        %3951 = vmatmul.bf16.gmra.mxu0 %v679
        %v3952 = vpop.f32.mrf.mxu0
        %v3953 = vadd.f32 %v3864, %v3952
        %v3954 = vpop.f32.mrf.mxu0
        %v3955 = vadd.f32 %v3866, %v3954
        %3956 = vmatmul.bf16.gmra.mxu0 %v687
        %v3957 = vpop.f32.mrf.mxu0
        %v3958 = vadd.f32 %v3869, %v3957
        %v3959 = vpop.f32.mrf.mxu0
        %v3960 = vadd.f32 %v3871, %v3959
        %3961 = vdwg.mxu0
        %3962 = vmatpush.bf16.msra.mxu0 %v2944
        %3963 = vmatpush.bf16.msra.mxu0 %v2936
        %3964 = vmatpush.bf16.msra.mxu0 %v2928
        %3965 = vmatpush.bf16.msra.mxu0 %v2920
        %3966 = vmatpush.bf16.msra.mxu0 %v2912
        %3967 = vmatpush.bf16.msra.mxu0 %v2904
        %3968 = vmatpush.bf16.msra.mxu0 %v2896
        %3969 = vmatpush.bf16.msra.mxu0 %v2888
        %3970 = vmatmul.bf16.gmra.mxu0 %v568
        %v3971 = vpop.f32.mrf.mxu0
        %v3972 = vadd.f32 %v3883, %v3971
        %v3973 = vpop.f32.mrf.mxu0
        %v3974 = vadd.f32 %v3885, %v3973
        %3975 = vmatmul.bf16.gmra.mxu0 %v576
        %v3976 = vpop.f32.mrf.mxu0
        %v3977 = vadd.f32 %v3888, %v3976
        %v3978 = vpop.f32.mrf.mxu0
        %v3979 = vadd.f32 %v3890, %v3978
        %3980 = vmatmul.bf16.gmra.mxu0 %v584
        %v3981 = vpop.f32.mrf.mxu0
        %v3982 = vadd.f32 %v3893, %v3981
        %v3983 = vpop.f32.mrf.mxu0
        %v3984 = vadd.f32 %v3895, %v3983
        %3985 = vmatmul.bf16.gmra.mxu0 %v592
        %v3986 = vpop.f32.mrf.mxu0
        %v3987 = vadd.f32 %v3898, %v3986
        %v3988 = vpop.f32.mrf.mxu0
        %v3989 = vadd.f32 %v3900, %v3988
        %3990 = vmatmul.bf16.gmra.mxu0 %v600
        %v3991 = vpop.f32.mrf.mxu0
        %v3992 = vadd.f32 %v3903, %v3991
        %v3993 = vpop.f32.mrf.mxu0
        %v3994 = vadd.f32 %v3905, %v3993
        %3995 = vmatmul.bf16.gmra.mxu0 %v608
        %v3996 = vpop.f32.mrf.mxu0
        %v3997 = vadd.f32 %v3908, %v3996
        %v3998 = vpop.f32.mrf.mxu0
        %v3999 = vadd.f32 %v3910, %v3998
        %4000 = vmatmul.bf16.gmra.mxu0 %v616
        %v4001 = vpop.f32.mrf.mxu0
        %v4002 = vadd.f32 %v3913, %v4001
        %v4003 = vpop.f32.mrf.mxu0
        %v4004 = vadd.f32 %v3915, %v4003
        %4005 = vmatmul.bf16.gmra.mxu0 %v624
        %v4006 = vpop.f32.mrf.mxu0
        %v4007 = vadd.f32 %v3918, %v4006
        %v4008 = vpop.f32.mrf.mxu0
        %v4009 = vadd.f32 %v3920, %v4008
        %4010 = vmatmul.bf16.gmra.mxu0 %v632
        %v4011 = vpop.f32.mrf.mxu0
        %v4012 = vadd.f32 %v3923, %v4011
        %v4013 = vpop.f32.mrf.mxu0
        %v4014 = vadd.f32 %v3925, %v4013
        %4015 = vmatmul.bf16.gmra.mxu0 %v640
        %v4016 = vpop.f32.mrf.mxu0
        %v4017 = vadd.f32 %v3928, %v4016
        %v4018 = vpop.f32.mrf.mxu0
        %v4019 = vadd.f32 %v3930, %v4018
        %4020 = vmatmul.bf16.gmra.mxu0 %v648
        %v4021 = vpop.f32.mrf.mxu0
        %v4022 = vadd.f32 %v3933, %v4021
        %v4023 = vpop.f32.mrf.mxu0
        %v4024 = vadd.f32 %v3935, %v4023
        %4025 = vmatmul.bf16.gmra.mxu0 %v656
        %v4026 = vpop.f32.mrf.mxu0
        %v4027 = vadd.f32 %v3938, %v4026
        %v4028 = vpop.f32.mrf.mxu0
        %v4029 = vadd.f32 %v3940, %v4028
        %4030 = vmatmul.bf16.gmra.mxu0 %v664
        %v4031 = vpop.f32.mrf.mxu0
        %v4032 = vadd.f32 %v3943, %v4031
        %v4033 = vpop.f32.mrf.mxu0
        %v4034 = vadd.f32 %v3945, %v4033
        %4035 = vmatmul.bf16.gmra.mxu0 %v672
        %v4036 = vpop.f32.mrf.mxu0
        %v4037 = vadd.f32 %v3948, %v4036
        %v4038 = vpop.f32.mrf.mxu0
        %v4039 = vadd.f32 %v3950, %v4038
        %4040 = vmatmul.bf16.gmra.mxu0 %v680
        %v4041 = vpop.f32.mrf.mxu0
        %v4042 = vadd.f32 %v3953, %v4041
        %v4043 = vpop.f32.mrf.mxu0
        %v4044 = vadd.f32 %v3955, %v4043
        %4045 = vmatmul.bf16.gmra.mxu0 %v688
        %v4046 = vpop.f32.mrf.mxu0
        %v4047 = vadd.f32 %v3958, %v4046
        %v4048 = vpop.f32.mrf.mxu0
        %v4049 = vadd.f32 %v3960, %v4048
        %4050 = vdwg.mxu0
        %4051 = vmatpush.bf16.msra.mxu0 %v3008
        %4052 = vmatpush.bf16.msra.mxu0 %v3000
        %4053 = vmatpush.bf16.msra.mxu0 %v2992
        %4054 = vmatpush.bf16.msra.mxu0 %v2984
        %4055 = vmatpush.bf16.msra.mxu0 %v2976
        %4056 = vmatpush.bf16.msra.mxu0 %v2968
        %4057 = vmatpush.bf16.msra.mxu0 %v2960
        %4058 = vmatpush.bf16.msra.mxu0 %v2952
        %4059 = vmatmul.bf16.gmra.mxu0 %v569
        %v4060 = vpop.f32.mrf.mxu0
        %v4061 = vadd.f32 %v3972, %v4060
        %v4062 = vpop.f32.mrf.mxu0
        %v4063 = vadd.f32 %v3974, %v4062
        %4064 = vmatmul.bf16.gmra.mxu0 %v577
        %v4065 = vpop.f32.mrf.mxu0
        %v4066 = vadd.f32 %v3977, %v4065
        %v4067 = vpop.f32.mrf.mxu0
        %v4068 = vadd.f32 %v3979, %v4067
        %4069 = vmatmul.bf16.gmra.mxu0 %v585
        %v4070 = vpop.f32.mrf.mxu0
        %v4071 = vadd.f32 %v3982, %v4070
        %v4072 = vpop.f32.mrf.mxu0
        %v4073 = vadd.f32 %v3984, %v4072
        %4074 = vmatmul.bf16.gmra.mxu0 %v593
        %v4075 = vpop.f32.mrf.mxu0
        %v4076 = vadd.f32 %v3987, %v4075
        %v4077 = vpop.f32.mrf.mxu0
        %v4078 = vadd.f32 %v3989, %v4077
        %4079 = vmatmul.bf16.gmra.mxu0 %v601
        %v4080 = vpop.f32.mrf.mxu0
        %v4081 = vadd.f32 %v3992, %v4080
        %v4082 = vpop.f32.mrf.mxu0
        %v4083 = vadd.f32 %v3994, %v4082
        %4084 = vmatmul.bf16.gmra.mxu0 %v609
        %v4085 = vpop.f32.mrf.mxu0
        %v4086 = vadd.f32 %v3997, %v4085
        %v4087 = vpop.f32.mrf.mxu0
        %v4088 = vadd.f32 %v3999, %v4087
        %4089 = vmatmul.bf16.gmra.mxu0 %v617
        %v4090 = vpop.f32.mrf.mxu0
        %v4091 = vadd.f32 %v4002, %v4090
        %v4092 = vpop.f32.mrf.mxu0
        %v4093 = vadd.f32 %v4004, %v4092
        %4094 = vmatmul.bf16.gmra.mxu0 %v625
        %v4095 = vpop.f32.mrf.mxu0
        %v4096 = vadd.f32 %v4007, %v4095
        %v4097 = vpop.f32.mrf.mxu0
        %v4098 = vadd.f32 %v4009, %v4097
        %4099 = vmatmul.bf16.gmra.mxu0 %v633
        %v4100 = vpop.f32.mrf.mxu0
        %v4101 = vadd.f32 %v4012, %v4100
        %v4102 = vpop.f32.mrf.mxu0
        %v4103 = vadd.f32 %v4014, %v4102
        %4104 = vmatmul.bf16.gmra.mxu0 %v641
        %v4105 = vpop.f32.mrf.mxu0
        %v4106 = vadd.f32 %v4017, %v4105
        %v4107 = vpop.f32.mrf.mxu0
        %v4108 = vadd.f32 %v4019, %v4107
        %4109 = vmatmul.bf16.gmra.mxu0 %v649
        %v4110 = vpop.f32.mrf.mxu0
        %v4111 = vadd.f32 %v4022, %v4110
        %v4112 = vpop.f32.mrf.mxu0
        %v4113 = vadd.f32 %v4024, %v4112
        %4114 = vmatmul.bf16.gmra.mxu0 %v657
        %v4115 = vpop.f32.mrf.mxu0
        %v4116 = vadd.f32 %v4027, %v4115
        %v4117 = vpop.f32.mrf.mxu0
        %v4118 = vadd.f32 %v4029, %v4117
        %4119 = vmatmul.bf16.gmra.mxu0 %v665
        %v4120 = vpop.f32.mrf.mxu0
        %v4121 = vadd.f32 %v4032, %v4120
        %v4122 = vpop.f32.mrf.mxu0
        %v4123 = vadd.f32 %v4034, %v4122
        %4124 = vmatmul.bf16.gmra.mxu0 %v673
        %v4125 = vpop.f32.mrf.mxu0
        %v4126 = vadd.f32 %v4037, %v4125
        %v4127 = vpop.f32.mrf.mxu0
        %v4128 = vadd.f32 %v4039, %v4127
        %4129 = vmatmul.bf16.gmra.mxu0 %v681
        %v4130 = vpop.f32.mrf.mxu0
        %v4131 = vadd.f32 %v4042, %v4130
        %v4132 = vpop.f32.mrf.mxu0
        %v4133 = vadd.f32 %v4044, %v4132
        %4134 = vmatmul.bf16.gmra.mxu0 %v689
        %v4135 = vpop.f32.mrf.mxu0
        %v4136 = vadd.f32 %v4047, %v4135
        %v4137 = vpop.f32.mrf.mxu0
        %v4138 = vadd.f32 %v4049, %v4137
        %4139 = vdwg.mxu0
        %4140 = vmatpush.bf16.msra.mxu0 %v3072
        %4141 = vmatpush.bf16.msra.mxu0 %v3064
        %4142 = vmatpush.bf16.msra.mxu0 %v3056
        %4143 = vmatpush.bf16.msra.mxu0 %v3048
        %4144 = vmatpush.bf16.msra.mxu0 %v3040
        %4145 = vmatpush.bf16.msra.mxu0 %v3032
        %4146 = vmatpush.bf16.msra.mxu0 %v3024
        %4147 = vmatpush.bf16.msra.mxu0 %v3016
        %4148 = vmatmul.bf16.gmra.mxu0 %v570
        %v4149 = vpop.f32.mrf.mxu0
        %v4150 = vadd.f32 %v4061, %v4149
        %v4151 = vpop.f32.mrf.mxu0
        %v4152 = vadd.f32 %v4063, %v4151
        %4153 = vmatmul.bf16.gmra.mxu0 %v578
        %v4154 = vpop.f32.mrf.mxu0
        %v4155 = vadd.f32 %v4066, %v4154
        %v4156 = vpop.f32.mrf.mxu0
        %v4157 = vadd.f32 %v4068, %v4156
        %4158 = vmatmul.bf16.gmra.mxu0 %v586
        %v4159 = vpop.f32.mrf.mxu0
        %v4160 = vadd.f32 %v4071, %v4159
        %v4161 = vpop.f32.mrf.mxu0
        %v4162 = vadd.f32 %v4073, %v4161
        %4163 = vmatmul.bf16.gmra.mxu0 %v594
        %v4164 = vpop.f32.mrf.mxu0
        %v4165 = vadd.f32 %v4076, %v4164
        %v4166 = vpop.f32.mrf.mxu0
        %v4167 = vadd.f32 %v4078, %v4166
        %4168 = vmatmul.bf16.gmra.mxu0 %v602
        %v4169 = vpop.f32.mrf.mxu0
        %v4170 = vadd.f32 %v4081, %v4169
        %v4171 = vpop.f32.mrf.mxu0
        %v4172 = vadd.f32 %v4083, %v4171
        %4173 = vmatmul.bf16.gmra.mxu0 %v610
        %v4174 = vpop.f32.mrf.mxu0
        %v4175 = vadd.f32 %v4086, %v4174
        %v4176 = vpop.f32.mrf.mxu0
        %v4177 = vadd.f32 %v4088, %v4176
        %4178 = vmatmul.bf16.gmra.mxu0 %v618
        %v4179 = vpop.f32.mrf.mxu0
        %v4180 = vadd.f32 %v4091, %v4179
        %v4181 = vpop.f32.mrf.mxu0
        %v4182 = vadd.f32 %v4093, %v4181
        %4183 = vmatmul.bf16.gmra.mxu0 %v626
        %v4184 = vpop.f32.mrf.mxu0
        %v4185 = vadd.f32 %v4096, %v4184
        %v4186 = vpop.f32.mrf.mxu0
        %v4187 = vadd.f32 %v4098, %v4186
        %4188 = vmatmul.bf16.gmra.mxu0 %v634
        %v4189 = vpop.f32.mrf.mxu0
        %v4190 = vadd.f32 %v4101, %v4189
        %v4191 = vpop.f32.mrf.mxu0
        %v4192 = vadd.f32 %v4103, %v4191
        %4193 = vmatmul.bf16.gmra.mxu0 %v642
        %v4194 = vpop.f32.mrf.mxu0
        %v4195 = vadd.f32 %v4106, %v4194
        %v4196 = vpop.f32.mrf.mxu0
        %v4197 = vadd.f32 %v4108, %v4196
        %4198 = vmatmul.bf16.gmra.mxu0 %v650
        %v4199 = vpop.f32.mrf.mxu0
        %v4200 = vadd.f32 %v4111, %v4199
        %v4201 = vpop.f32.mrf.mxu0
        %v4202 = vadd.f32 %v4113, %v4201
        %4203 = vmatmul.bf16.gmra.mxu0 %v658
        %v4204 = vpop.f32.mrf.mxu0
        %v4205 = vadd.f32 %v4116, %v4204
        %v4206 = vpop.f32.mrf.mxu0
        %v4207 = vadd.f32 %v4118, %v4206
        %4208 = vmatmul.bf16.gmra.mxu0 %v666
        %v4209 = vpop.f32.mrf.mxu0
        %v4210 = vadd.f32 %v4121, %v4209
        %v4211 = vpop.f32.mrf.mxu0
        %v4212 = vadd.f32 %v4123, %v4211
        %4213 = vmatmul.bf16.gmra.mxu0 %v674
        %v4214 = vpop.f32.mrf.mxu0
        %v4215 = vadd.f32 %v4126, %v4214
        %v4216 = vpop.f32.mrf.mxu0
        %v4217 = vadd.f32 %v4128, %v4216
        %4218 = vmatmul.bf16.gmra.mxu0 %v682
        %v4219 = vpop.f32.mrf.mxu0
        %v4220 = vadd.f32 %v4131, %v4219
        %v4221 = vpop.f32.mrf.mxu0
        %v4222 = vadd.f32 %v4133, %v4221
        %4223 = vmatmul.bf16.gmra.mxu0 %v690
        %v4224 = vpop.f32.mrf.mxu0
        %v4225 = vadd.f32 %v4136, %v4224
        %v4226 = vpop.f32.mrf.mxu0
        %v4227 = vadd.f32 %v4138, %v4226
        %4228 = vdwg.mxu0
        %4229 = vmatpush.bf16.msra.mxu0 %v3136
        %4230 = vmatpush.bf16.msra.mxu0 %v3128
        %4231 = vmatpush.bf16.msra.mxu0 %v3120
        %4232 = vmatpush.bf16.msra.mxu0 %v3112
        %4233 = vmatpush.bf16.msra.mxu0 %v3104
        %4234 = vmatpush.bf16.msra.mxu0 %v3096
        %4235 = vmatpush.bf16.msra.mxu0 %v3088
        %4236 = vmatpush.bf16.msra.mxu0 %v3080
        %4237 = vmatmul.bf16.gmra.mxu0 %v571
        %v4238 = vpop.f32.mrf.mxu0
        %v4239 = vadd.f32 %v4150, %v4238
        %v4240 = vpop.f32.mrf.mxu0
        %v4241 = vadd.f32 %v4152, %v4240
        %4242 = vmatmul.bf16.gmra.mxu0 %v579
        %v4243 = vpop.f32.mrf.mxu0
        %v4244 = vadd.f32 %v4155, %v4243
        %v4245 = vpop.f32.mrf.mxu0
        %v4246 = vadd.f32 %v4157, %v4245
        %4247 = vmatmul.bf16.gmra.mxu0 %v587
        %v4248 = vpop.f32.mrf.mxu0
        %v4249 = vadd.f32 %v4160, %v4248
        %v4250 = vpop.f32.mrf.mxu0
        %v4251 = vadd.f32 %v4162, %v4250
        %4252 = vmatmul.bf16.gmra.mxu0 %v595
        %v4253 = vpop.f32.mrf.mxu0
        %v4254 = vadd.f32 %v4165, %v4253
        %v4255 = vpop.f32.mrf.mxu0
        %v4256 = vadd.f32 %v4167, %v4255
        %4257 = vmatmul.bf16.gmra.mxu0 %v603
        %v4258 = vpop.f32.mrf.mxu0
        %v4259 = vadd.f32 %v4170, %v4258
        %v4260 = vpop.f32.mrf.mxu0
        %v4261 = vadd.f32 %v4172, %v4260
        %4262 = vmatmul.bf16.gmra.mxu0 %v611
        %v4263 = vpop.f32.mrf.mxu0
        %v4264 = vadd.f32 %v4175, %v4263
        %v4265 = vpop.f32.mrf.mxu0
        %v4266 = vadd.f32 %v4177, %v4265
        %4267 = vmatmul.bf16.gmra.mxu0 %v619
        %v4268 = vpop.f32.mrf.mxu0
        %v4269 = vadd.f32 %v4180, %v4268
        %v4270 = vpop.f32.mrf.mxu0
        %v4271 = vadd.f32 %v4182, %v4270
        %4272 = vmatmul.bf16.gmra.mxu0 %v627
        %v4273 = vpop.f32.mrf.mxu0
        %v4274 = vadd.f32 %v4185, %v4273
        %v4275 = vpop.f32.mrf.mxu0
        %v4276 = vadd.f32 %v4187, %v4275
        %4277 = vmatmul.bf16.gmra.mxu0 %v635
        %v4278 = vpop.f32.mrf.mxu0
        %v4279 = vadd.f32 %v4190, %v4278
        %v4280 = vpop.f32.mrf.mxu0
        %v4281 = vadd.f32 %v4192, %v4280
        %4282 = vmatmul.bf16.gmra.mxu0 %v643
        %v4283 = vpop.f32.mrf.mxu0
        %v4284 = vadd.f32 %v4195, %v4283
        %v4285 = vpop.f32.mrf.mxu0
        %v4286 = vadd.f32 %v4197, %v4285
        %4287 = vmatmul.bf16.gmra.mxu0 %v651
        %v4288 = vpop.f32.mrf.mxu0
        %v4289 = vadd.f32 %v4200, %v4288
        %v4290 = vpop.f32.mrf.mxu0
        %v4291 = vadd.f32 %v4202, %v4290
        %4292 = vmatmul.bf16.gmra.mxu0 %v659
        %v4293 = vpop.f32.mrf.mxu0
        %v4294 = vadd.f32 %v4205, %v4293
        %v4295 = vpop.f32.mrf.mxu0
        %v4296 = vadd.f32 %v4207, %v4295
        %4297 = vmatmul.bf16.gmra.mxu0 %v667
        %v4298 = vpop.f32.mrf.mxu0
        %v4299 = vadd.f32 %v4210, %v4298
        %v4300 = vpop.f32.mrf.mxu0
        %v4301 = vadd.f32 %v4212, %v4300
        %4302 = vmatmul.bf16.gmra.mxu0 %v675
        %v4303 = vpop.f32.mrf.mxu0
        %v4304 = vadd.f32 %v4215, %v4303
        %v4305 = vpop.f32.mrf.mxu0
        %v4306 = vadd.f32 %v4217, %v4305
        %4307 = vmatmul.bf16.gmra.mxu0 %v683
        %v4308 = vpop.f32.mrf.mxu0
        %v4309 = vadd.f32 %v4220, %v4308
        %v4310 = vpop.f32.mrf.mxu0
        %v4311 = vadd.f32 %v4222, %v4310
        %4312 = vmatmul.bf16.gmra.mxu0 %v691
        %v4313 = vpop.f32.mrf.mxu0
        %v4314 = vadd.f32 %v4225, %v4313
        %v4315 = vpop.f32.mrf.mxu0
        %v4316 = vadd.f32 %v4227, %v4315
        %4317 = vdwg.mxu0
        %4318 = vmatpush.bf16.msra.mxu0 %v3200
        %4319 = vmatpush.bf16.msra.mxu0 %v3192
        %4320 = vmatpush.bf16.msra.mxu0 %v3184
        %4321 = vmatpush.bf16.msra.mxu0 %v3176
        %4322 = vmatpush.bf16.msra.mxu0 %v3168
        %4323 = vmatpush.bf16.msra.mxu0 %v3160
        %4324 = vmatpush.bf16.msra.mxu0 %v3152
        %4325 = vmatpush.bf16.msra.mxu0 %v3144
        %4326 = vmatmul.bf16.gmra.mxu0 %v572
        %v4327 = vpop.f32.mrf.mxu0
        %v4328 = vadd.f32 %v4239, %v4327
        %v4329 = vpop.f32.mrf.mxu0
        %v4330 = vadd.f32 %v4241, %v4329
        %4331 = vmatmul.bf16.gmra.mxu0 %v580
        %v4332 = vpop.f32.mrf.mxu0
        %v4333 = vadd.f32 %v4244, %v4332
        %v4334 = vpop.f32.mrf.mxu0
        %v4335 = vadd.f32 %v4246, %v4334
        %4336 = vmatmul.bf16.gmra.mxu0 %v588
        %v4337 = vpop.f32.mrf.mxu0
        %v4338 = vadd.f32 %v4249, %v4337
        %v4339 = vpop.f32.mrf.mxu0
        %v4340 = vadd.f32 %v4251, %v4339
        %4341 = vmatmul.bf16.gmra.mxu0 %v596
        %v4342 = vpop.f32.mrf.mxu0
        %v4343 = vadd.f32 %v4254, %v4342
        %v4344 = vpop.f32.mrf.mxu0
        %v4345 = vadd.f32 %v4256, %v4344
        %4346 = vmatmul.bf16.gmra.mxu0 %v604
        %v4347 = vpop.f32.mrf.mxu0
        %v4348 = vadd.f32 %v4259, %v4347
        %v4349 = vpop.f32.mrf.mxu0
        %v4350 = vadd.f32 %v4261, %v4349
        %4351 = vmatmul.bf16.gmra.mxu0 %v612
        %v4352 = vpop.f32.mrf.mxu0
        %v4353 = vadd.f32 %v4264, %v4352
        %v4354 = vpop.f32.mrf.mxu0
        %v4355 = vadd.f32 %v4266, %v4354
        %4356 = vmatmul.bf16.gmra.mxu0 %v620
        %v4357 = vpop.f32.mrf.mxu0
        %v4358 = vadd.f32 %v4269, %v4357
        %v4359 = vpop.f32.mrf.mxu0
        %v4360 = vadd.f32 %v4271, %v4359
        %4361 = vmatmul.bf16.gmra.mxu0 %v628
        %v4362 = vpop.f32.mrf.mxu0
        %v4363 = vadd.f32 %v4274, %v4362
        %v4364 = vpop.f32.mrf.mxu0
        %v4365 = vadd.f32 %v4276, %v4364
        %4366 = vmatmul.bf16.gmra.mxu0 %v636
        %v4367 = vpop.f32.mrf.mxu0
        %v4368 = vadd.f32 %v4279, %v4367
        %v4369 = vpop.f32.mrf.mxu0
        %v4370 = vadd.f32 %v4281, %v4369
        %4371 = vmatmul.bf16.gmra.mxu0 %v644
        %v4372 = vpop.f32.mrf.mxu0
        %v4373 = vadd.f32 %v4284, %v4372
        %v4374 = vpop.f32.mrf.mxu0
        %v4375 = vadd.f32 %v4286, %v4374
        %4376 = vmatmul.bf16.gmra.mxu0 %v652
        %v4377 = vpop.f32.mrf.mxu0
        %v4378 = vadd.f32 %v4289, %v4377
        %v4379 = vpop.f32.mrf.mxu0
        %v4380 = vadd.f32 %v4291, %v4379
        %4381 = vmatmul.bf16.gmra.mxu0 %v660
        %v4382 = vpop.f32.mrf.mxu0
        %v4383 = vadd.f32 %v4294, %v4382
        %v4384 = vpop.f32.mrf.mxu0
        %v4385 = vadd.f32 %v4296, %v4384
        %4386 = vmatmul.bf16.gmra.mxu0 %v668
        %v4387 = vpop.f32.mrf.mxu0
        %v4388 = vadd.f32 %v4299, %v4387
        %v4389 = vpop.f32.mrf.mxu0
        %v4390 = vadd.f32 %v4301, %v4389
        %4391 = vmatmul.bf16.gmra.mxu0 %v676
        %v4392 = vpop.f32.mrf.mxu0
        %v4393 = vadd.f32 %v4304, %v4392
        %v4394 = vpop.f32.mrf.mxu0
        %v4395 = vadd.f32 %v4306, %v4394
        %4396 = vmatmul.bf16.gmra.mxu0 %v684
        %v4397 = vpop.f32.mrf.mxu0
        %v4398 = vadd.f32 %v4309, %v4397
        %v4399 = vpop.f32.mrf.mxu0
        %v4400 = vadd.f32 %v4311, %v4399
        %4401 = vmatmul.bf16.gmra.mxu0 %v692
        %v4402 = vpop.f32.mrf.mxu0
        %v4403 = vadd.f32 %v4314, %v4402
        %v4404 = vpop.f32.mrf.mxu0
        %v4405 = vadd.f32 %v4316, %v4404
        %4406 = vdwg.mxu0
        %4407 = vmatpush.bf16.msra.mxu0 %v3264
        %4408 = vmatpush.bf16.msra.mxu0 %v3256
        %4409 = vmatpush.bf16.msra.mxu0 %v3248
        %4410 = vmatpush.bf16.msra.mxu0 %v3240
        %4411 = vmatpush.bf16.msra.mxu0 %v3232
        %4412 = vmatpush.bf16.msra.mxu0 %v3224
        %4413 = vmatpush.bf16.msra.mxu0 %v3216
        %4414 = vmatpush.bf16.msra.mxu0 %v3208
        %4415 = vmatmul.bf16.gmra.mxu0 %v573
        %v4416 = vpop.f32.mrf.mxu0
        %v4417 = vadd.f32 %v4328, %v4416
        %v4418 = vpop.f32.mrf.mxu0
        %v4419 = vadd.f32 %v4330, %v4418
        %4420 = vmatmul.bf16.gmra.mxu0 %v581
        %v4421 = vpop.f32.mrf.mxu0
        %v4422 = vadd.f32 %v4333, %v4421
        %v4423 = vpop.f32.mrf.mxu0
        %v4424 = vadd.f32 %v4335, %v4423
        %4425 = vmatmul.bf16.gmra.mxu0 %v589
        %v4426 = vpop.f32.mrf.mxu0
        %v4427 = vadd.f32 %v4338, %v4426
        %v4428 = vpop.f32.mrf.mxu0
        %v4429 = vadd.f32 %v4340, %v4428
        %4430 = vmatmul.bf16.gmra.mxu0 %v597
        %v4431 = vpop.f32.mrf.mxu0
        %v4432 = vadd.f32 %v4343, %v4431
        %v4433 = vpop.f32.mrf.mxu0
        %v4434 = vadd.f32 %v4345, %v4433
        %4435 = vmatmul.bf16.gmra.mxu0 %v605
        %v4436 = vpop.f32.mrf.mxu0
        %v4437 = vadd.f32 %v4348, %v4436
        %v4438 = vpop.f32.mrf.mxu0
        %v4439 = vadd.f32 %v4350, %v4438
        %4440 = vmatmul.bf16.gmra.mxu0 %v613
        %v4441 = vpop.f32.mrf.mxu0
        %v4442 = vadd.f32 %v4353, %v4441
        %v4443 = vpop.f32.mrf.mxu0
        %v4444 = vadd.f32 %v4355, %v4443
        %4445 = vmatmul.bf16.gmra.mxu0 %v621
        %v4446 = vpop.f32.mrf.mxu0
        %v4447 = vadd.f32 %v4358, %v4446
        %v4448 = vpop.f32.mrf.mxu0
        %v4449 = vadd.f32 %v4360, %v4448
        %4450 = vmatmul.bf16.gmra.mxu0 %v629
        %v4451 = vpop.f32.mrf.mxu0
        %v4452 = vadd.f32 %v4363, %v4451
        %v4453 = vpop.f32.mrf.mxu0
        %v4454 = vadd.f32 %v4365, %v4453
        %4455 = vmatmul.bf16.gmra.mxu0 %v637
        %v4456 = vpop.f32.mrf.mxu0
        %v4457 = vadd.f32 %v4368, %v4456
        %v4458 = vpop.f32.mrf.mxu0
        %v4459 = vadd.f32 %v4370, %v4458
        %4460 = vmatmul.bf16.gmra.mxu0 %v645
        %v4461 = vpop.f32.mrf.mxu0
        %v4462 = vadd.f32 %v4373, %v4461
        %v4463 = vpop.f32.mrf.mxu0
        %v4464 = vadd.f32 %v4375, %v4463
        %4465 = vmatmul.bf16.gmra.mxu0 %v653
        %v4466 = vpop.f32.mrf.mxu0
        %v4467 = vadd.f32 %v4378, %v4466
        %v4468 = vpop.f32.mrf.mxu0
        %v4469 = vadd.f32 %v4380, %v4468
        %4470 = vmatmul.bf16.gmra.mxu0 %v661
        %v4471 = vpop.f32.mrf.mxu0
        %v4472 = vadd.f32 %v4383, %v4471
        %v4473 = vpop.f32.mrf.mxu0
        %v4474 = vadd.f32 %v4385, %v4473
        %4475 = vmatmul.bf16.gmra.mxu0 %v669
        %v4476 = vpop.f32.mrf.mxu0
        %v4477 = vadd.f32 %v4388, %v4476
        %v4478 = vpop.f32.mrf.mxu0
        %v4479 = vadd.f32 %v4390, %v4478
        %4480 = vmatmul.bf16.gmra.mxu0 %v677
        %v4481 = vpop.f32.mrf.mxu0
        %v4482 = vadd.f32 %v4393, %v4481
        %v4483 = vpop.f32.mrf.mxu0
        %v4484 = vadd.f32 %v4395, %v4483
        %4485 = vmatmul.bf16.gmra.mxu0 %v685
        %v4486 = vpop.f32.mrf.mxu0
        %v4487 = vadd.f32 %v4398, %v4486
        %v4488 = vpop.f32.mrf.mxu0
        %v4489 = vadd.f32 %v4400, %v4488
        %4490 = vmatmul.bf16.gmra.mxu0 %v693
        %v4491 = vpop.f32.mrf.mxu0
        %v4492 = vadd.f32 %v4403, %v4491
        %v4493 = vpop.f32.mrf.mxu0
        %v4494 = vadd.f32 %v4405, %v4493
        %4495 = vdwg.mxu0
        %4496 = vmatpush.bf16.msra.mxu0 %v2817
        %4497 = vmatpush.bf16.msra.mxu0 %v2809
        %4498 = vmatpush.bf16.msra.mxu0 %v2801
        %4499 = vmatpush.bf16.msra.mxu0 %v2793
        %4500 = vmatpush.bf16.msra.mxu0 %v2785
        %4501 = vmatpush.bf16.msra.mxu0 %v2777
        %4502 = vmatpush.bf16.msra.mxu0 %v2769
        %4503 = vmatpush.bf16.msra.mxu0 %v2761
        %4504 = vmatmul.bf16.gmra.mxu0 %v566
        %v4505 = vpop.f32.mrf.mxu0
        %v4506 = vadd.f32 %v1209, %v4505
        %v4507 = vpop.f32.mrf.mxu0
        %v4508 = vadd.f32 %v1209, %v4507
        %4509 = vmatmul.bf16.gmra.mxu0 %v574
        %v4510 = vpop.f32.mrf.mxu0
        %v4511 = vadd.f32 %v1209, %v4510
        %v4512 = vpop.f32.mrf.mxu0
        %v4513 = vadd.f32 %v1209, %v4512
        %4514 = vmatmul.bf16.gmra.mxu0 %v582
        %v4515 = vpop.f32.mrf.mxu0
        %v4516 = vadd.f32 %v1209, %v4515
        %v4517 = vpop.f32.mrf.mxu0
        %v4518 = vadd.f32 %v1209, %v4517
        %4519 = vmatmul.bf16.gmra.mxu0 %v590
        %v4520 = vpop.f32.mrf.mxu0
        %v4521 = vadd.f32 %v1209, %v4520
        %v4522 = vpop.f32.mrf.mxu0
        %v4523 = vadd.f32 %v1209, %v4522
        %4524 = vmatmul.bf16.gmra.mxu0 %v598
        %v4525 = vpop.f32.mrf.mxu0
        %v4526 = vadd.f32 %v1209, %v4525
        %v4527 = vpop.f32.mrf.mxu0
        %v4528 = vadd.f32 %v1209, %v4527
        %4529 = vmatmul.bf16.gmra.mxu0 %v606
        %v4530 = vpop.f32.mrf.mxu0
        %v4531 = vadd.f32 %v1209, %v4530
        %v4532 = vpop.f32.mrf.mxu0
        %v4533 = vadd.f32 %v1209, %v4532
        %4534 = vmatmul.bf16.gmra.mxu0 %v614
        %v4535 = vpop.f32.mrf.mxu0
        %v4536 = vadd.f32 %v1209, %v4535
        %v4537 = vpop.f32.mrf.mxu0
        %v4538 = vadd.f32 %v1209, %v4537
        %4539 = vmatmul.bf16.gmra.mxu0 %v622
        %v4540 = vpop.f32.mrf.mxu0
        %v4541 = vadd.f32 %v1209, %v4540
        %v4542 = vpop.f32.mrf.mxu0
        %v4543 = vadd.f32 %v1209, %v4542
        %4544 = vmatmul.bf16.gmra.mxu0 %v630
        %v4545 = vpop.f32.mrf.mxu0
        %v4546 = vadd.f32 %v1209, %v4545
        %v4547 = vpop.f32.mrf.mxu0
        %v4548 = vadd.f32 %v1209, %v4547
        %4549 = vmatmul.bf16.gmra.mxu0 %v638
        %v4550 = vpop.f32.mrf.mxu0
        %v4551 = vadd.f32 %v1209, %v4550
        %v4552 = vpop.f32.mrf.mxu0
        %v4553 = vadd.f32 %v1209, %v4552
        %4554 = vmatmul.bf16.gmra.mxu0 %v646
        %v4555 = vpop.f32.mrf.mxu0
        %v4556 = vadd.f32 %v1209, %v4555
        %v4557 = vpop.f32.mrf.mxu0
        %v4558 = vadd.f32 %v1209, %v4557
        %4559 = vmatmul.bf16.gmra.mxu0 %v654
        %v4560 = vpop.f32.mrf.mxu0
        %v4561 = vadd.f32 %v1209, %v4560
        %v4562 = vpop.f32.mrf.mxu0
        %v4563 = vadd.f32 %v1209, %v4562
        %4564 = vmatmul.bf16.gmra.mxu0 %v662
        %v4565 = vpop.f32.mrf.mxu0
        %v4566 = vadd.f32 %v1209, %v4565
        %v4567 = vpop.f32.mrf.mxu0
        %v4568 = vadd.f32 %v1209, %v4567
        %4569 = vmatmul.bf16.gmra.mxu0 %v670
        %v4570 = vpop.f32.mrf.mxu0
        %v4571 = vadd.f32 %v1209, %v4570
        %v4572 = vpop.f32.mrf.mxu0
        %v4573 = vadd.f32 %v1209, %v4572
        %4574 = vmatmul.bf16.gmra.mxu0 %v678
        %v4575 = vpop.f32.mrf.mxu0
        %v4576 = vadd.f32 %v1209, %v4575
        %v4577 = vpop.f32.mrf.mxu0
        %v4578 = vadd.f32 %v1209, %v4577
        %4579 = vmatmul.bf16.gmra.mxu0 %v686
        %v4580 = vpop.f32.mrf.mxu0
        %v4581 = vadd.f32 %v1209, %v4580
        %v4582 = vpop.f32.mrf.mxu0
        %v4583 = vadd.f32 %v1209, %v4582
        %4584 = vdwg.mxu0
        %4585 = vmatpush.bf16.msra.mxu0 %v2881
        %4586 = vmatpush.bf16.msra.mxu0 %v2873
        %4587 = vmatpush.bf16.msra.mxu0 %v2865
        %4588 = vmatpush.bf16.msra.mxu0 %v2857
        %4589 = vmatpush.bf16.msra.mxu0 %v2849
        %4590 = vmatpush.bf16.msra.mxu0 %v2841
        %4591 = vmatpush.bf16.msra.mxu0 %v2833
        %4592 = vmatpush.bf16.msra.mxu0 %v2825
        %4593 = vmatmul.bf16.gmra.mxu0 %v567
        %v4594 = vpop.f32.mrf.mxu0
        %v4595 = vadd.f32 %v4506, %v4594
        %v4596 = vpop.f32.mrf.mxu0
        %v4597 = vadd.f32 %v4508, %v4596
        %4598 = vmatmul.bf16.gmra.mxu0 %v575
        %v4599 = vpop.f32.mrf.mxu0
        %v4600 = vadd.f32 %v4511, %v4599
        %v4601 = vpop.f32.mrf.mxu0
        %v4602 = vadd.f32 %v4513, %v4601
        %4603 = vmatmul.bf16.gmra.mxu0 %v583
        %v4604 = vpop.f32.mrf.mxu0
        %v4605 = vadd.f32 %v4516, %v4604
        %v4606 = vpop.f32.mrf.mxu0
        %v4607 = vadd.f32 %v4518, %v4606
        %4608 = vmatmul.bf16.gmra.mxu0 %v591
        %v4609 = vpop.f32.mrf.mxu0
        %v4610 = vadd.f32 %v4521, %v4609
        %v4611 = vpop.f32.mrf.mxu0
        %v4612 = vadd.f32 %v4523, %v4611
        %4613 = vmatmul.bf16.gmra.mxu0 %v599
        %v4614 = vpop.f32.mrf.mxu0
        %v4615 = vadd.f32 %v4526, %v4614
        %v4616 = vpop.f32.mrf.mxu0
        %v4617 = vadd.f32 %v4528, %v4616
        %4618 = vmatmul.bf16.gmra.mxu0 %v607
        %v4619 = vpop.f32.mrf.mxu0
        %v4620 = vadd.f32 %v4531, %v4619
        %v4621 = vpop.f32.mrf.mxu0
        %v4622 = vadd.f32 %v4533, %v4621
        %4623 = vmatmul.bf16.gmra.mxu0 %v615
        %v4624 = vpop.f32.mrf.mxu0
        %v4625 = vadd.f32 %v4536, %v4624
        %v4626 = vpop.f32.mrf.mxu0
        %v4627 = vadd.f32 %v4538, %v4626
        %4628 = vmatmul.bf16.gmra.mxu0 %v623
        %v4629 = vpop.f32.mrf.mxu0
        %v4630 = vadd.f32 %v4541, %v4629
        %v4631 = vpop.f32.mrf.mxu0
        %v4632 = vadd.f32 %v4543, %v4631
        %4633 = vmatmul.bf16.gmra.mxu0 %v631
        %v4634 = vpop.f32.mrf.mxu0
        %v4635 = vadd.f32 %v4546, %v4634
        %v4636 = vpop.f32.mrf.mxu0
        %v4637 = vadd.f32 %v4548, %v4636
        %4638 = vmatmul.bf16.gmra.mxu0 %v639
        %v4639 = vpop.f32.mrf.mxu0
        %v4640 = vadd.f32 %v4551, %v4639
        %v4641 = vpop.f32.mrf.mxu0
        %v4642 = vadd.f32 %v4553, %v4641
        %4643 = vmatmul.bf16.gmra.mxu0 %v647
        %v4644 = vpop.f32.mrf.mxu0
        %v4645 = vadd.f32 %v4556, %v4644
        %v4646 = vpop.f32.mrf.mxu0
        %v4647 = vadd.f32 %v4558, %v4646
        %4648 = vmatmul.bf16.gmra.mxu0 %v655
        %v4649 = vpop.f32.mrf.mxu0
        %v4650 = vadd.f32 %v4561, %v4649
        %v4651 = vpop.f32.mrf.mxu0
        %v4652 = vadd.f32 %v4563, %v4651
        %4653 = vmatmul.bf16.gmra.mxu0 %v663
        %v4654 = vpop.f32.mrf.mxu0
        %v4655 = vadd.f32 %v4566, %v4654
        %v4656 = vpop.f32.mrf.mxu0
        %v4657 = vadd.f32 %v4568, %v4656
        %4658 = vmatmul.bf16.gmra.mxu0 %v671
        %v4659 = vpop.f32.mrf.mxu0
        %v4660 = vadd.f32 %v4571, %v4659
        %v4661 = vpop.f32.mrf.mxu0
        %v4662 = vadd.f32 %v4573, %v4661
        %4663 = vmatmul.bf16.gmra.mxu0 %v679
        %v4664 = vpop.f32.mrf.mxu0
        %v4665 = vadd.f32 %v4576, %v4664
        %v4666 = vpop.f32.mrf.mxu0
        %v4667 = vadd.f32 %v4578, %v4666
        %4668 = vmatmul.bf16.gmra.mxu0 %v687
        %v4669 = vpop.f32.mrf.mxu0
        %v4670 = vadd.f32 %v4581, %v4669
        %v4671 = vpop.f32.mrf.mxu0
        %v4672 = vadd.f32 %v4583, %v4671
        %4673 = vdwg.mxu0
        %4674 = vmatpush.bf16.msra.mxu0 %v2945
        %4675 = vmatpush.bf16.msra.mxu0 %v2937
        %4676 = vmatpush.bf16.msra.mxu0 %v2929
        %4677 = vmatpush.bf16.msra.mxu0 %v2921
        %4678 = vmatpush.bf16.msra.mxu0 %v2913
        %4679 = vmatpush.bf16.msra.mxu0 %v2905
        %4680 = vmatpush.bf16.msra.mxu0 %v2897
        %4681 = vmatpush.bf16.msra.mxu0 %v2889
        %4682 = vmatmul.bf16.gmra.mxu0 %v568
        %v4683 = vpop.f32.mrf.mxu0
        %v4684 = vadd.f32 %v4595, %v4683
        %v4685 = vpop.f32.mrf.mxu0
        %v4686 = vadd.f32 %v4597, %v4685
        %4687 = vmatmul.bf16.gmra.mxu0 %v576
        %v4688 = vpop.f32.mrf.mxu0
        %v4689 = vadd.f32 %v4600, %v4688
        %v4690 = vpop.f32.mrf.mxu0
        %v4691 = vadd.f32 %v4602, %v4690
        %4692 = vmatmul.bf16.gmra.mxu0 %v584
        %v4693 = vpop.f32.mrf.mxu0
        %v4694 = vadd.f32 %v4605, %v4693
        %v4695 = vpop.f32.mrf.mxu0
        %v4696 = vadd.f32 %v4607, %v4695
        %4697 = vmatmul.bf16.gmra.mxu0 %v592
        %v4698 = vpop.f32.mrf.mxu0
        %v4699 = vadd.f32 %v4610, %v4698
        %v4700 = vpop.f32.mrf.mxu0
        %v4701 = vadd.f32 %v4612, %v4700
        %4702 = vmatmul.bf16.gmra.mxu0 %v600
        %v4703 = vpop.f32.mrf.mxu0
        %v4704 = vadd.f32 %v4615, %v4703
        %v4705 = vpop.f32.mrf.mxu0
        %v4706 = vadd.f32 %v4617, %v4705
        %4707 = vmatmul.bf16.gmra.mxu0 %v608
        %v4708 = vpop.f32.mrf.mxu0
        %v4709 = vadd.f32 %v4620, %v4708
        %v4710 = vpop.f32.mrf.mxu0
        %v4711 = vadd.f32 %v4622, %v4710
        %4712 = vmatmul.bf16.gmra.mxu0 %v616
        %v4713 = vpop.f32.mrf.mxu0
        %v4714 = vadd.f32 %v4625, %v4713
        %v4715 = vpop.f32.mrf.mxu0
        %v4716 = vadd.f32 %v4627, %v4715
        %4717 = vmatmul.bf16.gmra.mxu0 %v624
        %v4718 = vpop.f32.mrf.mxu0
        %v4719 = vadd.f32 %v4630, %v4718
        %v4720 = vpop.f32.mrf.mxu0
        %v4721 = vadd.f32 %v4632, %v4720
        %4722 = vmatmul.bf16.gmra.mxu0 %v632
        %v4723 = vpop.f32.mrf.mxu0
        %v4724 = vadd.f32 %v4635, %v4723
        %v4725 = vpop.f32.mrf.mxu0
        %v4726 = vadd.f32 %v4637, %v4725
        %4727 = vmatmul.bf16.gmra.mxu0 %v640
        %v4728 = vpop.f32.mrf.mxu0
        %v4729 = vadd.f32 %v4640, %v4728
        %v4730 = vpop.f32.mrf.mxu0
        %v4731 = vadd.f32 %v4642, %v4730
        %4732 = vmatmul.bf16.gmra.mxu0 %v648
        %v4733 = vpop.f32.mrf.mxu0
        %v4734 = vadd.f32 %v4645, %v4733
        %v4735 = vpop.f32.mrf.mxu0
        %v4736 = vadd.f32 %v4647, %v4735
        %4737 = vmatmul.bf16.gmra.mxu0 %v656
        %v4738 = vpop.f32.mrf.mxu0
        %v4739 = vadd.f32 %v4650, %v4738
        %v4740 = vpop.f32.mrf.mxu0
        %v4741 = vadd.f32 %v4652, %v4740
        %4742 = vmatmul.bf16.gmra.mxu0 %v664
        %v4743 = vpop.f32.mrf.mxu0
        %v4744 = vadd.f32 %v4655, %v4743
        %v4745 = vpop.f32.mrf.mxu0
        %v4746 = vadd.f32 %v4657, %v4745
        %4747 = vmatmul.bf16.gmra.mxu0 %v672
        %v4748 = vpop.f32.mrf.mxu0
        %v4749 = vadd.f32 %v4660, %v4748
        %v4750 = vpop.f32.mrf.mxu0
        %v4751 = vadd.f32 %v4662, %v4750
        %4752 = vmatmul.bf16.gmra.mxu0 %v680
        %v4753 = vpop.f32.mrf.mxu0
        %v4754 = vadd.f32 %v4665, %v4753
        %v4755 = vpop.f32.mrf.mxu0
        %v4756 = vadd.f32 %v4667, %v4755
        %4757 = vmatmul.bf16.gmra.mxu0 %v688
        %v4758 = vpop.f32.mrf.mxu0
        %v4759 = vadd.f32 %v4670, %v4758
        %v4760 = vpop.f32.mrf.mxu0
        %v4761 = vadd.f32 %v4672, %v4760
        %4762 = vdwg.mxu0
        %4763 = vmatpush.bf16.msra.mxu0 %v3009
        %4764 = vmatpush.bf16.msra.mxu0 %v3001
        %4765 = vmatpush.bf16.msra.mxu0 %v2993
        %4766 = vmatpush.bf16.msra.mxu0 %v2985
        %4767 = vmatpush.bf16.msra.mxu0 %v2977
        %4768 = vmatpush.bf16.msra.mxu0 %v2969
        %4769 = vmatpush.bf16.msra.mxu0 %v2961
        %4770 = vmatpush.bf16.msra.mxu0 %v2953
        %4771 = vmatmul.bf16.gmra.mxu0 %v569
        %v4772 = vpop.f32.mrf.mxu0
        %v4773 = vadd.f32 %v4684, %v4772
        %v4774 = vpop.f32.mrf.mxu0
        %v4775 = vadd.f32 %v4686, %v4774
        %4776 = vmatmul.bf16.gmra.mxu0 %v577
        %v4777 = vpop.f32.mrf.mxu0
        %v4778 = vadd.f32 %v4689, %v4777
        %v4779 = vpop.f32.mrf.mxu0
        %v4780 = vadd.f32 %v4691, %v4779
        %4781 = vmatmul.bf16.gmra.mxu0 %v585
        %v4782 = vpop.f32.mrf.mxu0
        %v4783 = vadd.f32 %v4694, %v4782
        %v4784 = vpop.f32.mrf.mxu0
        %v4785 = vadd.f32 %v4696, %v4784
        %4786 = vmatmul.bf16.gmra.mxu0 %v593
        %v4787 = vpop.f32.mrf.mxu0
        %v4788 = vadd.f32 %v4699, %v4787
        %v4789 = vpop.f32.mrf.mxu0
        %v4790 = vadd.f32 %v4701, %v4789
        %4791 = vmatmul.bf16.gmra.mxu0 %v601
        %v4792 = vpop.f32.mrf.mxu0
        %v4793 = vadd.f32 %v4704, %v4792
        %v4794 = vpop.f32.mrf.mxu0
        %v4795 = vadd.f32 %v4706, %v4794
        %4796 = vmatmul.bf16.gmra.mxu0 %v609
        %v4797 = vpop.f32.mrf.mxu0
        %v4798 = vadd.f32 %v4709, %v4797
        %v4799 = vpop.f32.mrf.mxu0
        %v4800 = vadd.f32 %v4711, %v4799
        %4801 = vmatmul.bf16.gmra.mxu0 %v617
        %v4802 = vpop.f32.mrf.mxu0
        %v4803 = vadd.f32 %v4714, %v4802
        %v4804 = vpop.f32.mrf.mxu0
        %v4805 = vadd.f32 %v4716, %v4804
        %4806 = vmatmul.bf16.gmra.mxu0 %v625
        %v4807 = vpop.f32.mrf.mxu0
        %v4808 = vadd.f32 %v4719, %v4807
        %v4809 = vpop.f32.mrf.mxu0
        %v4810 = vadd.f32 %v4721, %v4809
        %4811 = vmatmul.bf16.gmra.mxu0 %v633
        %v4812 = vpop.f32.mrf.mxu0
        %v4813 = vadd.f32 %v4724, %v4812
        %v4814 = vpop.f32.mrf.mxu0
        %v4815 = vadd.f32 %v4726, %v4814
        %4816 = vmatmul.bf16.gmra.mxu0 %v641
        %v4817 = vpop.f32.mrf.mxu0
        %v4818 = vadd.f32 %v4729, %v4817
        %v4819 = vpop.f32.mrf.mxu0
        %v4820 = vadd.f32 %v4731, %v4819
        %4821 = vmatmul.bf16.gmra.mxu0 %v649
        %v4822 = vpop.f32.mrf.mxu0
        %v4823 = vadd.f32 %v4734, %v4822
        %v4824 = vpop.f32.mrf.mxu0
        %v4825 = vadd.f32 %v4736, %v4824
        %4826 = vmatmul.bf16.gmra.mxu0 %v657
        %v4827 = vpop.f32.mrf.mxu0
        %v4828 = vadd.f32 %v4739, %v4827
        %v4829 = vpop.f32.mrf.mxu0
        %v4830 = vadd.f32 %v4741, %v4829
        %4831 = vmatmul.bf16.gmra.mxu0 %v665
        %v4832 = vpop.f32.mrf.mxu0
        %v4833 = vadd.f32 %v4744, %v4832
        %v4834 = vpop.f32.mrf.mxu0
        %v4835 = vadd.f32 %v4746, %v4834
        %4836 = vmatmul.bf16.gmra.mxu0 %v673
        %v4837 = vpop.f32.mrf.mxu0
        %v4838 = vadd.f32 %v4749, %v4837
        %v4839 = vpop.f32.mrf.mxu0
        %v4840 = vadd.f32 %v4751, %v4839
        %4841 = vmatmul.bf16.gmra.mxu0 %v681
        %v4842 = vpop.f32.mrf.mxu0
        %v4843 = vadd.f32 %v4754, %v4842
        %v4844 = vpop.f32.mrf.mxu0
        %v4845 = vadd.f32 %v4756, %v4844
        %4846 = vmatmul.bf16.gmra.mxu0 %v689
        %v4847 = vpop.f32.mrf.mxu0
        %v4848 = vadd.f32 %v4759, %v4847
        %v4849 = vpop.f32.mrf.mxu0
        %v4850 = vadd.f32 %v4761, %v4849
        %4851 = vdwg.mxu0
        %4852 = vmatpush.bf16.msra.mxu0 %v3073
        %4853 = vmatpush.bf16.msra.mxu0 %v3065
        %4854 = vmatpush.bf16.msra.mxu0 %v3057
        %4855 = vmatpush.bf16.msra.mxu0 %v3049
        %4856 = vmatpush.bf16.msra.mxu0 %v3041
        %4857 = vmatpush.bf16.msra.mxu0 %v3033
        %4858 = vmatpush.bf16.msra.mxu0 %v3025
        %4859 = vmatpush.bf16.msra.mxu0 %v3017
        %4860 = vmatmul.bf16.gmra.mxu0 %v570
        %v4861 = vpop.f32.mrf.mxu0
        %v4862 = vadd.f32 %v4773, %v4861
        %v4863 = vpop.f32.mrf.mxu0
        %v4864 = vadd.f32 %v4775, %v4863
        %4865 = vmatmul.bf16.gmra.mxu0 %v578
        %v4866 = vpop.f32.mrf.mxu0
        %v4867 = vadd.f32 %v4778, %v4866
        %v4868 = vpop.f32.mrf.mxu0
        %v4869 = vadd.f32 %v4780, %v4868
        %4870 = vmatmul.bf16.gmra.mxu0 %v586
        %v4871 = vpop.f32.mrf.mxu0
        %v4872 = vadd.f32 %v4783, %v4871
        %v4873 = vpop.f32.mrf.mxu0
        %v4874 = vadd.f32 %v4785, %v4873
        %4875 = vmatmul.bf16.gmra.mxu0 %v594
        %v4876 = vpop.f32.mrf.mxu0
        %v4877 = vadd.f32 %v4788, %v4876
        %v4878 = vpop.f32.mrf.mxu0
        %v4879 = vadd.f32 %v4790, %v4878
        %4880 = vmatmul.bf16.gmra.mxu0 %v602
        %v4881 = vpop.f32.mrf.mxu0
        %v4882 = vadd.f32 %v4793, %v4881
        %v4883 = vpop.f32.mrf.mxu0
        %v4884 = vadd.f32 %v4795, %v4883
        %4885 = vmatmul.bf16.gmra.mxu0 %v610
        %v4886 = vpop.f32.mrf.mxu0
        %v4887 = vadd.f32 %v4798, %v4886
        %v4888 = vpop.f32.mrf.mxu0
        %v4889 = vadd.f32 %v4800, %v4888
        %4890 = vmatmul.bf16.gmra.mxu0 %v618
        %v4891 = vpop.f32.mrf.mxu0
        %v4892 = vadd.f32 %v4803, %v4891
        %v4893 = vpop.f32.mrf.mxu0
        %v4894 = vadd.f32 %v4805, %v4893
        %4895 = vmatmul.bf16.gmra.mxu0 %v626
        %v4896 = vpop.f32.mrf.mxu0
        %v4897 = vadd.f32 %v4808, %v4896
        %v4898 = vpop.f32.mrf.mxu0
        %v4899 = vadd.f32 %v4810, %v4898
        %4900 = vmatmul.bf16.gmra.mxu0 %v634
        %v4901 = vpop.f32.mrf.mxu0
        %v4902 = vadd.f32 %v4813, %v4901
        %v4903 = vpop.f32.mrf.mxu0
        %v4904 = vadd.f32 %v4815, %v4903
        %4905 = vmatmul.bf16.gmra.mxu0 %v642
        %v4906 = vpop.f32.mrf.mxu0
        %v4907 = vadd.f32 %v4818, %v4906
        %v4908 = vpop.f32.mrf.mxu0
        %v4909 = vadd.f32 %v4820, %v4908
        %4910 = vmatmul.bf16.gmra.mxu0 %v650
        %v4911 = vpop.f32.mrf.mxu0
        %v4912 = vadd.f32 %v4823, %v4911
        %v4913 = vpop.f32.mrf.mxu0
        %v4914 = vadd.f32 %v4825, %v4913
        %4915 = vmatmul.bf16.gmra.mxu0 %v658
        %v4916 = vpop.f32.mrf.mxu0
        %v4917 = vadd.f32 %v4828, %v4916
        %v4918 = vpop.f32.mrf.mxu0
        %v4919 = vadd.f32 %v4830, %v4918
        %4920 = vmatmul.bf16.gmra.mxu0 %v666
        %v4921 = vpop.f32.mrf.mxu0
        %v4922 = vadd.f32 %v4833, %v4921
        %v4923 = vpop.f32.mrf.mxu0
        %v4924 = vadd.f32 %v4835, %v4923
        %4925 = vmatmul.bf16.gmra.mxu0 %v674
        %v4926 = vpop.f32.mrf.mxu0
        %v4927 = vadd.f32 %v4838, %v4926
        %v4928 = vpop.f32.mrf.mxu0
        %v4929 = vadd.f32 %v4840, %v4928
        %4930 = vmatmul.bf16.gmra.mxu0 %v682
        %v4931 = vpop.f32.mrf.mxu0
        %v4932 = vadd.f32 %v4843, %v4931
        %v4933 = vpop.f32.mrf.mxu0
        %v4934 = vadd.f32 %v4845, %v4933
        %4935 = vmatmul.bf16.gmra.mxu0 %v690
        %v4936 = vpop.f32.mrf.mxu0
        %v4937 = vadd.f32 %v4848, %v4936
        %v4938 = vpop.f32.mrf.mxu0
        %v4939 = vadd.f32 %v4850, %v4938
        %4940 = vdwg.mxu0
        %4941 = vmatpush.bf16.msra.mxu0 %v3137
        %4942 = vmatpush.bf16.msra.mxu0 %v3129
        %4943 = vmatpush.bf16.msra.mxu0 %v3121
        %4944 = vmatpush.bf16.msra.mxu0 %v3113
        %4945 = vmatpush.bf16.msra.mxu0 %v3105
        %4946 = vmatpush.bf16.msra.mxu0 %v3097
        %4947 = vmatpush.bf16.msra.mxu0 %v3089
        %4948 = vmatpush.bf16.msra.mxu0 %v3081
        %4949 = vmatmul.bf16.gmra.mxu0 %v571
        %v4950 = vpop.f32.mrf.mxu0
        %v4951 = vadd.f32 %v4862, %v4950
        %v4952 = vpop.f32.mrf.mxu0
        %v4953 = vadd.f32 %v4864, %v4952
        %4954 = vmatmul.bf16.gmra.mxu0 %v579
        %v4955 = vpop.f32.mrf.mxu0
        %v4956 = vadd.f32 %v4867, %v4955
        %v4957 = vpop.f32.mrf.mxu0
        %v4958 = vadd.f32 %v4869, %v4957
        %4959 = vmatmul.bf16.gmra.mxu0 %v587
        %v4960 = vpop.f32.mrf.mxu0
        %v4961 = vadd.f32 %v4872, %v4960
        %v4962 = vpop.f32.mrf.mxu0
        %v4963 = vadd.f32 %v4874, %v4962
        %4964 = vmatmul.bf16.gmra.mxu0 %v595
        %v4965 = vpop.f32.mrf.mxu0
        %v4966 = vadd.f32 %v4877, %v4965
        %v4967 = vpop.f32.mrf.mxu0
        %v4968 = vadd.f32 %v4879, %v4967
        %4969 = vmatmul.bf16.gmra.mxu0 %v603
        %v4970 = vpop.f32.mrf.mxu0
        %v4971 = vadd.f32 %v4882, %v4970
        %v4972 = vpop.f32.mrf.mxu0
        %v4973 = vadd.f32 %v4884, %v4972
        %4974 = vmatmul.bf16.gmra.mxu0 %v611
        %v4975 = vpop.f32.mrf.mxu0
        %v4976 = vadd.f32 %v4887, %v4975
        %v4977 = vpop.f32.mrf.mxu0
        %v4978 = vadd.f32 %v4889, %v4977
        %4979 = vmatmul.bf16.gmra.mxu0 %v619
        %v4980 = vpop.f32.mrf.mxu0
        %v4981 = vadd.f32 %v4892, %v4980
        %v4982 = vpop.f32.mrf.mxu0
        %v4983 = vadd.f32 %v4894, %v4982
        %4984 = vmatmul.bf16.gmra.mxu0 %v627
        %v4985 = vpop.f32.mrf.mxu0
        %v4986 = vadd.f32 %v4897, %v4985
        %v4987 = vpop.f32.mrf.mxu0
        %v4988 = vadd.f32 %v4899, %v4987
        %4989 = vmatmul.bf16.gmra.mxu0 %v635
        %v4990 = vpop.f32.mrf.mxu0
        %v4991 = vadd.f32 %v4902, %v4990
        %v4992 = vpop.f32.mrf.mxu0
        %v4993 = vadd.f32 %v4904, %v4992
        %4994 = vmatmul.bf16.gmra.mxu0 %v643
        %v4995 = vpop.f32.mrf.mxu0
        %v4996 = vadd.f32 %v4907, %v4995
        %v4997 = vpop.f32.mrf.mxu0
        %v4998 = vadd.f32 %v4909, %v4997
        %4999 = vmatmul.bf16.gmra.mxu0 %v651
        %v5000 = vpop.f32.mrf.mxu0
        %v5001 = vadd.f32 %v4912, %v5000
        %v5002 = vpop.f32.mrf.mxu0
        %v5003 = vadd.f32 %v4914, %v5002
        %5004 = vmatmul.bf16.gmra.mxu0 %v659
        %v5005 = vpop.f32.mrf.mxu0
        %v5006 = vadd.f32 %v4917, %v5005
        %v5007 = vpop.f32.mrf.mxu0
        %v5008 = vadd.f32 %v4919, %v5007
        %5009 = vmatmul.bf16.gmra.mxu0 %v667
        %v5010 = vpop.f32.mrf.mxu0
        %v5011 = vadd.f32 %v4922, %v5010
        %v5012 = vpop.f32.mrf.mxu0
        %v5013 = vadd.f32 %v4924, %v5012
        %5014 = vmatmul.bf16.gmra.mxu0 %v675
        %v5015 = vpop.f32.mrf.mxu0
        %v5016 = vadd.f32 %v4927, %v5015
        %v5017 = vpop.f32.mrf.mxu0
        %v5018 = vadd.f32 %v4929, %v5017
        %5019 = vmatmul.bf16.gmra.mxu0 %v683
        %v5020 = vpop.f32.mrf.mxu0
        %v5021 = vadd.f32 %v4932, %v5020
        %v5022 = vpop.f32.mrf.mxu0
        %v5023 = vadd.f32 %v4934, %v5022
        %5024 = vmatmul.bf16.gmra.mxu0 %v691
        %v5025 = vpop.f32.mrf.mxu0
        %v5026 = vadd.f32 %v4937, %v5025
        %v5027 = vpop.f32.mrf.mxu0
        %v5028 = vadd.f32 %v4939, %v5027
        %5029 = vdwg.mxu0
        %5030 = vmatpush.bf16.msra.mxu0 %v3201
        %5031 = vmatpush.bf16.msra.mxu0 %v3193
        %5032 = vmatpush.bf16.msra.mxu0 %v3185
        %5033 = vmatpush.bf16.msra.mxu0 %v3177
        %5034 = vmatpush.bf16.msra.mxu0 %v3169
        %5035 = vmatpush.bf16.msra.mxu0 %v3161
        %5036 = vmatpush.bf16.msra.mxu0 %v3153
        %5037 = vmatpush.bf16.msra.mxu0 %v3145
        %5038 = vmatmul.bf16.gmra.mxu0 %v572
        %v5039 = vpop.f32.mrf.mxu0
        %v5040 = vadd.f32 %v4951, %v5039
        %v5041 = vpop.f32.mrf.mxu0
        %v5042 = vadd.f32 %v4953, %v5041
        %5043 = vmatmul.bf16.gmra.mxu0 %v580
        %v5044 = vpop.f32.mrf.mxu0
        %v5045 = vadd.f32 %v4956, %v5044
        %v5046 = vpop.f32.mrf.mxu0
        %v5047 = vadd.f32 %v4958, %v5046
        %5048 = vmatmul.bf16.gmra.mxu0 %v588
        %v5049 = vpop.f32.mrf.mxu0
        %v5050 = vadd.f32 %v4961, %v5049
        %v5051 = vpop.f32.mrf.mxu0
        %v5052 = vadd.f32 %v4963, %v5051
        %5053 = vmatmul.bf16.gmra.mxu0 %v596
        %v5054 = vpop.f32.mrf.mxu0
        %v5055 = vadd.f32 %v4966, %v5054
        %v5056 = vpop.f32.mrf.mxu0
        %v5057 = vadd.f32 %v4968, %v5056
        %5058 = vmatmul.bf16.gmra.mxu0 %v604
        %v5059 = vpop.f32.mrf.mxu0
        %v5060 = vadd.f32 %v4971, %v5059
        %v5061 = vpop.f32.mrf.mxu0
        %v5062 = vadd.f32 %v4973, %v5061
        %5063 = vmatmul.bf16.gmra.mxu0 %v612
        %v5064 = vpop.f32.mrf.mxu0
        %v5065 = vadd.f32 %v4976, %v5064
        %v5066 = vpop.f32.mrf.mxu0
        %v5067 = vadd.f32 %v4978, %v5066
        %5068 = vmatmul.bf16.gmra.mxu0 %v620
        %v5069 = vpop.f32.mrf.mxu0
        %v5070 = vadd.f32 %v4981, %v5069
        %v5071 = vpop.f32.mrf.mxu0
        %v5072 = vadd.f32 %v4983, %v5071
        %5073 = vmatmul.bf16.gmra.mxu0 %v628
        %v5074 = vpop.f32.mrf.mxu0
        %v5075 = vadd.f32 %v4986, %v5074
        %v5076 = vpop.f32.mrf.mxu0
        %v5077 = vadd.f32 %v4988, %v5076
        %5078 = vmatmul.bf16.gmra.mxu0 %v636
        %v5079 = vpop.f32.mrf.mxu0
        %v5080 = vadd.f32 %v4991, %v5079
        %v5081 = vpop.f32.mrf.mxu0
        %v5082 = vadd.f32 %v4993, %v5081
        %5083 = vmatmul.bf16.gmra.mxu0 %v644
        %v5084 = vpop.f32.mrf.mxu0
        %v5085 = vadd.f32 %v4996, %v5084
        %v5086 = vpop.f32.mrf.mxu0
        %v5087 = vadd.f32 %v4998, %v5086
        %5088 = vmatmul.bf16.gmra.mxu0 %v652
        %v5089 = vpop.f32.mrf.mxu0
        %v5090 = vadd.f32 %v5001, %v5089
        %v5091 = vpop.f32.mrf.mxu0
        %v5092 = vadd.f32 %v5003, %v5091
        %5093 = vmatmul.bf16.gmra.mxu0 %v660
        %v5094 = vpop.f32.mrf.mxu0
        %v5095 = vadd.f32 %v5006, %v5094
        %v5096 = vpop.f32.mrf.mxu0
        %v5097 = vadd.f32 %v5008, %v5096
        %5098 = vmatmul.bf16.gmra.mxu0 %v668
        %v5099 = vpop.f32.mrf.mxu0
        %v5100 = vadd.f32 %v5011, %v5099
        %v5101 = vpop.f32.mrf.mxu0
        %v5102 = vadd.f32 %v5013, %v5101
        %5103 = vmatmul.bf16.gmra.mxu0 %v676
        %v5104 = vpop.f32.mrf.mxu0
        %v5105 = vadd.f32 %v5016, %v5104
        %v5106 = vpop.f32.mrf.mxu0
        %v5107 = vadd.f32 %v5018, %v5106
        %5108 = vmatmul.bf16.gmra.mxu0 %v684
        %v5109 = vpop.f32.mrf.mxu0
        %v5110 = vadd.f32 %v5021, %v5109
        %v5111 = vpop.f32.mrf.mxu0
        %v5112 = vadd.f32 %v5023, %v5111
        %5113 = vmatmul.bf16.gmra.mxu0 %v692
        %v5114 = vpop.f32.mrf.mxu0
        %v5115 = vadd.f32 %v5026, %v5114
        %v5116 = vpop.f32.mrf.mxu0
        %v5117 = vadd.f32 %v5028, %v5116
        %5118 = vdwg.mxu0
        %5119 = vmatpush.bf16.msra.mxu0 %v3265
        %5120 = vmatpush.bf16.msra.mxu0 %v3257
        %5121 = vmatpush.bf16.msra.mxu0 %v3249
        %5122 = vmatpush.bf16.msra.mxu0 %v3241
        %5123 = vmatpush.bf16.msra.mxu0 %v3233
        %5124 = vmatpush.bf16.msra.mxu0 %v3225
        %5125 = vmatpush.bf16.msra.mxu0 %v3217
        %5126 = vmatpush.bf16.msra.mxu0 %v3209
        %5127 = vmatmul.bf16.gmra.mxu0 %v573
        %v5128 = vpop.f32.mrf.mxu0
        %v5129 = vadd.f32 %v5040, %v5128
        %v5130 = vpop.f32.mrf.mxu0
        %v5131 = vadd.f32 %v5042, %v5130
        %5132 = vmatmul.bf16.gmra.mxu0 %v581
        %v5133 = vpop.f32.mrf.mxu0
        %v5134 = vadd.f32 %v5045, %v5133
        %v5135 = vpop.f32.mrf.mxu0
        %v5136 = vadd.f32 %v5047, %v5135
        %5137 = vmatmul.bf16.gmra.mxu0 %v589
        %v5138 = vpop.f32.mrf.mxu0
        %v5139 = vadd.f32 %v5050, %v5138
        %v5140 = vpop.f32.mrf.mxu0
        %v5141 = vadd.f32 %v5052, %v5140
        %5142 = vmatmul.bf16.gmra.mxu0 %v597
        %v5143 = vpop.f32.mrf.mxu0
        %v5144 = vadd.f32 %v5055, %v5143
        %v5145 = vpop.f32.mrf.mxu0
        %v5146 = vadd.f32 %v5057, %v5145
        %5147 = vmatmul.bf16.gmra.mxu0 %v605
        %v5148 = vpop.f32.mrf.mxu0
        %v5149 = vadd.f32 %v5060, %v5148
        %v5150 = vpop.f32.mrf.mxu0
        %v5151 = vadd.f32 %v5062, %v5150
        %5152 = vmatmul.bf16.gmra.mxu0 %v613
        %v5153 = vpop.f32.mrf.mxu0
        %v5154 = vadd.f32 %v5065, %v5153
        %v5155 = vpop.f32.mrf.mxu0
        %v5156 = vadd.f32 %v5067, %v5155
        %5157 = vmatmul.bf16.gmra.mxu0 %v621
        %v5158 = vpop.f32.mrf.mxu0
        %v5159 = vadd.f32 %v5070, %v5158
        %v5160 = vpop.f32.mrf.mxu0
        %v5161 = vadd.f32 %v5072, %v5160
        %5162 = vmatmul.bf16.gmra.mxu0 %v629
        %v5163 = vpop.f32.mrf.mxu0
        %v5164 = vadd.f32 %v5075, %v5163
        %v5165 = vpop.f32.mrf.mxu0
        %v5166 = vadd.f32 %v5077, %v5165
        %5167 = vmatmul.bf16.gmra.mxu0 %v637
        %v5168 = vpop.f32.mrf.mxu0
        %v5169 = vadd.f32 %v5080, %v5168
        %v5170 = vpop.f32.mrf.mxu0
        %v5171 = vadd.f32 %v5082, %v5170
        %5172 = vmatmul.bf16.gmra.mxu0 %v645
        %v5173 = vpop.f32.mrf.mxu0
        %v5174 = vadd.f32 %v5085, %v5173
        %v5175 = vpop.f32.mrf.mxu0
        %v5176 = vadd.f32 %v5087, %v5175
        %5177 = vmatmul.bf16.gmra.mxu0 %v653
        %v5178 = vpop.f32.mrf.mxu0
        %v5179 = vadd.f32 %v5090, %v5178
        %v5180 = vpop.f32.mrf.mxu0
        %v5181 = vadd.f32 %v5092, %v5180
        %5182 = vmatmul.bf16.gmra.mxu0 %v661
        %v5183 = vpop.f32.mrf.mxu0
        %v5184 = vadd.f32 %v5095, %v5183
        %v5185 = vpop.f32.mrf.mxu0
        %v5186 = vadd.f32 %v5097, %v5185
        %5187 = vmatmul.bf16.gmra.mxu0 %v669
        %v5188 = vpop.f32.mrf.mxu0
        %v5189 = vadd.f32 %v5100, %v5188
        %v5190 = vpop.f32.mrf.mxu0
        %v5191 = vadd.f32 %v5102, %v5190
        %5192 = vmatmul.bf16.gmra.mxu0 %v677
        %v5193 = vpop.f32.mrf.mxu0
        %v5194 = vadd.f32 %v5105, %v5193
        %v5195 = vpop.f32.mrf.mxu0
        %v5196 = vadd.f32 %v5107, %v5195
        %5197 = vmatmul.bf16.gmra.mxu0 %v685
        %v5198 = vpop.f32.mrf.mxu0
        %v5199 = vadd.f32 %v5110, %v5198
        %v5200 = vpop.f32.mrf.mxu0
        %v5201 = vadd.f32 %v5112, %v5200
        %5202 = vmatmul.bf16.gmra.mxu0 %v693
        %v5203 = vpop.f32.mrf.mxu0
        %v5204 = vadd.f32 %v5115, %v5203
        %v5205 = vpop.f32.mrf.mxu0
        %v5206 = vadd.f32 %v5117, %v5205
        %5207 = vdwg.mxu0
        %5208 = vmatpush.bf16.msra.mxu0 %v2818
        %5209 = vmatpush.bf16.msra.mxu0 %v2810
        %5210 = vmatpush.bf16.msra.mxu0 %v2802
        %5211 = vmatpush.bf16.msra.mxu0 %v2794
        %5212 = vmatpush.bf16.msra.mxu0 %v2786
        %5213 = vmatpush.bf16.msra.mxu0 %v2778
        %5214 = vmatpush.bf16.msra.mxu0 %v2770
        %5215 = vmatpush.bf16.msra.mxu0 %v2762
        %5216 = vmatmul.bf16.gmra.mxu0 %v566
        %v5217 = vpop.f32.mrf.mxu0
        %v5218 = vadd.f32 %v1210, %v5217
        %v5219 = vpop.f32.mrf.mxu0
        %v5220 = vadd.f32 %v1210, %v5219
        %5221 = vmatmul.bf16.gmra.mxu0 %v574
        %v5222 = vpop.f32.mrf.mxu0
        %v5223 = vadd.f32 %v1210, %v5222
        %v5224 = vpop.f32.mrf.mxu0
        %v5225 = vadd.f32 %v1210, %v5224
        %5226 = vmatmul.bf16.gmra.mxu0 %v582
        %v5227 = vpop.f32.mrf.mxu0
        %v5228 = vadd.f32 %v1210, %v5227
        %v5229 = vpop.f32.mrf.mxu0
        %v5230 = vadd.f32 %v1210, %v5229
        %5231 = vmatmul.bf16.gmra.mxu0 %v590
        %v5232 = vpop.f32.mrf.mxu0
        %v5233 = vadd.f32 %v1210, %v5232
        %v5234 = vpop.f32.mrf.mxu0
        %v5235 = vadd.f32 %v1210, %v5234
        %5236 = vmatmul.bf16.gmra.mxu0 %v598
        %v5237 = vpop.f32.mrf.mxu0
        %v5238 = vadd.f32 %v1210, %v5237
        %v5239 = vpop.f32.mrf.mxu0
        %v5240 = vadd.f32 %v1210, %v5239
        %5241 = vmatmul.bf16.gmra.mxu0 %v606
        %v5242 = vpop.f32.mrf.mxu0
        %v5243 = vadd.f32 %v1210, %v5242
        %v5244 = vpop.f32.mrf.mxu0
        %v5245 = vadd.f32 %v1210, %v5244
        %5246 = vmatmul.bf16.gmra.mxu0 %v614
        %v5247 = vpop.f32.mrf.mxu0
        %v5248 = vadd.f32 %v1210, %v5247
        %v5249 = vpop.f32.mrf.mxu0
        %v5250 = vadd.f32 %v1210, %v5249
        %5251 = vmatmul.bf16.gmra.mxu0 %v622
        %v5252 = vpop.f32.mrf.mxu0
        %v5253 = vadd.f32 %v1210, %v5252
        %v5254 = vpop.f32.mrf.mxu0
        %v5255 = vadd.f32 %v1210, %v5254
        %5256 = vmatmul.bf16.gmra.mxu0 %v630
        %v5257 = vpop.f32.mrf.mxu0
        %v5258 = vadd.f32 %v1210, %v5257
        %v5259 = vpop.f32.mrf.mxu0
        %v5260 = vadd.f32 %v1210, %v5259
        %5261 = vmatmul.bf16.gmra.mxu0 %v638
        %v5262 = vpop.f32.mrf.mxu0
        %v5263 = vadd.f32 %v1210, %v5262
        %v5264 = vpop.f32.mrf.mxu0
        %v5265 = vadd.f32 %v1210, %v5264
        %5266 = vmatmul.bf16.gmra.mxu0 %v646
        %v5267 = vpop.f32.mrf.mxu0
        %v5268 = vadd.f32 %v1210, %v5267
        %v5269 = vpop.f32.mrf.mxu0
        %v5270 = vadd.f32 %v1210, %v5269
        %5271 = vmatmul.bf16.gmra.mxu0 %v654
        %v5272 = vpop.f32.mrf.mxu0
        %v5273 = vadd.f32 %v1210, %v5272
        %v5274 = vpop.f32.mrf.mxu0
        %v5275 = vadd.f32 %v1210, %v5274
        %5276 = vmatmul.bf16.gmra.mxu0 %v662
        %v5277 = vpop.f32.mrf.mxu0
        %v5278 = vadd.f32 %v1210, %v5277
        %v5279 = vpop.f32.mrf.mxu0
        %v5280 = vadd.f32 %v1210, %v5279
        %5281 = vmatmul.bf16.gmra.mxu0 %v670
        %v5282 = vpop.f32.mrf.mxu0
        %v5283 = vadd.f32 %v1210, %v5282
        %v5284 = vpop.f32.mrf.mxu0
        %v5285 = vadd.f32 %v1210, %v5284
        %5286 = vmatmul.bf16.gmra.mxu0 %v678
        %v5287 = vpop.f32.mrf.mxu0
        %v5288 = vadd.f32 %v1210, %v5287
        %v5289 = vpop.f32.mrf.mxu0
        %v5290 = vadd.f32 %v1210, %v5289
        %5291 = vmatmul.bf16.gmra.mxu0 %v686
        %v5292 = vpop.f32.mrf.mxu0
        %v5293 = vadd.f32 %v1210, %v5292
        %v5294 = vpop.f32.mrf.mxu0
        %v5295 = vadd.f32 %v1210, %v5294
        %5296 = vdwg.mxu0
        %5297 = vmatpush.bf16.msra.mxu0 %v2882
        %5298 = vmatpush.bf16.msra.mxu0 %v2874
        %5299 = vmatpush.bf16.msra.mxu0 %v2866
        %5300 = vmatpush.bf16.msra.mxu0 %v2858
        %5301 = vmatpush.bf16.msra.mxu0 %v2850
        %5302 = vmatpush.bf16.msra.mxu0 %v2842
        %5303 = vmatpush.bf16.msra.mxu0 %v2834
        %5304 = vmatpush.bf16.msra.mxu0 %v2826
        %5305 = vmatmul.bf16.gmra.mxu0 %v567
        %v5306 = vpop.f32.mrf.mxu0
        %v5307 = vadd.f32 %v5218, %v5306
        %v5308 = vpop.f32.mrf.mxu0
        %v5309 = vadd.f32 %v5220, %v5308
        %5310 = vmatmul.bf16.gmra.mxu0 %v575
        %v5311 = vpop.f32.mrf.mxu0
        %v5312 = vadd.f32 %v5223, %v5311
        %v5313 = vpop.f32.mrf.mxu0
        %v5314 = vadd.f32 %v5225, %v5313
        %5315 = vmatmul.bf16.gmra.mxu0 %v583
        %v5316 = vpop.f32.mrf.mxu0
        %v5317 = vadd.f32 %v5228, %v5316
        %v5318 = vpop.f32.mrf.mxu0
        %v5319 = vadd.f32 %v5230, %v5318
        %5320 = vmatmul.bf16.gmra.mxu0 %v591
        %v5321 = vpop.f32.mrf.mxu0
        %v5322 = vadd.f32 %v5233, %v5321
        %v5323 = vpop.f32.mrf.mxu0
        %v5324 = vadd.f32 %v5235, %v5323
        %5325 = vmatmul.bf16.gmra.mxu0 %v599
        %v5326 = vpop.f32.mrf.mxu0
        %v5327 = vadd.f32 %v5238, %v5326
        %v5328 = vpop.f32.mrf.mxu0
        %v5329 = vadd.f32 %v5240, %v5328
        %5330 = vmatmul.bf16.gmra.mxu0 %v607
        %v5331 = vpop.f32.mrf.mxu0
        %v5332 = vadd.f32 %v5243, %v5331
        %v5333 = vpop.f32.mrf.mxu0
        %v5334 = vadd.f32 %v5245, %v5333
        %5335 = vmatmul.bf16.gmra.mxu0 %v615
        %v5336 = vpop.f32.mrf.mxu0
        %v5337 = vadd.f32 %v5248, %v5336
        %v5338 = vpop.f32.mrf.mxu0
        %v5339 = vadd.f32 %v5250, %v5338
        %5340 = vmatmul.bf16.gmra.mxu0 %v623
        %v5341 = vpop.f32.mrf.mxu0
        %v5342 = vadd.f32 %v5253, %v5341
        %v5343 = vpop.f32.mrf.mxu0
        %v5344 = vadd.f32 %v5255, %v5343
        %5345 = vmatmul.bf16.gmra.mxu0 %v631
        %v5346 = vpop.f32.mrf.mxu0
        %v5347 = vadd.f32 %v5258, %v5346
        %v5348 = vpop.f32.mrf.mxu0
        %v5349 = vadd.f32 %v5260, %v5348
        %5350 = vmatmul.bf16.gmra.mxu0 %v639
        %v5351 = vpop.f32.mrf.mxu0
        %v5352 = vadd.f32 %v5263, %v5351
        %v5353 = vpop.f32.mrf.mxu0
        %v5354 = vadd.f32 %v5265, %v5353
        %5355 = vmatmul.bf16.gmra.mxu0 %v647
        %v5356 = vpop.f32.mrf.mxu0
        %v5357 = vadd.f32 %v5268, %v5356
        %v5358 = vpop.f32.mrf.mxu0
        %v5359 = vadd.f32 %v5270, %v5358
        %5360 = vmatmul.bf16.gmra.mxu0 %v655
        %v5361 = vpop.f32.mrf.mxu0
        %v5362 = vadd.f32 %v5273, %v5361
        %v5363 = vpop.f32.mrf.mxu0
        %v5364 = vadd.f32 %v5275, %v5363
        %5365 = vmatmul.bf16.gmra.mxu0 %v663
        %v5366 = vpop.f32.mrf.mxu0
        %v5367 = vadd.f32 %v5278, %v5366
        %v5368 = vpop.f32.mrf.mxu0
        %v5369 = vadd.f32 %v5280, %v5368
        %5370 = vmatmul.bf16.gmra.mxu0 %v671
        %v5371 = vpop.f32.mrf.mxu0
        %v5372 = vadd.f32 %v5283, %v5371
        %v5373 = vpop.f32.mrf.mxu0
        %v5374 = vadd.f32 %v5285, %v5373
        %5375 = vmatmul.bf16.gmra.mxu0 %v679
        %v5376 = vpop.f32.mrf.mxu0
        %v5377 = vadd.f32 %v5288, %v5376
        %v5378 = vpop.f32.mrf.mxu0
        %v5379 = vadd.f32 %v5290, %v5378
        %5380 = vmatmul.bf16.gmra.mxu0 %v687
        %v5381 = vpop.f32.mrf.mxu0
        %v5382 = vadd.f32 %v5293, %v5381
        %v5383 = vpop.f32.mrf.mxu0
        %v5384 = vadd.f32 %v5295, %v5383
        %5385 = vdwg.mxu0
        %5386 = vmatpush.bf16.msra.mxu0 %v2946
        %5387 = vmatpush.bf16.msra.mxu0 %v2938
        %5388 = vmatpush.bf16.msra.mxu0 %v2930
        %5389 = vmatpush.bf16.msra.mxu0 %v2922
        %5390 = vmatpush.bf16.msra.mxu0 %v2914
        %5391 = vmatpush.bf16.msra.mxu0 %v2906
        %5392 = vmatpush.bf16.msra.mxu0 %v2898
        %5393 = vmatpush.bf16.msra.mxu0 %v2890
        %5394 = vmatmul.bf16.gmra.mxu0 %v568
        %v5395 = vpop.f32.mrf.mxu0
        %v5396 = vadd.f32 %v5307, %v5395
        %v5397 = vpop.f32.mrf.mxu0
        %v5398 = vadd.f32 %v5309, %v5397
        %5399 = vmatmul.bf16.gmra.mxu0 %v576
        %v5400 = vpop.f32.mrf.mxu0
        %v5401 = vadd.f32 %v5312, %v5400
        %v5402 = vpop.f32.mrf.mxu0
        %v5403 = vadd.f32 %v5314, %v5402
        %5404 = vmatmul.bf16.gmra.mxu0 %v584
        %v5405 = vpop.f32.mrf.mxu0
        %v5406 = vadd.f32 %v5317, %v5405
        %v5407 = vpop.f32.mrf.mxu0
        %v5408 = vadd.f32 %v5319, %v5407
        %5409 = vmatmul.bf16.gmra.mxu0 %v592
        %v5410 = vpop.f32.mrf.mxu0
        %v5411 = vadd.f32 %v5322, %v5410
        %v5412 = vpop.f32.mrf.mxu0
        %v5413 = vadd.f32 %v5324, %v5412
        %5414 = vmatmul.bf16.gmra.mxu0 %v600
        %v5415 = vpop.f32.mrf.mxu0
        %v5416 = vadd.f32 %v5327, %v5415
        %v5417 = vpop.f32.mrf.mxu0
        %v5418 = vadd.f32 %v5329, %v5417
        %5419 = vmatmul.bf16.gmra.mxu0 %v608
        %v5420 = vpop.f32.mrf.mxu0
        %v5421 = vadd.f32 %v5332, %v5420
        %v5422 = vpop.f32.mrf.mxu0
        %v5423 = vadd.f32 %v5334, %v5422
        %5424 = vmatmul.bf16.gmra.mxu0 %v616
        %v5425 = vpop.f32.mrf.mxu0
        %v5426 = vadd.f32 %v5337, %v5425
        %v5427 = vpop.f32.mrf.mxu0
        %v5428 = vadd.f32 %v5339, %v5427
        %5429 = vmatmul.bf16.gmra.mxu0 %v624
        %v5430 = vpop.f32.mrf.mxu0
        %v5431 = vadd.f32 %v5342, %v5430
        %v5432 = vpop.f32.mrf.mxu0
        %v5433 = vadd.f32 %v5344, %v5432
        %5434 = vmatmul.bf16.gmra.mxu0 %v632
        %v5435 = vpop.f32.mrf.mxu0
        %v5436 = vadd.f32 %v5347, %v5435
        %v5437 = vpop.f32.mrf.mxu0
        %v5438 = vadd.f32 %v5349, %v5437
        %5439 = vmatmul.bf16.gmra.mxu0 %v640
        %v5440 = vpop.f32.mrf.mxu0
        %v5441 = vadd.f32 %v5352, %v5440
        %v5442 = vpop.f32.mrf.mxu0
        %v5443 = vadd.f32 %v5354, %v5442
        %5444 = vmatmul.bf16.gmra.mxu0 %v648
        %v5445 = vpop.f32.mrf.mxu0
        %v5446 = vadd.f32 %v5357, %v5445
        %v5447 = vpop.f32.mrf.mxu0
        %v5448 = vadd.f32 %v5359, %v5447
        %5449 = vmatmul.bf16.gmra.mxu0 %v656
        %v5450 = vpop.f32.mrf.mxu0
        %v5451 = vadd.f32 %v5362, %v5450
        %v5452 = vpop.f32.mrf.mxu0
        %v5453 = vadd.f32 %v5364, %v5452
        %5454 = vmatmul.bf16.gmra.mxu0 %v664
        %v5455 = vpop.f32.mrf.mxu0
        %v5456 = vadd.f32 %v5367, %v5455
        %v5457 = vpop.f32.mrf.mxu0
        %v5458 = vadd.f32 %v5369, %v5457
        %5459 = vmatmul.bf16.gmra.mxu0 %v672
        %v5460 = vpop.f32.mrf.mxu0
        %v5461 = vadd.f32 %v5372, %v5460
        %v5462 = vpop.f32.mrf.mxu0
        %v5463 = vadd.f32 %v5374, %v5462
        %5464 = vmatmul.bf16.gmra.mxu0 %v680
        %v5465 = vpop.f32.mrf.mxu0
        %v5466 = vadd.f32 %v5377, %v5465
        %v5467 = vpop.f32.mrf.mxu0
        %v5468 = vadd.f32 %v5379, %v5467
        %5469 = vmatmul.bf16.gmra.mxu0 %v688
        %v5470 = vpop.f32.mrf.mxu0
        %v5471 = vadd.f32 %v5382, %v5470
        %v5472 = vpop.f32.mrf.mxu0
        %v5473 = vadd.f32 %v5384, %v5472
        %5474 = vdwg.mxu0
        %5475 = vmatpush.bf16.msra.mxu0 %v3010
        %5476 = vmatpush.bf16.msra.mxu0 %v3002
        %5477 = vmatpush.bf16.msra.mxu0 %v2994
        %5478 = vmatpush.bf16.msra.mxu0 %v2986
        %5479 = vmatpush.bf16.msra.mxu0 %v2978
        %5480 = vmatpush.bf16.msra.mxu0 %v2970
        %5481 = vmatpush.bf16.msra.mxu0 %v2962
        %5482 = vmatpush.bf16.msra.mxu0 %v2954
        %5483 = vmatmul.bf16.gmra.mxu0 %v569
        %v5484 = vpop.f32.mrf.mxu0
        %v5485 = vadd.f32 %v5396, %v5484
        %v5486 = vpop.f32.mrf.mxu0
        %v5487 = vadd.f32 %v5398, %v5486
        %5488 = vmatmul.bf16.gmra.mxu0 %v577
        %v5489 = vpop.f32.mrf.mxu0
        %v5490 = vadd.f32 %v5401, %v5489
        %v5491 = vpop.f32.mrf.mxu0
        %v5492 = vadd.f32 %v5403, %v5491
        %5493 = vmatmul.bf16.gmra.mxu0 %v585
        %v5494 = vpop.f32.mrf.mxu0
        %v5495 = vadd.f32 %v5406, %v5494
        %v5496 = vpop.f32.mrf.mxu0
        %v5497 = vadd.f32 %v5408, %v5496
        %5498 = vmatmul.bf16.gmra.mxu0 %v593
        %v5499 = vpop.f32.mrf.mxu0
        %v5500 = vadd.f32 %v5411, %v5499
        %v5501 = vpop.f32.mrf.mxu0
        %v5502 = vadd.f32 %v5413, %v5501
        %5503 = vmatmul.bf16.gmra.mxu0 %v601
        %v5504 = vpop.f32.mrf.mxu0
        %v5505 = vadd.f32 %v5416, %v5504
        %v5506 = vpop.f32.mrf.mxu0
        %v5507 = vadd.f32 %v5418, %v5506
        %5508 = vmatmul.bf16.gmra.mxu0 %v609
        %v5509 = vpop.f32.mrf.mxu0
        %v5510 = vadd.f32 %v5421, %v5509
        %v5511 = vpop.f32.mrf.mxu0
        %v5512 = vadd.f32 %v5423, %v5511
        %5513 = vmatmul.bf16.gmra.mxu0 %v617
        %v5514 = vpop.f32.mrf.mxu0
        %v5515 = vadd.f32 %v5426, %v5514
        %v5516 = vpop.f32.mrf.mxu0
        %v5517 = vadd.f32 %v5428, %v5516
        %5518 = vmatmul.bf16.gmra.mxu0 %v625
        %v5519 = vpop.f32.mrf.mxu0
        %v5520 = vadd.f32 %v5431, %v5519
        %v5521 = vpop.f32.mrf.mxu0
        %v5522 = vadd.f32 %v5433, %v5521
        %5523 = vmatmul.bf16.gmra.mxu0 %v633
        %v5524 = vpop.f32.mrf.mxu0
        %v5525 = vadd.f32 %v5436, %v5524
        %v5526 = vpop.f32.mrf.mxu0
        %v5527 = vadd.f32 %v5438, %v5526
        %5528 = vmatmul.bf16.gmra.mxu0 %v641
        %v5529 = vpop.f32.mrf.mxu0
        %v5530 = vadd.f32 %v5441, %v5529
        %v5531 = vpop.f32.mrf.mxu0
        %v5532 = vadd.f32 %v5443, %v5531
        %5533 = vmatmul.bf16.gmra.mxu0 %v649
        %v5534 = vpop.f32.mrf.mxu0
        %v5535 = vadd.f32 %v5446, %v5534
        %v5536 = vpop.f32.mrf.mxu0
        %v5537 = vadd.f32 %v5448, %v5536
        %5538 = vmatmul.bf16.gmra.mxu0 %v657
        %v5539 = vpop.f32.mrf.mxu0
        %v5540 = vadd.f32 %v5451, %v5539
        %v5541 = vpop.f32.mrf.mxu0
        %v5542 = vadd.f32 %v5453, %v5541
        %5543 = vmatmul.bf16.gmra.mxu0 %v665
        %v5544 = vpop.f32.mrf.mxu0
        %v5545 = vadd.f32 %v5456, %v5544
        %v5546 = vpop.f32.mrf.mxu0
        %v5547 = vadd.f32 %v5458, %v5546
        %5548 = vmatmul.bf16.gmra.mxu0 %v673
        %v5549 = vpop.f32.mrf.mxu0
        %v5550 = vadd.f32 %v5461, %v5549
        %v5551 = vpop.f32.mrf.mxu0
        %v5552 = vadd.f32 %v5463, %v5551
        %5553 = vmatmul.bf16.gmra.mxu0 %v681
        %v5554 = vpop.f32.mrf.mxu0
        %v5555 = vadd.f32 %v5466, %v5554
        %v5556 = vpop.f32.mrf.mxu0
        %v5557 = vadd.f32 %v5468, %v5556
        %5558 = vmatmul.bf16.gmra.mxu0 %v689
        %v5559 = vpop.f32.mrf.mxu0
        %v5560 = vadd.f32 %v5471, %v5559
        %v5561 = vpop.f32.mrf.mxu0
        %v5562 = vadd.f32 %v5473, %v5561
        %5563 = vdwg.mxu0
        %5564 = vmatpush.bf16.msra.mxu0 %v3074
        %5565 = vmatpush.bf16.msra.mxu0 %v3066
        %5566 = vmatpush.bf16.msra.mxu0 %v3058
        %5567 = vmatpush.bf16.msra.mxu0 %v3050
        %5568 = vmatpush.bf16.msra.mxu0 %v3042
        %5569 = vmatpush.bf16.msra.mxu0 %v3034
        %5570 = vmatpush.bf16.msra.mxu0 %v3026
        %5571 = vmatpush.bf16.msra.mxu0 %v3018
        %5572 = vmatmul.bf16.gmra.mxu0 %v570
        %v5573 = vpop.f32.mrf.mxu0
        %v5574 = vadd.f32 %v5485, %v5573
        %v5575 = vpop.f32.mrf.mxu0
        %v5576 = vadd.f32 %v5487, %v5575
        %5577 = vmatmul.bf16.gmra.mxu0 %v578
        %v5578 = vpop.f32.mrf.mxu0
        %v5579 = vadd.f32 %v5490, %v5578
        %v5580 = vpop.f32.mrf.mxu0
        %v5581 = vadd.f32 %v5492, %v5580
        %5582 = vmatmul.bf16.gmra.mxu0 %v586
        %v5583 = vpop.f32.mrf.mxu0
        %v5584 = vadd.f32 %v5495, %v5583
        %v5585 = vpop.f32.mrf.mxu0
        %v5586 = vadd.f32 %v5497, %v5585
        %5587 = vmatmul.bf16.gmra.mxu0 %v594
        %v5588 = vpop.f32.mrf.mxu0
        %v5589 = vadd.f32 %v5500, %v5588
        %v5590 = vpop.f32.mrf.mxu0
        %v5591 = vadd.f32 %v5502, %v5590
        %5592 = vmatmul.bf16.gmra.mxu0 %v602
        %v5593 = vpop.f32.mrf.mxu0
        %v5594 = vadd.f32 %v5505, %v5593
        %v5595 = vpop.f32.mrf.mxu0
        %v5596 = vadd.f32 %v5507, %v5595
        %5597 = vmatmul.bf16.gmra.mxu0 %v610
        %v5598 = vpop.f32.mrf.mxu0
        %v5599 = vadd.f32 %v5510, %v5598
        %v5600 = vpop.f32.mrf.mxu0
        %v5601 = vadd.f32 %v5512, %v5600
        %5602 = vmatmul.bf16.gmra.mxu0 %v618
        %v5603 = vpop.f32.mrf.mxu0
        %v5604 = vadd.f32 %v5515, %v5603
        %v5605 = vpop.f32.mrf.mxu0
        %v5606 = vadd.f32 %v5517, %v5605
        %5607 = vmatmul.bf16.gmra.mxu0 %v626
        %v5608 = vpop.f32.mrf.mxu0
        %v5609 = vadd.f32 %v5520, %v5608
        %v5610 = vpop.f32.mrf.mxu0
        %v5611 = vadd.f32 %v5522, %v5610
        %5612 = vmatmul.bf16.gmra.mxu0 %v634
        %v5613 = vpop.f32.mrf.mxu0
        %v5614 = vadd.f32 %v5525, %v5613
        %v5615 = vpop.f32.mrf.mxu0
        %v5616 = vadd.f32 %v5527, %v5615
        %5617 = vmatmul.bf16.gmra.mxu0 %v642
        %v5618 = vpop.f32.mrf.mxu0
        %v5619 = vadd.f32 %v5530, %v5618
        %v5620 = vpop.f32.mrf.mxu0
        %v5621 = vadd.f32 %v5532, %v5620
        %5622 = vmatmul.bf16.gmra.mxu0 %v650
        %v5623 = vpop.f32.mrf.mxu0
        %v5624 = vadd.f32 %v5535, %v5623
        %v5625 = vpop.f32.mrf.mxu0
        %v5626 = vadd.f32 %v5537, %v5625
        %5627 = vmatmul.bf16.gmra.mxu0 %v658
        %v5628 = vpop.f32.mrf.mxu0
        %v5629 = vadd.f32 %v5540, %v5628
        %v5630 = vpop.f32.mrf.mxu0
        %v5631 = vadd.f32 %v5542, %v5630
        %5632 = vmatmul.bf16.gmra.mxu0 %v666
        %v5633 = vpop.f32.mrf.mxu0
        %v5634 = vadd.f32 %v5545, %v5633
        %v5635 = vpop.f32.mrf.mxu0
        %v5636 = vadd.f32 %v5547, %v5635
        %5637 = vmatmul.bf16.gmra.mxu0 %v674
        %v5638 = vpop.f32.mrf.mxu0
        %v5639 = vadd.f32 %v5550, %v5638
        %v5640 = vpop.f32.mrf.mxu0
        %v5641 = vadd.f32 %v5552, %v5640
        %5642 = vmatmul.bf16.gmra.mxu0 %v682
        %v5643 = vpop.f32.mrf.mxu0
        %v5644 = vadd.f32 %v5555, %v5643
        %v5645 = vpop.f32.mrf.mxu0
        %v5646 = vadd.f32 %v5557, %v5645
        %5647 = vmatmul.bf16.gmra.mxu0 %v690
        %v5648 = vpop.f32.mrf.mxu0
        %v5649 = vadd.f32 %v5560, %v5648
        %v5650 = vpop.f32.mrf.mxu0
        %v5651 = vadd.f32 %v5562, %v5650
        %5652 = vdwg.mxu0
        %5653 = vmatpush.bf16.msra.mxu0 %v3138
        %5654 = vmatpush.bf16.msra.mxu0 %v3130
        %5655 = vmatpush.bf16.msra.mxu0 %v3122
        %5656 = vmatpush.bf16.msra.mxu0 %v3114
        %5657 = vmatpush.bf16.msra.mxu0 %v3106
        %5658 = vmatpush.bf16.msra.mxu0 %v3098
        %5659 = vmatpush.bf16.msra.mxu0 %v3090
        %5660 = vmatpush.bf16.msra.mxu0 %v3082
        %5661 = vmatmul.bf16.gmra.mxu0 %v571
        %v5662 = vpop.f32.mrf.mxu0
        %v5663 = vadd.f32 %v5574, %v5662
        %v5664 = vpop.f32.mrf.mxu0
        %v5665 = vadd.f32 %v5576, %v5664
        %5666 = vmatmul.bf16.gmra.mxu0 %v579
        %v5667 = vpop.f32.mrf.mxu0
        %v5668 = vadd.f32 %v5579, %v5667
        %v5669 = vpop.f32.mrf.mxu0
        %v5670 = vadd.f32 %v5581, %v5669
        %5671 = vmatmul.bf16.gmra.mxu0 %v587
        %v5672 = vpop.f32.mrf.mxu0
        %v5673 = vadd.f32 %v5584, %v5672
        %v5674 = vpop.f32.mrf.mxu0
        %v5675 = vadd.f32 %v5586, %v5674
        %5676 = vmatmul.bf16.gmra.mxu0 %v595
        %v5677 = vpop.f32.mrf.mxu0
        %v5678 = vadd.f32 %v5589, %v5677
        %v5679 = vpop.f32.mrf.mxu0
        %v5680 = vadd.f32 %v5591, %v5679
        %5681 = vmatmul.bf16.gmra.mxu0 %v603
        %v5682 = vpop.f32.mrf.mxu0
        %v5683 = vadd.f32 %v5594, %v5682
        %v5684 = vpop.f32.mrf.mxu0
        %v5685 = vadd.f32 %v5596, %v5684
        %5686 = vmatmul.bf16.gmra.mxu0 %v611
        %v5687 = vpop.f32.mrf.mxu0
        %v5688 = vadd.f32 %v5599, %v5687
        %v5689 = vpop.f32.mrf.mxu0
        %v5690 = vadd.f32 %v5601, %v5689
        %5691 = vmatmul.bf16.gmra.mxu0 %v619
        %v5692 = vpop.f32.mrf.mxu0
        %v5693 = vadd.f32 %v5604, %v5692
        %v5694 = vpop.f32.mrf.mxu0
        %v5695 = vadd.f32 %v5606, %v5694
        %5696 = vmatmul.bf16.gmra.mxu0 %v627
        %v5697 = vpop.f32.mrf.mxu0
        %v5698 = vadd.f32 %v5609, %v5697
        %v5699 = vpop.f32.mrf.mxu0
        %v5700 = vadd.f32 %v5611, %v5699
        %5701 = vmatmul.bf16.gmra.mxu0 %v635
        %v5702 = vpop.f32.mrf.mxu0
        %v5703 = vadd.f32 %v5614, %v5702
        %v5704 = vpop.f32.mrf.mxu0
        %v5705 = vadd.f32 %v5616, %v5704
        %5706 = vmatmul.bf16.gmra.mxu0 %v643
        %v5707 = vpop.f32.mrf.mxu0
        %v5708 = vadd.f32 %v5619, %v5707
        %v5709 = vpop.f32.mrf.mxu0
        %v5710 = vadd.f32 %v5621, %v5709
        %5711 = vmatmul.bf16.gmra.mxu0 %v651
        %v5712 = vpop.f32.mrf.mxu0
        %v5713 = vadd.f32 %v5624, %v5712
        %v5714 = vpop.f32.mrf.mxu0
        %v5715 = vadd.f32 %v5626, %v5714
        %5716 = vmatmul.bf16.gmra.mxu0 %v659
        %v5717 = vpop.f32.mrf.mxu0
        %v5718 = vadd.f32 %v5629, %v5717
        %v5719 = vpop.f32.mrf.mxu0
        %v5720 = vadd.f32 %v5631, %v5719
        %5721 = vmatmul.bf16.gmra.mxu0 %v667
        %v5722 = vpop.f32.mrf.mxu0
        %v5723 = vadd.f32 %v5634, %v5722
        %v5724 = vpop.f32.mrf.mxu0
        %v5725 = vadd.f32 %v5636, %v5724
        %5726 = vmatmul.bf16.gmra.mxu0 %v675
        %v5727 = vpop.f32.mrf.mxu0
        %v5728 = vadd.f32 %v5639, %v5727
        %v5729 = vpop.f32.mrf.mxu0
        %v5730 = vadd.f32 %v5641, %v5729
        %5731 = vmatmul.bf16.gmra.mxu0 %v683
        %v5732 = vpop.f32.mrf.mxu0
        %v5733 = vadd.f32 %v5644, %v5732
        %v5734 = vpop.f32.mrf.mxu0
        %v5735 = vadd.f32 %v5646, %v5734
        %5736 = vmatmul.bf16.gmra.mxu0 %v691
        %v5737 = vpop.f32.mrf.mxu0
        %v5738 = vadd.f32 %v5649, %v5737
        %v5739 = vpop.f32.mrf.mxu0
        %v5740 = vadd.f32 %v5651, %v5739
        %5741 = vdwg.mxu0
        %5742 = vmatpush.bf16.msra.mxu0 %v3202
        %5743 = vmatpush.bf16.msra.mxu0 %v3194
        %5744 = vmatpush.bf16.msra.mxu0 %v3186
        %5745 = vmatpush.bf16.msra.mxu0 %v3178
        %5746 = vmatpush.bf16.msra.mxu0 %v3170
        %5747 = vmatpush.bf16.msra.mxu0 %v3162
        %5748 = vmatpush.bf16.msra.mxu0 %v3154
        %5749 = vmatpush.bf16.msra.mxu0 %v3146
        %5750 = vmatmul.bf16.gmra.mxu0 %v572
        %v5751 = vpop.f32.mrf.mxu0
        %v5752 = vadd.f32 %v5663, %v5751
        %v5753 = vpop.f32.mrf.mxu0
        %v5754 = vadd.f32 %v5665, %v5753
        %5755 = vmatmul.bf16.gmra.mxu0 %v580
        %v5756 = vpop.f32.mrf.mxu0
        %v5757 = vadd.f32 %v5668, %v5756
        %v5758 = vpop.f32.mrf.mxu0
        %v5759 = vadd.f32 %v5670, %v5758
        %5760 = vmatmul.bf16.gmra.mxu0 %v588
        %v5761 = vpop.f32.mrf.mxu0
        %v5762 = vadd.f32 %v5673, %v5761
        %v5763 = vpop.f32.mrf.mxu0
        %v5764 = vadd.f32 %v5675, %v5763
        %5765 = vmatmul.bf16.gmra.mxu0 %v596
        %v5766 = vpop.f32.mrf.mxu0
        %v5767 = vadd.f32 %v5678, %v5766
        %v5768 = vpop.f32.mrf.mxu0
        %v5769 = vadd.f32 %v5680, %v5768
        %5770 = vmatmul.bf16.gmra.mxu0 %v604
        %v5771 = vpop.f32.mrf.mxu0
        %v5772 = vadd.f32 %v5683, %v5771
        %v5773 = vpop.f32.mrf.mxu0
        %v5774 = vadd.f32 %v5685, %v5773
        %5775 = vmatmul.bf16.gmra.mxu0 %v612
        %v5776 = vpop.f32.mrf.mxu0
        %v5777 = vadd.f32 %v5688, %v5776
        %v5778 = vpop.f32.mrf.mxu0
        %v5779 = vadd.f32 %v5690, %v5778
        %5780 = vmatmul.bf16.gmra.mxu0 %v620
        %v5781 = vpop.f32.mrf.mxu0
        %v5782 = vadd.f32 %v5693, %v5781
        %v5783 = vpop.f32.mrf.mxu0
        %v5784 = vadd.f32 %v5695, %v5783
        %5785 = vmatmul.bf16.gmra.mxu0 %v628
        %v5786 = vpop.f32.mrf.mxu0
        %v5787 = vadd.f32 %v5698, %v5786
        %v5788 = vpop.f32.mrf.mxu0
        %v5789 = vadd.f32 %v5700, %v5788
        %5790 = vmatmul.bf16.gmra.mxu0 %v636
        %v5791 = vpop.f32.mrf.mxu0
        %v5792 = vadd.f32 %v5703, %v5791
        %v5793 = vpop.f32.mrf.mxu0
        %v5794 = vadd.f32 %v5705, %v5793
        %5795 = vmatmul.bf16.gmra.mxu0 %v644
        %v5796 = vpop.f32.mrf.mxu0
        %v5797 = vadd.f32 %v5708, %v5796
        %v5798 = vpop.f32.mrf.mxu0
        %v5799 = vadd.f32 %v5710, %v5798
        %5800 = vmatmul.bf16.gmra.mxu0 %v652
        %v5801 = vpop.f32.mrf.mxu0
        %v5802 = vadd.f32 %v5713, %v5801
        %v5803 = vpop.f32.mrf.mxu0
        %v5804 = vadd.f32 %v5715, %v5803
        %5805 = vmatmul.bf16.gmra.mxu0 %v660
        %v5806 = vpop.f32.mrf.mxu0
        %v5807 = vadd.f32 %v5718, %v5806
        %v5808 = vpop.f32.mrf.mxu0
        %v5809 = vadd.f32 %v5720, %v5808
        %5810 = vmatmul.bf16.gmra.mxu0 %v668
        %v5811 = vpop.f32.mrf.mxu0
        %v5812 = vadd.f32 %v5723, %v5811
        %v5813 = vpop.f32.mrf.mxu0
        %v5814 = vadd.f32 %v5725, %v5813
        %5815 = vmatmul.bf16.gmra.mxu0 %v676
        %v5816 = vpop.f32.mrf.mxu0
        %v5817 = vadd.f32 %v5728, %v5816
        %v5818 = vpop.f32.mrf.mxu0
        %v5819 = vadd.f32 %v5730, %v5818
        %5820 = vmatmul.bf16.gmra.mxu0 %v684
        %v5821 = vpop.f32.mrf.mxu0
        %v5822 = vadd.f32 %v5733, %v5821
        %v5823 = vpop.f32.mrf.mxu0
        %v5824 = vadd.f32 %v5735, %v5823
        %5825 = vmatmul.bf16.gmra.mxu0 %v692
        %v5826 = vpop.f32.mrf.mxu0
        %v5827 = vadd.f32 %v5738, %v5826
        %v5828 = vpop.f32.mrf.mxu0
        %v5829 = vadd.f32 %v5740, %v5828
        %5830 = vdwg.mxu0
        %5831 = vmatpush.bf16.msra.mxu0 %v3266
        %5832 = vmatpush.bf16.msra.mxu0 %v3258
        %5833 = vmatpush.bf16.msra.mxu0 %v3250
        %5834 = vmatpush.bf16.msra.mxu0 %v3242
        %5835 = vmatpush.bf16.msra.mxu0 %v3234
        %5836 = vmatpush.bf16.msra.mxu0 %v3226
        %5837 = vmatpush.bf16.msra.mxu0 %v3218
        %5838 = vmatpush.bf16.msra.mxu0 %v3210
        %5839 = vmatmul.bf16.gmra.mxu0 %v573
        %v5840 = vpop.f32.mrf.mxu0
        %v5841 = vadd.f32 %v5752, %v5840
        %v5842 = vpop.f32.mrf.mxu0
        %v5843 = vadd.f32 %v5754, %v5842
        %5844 = vmatmul.bf16.gmra.mxu0 %v581
        %v5845 = vpop.f32.mrf.mxu0
        %v5846 = vadd.f32 %v5757, %v5845
        %v5847 = vpop.f32.mrf.mxu0
        %v5848 = vadd.f32 %v5759, %v5847
        %5849 = vmatmul.bf16.gmra.mxu0 %v589
        %v5850 = vpop.f32.mrf.mxu0
        %v5851 = vadd.f32 %v5762, %v5850
        %v5852 = vpop.f32.mrf.mxu0
        %v5853 = vadd.f32 %v5764, %v5852
        %5854 = vmatmul.bf16.gmra.mxu0 %v597
        %v5855 = vpop.f32.mrf.mxu0
        %v5856 = vadd.f32 %v5767, %v5855
        %v5857 = vpop.f32.mrf.mxu0
        %v5858 = vadd.f32 %v5769, %v5857
        %5859 = vmatmul.bf16.gmra.mxu0 %v605
        %v5860 = vpop.f32.mrf.mxu0
        %v5861 = vadd.f32 %v5772, %v5860
        %v5862 = vpop.f32.mrf.mxu0
        %v5863 = vadd.f32 %v5774, %v5862
        %5864 = vmatmul.bf16.gmra.mxu0 %v613
        %v5865 = vpop.f32.mrf.mxu0
        %v5866 = vadd.f32 %v5777, %v5865
        %v5867 = vpop.f32.mrf.mxu0
        %v5868 = vadd.f32 %v5779, %v5867
        %5869 = vmatmul.bf16.gmra.mxu0 %v621
        %v5870 = vpop.f32.mrf.mxu0
        %v5871 = vadd.f32 %v5782, %v5870
        %v5872 = vpop.f32.mrf.mxu0
        %v5873 = vadd.f32 %v5784, %v5872
        %5874 = vmatmul.bf16.gmra.mxu0 %v629
        %v5875 = vpop.f32.mrf.mxu0
        %v5876 = vadd.f32 %v5787, %v5875
        %v5877 = vpop.f32.mrf.mxu0
        %v5878 = vadd.f32 %v5789, %v5877
        %5879 = vmatmul.bf16.gmra.mxu0 %v637
        %v5880 = vpop.f32.mrf.mxu0
        %v5881 = vadd.f32 %v5792, %v5880
        %v5882 = vpop.f32.mrf.mxu0
        %v5883 = vadd.f32 %v5794, %v5882
        %5884 = vmatmul.bf16.gmra.mxu0 %v645
        %v5885 = vpop.f32.mrf.mxu0
        %v5886 = vadd.f32 %v5797, %v5885
        %v5887 = vpop.f32.mrf.mxu0
        %v5888 = vadd.f32 %v5799, %v5887
        %5889 = vmatmul.bf16.gmra.mxu0 %v653
        %v5890 = vpop.f32.mrf.mxu0
        %v5891 = vadd.f32 %v5802, %v5890
        %v5892 = vpop.f32.mrf.mxu0
        %v5893 = vadd.f32 %v5804, %v5892
        %5894 = vmatmul.bf16.gmra.mxu0 %v661
        %v5895 = vpop.f32.mrf.mxu0
        %v5896 = vadd.f32 %v5807, %v5895
        %v5897 = vpop.f32.mrf.mxu0
        %v5898 = vadd.f32 %v5809, %v5897
        %5899 = vmatmul.bf16.gmra.mxu0 %v669
        %v5900 = vpop.f32.mrf.mxu0
        %v5901 = vadd.f32 %v5812, %v5900
        %v5902 = vpop.f32.mrf.mxu0
        %v5903 = vadd.f32 %v5814, %v5902
        %5904 = vmatmul.bf16.gmra.mxu0 %v677
        %v5905 = vpop.f32.mrf.mxu0
        %v5906 = vadd.f32 %v5817, %v5905
        %v5907 = vpop.f32.mrf.mxu0
        %v5908 = vadd.f32 %v5819, %v5907
        %5909 = vmatmul.bf16.gmra.mxu0 %v685
        %v5910 = vpop.f32.mrf.mxu0
        %v5911 = vadd.f32 %v5822, %v5910
        %v5912 = vpop.f32.mrf.mxu0
        %v5913 = vadd.f32 %v5824, %v5912
        %5914 = vmatmul.bf16.gmra.mxu0 %v693
        %v5915 = vpop.f32.mrf.mxu0
        %v5916 = vadd.f32 %v5827, %v5915
        %v5917 = vpop.f32.mrf.mxu0
        %v5918 = vadd.f32 %v5829, %v5917
        %5919 = vdwg.mxu0
        %5920 = vmatpush.bf16.msra.mxu0 %v2819
        %5921 = vmatpush.bf16.msra.mxu0 %v2811
        %5922 = vmatpush.bf16.msra.mxu0 %v2803
        %5923 = vmatpush.bf16.msra.mxu0 %v2795
        %5924 = vmatpush.bf16.msra.mxu0 %v2787
        %5925 = vmatpush.bf16.msra.mxu0 %v2779
        %5926 = vmatpush.bf16.msra.mxu0 %v2771
        %5927 = vmatpush.bf16.msra.mxu0 %v2763
        %5928 = vmatmul.bf16.gmra.mxu0 %v566
        %v5929 = vpop.f32.mrf.mxu0
        %v5930 = vadd.f32 %v1211, %v5929
        %v5931 = vpop.f32.mrf.mxu0
        %v5932 = vadd.f32 %v1211, %v5931
        %5933 = vmatmul.bf16.gmra.mxu0 %v574
        %v5934 = vpop.f32.mrf.mxu0
        %v5935 = vadd.f32 %v1211, %v5934
        %v5936 = vpop.f32.mrf.mxu0
        %v5937 = vadd.f32 %v1211, %v5936
        %5938 = vmatmul.bf16.gmra.mxu0 %v582
        %v5939 = vpop.f32.mrf.mxu0
        %v5940 = vadd.f32 %v1211, %v5939
        %v5941 = vpop.f32.mrf.mxu0
        %v5942 = vadd.f32 %v1211, %v5941
        %5943 = vmatmul.bf16.gmra.mxu0 %v590
        %v5944 = vpop.f32.mrf.mxu0
        %v5945 = vadd.f32 %v1211, %v5944
        %v5946 = vpop.f32.mrf.mxu0
        %v5947 = vadd.f32 %v1211, %v5946
        %5948 = vmatmul.bf16.gmra.mxu0 %v598
        %v5949 = vpop.f32.mrf.mxu0
        %v5950 = vadd.f32 %v1211, %v5949
        %v5951 = vpop.f32.mrf.mxu0
        %v5952 = vadd.f32 %v1211, %v5951
        %5953 = vmatmul.bf16.gmra.mxu0 %v606
        %v5954 = vpop.f32.mrf.mxu0
        %v5955 = vadd.f32 %v1211, %v5954
        %v5956 = vpop.f32.mrf.mxu0
        %v5957 = vadd.f32 %v1211, %v5956
        %5958 = vmatmul.bf16.gmra.mxu0 %v614
        %v5959 = vpop.f32.mrf.mxu0
        %v5960 = vadd.f32 %v1211, %v5959
        %v5961 = vpop.f32.mrf.mxu0
        %v5962 = vadd.f32 %v1211, %v5961
        %5963 = vmatmul.bf16.gmra.mxu0 %v622
        %v5964 = vpop.f32.mrf.mxu0
        %v5965 = vadd.f32 %v1211, %v5964
        %v5966 = vpop.f32.mrf.mxu0
        %v5967 = vadd.f32 %v1211, %v5966
        %5968 = vmatmul.bf16.gmra.mxu0 %v630
        %v5969 = vpop.f32.mrf.mxu0
        %v5970 = vadd.f32 %v1211, %v5969
        %v5971 = vpop.f32.mrf.mxu0
        %v5972 = vadd.f32 %v1211, %v5971
        %5973 = vmatmul.bf16.gmra.mxu0 %v638
        %v5974 = vpop.f32.mrf.mxu0
        %v5975 = vadd.f32 %v1211, %v5974
        %v5976 = vpop.f32.mrf.mxu0
        %v5977 = vadd.f32 %v1211, %v5976
        %5978 = vmatmul.bf16.gmra.mxu0 %v646
        %v5979 = vpop.f32.mrf.mxu0
        %v5980 = vadd.f32 %v1211, %v5979
        %v5981 = vpop.f32.mrf.mxu0
        %v5982 = vadd.f32 %v1211, %v5981
        %5983 = vmatmul.bf16.gmra.mxu0 %v654
        %v5984 = vpop.f32.mrf.mxu0
        %v5985 = vadd.f32 %v1211, %v5984
        %v5986 = vpop.f32.mrf.mxu0
        %v5987 = vadd.f32 %v1211, %v5986
        %5988 = vmatmul.bf16.gmra.mxu0 %v662
        %v5989 = vpop.f32.mrf.mxu0
        %v5990 = vadd.f32 %v1211, %v5989
        %v5991 = vpop.f32.mrf.mxu0
        %v5992 = vadd.f32 %v1211, %v5991
        %5993 = vmatmul.bf16.gmra.mxu0 %v670
        %v5994 = vpop.f32.mrf.mxu0
        %v5995 = vadd.f32 %v1211, %v5994
        %v5996 = vpop.f32.mrf.mxu0
        %v5997 = vadd.f32 %v1211, %v5996
        %5998 = vmatmul.bf16.gmra.mxu0 %v678
        %v5999 = vpop.f32.mrf.mxu0
        %v6000 = vadd.f32 %v1211, %v5999
        %v6001 = vpop.f32.mrf.mxu0
        %v6002 = vadd.f32 %v1211, %v6001
        %6003 = vmatmul.bf16.gmra.mxu0 %v686
        %v6004 = vpop.f32.mrf.mxu0
        %v6005 = vadd.f32 %v1211, %v6004
        %v6006 = vpop.f32.mrf.mxu0
        %v6007 = vadd.f32 %v1211, %v6006
        %6008 = vdwg.mxu0
        %6009 = vmatpush.bf16.msra.mxu0 %v2883
        %6010 = vmatpush.bf16.msra.mxu0 %v2875
        %6011 = vmatpush.bf16.msra.mxu0 %v2867
        %6012 = vmatpush.bf16.msra.mxu0 %v2859
        %6013 = vmatpush.bf16.msra.mxu0 %v2851
        %6014 = vmatpush.bf16.msra.mxu0 %v2843
        %6015 = vmatpush.bf16.msra.mxu0 %v2835
        %6016 = vmatpush.bf16.msra.mxu0 %v2827
        %6017 = vmatmul.bf16.gmra.mxu0 %v567
        %v6018 = vpop.f32.mrf.mxu0
        %v6019 = vadd.f32 %v5930, %v6018
        %v6020 = vpop.f32.mrf.mxu0
        %v6021 = vadd.f32 %v5932, %v6020
        %6022 = vmatmul.bf16.gmra.mxu0 %v575
        %v6023 = vpop.f32.mrf.mxu0
        %v6024 = vadd.f32 %v5935, %v6023
        %v6025 = vpop.f32.mrf.mxu0
        %v6026 = vadd.f32 %v5937, %v6025
        %6027 = vmatmul.bf16.gmra.mxu0 %v583
        %v6028 = vpop.f32.mrf.mxu0
        %v6029 = vadd.f32 %v5940, %v6028
        %v6030 = vpop.f32.mrf.mxu0
        %v6031 = vadd.f32 %v5942, %v6030
        %6032 = vmatmul.bf16.gmra.mxu0 %v591
        %v6033 = vpop.f32.mrf.mxu0
        %v6034 = vadd.f32 %v5945, %v6033
        %v6035 = vpop.f32.mrf.mxu0
        %v6036 = vadd.f32 %v5947, %v6035
        %6037 = vmatmul.bf16.gmra.mxu0 %v599
        %v6038 = vpop.f32.mrf.mxu0
        %v6039 = vadd.f32 %v5950, %v6038
        %v6040 = vpop.f32.mrf.mxu0
        %v6041 = vadd.f32 %v5952, %v6040
        %6042 = vmatmul.bf16.gmra.mxu0 %v607
        %v6043 = vpop.f32.mrf.mxu0
        %v6044 = vadd.f32 %v5955, %v6043
        %v6045 = vpop.f32.mrf.mxu0
        %v6046 = vadd.f32 %v5957, %v6045
        %6047 = vmatmul.bf16.gmra.mxu0 %v615
        %v6048 = vpop.f32.mrf.mxu0
        %v6049 = vadd.f32 %v5960, %v6048
        %v6050 = vpop.f32.mrf.mxu0
        %v6051 = vadd.f32 %v5962, %v6050
        %6052 = vmatmul.bf16.gmra.mxu0 %v623
        %v6053 = vpop.f32.mrf.mxu0
        %v6054 = vadd.f32 %v5965, %v6053
        %v6055 = vpop.f32.mrf.mxu0
        %v6056 = vadd.f32 %v5967, %v6055
        %6057 = vmatmul.bf16.gmra.mxu0 %v631
        %v6058 = vpop.f32.mrf.mxu0
        %v6059 = vadd.f32 %v5970, %v6058
        %v6060 = vpop.f32.mrf.mxu0
        %v6061 = vadd.f32 %v5972, %v6060
        %6062 = vmatmul.bf16.gmra.mxu0 %v639
        %v6063 = vpop.f32.mrf.mxu0
        %v6064 = vadd.f32 %v5975, %v6063
        %v6065 = vpop.f32.mrf.mxu0
        %v6066 = vadd.f32 %v5977, %v6065
        %6067 = vmatmul.bf16.gmra.mxu0 %v647
        %v6068 = vpop.f32.mrf.mxu0
        %v6069 = vadd.f32 %v5980, %v6068
        %v6070 = vpop.f32.mrf.mxu0
        %v6071 = vadd.f32 %v5982, %v6070
        %6072 = vmatmul.bf16.gmra.mxu0 %v655
        %v6073 = vpop.f32.mrf.mxu0
        %v6074 = vadd.f32 %v5985, %v6073
        %v6075 = vpop.f32.mrf.mxu0
        %v6076 = vadd.f32 %v5987, %v6075
        %6077 = vmatmul.bf16.gmra.mxu0 %v663
        %v6078 = vpop.f32.mrf.mxu0
        %v6079 = vadd.f32 %v5990, %v6078
        %v6080 = vpop.f32.mrf.mxu0
        %v6081 = vadd.f32 %v5992, %v6080
        %6082 = vmatmul.bf16.gmra.mxu0 %v671
        %v6083 = vpop.f32.mrf.mxu0
        %v6084 = vadd.f32 %v5995, %v6083
        %v6085 = vpop.f32.mrf.mxu0
        %v6086 = vadd.f32 %v5997, %v6085
        %6087 = vmatmul.bf16.gmra.mxu0 %v679
        %v6088 = vpop.f32.mrf.mxu0
        %v6089 = vadd.f32 %v6000, %v6088
        %v6090 = vpop.f32.mrf.mxu0
        %v6091 = vadd.f32 %v6002, %v6090
        %6092 = vmatmul.bf16.gmra.mxu0 %v687
        %v6093 = vpop.f32.mrf.mxu0
        %v6094 = vadd.f32 %v6005, %v6093
        %v6095 = vpop.f32.mrf.mxu0
        %v6096 = vadd.f32 %v6007, %v6095
        %6097 = vdwg.mxu0
        %6098 = vmatpush.bf16.msra.mxu0 %v2947
        %6099 = vmatpush.bf16.msra.mxu0 %v2939
        %6100 = vmatpush.bf16.msra.mxu0 %v2931
        %6101 = vmatpush.bf16.msra.mxu0 %v2923
        %6102 = vmatpush.bf16.msra.mxu0 %v2915
        %6103 = vmatpush.bf16.msra.mxu0 %v2907
        %6104 = vmatpush.bf16.msra.mxu0 %v2899
        %6105 = vmatpush.bf16.msra.mxu0 %v2891
        %6106 = vmatmul.bf16.gmra.mxu0 %v568
        %v6107 = vpop.f32.mrf.mxu0
        %v6108 = vadd.f32 %v6019, %v6107
        %v6109 = vpop.f32.mrf.mxu0
        %v6110 = vadd.f32 %v6021, %v6109
        %6111 = vmatmul.bf16.gmra.mxu0 %v576
        %v6112 = vpop.f32.mrf.mxu0
        %v6113 = vadd.f32 %v6024, %v6112
        %v6114 = vpop.f32.mrf.mxu0
        %v6115 = vadd.f32 %v6026, %v6114
        %6116 = vmatmul.bf16.gmra.mxu0 %v584
        %v6117 = vpop.f32.mrf.mxu0
        %v6118 = vadd.f32 %v6029, %v6117
        %v6119 = vpop.f32.mrf.mxu0
        %v6120 = vadd.f32 %v6031, %v6119
        %6121 = vmatmul.bf16.gmra.mxu0 %v592
        %v6122 = vpop.f32.mrf.mxu0
        %v6123 = vadd.f32 %v6034, %v6122
        %v6124 = vpop.f32.mrf.mxu0
        %v6125 = vadd.f32 %v6036, %v6124
        %6126 = vmatmul.bf16.gmra.mxu0 %v600
        %v6127 = vpop.f32.mrf.mxu0
        %v6128 = vadd.f32 %v6039, %v6127
        %v6129 = vpop.f32.mrf.mxu0
        %v6130 = vadd.f32 %v6041, %v6129
        %6131 = vmatmul.bf16.gmra.mxu0 %v608
        %v6132 = vpop.f32.mrf.mxu0
        %v6133 = vadd.f32 %v6044, %v6132
        %v6134 = vpop.f32.mrf.mxu0
        %v6135 = vadd.f32 %v6046, %v6134
        %6136 = vmatmul.bf16.gmra.mxu0 %v616
        %v6137 = vpop.f32.mrf.mxu0
        %v6138 = vadd.f32 %v6049, %v6137
        %v6139 = vpop.f32.mrf.mxu0
        %v6140 = vadd.f32 %v6051, %v6139
        %6141 = vmatmul.bf16.gmra.mxu0 %v624
        %v6142 = vpop.f32.mrf.mxu0
        %v6143 = vadd.f32 %v6054, %v6142
        %v6144 = vpop.f32.mrf.mxu0
        %v6145 = vadd.f32 %v6056, %v6144
        %6146 = vmatmul.bf16.gmra.mxu0 %v632
        %v6147 = vpop.f32.mrf.mxu0
        %v6148 = vadd.f32 %v6059, %v6147
        %v6149 = vpop.f32.mrf.mxu0
        %v6150 = vadd.f32 %v6061, %v6149
        %6151 = vmatmul.bf16.gmra.mxu0 %v640
        %v6152 = vpop.f32.mrf.mxu0
        %v6153 = vadd.f32 %v6064, %v6152
        %v6154 = vpop.f32.mrf.mxu0
        %v6155 = vadd.f32 %v6066, %v6154
        %6156 = vmatmul.bf16.gmra.mxu0 %v648
        %v6157 = vpop.f32.mrf.mxu0
        %v6158 = vadd.f32 %v6069, %v6157
        %v6159 = vpop.f32.mrf.mxu0
        %v6160 = vadd.f32 %v6071, %v6159
        %6161 = vmatmul.bf16.gmra.mxu0 %v656
        %v6162 = vpop.f32.mrf.mxu0
        %v6163 = vadd.f32 %v6074, %v6162
        %v6164 = vpop.f32.mrf.mxu0
        %v6165 = vadd.f32 %v6076, %v6164
        %6166 = vmatmul.bf16.gmra.mxu0 %v664
        %v6167 = vpop.f32.mrf.mxu0
        %v6168 = vadd.f32 %v6079, %v6167
        %v6169 = vpop.f32.mrf.mxu0
        %v6170 = vadd.f32 %v6081, %v6169
        %6171 = vmatmul.bf16.gmra.mxu0 %v672
        %v6172 = vpop.f32.mrf.mxu0
        %v6173 = vadd.f32 %v6084, %v6172
        %v6174 = vpop.f32.mrf.mxu0
        %v6175 = vadd.f32 %v6086, %v6174
        %6176 = vmatmul.bf16.gmra.mxu0 %v680
        %v6177 = vpop.f32.mrf.mxu0
        %v6178 = vadd.f32 %v6089, %v6177
        %v6179 = vpop.f32.mrf.mxu0
        %v6180 = vadd.f32 %v6091, %v6179
        %6181 = vmatmul.bf16.gmra.mxu0 %v688
        %v6182 = vpop.f32.mrf.mxu0
        %v6183 = vadd.f32 %v6094, %v6182
        %v6184 = vpop.f32.mrf.mxu0
        %v6185 = vadd.f32 %v6096, %v6184
        %6186 = vdwg.mxu0
        %6187 = vmatpush.bf16.msra.mxu0 %v3011
        %6188 = vmatpush.bf16.msra.mxu0 %v3003
        %6189 = vmatpush.bf16.msra.mxu0 %v2995
        %6190 = vmatpush.bf16.msra.mxu0 %v2987
        %6191 = vmatpush.bf16.msra.mxu0 %v2979
        %6192 = vmatpush.bf16.msra.mxu0 %v2971
        %6193 = vmatpush.bf16.msra.mxu0 %v2963
        %6194 = vmatpush.bf16.msra.mxu0 %v2955
        %6195 = vmatmul.bf16.gmra.mxu0 %v569
        %v6196 = vpop.f32.mrf.mxu0
        %v6197 = vadd.f32 %v6108, %v6196
        %v6198 = vpop.f32.mrf.mxu0
        %v6199 = vadd.f32 %v6110, %v6198
        %6200 = vmatmul.bf16.gmra.mxu0 %v577
        %v6201 = vpop.f32.mrf.mxu0
        %v6202 = vadd.f32 %v6113, %v6201
        %v6203 = vpop.f32.mrf.mxu0
        %v6204 = vadd.f32 %v6115, %v6203
        %6205 = vmatmul.bf16.gmra.mxu0 %v585
        %v6206 = vpop.f32.mrf.mxu0
        %v6207 = vadd.f32 %v6118, %v6206
        %v6208 = vpop.f32.mrf.mxu0
        %v6209 = vadd.f32 %v6120, %v6208
        %6210 = vmatmul.bf16.gmra.mxu0 %v593
        %v6211 = vpop.f32.mrf.mxu0
        %v6212 = vadd.f32 %v6123, %v6211
        %v6213 = vpop.f32.mrf.mxu0
        %v6214 = vadd.f32 %v6125, %v6213
        %6215 = vmatmul.bf16.gmra.mxu0 %v601
        %v6216 = vpop.f32.mrf.mxu0
        %v6217 = vadd.f32 %v6128, %v6216
        %v6218 = vpop.f32.mrf.mxu0
        %v6219 = vadd.f32 %v6130, %v6218
        %6220 = vmatmul.bf16.gmra.mxu0 %v609
        %v6221 = vpop.f32.mrf.mxu0
        %v6222 = vadd.f32 %v6133, %v6221
        %v6223 = vpop.f32.mrf.mxu0
        %v6224 = vadd.f32 %v6135, %v6223
        %6225 = vmatmul.bf16.gmra.mxu0 %v617
        %v6226 = vpop.f32.mrf.mxu0
        %v6227 = vadd.f32 %v6138, %v6226
        %v6228 = vpop.f32.mrf.mxu0
        %v6229 = vadd.f32 %v6140, %v6228
        %6230 = vmatmul.bf16.gmra.mxu0 %v625
        %v6231 = vpop.f32.mrf.mxu0
        %v6232 = vadd.f32 %v6143, %v6231
        %v6233 = vpop.f32.mrf.mxu0
        %v6234 = vadd.f32 %v6145, %v6233
        %6235 = vmatmul.bf16.gmra.mxu0 %v633
        %v6236 = vpop.f32.mrf.mxu0
        %v6237 = vadd.f32 %v6148, %v6236
        %v6238 = vpop.f32.mrf.mxu0
        %v6239 = vadd.f32 %v6150, %v6238
        %6240 = vmatmul.bf16.gmra.mxu0 %v641
        %v6241 = vpop.f32.mrf.mxu0
        %v6242 = vadd.f32 %v6153, %v6241
        %v6243 = vpop.f32.mrf.mxu0
        %v6244 = vadd.f32 %v6155, %v6243
        %6245 = vmatmul.bf16.gmra.mxu0 %v649
        %v6246 = vpop.f32.mrf.mxu0
        %v6247 = vadd.f32 %v6158, %v6246
        %v6248 = vpop.f32.mrf.mxu0
        %v6249 = vadd.f32 %v6160, %v6248
        %6250 = vmatmul.bf16.gmra.mxu0 %v657
        %v6251 = vpop.f32.mrf.mxu0
        %v6252 = vadd.f32 %v6163, %v6251
        %v6253 = vpop.f32.mrf.mxu0
        %v6254 = vadd.f32 %v6165, %v6253
        %6255 = vmatmul.bf16.gmra.mxu0 %v665
        %v6256 = vpop.f32.mrf.mxu0
        %v6257 = vadd.f32 %v6168, %v6256
        %v6258 = vpop.f32.mrf.mxu0
        %v6259 = vadd.f32 %v6170, %v6258
        %6260 = vmatmul.bf16.gmra.mxu0 %v673
        %v6261 = vpop.f32.mrf.mxu0
        %v6262 = vadd.f32 %v6173, %v6261
        %v6263 = vpop.f32.mrf.mxu0
        %v6264 = vadd.f32 %v6175, %v6263
        %6265 = vmatmul.bf16.gmra.mxu0 %v681
        %v6266 = vpop.f32.mrf.mxu0
        %v6267 = vadd.f32 %v6178, %v6266
        %v6268 = vpop.f32.mrf.mxu0
        %v6269 = vadd.f32 %v6180, %v6268
        %6270 = vmatmul.bf16.gmra.mxu0 %v689
        %v6271 = vpop.f32.mrf.mxu0
        %v6272 = vadd.f32 %v6183, %v6271
        %v6273 = vpop.f32.mrf.mxu0
        %v6274 = vadd.f32 %v6185, %v6273
        %6275 = vdwg.mxu0
        %6276 = vmatpush.bf16.msra.mxu0 %v3075
        %6277 = vmatpush.bf16.msra.mxu0 %v3067
        %6278 = vmatpush.bf16.msra.mxu0 %v3059
        %6279 = vmatpush.bf16.msra.mxu0 %v3051
        %6280 = vmatpush.bf16.msra.mxu0 %v3043
        %6281 = vmatpush.bf16.msra.mxu0 %v3035
        %6282 = vmatpush.bf16.msra.mxu0 %v3027
        %6283 = vmatpush.bf16.msra.mxu0 %v3019
        %6284 = vmatmul.bf16.gmra.mxu0 %v570
        %v6285 = vpop.f32.mrf.mxu0
        %v6286 = vadd.f32 %v6197, %v6285
        %v6287 = vpop.f32.mrf.mxu0
        %v6288 = vadd.f32 %v6199, %v6287
        %6289 = vmatmul.bf16.gmra.mxu0 %v578
        %v6290 = vpop.f32.mrf.mxu0
        %v6291 = vadd.f32 %v6202, %v6290
        %v6292 = vpop.f32.mrf.mxu0
        %v6293 = vadd.f32 %v6204, %v6292
        %6294 = vmatmul.bf16.gmra.mxu0 %v586
        %v6295 = vpop.f32.mrf.mxu0
        %v6296 = vadd.f32 %v6207, %v6295
        %v6297 = vpop.f32.mrf.mxu0
        %v6298 = vadd.f32 %v6209, %v6297
        %6299 = vmatmul.bf16.gmra.mxu0 %v594
        %v6300 = vpop.f32.mrf.mxu0
        %v6301 = vadd.f32 %v6212, %v6300
        %v6302 = vpop.f32.mrf.mxu0
        %v6303 = vadd.f32 %v6214, %v6302
        %6304 = vmatmul.bf16.gmra.mxu0 %v602
        %v6305 = vpop.f32.mrf.mxu0
        %v6306 = vadd.f32 %v6217, %v6305
        %v6307 = vpop.f32.mrf.mxu0
        %v6308 = vadd.f32 %v6219, %v6307
        %6309 = vmatmul.bf16.gmra.mxu0 %v610
        %v6310 = vpop.f32.mrf.mxu0
        %v6311 = vadd.f32 %v6222, %v6310
        %v6312 = vpop.f32.mrf.mxu0
        %v6313 = vadd.f32 %v6224, %v6312
        %6314 = vmatmul.bf16.gmra.mxu0 %v618
        %v6315 = vpop.f32.mrf.mxu0
        %v6316 = vadd.f32 %v6227, %v6315
        %v6317 = vpop.f32.mrf.mxu0
        %v6318 = vadd.f32 %v6229, %v6317
        %6319 = vmatmul.bf16.gmra.mxu0 %v626
        %v6320 = vpop.f32.mrf.mxu0
        %v6321 = vadd.f32 %v6232, %v6320
        %v6322 = vpop.f32.mrf.mxu0
        %v6323 = vadd.f32 %v6234, %v6322
        %6324 = vmatmul.bf16.gmra.mxu0 %v634
        %v6325 = vpop.f32.mrf.mxu0
        %v6326 = vadd.f32 %v6237, %v6325
        %v6327 = vpop.f32.mrf.mxu0
        %v6328 = vadd.f32 %v6239, %v6327
        %6329 = vmatmul.bf16.gmra.mxu0 %v642
        %v6330 = vpop.f32.mrf.mxu0
        %v6331 = vadd.f32 %v6242, %v6330
        %v6332 = vpop.f32.mrf.mxu0
        %v6333 = vadd.f32 %v6244, %v6332
        %6334 = vmatmul.bf16.gmra.mxu0 %v650
        %v6335 = vpop.f32.mrf.mxu0
        %v6336 = vadd.f32 %v6247, %v6335
        %v6337 = vpop.f32.mrf.mxu0
        %v6338 = vadd.f32 %v6249, %v6337
        %6339 = vmatmul.bf16.gmra.mxu0 %v658
        %v6340 = vpop.f32.mrf.mxu0
        %v6341 = vadd.f32 %v6252, %v6340
        %v6342 = vpop.f32.mrf.mxu0
        %v6343 = vadd.f32 %v6254, %v6342
        %6344 = vmatmul.bf16.gmra.mxu0 %v666
        %v6345 = vpop.f32.mrf.mxu0
        %v6346 = vadd.f32 %v6257, %v6345
        %v6347 = vpop.f32.mrf.mxu0
        %v6348 = vadd.f32 %v6259, %v6347
        %6349 = vmatmul.bf16.gmra.mxu0 %v674
        %v6350 = vpop.f32.mrf.mxu0
        %v6351 = vadd.f32 %v6262, %v6350
        %v6352 = vpop.f32.mrf.mxu0
        %v6353 = vadd.f32 %v6264, %v6352
        %6354 = vmatmul.bf16.gmra.mxu0 %v682
        %v6355 = vpop.f32.mrf.mxu0
        %v6356 = vadd.f32 %v6267, %v6355
        %v6357 = vpop.f32.mrf.mxu0
        %v6358 = vadd.f32 %v6269, %v6357
        %6359 = vmatmul.bf16.gmra.mxu0 %v690
        %v6360 = vpop.f32.mrf.mxu0
        %v6361 = vadd.f32 %v6272, %v6360
        %v6362 = vpop.f32.mrf.mxu0
        %v6363 = vadd.f32 %v6274, %v6362
        %6364 = vdwg.mxu0
        %6365 = vmatpush.bf16.msra.mxu0 %v3139
        %6366 = vmatpush.bf16.msra.mxu0 %v3131
        %6367 = vmatpush.bf16.msra.mxu0 %v3123
        %6368 = vmatpush.bf16.msra.mxu0 %v3115
        %6369 = vmatpush.bf16.msra.mxu0 %v3107
        %6370 = vmatpush.bf16.msra.mxu0 %v3099
        %6371 = vmatpush.bf16.msra.mxu0 %v3091
        %6372 = vmatpush.bf16.msra.mxu0 %v3083
        %6373 = vmatmul.bf16.gmra.mxu0 %v571
        %v6374 = vpop.f32.mrf.mxu0
        %v6375 = vadd.f32 %v6286, %v6374
        %v6376 = vpop.f32.mrf.mxu0
        %v6377 = vadd.f32 %v6288, %v6376
        %6378 = vmatmul.bf16.gmra.mxu0 %v579
        %v6379 = vpop.f32.mrf.mxu0
        %v6380 = vadd.f32 %v6291, %v6379
        %v6381 = vpop.f32.mrf.mxu0
        %v6382 = vadd.f32 %v6293, %v6381
        %6383 = vmatmul.bf16.gmra.mxu0 %v587
        %v6384 = vpop.f32.mrf.mxu0
        %v6385 = vadd.f32 %v6296, %v6384
        %v6386 = vpop.f32.mrf.mxu0
        %v6387 = vadd.f32 %v6298, %v6386
        %6388 = vmatmul.bf16.gmra.mxu0 %v595
        %v6389 = vpop.f32.mrf.mxu0
        %v6390 = vadd.f32 %v6301, %v6389
        %v6391 = vpop.f32.mrf.mxu0
        %v6392 = vadd.f32 %v6303, %v6391
        %6393 = vmatmul.bf16.gmra.mxu0 %v603
        %v6394 = vpop.f32.mrf.mxu0
        %v6395 = vadd.f32 %v6306, %v6394
        %v6396 = vpop.f32.mrf.mxu0
        %v6397 = vadd.f32 %v6308, %v6396
        %6398 = vmatmul.bf16.gmra.mxu0 %v611
        %v6399 = vpop.f32.mrf.mxu0
        %v6400 = vadd.f32 %v6311, %v6399
        %v6401 = vpop.f32.mrf.mxu0
        %v6402 = vadd.f32 %v6313, %v6401
        %6403 = vmatmul.bf16.gmra.mxu0 %v619
        %v6404 = vpop.f32.mrf.mxu0
        %v6405 = vadd.f32 %v6316, %v6404
        %v6406 = vpop.f32.mrf.mxu0
        %v6407 = vadd.f32 %v6318, %v6406
        %6408 = vmatmul.bf16.gmra.mxu0 %v627
        %v6409 = vpop.f32.mrf.mxu0
        %v6410 = vadd.f32 %v6321, %v6409
        %v6411 = vpop.f32.mrf.mxu0
        %v6412 = vadd.f32 %v6323, %v6411
        %6413 = vmatmul.bf16.gmra.mxu0 %v635
        %v6414 = vpop.f32.mrf.mxu0
        %v6415 = vadd.f32 %v6326, %v6414
        %v6416 = vpop.f32.mrf.mxu0
        %v6417 = vadd.f32 %v6328, %v6416
        %6418 = vmatmul.bf16.gmra.mxu0 %v643
        %v6419 = vpop.f32.mrf.mxu0
        %v6420 = vadd.f32 %v6331, %v6419
        %v6421 = vpop.f32.mrf.mxu0
        %v6422 = vadd.f32 %v6333, %v6421
        %6423 = vmatmul.bf16.gmra.mxu0 %v651
        %v6424 = vpop.f32.mrf.mxu0
        %v6425 = vadd.f32 %v6336, %v6424
        %v6426 = vpop.f32.mrf.mxu0
        %v6427 = vadd.f32 %v6338, %v6426
        %6428 = vmatmul.bf16.gmra.mxu0 %v659
        %v6429 = vpop.f32.mrf.mxu0
        %v6430 = vadd.f32 %v6341, %v6429
        %v6431 = vpop.f32.mrf.mxu0
        %v6432 = vadd.f32 %v6343, %v6431
        %6433 = vmatmul.bf16.gmra.mxu0 %v667
        %v6434 = vpop.f32.mrf.mxu0
        %v6435 = vadd.f32 %v6346, %v6434
        %v6436 = vpop.f32.mrf.mxu0
        %v6437 = vadd.f32 %v6348, %v6436
        %6438 = vmatmul.bf16.gmra.mxu0 %v675
        %v6439 = vpop.f32.mrf.mxu0
        %v6440 = vadd.f32 %v6351, %v6439
        %v6441 = vpop.f32.mrf.mxu0
        %v6442 = vadd.f32 %v6353, %v6441
        %6443 = vmatmul.bf16.gmra.mxu0 %v683
        %v6444 = vpop.f32.mrf.mxu0
        %v6445 = vadd.f32 %v6356, %v6444
        %v6446 = vpop.f32.mrf.mxu0
        %v6447 = vadd.f32 %v6358, %v6446
        %6448 = vmatmul.bf16.gmra.mxu0 %v691
        %v6449 = vpop.f32.mrf.mxu0
        %v6450 = vadd.f32 %v6361, %v6449
        %v6451 = vpop.f32.mrf.mxu0
        %v6452 = vadd.f32 %v6363, %v6451
        %6453 = vdwg.mxu0
        %6454 = vmatpush.bf16.msra.mxu0 %v3203
        %6455 = vmatpush.bf16.msra.mxu0 %v3195
        %6456 = vmatpush.bf16.msra.mxu0 %v3187
        %6457 = vmatpush.bf16.msra.mxu0 %v3179
        %6458 = vmatpush.bf16.msra.mxu0 %v3171
        %6459 = vmatpush.bf16.msra.mxu0 %v3163
        %6460 = vmatpush.bf16.msra.mxu0 %v3155
        %6461 = vmatpush.bf16.msra.mxu0 %v3147
        %6462 = vmatmul.bf16.gmra.mxu0 %v572
        %v6463 = vpop.f32.mrf.mxu0
        %v6464 = vadd.f32 %v6375, %v6463
        %v6465 = vpop.f32.mrf.mxu0
        %v6466 = vadd.f32 %v6377, %v6465
        %6467 = vmatmul.bf16.gmra.mxu0 %v580
        %v6468 = vpop.f32.mrf.mxu0
        %v6469 = vadd.f32 %v6380, %v6468
        %v6470 = vpop.f32.mrf.mxu0
        %v6471 = vadd.f32 %v6382, %v6470
        %6472 = vmatmul.bf16.gmra.mxu0 %v588
        %v6473 = vpop.f32.mrf.mxu0
        %v6474 = vadd.f32 %v6385, %v6473
        %v6475 = vpop.f32.mrf.mxu0
        %v6476 = vadd.f32 %v6387, %v6475
        %6477 = vmatmul.bf16.gmra.mxu0 %v596
        %v6478 = vpop.f32.mrf.mxu0
        %v6479 = vadd.f32 %v6390, %v6478
        %v6480 = vpop.f32.mrf.mxu0
        %v6481 = vadd.f32 %v6392, %v6480
        %6482 = vmatmul.bf16.gmra.mxu0 %v604
        %v6483 = vpop.f32.mrf.mxu0
        %v6484 = vadd.f32 %v6395, %v6483
        %v6485 = vpop.f32.mrf.mxu0
        %v6486 = vadd.f32 %v6397, %v6485
        %6487 = vmatmul.bf16.gmra.mxu0 %v612
        %v6488 = vpop.f32.mrf.mxu0
        %v6489 = vadd.f32 %v6400, %v6488
        %v6490 = vpop.f32.mrf.mxu0
        %v6491 = vadd.f32 %v6402, %v6490
        %6492 = vmatmul.bf16.gmra.mxu0 %v620
        %v6493 = vpop.f32.mrf.mxu0
        %v6494 = vadd.f32 %v6405, %v6493
        %v6495 = vpop.f32.mrf.mxu0
        %v6496 = vadd.f32 %v6407, %v6495
        %6497 = vmatmul.bf16.gmra.mxu0 %v628
        %v6498 = vpop.f32.mrf.mxu0
        %v6499 = vadd.f32 %v6410, %v6498
        %v6500 = vpop.f32.mrf.mxu0
        %v6501 = vadd.f32 %v6412, %v6500
        %6502 = vmatmul.bf16.gmra.mxu0 %v636
        %v6503 = vpop.f32.mrf.mxu0
        %v6504 = vadd.f32 %v6415, %v6503
        %v6505 = vpop.f32.mrf.mxu0
        %v6506 = vadd.f32 %v6417, %v6505
        %6507 = vmatmul.bf16.gmra.mxu0 %v644
        %v6508 = vpop.f32.mrf.mxu0
        %v6509 = vadd.f32 %v6420, %v6508
        %v6510 = vpop.f32.mrf.mxu0
        %v6511 = vadd.f32 %v6422, %v6510
        %6512 = vmatmul.bf16.gmra.mxu0 %v652
        %v6513 = vpop.f32.mrf.mxu0
        %v6514 = vadd.f32 %v6425, %v6513
        %v6515 = vpop.f32.mrf.mxu0
        %v6516 = vadd.f32 %v6427, %v6515
        %6517 = vmatmul.bf16.gmra.mxu0 %v660
        %v6518 = vpop.f32.mrf.mxu0
        %v6519 = vadd.f32 %v6430, %v6518
        %v6520 = vpop.f32.mrf.mxu0
        %v6521 = vadd.f32 %v6432, %v6520
        %6522 = vmatmul.bf16.gmra.mxu0 %v668
        %v6523 = vpop.f32.mrf.mxu0
        %v6524 = vadd.f32 %v6435, %v6523
        %v6525 = vpop.f32.mrf.mxu0
        %v6526 = vadd.f32 %v6437, %v6525
        %6527 = vmatmul.bf16.gmra.mxu0 %v676
        %v6528 = vpop.f32.mrf.mxu0
        %v6529 = vadd.f32 %v6440, %v6528
        %v6530 = vpop.f32.mrf.mxu0
        %v6531 = vadd.f32 %v6442, %v6530
        %6532 = vmatmul.bf16.gmra.mxu0 %v684
        %v6533 = vpop.f32.mrf.mxu0
        %v6534 = vadd.f32 %v6445, %v6533
        %v6535 = vpop.f32.mrf.mxu0
        %v6536 = vadd.f32 %v6447, %v6535
        %6537 = vmatmul.bf16.gmra.mxu0 %v692
        %v6538 = vpop.f32.mrf.mxu0
        %v6539 = vadd.f32 %v6450, %v6538
        %v6540 = vpop.f32.mrf.mxu0
        %v6541 = vadd.f32 %v6452, %v6540
        %6542 = vdwg.mxu0
        %6543 = vmatpush.bf16.msra.mxu0 %v3267
        %6544 = vmatpush.bf16.msra.mxu0 %v3259
        %6545 = vmatpush.bf16.msra.mxu0 %v3251
        %6546 = vmatpush.bf16.msra.mxu0 %v3243
        %6547 = vmatpush.bf16.msra.mxu0 %v3235
        %6548 = vmatpush.bf16.msra.mxu0 %v3227
        %6549 = vmatpush.bf16.msra.mxu0 %v3219
        %6550 = vmatpush.bf16.msra.mxu0 %v3211
        %6551 = vmatmul.bf16.gmra.mxu0 %v573
        %v6552 = vpop.f32.mrf.mxu0
        %v6553 = vadd.f32 %v6464, %v6552
        %v6554 = vpop.f32.mrf.mxu0
        %v6555 = vadd.f32 %v6466, %v6554
        %6556 = vmatmul.bf16.gmra.mxu0 %v581
        %v6557 = vpop.f32.mrf.mxu0
        %v6558 = vadd.f32 %v6469, %v6557
        %v6559 = vpop.f32.mrf.mxu0
        %v6560 = vadd.f32 %v6471, %v6559
        %6561 = vmatmul.bf16.gmra.mxu0 %v589
        %v6562 = vpop.f32.mrf.mxu0
        %v6563 = vadd.f32 %v6474, %v6562
        %v6564 = vpop.f32.mrf.mxu0
        %v6565 = vadd.f32 %v6476, %v6564
        %6566 = vmatmul.bf16.gmra.mxu0 %v597
        %v6567 = vpop.f32.mrf.mxu0
        %v6568 = vadd.f32 %v6479, %v6567
        %v6569 = vpop.f32.mrf.mxu0
        %v6570 = vadd.f32 %v6481, %v6569
        %6571 = vmatmul.bf16.gmra.mxu0 %v605
        %v6572 = vpop.f32.mrf.mxu0
        %v6573 = vadd.f32 %v6484, %v6572
        %v6574 = vpop.f32.mrf.mxu0
        %v6575 = vadd.f32 %v6486, %v6574
        %6576 = vmatmul.bf16.gmra.mxu0 %v613
        %v6577 = vpop.f32.mrf.mxu0
        %v6578 = vadd.f32 %v6489, %v6577
        %v6579 = vpop.f32.mrf.mxu0
        %v6580 = vadd.f32 %v6491, %v6579
        %6581 = vmatmul.bf16.gmra.mxu0 %v621
        %v6582 = vpop.f32.mrf.mxu0
        %v6583 = vadd.f32 %v6494, %v6582
        %v6584 = vpop.f32.mrf.mxu0
        %v6585 = vadd.f32 %v6496, %v6584
        %6586 = vmatmul.bf16.gmra.mxu0 %v629
        %v6587 = vpop.f32.mrf.mxu0
        %v6588 = vadd.f32 %v6499, %v6587
        %v6589 = vpop.f32.mrf.mxu0
        %v6590 = vadd.f32 %v6501, %v6589
        %6591 = vmatmul.bf16.gmra.mxu0 %v637
        %v6592 = vpop.f32.mrf.mxu0
        %v6593 = vadd.f32 %v6504, %v6592
        %v6594 = vpop.f32.mrf.mxu0
        %v6595 = vadd.f32 %v6506, %v6594
        %6596 = vmatmul.bf16.gmra.mxu0 %v645
        %v6597 = vpop.f32.mrf.mxu0
        %v6598 = vadd.f32 %v6509, %v6597
        %v6599 = vpop.f32.mrf.mxu0
        %v6600 = vadd.f32 %v6511, %v6599
        %6601 = vmatmul.bf16.gmra.mxu0 %v653
        %v6602 = vpop.f32.mrf.mxu0
        %v6603 = vadd.f32 %v6514, %v6602
        %v6604 = vpop.f32.mrf.mxu0
        %v6605 = vadd.f32 %v6516, %v6604
        %6606 = vmatmul.bf16.gmra.mxu0 %v661
        %v6607 = vpop.f32.mrf.mxu0
        %v6608 = vadd.f32 %v6519, %v6607
        %v6609 = vpop.f32.mrf.mxu0
        %v6610 = vadd.f32 %v6521, %v6609
        %6611 = vmatmul.bf16.gmra.mxu0 %v669
        %v6612 = vpop.f32.mrf.mxu0
        %v6613 = vadd.f32 %v6524, %v6612
        %v6614 = vpop.f32.mrf.mxu0
        %v6615 = vadd.f32 %v6526, %v6614
        %6616 = vmatmul.bf16.gmra.mxu0 %v677
        %v6617 = vpop.f32.mrf.mxu0
        %v6618 = vadd.f32 %v6529, %v6617
        %v6619 = vpop.f32.mrf.mxu0
        %v6620 = vadd.f32 %v6531, %v6619
        %6621 = vmatmul.bf16.gmra.mxu0 %v685
        %v6622 = vpop.f32.mrf.mxu0
        %v6623 = vadd.f32 %v6534, %v6622
        %v6624 = vpop.f32.mrf.mxu0
        %v6625 = vadd.f32 %v6536, %v6624
        %6626 = vmatmul.bf16.gmra.mxu0 %v693
        %v6627 = vpop.f32.mrf.mxu0
        %v6628 = vadd.f32 %v6539, %v6627
        %v6629 = vpop.f32.mrf.mxu0
        %v6630 = vadd.f32 %v6541, %v6629
        %6631 = vdwg.mxu0
        %6632 = vmatpush.bf16.msra.mxu0 %v2820
        %6633 = vmatpush.bf16.msra.mxu0 %v2812
        %6634 = vmatpush.bf16.msra.mxu0 %v2804
        %6635 = vmatpush.bf16.msra.mxu0 %v2796
        %6636 = vmatpush.bf16.msra.mxu0 %v2788
        %6637 = vmatpush.bf16.msra.mxu0 %v2780
        %6638 = vmatpush.bf16.msra.mxu0 %v2772
        %6639 = vmatpush.bf16.msra.mxu0 %v2764
        %6640 = vmatmul.bf16.gmra.mxu0 %v566
        %v6641 = vpop.f32.mrf.mxu0
        %v6642 = vadd.f32 %v1212, %v6641
        %v6643 = vpop.f32.mrf.mxu0
        %v6644 = vadd.f32 %v1212, %v6643
        %6645 = vmatmul.bf16.gmra.mxu0 %v574
        %v6646 = vpop.f32.mrf.mxu0
        %v6647 = vadd.f32 %v1212, %v6646
        %v6648 = vpop.f32.mrf.mxu0
        %v6649 = vadd.f32 %v1212, %v6648
        %6650 = vmatmul.bf16.gmra.mxu0 %v582
        %v6651 = vpop.f32.mrf.mxu0
        %v6652 = vadd.f32 %v1212, %v6651
        %v6653 = vpop.f32.mrf.mxu0
        %v6654 = vadd.f32 %v1212, %v6653
        %6655 = vmatmul.bf16.gmra.mxu0 %v590
        %v6656 = vpop.f32.mrf.mxu0
        %v6657 = vadd.f32 %v1212, %v6656
        %v6658 = vpop.f32.mrf.mxu0
        %v6659 = vadd.f32 %v1212, %v6658
        %6660 = vmatmul.bf16.gmra.mxu0 %v598
        %v6661 = vpop.f32.mrf.mxu0
        %v6662 = vadd.f32 %v1212, %v6661
        %v6663 = vpop.f32.mrf.mxu0
        %v6664 = vadd.f32 %v1212, %v6663
        %6665 = vmatmul.bf16.gmra.mxu0 %v606
        %v6666 = vpop.f32.mrf.mxu0
        %v6667 = vadd.f32 %v1212, %v6666
        %v6668 = vpop.f32.mrf.mxu0
        %v6669 = vadd.f32 %v1212, %v6668
        %6670 = vmatmul.bf16.gmra.mxu0 %v614
        %v6671 = vpop.f32.mrf.mxu0
        %v6672 = vadd.f32 %v1212, %v6671
        %v6673 = vpop.f32.mrf.mxu0
        %v6674 = vadd.f32 %v1212, %v6673
        %6675 = vmatmul.bf16.gmra.mxu0 %v622
        %v6676 = vpop.f32.mrf.mxu0
        %v6677 = vadd.f32 %v1212, %v6676
        %v6678 = vpop.f32.mrf.mxu0
        %v6679 = vadd.f32 %v1212, %v6678
        %6680 = vmatmul.bf16.gmra.mxu0 %v630
        %v6681 = vpop.f32.mrf.mxu0
        %v6682 = vadd.f32 %v1212, %v6681
        %v6683 = vpop.f32.mrf.mxu0
        %v6684 = vadd.f32 %v1212, %v6683
        %6685 = vmatmul.bf16.gmra.mxu0 %v638
        %v6686 = vpop.f32.mrf.mxu0
        %v6687 = vadd.f32 %v1212, %v6686
        %v6688 = vpop.f32.mrf.mxu0
        %v6689 = vadd.f32 %v1212, %v6688
        %6690 = vmatmul.bf16.gmra.mxu0 %v646
        %v6691 = vpop.f32.mrf.mxu0
        %v6692 = vadd.f32 %v1212, %v6691
        %v6693 = vpop.f32.mrf.mxu0
        %v6694 = vadd.f32 %v1212, %v6693
        %6695 = vmatmul.bf16.gmra.mxu0 %v654
        %v6696 = vpop.f32.mrf.mxu0
        %v6697 = vadd.f32 %v1212, %v6696
        %v6698 = vpop.f32.mrf.mxu0
        %v6699 = vadd.f32 %v1212, %v6698
        %6700 = vmatmul.bf16.gmra.mxu0 %v662
        %v6701 = vpop.f32.mrf.mxu0
        %v6702 = vadd.f32 %v1212, %v6701
        %v6703 = vpop.f32.mrf.mxu0
        %v6704 = vadd.f32 %v1212, %v6703
        %6705 = vmatmul.bf16.gmra.mxu0 %v670
        %v6706 = vpop.f32.mrf.mxu0
        %v6707 = vadd.f32 %v1212, %v6706
        %v6708 = vpop.f32.mrf.mxu0
        %v6709 = vadd.f32 %v1212, %v6708
        %6710 = vmatmul.bf16.gmra.mxu0 %v678
        %v6711 = vpop.f32.mrf.mxu0
        %v6712 = vadd.f32 %v1212, %v6711
        %v6713 = vpop.f32.mrf.mxu0
        %v6714 = vadd.f32 %v1212, %v6713
        %6715 = vmatmul.bf16.gmra.mxu0 %v686
        %v6716 = vpop.f32.mrf.mxu0
        %v6717 = vadd.f32 %v1212, %v6716
        %v6718 = vpop.f32.mrf.mxu0
        %v6719 = vadd.f32 %v1212, %v6718
        %6720 = vdwg.mxu0
        %6721 = vmatpush.bf16.msra.mxu0 %v2884
        %6722 = vmatpush.bf16.msra.mxu0 %v2876
        %6723 = vmatpush.bf16.msra.mxu0 %v2868
        %6724 = vmatpush.bf16.msra.mxu0 %v2860
        %6725 = vmatpush.bf16.msra.mxu0 %v2852
        %6726 = vmatpush.bf16.msra.mxu0 %v2844
        %6727 = vmatpush.bf16.msra.mxu0 %v2836
        %6728 = vmatpush.bf16.msra.mxu0 %v2828
        %6729 = vmatmul.bf16.gmra.mxu0 %v567
        %v6730 = vpop.f32.mrf.mxu0
        %v6731 = vadd.f32 %v6642, %v6730
        %v6732 = vpop.f32.mrf.mxu0
        %v6733 = vadd.f32 %v6644, %v6732
        %6734 = vmatmul.bf16.gmra.mxu0 %v575
        %v6735 = vpop.f32.mrf.mxu0
        %v6736 = vadd.f32 %v6647, %v6735
        %v6737 = vpop.f32.mrf.mxu0
        %v6738 = vadd.f32 %v6649, %v6737
        %6739 = vmatmul.bf16.gmra.mxu0 %v583
        %v6740 = vpop.f32.mrf.mxu0
        %v6741 = vadd.f32 %v6652, %v6740
        %v6742 = vpop.f32.mrf.mxu0
        %v6743 = vadd.f32 %v6654, %v6742
        %6744 = vmatmul.bf16.gmra.mxu0 %v591
        %v6745 = vpop.f32.mrf.mxu0
        %v6746 = vadd.f32 %v6657, %v6745
        %v6747 = vpop.f32.mrf.mxu0
        %v6748 = vadd.f32 %v6659, %v6747
        %6749 = vmatmul.bf16.gmra.mxu0 %v599
        %v6750 = vpop.f32.mrf.mxu0
        %v6751 = vadd.f32 %v6662, %v6750
        %v6752 = vpop.f32.mrf.mxu0
        %v6753 = vadd.f32 %v6664, %v6752
        %6754 = vmatmul.bf16.gmra.mxu0 %v607
        %v6755 = vpop.f32.mrf.mxu0
        %v6756 = vadd.f32 %v6667, %v6755
        %v6757 = vpop.f32.mrf.mxu0
        %v6758 = vadd.f32 %v6669, %v6757
        %6759 = vmatmul.bf16.gmra.mxu0 %v615
        %v6760 = vpop.f32.mrf.mxu0
        %v6761 = vadd.f32 %v6672, %v6760
        %v6762 = vpop.f32.mrf.mxu0
        %v6763 = vadd.f32 %v6674, %v6762
        %6764 = vmatmul.bf16.gmra.mxu0 %v623
        %v6765 = vpop.f32.mrf.mxu0
        %v6766 = vadd.f32 %v6677, %v6765
        %v6767 = vpop.f32.mrf.mxu0
        %v6768 = vadd.f32 %v6679, %v6767
        %6769 = vmatmul.bf16.gmra.mxu0 %v631
        %v6770 = vpop.f32.mrf.mxu0
        %v6771 = vadd.f32 %v6682, %v6770
        %v6772 = vpop.f32.mrf.mxu0
        %v6773 = vadd.f32 %v6684, %v6772
        %6774 = vmatmul.bf16.gmra.mxu0 %v639
        %v6775 = vpop.f32.mrf.mxu0
        %v6776 = vadd.f32 %v6687, %v6775
        %v6777 = vpop.f32.mrf.mxu0
        %v6778 = vadd.f32 %v6689, %v6777
        %6779 = vmatmul.bf16.gmra.mxu0 %v647
        %v6780 = vpop.f32.mrf.mxu0
        %v6781 = vadd.f32 %v6692, %v6780
        %v6782 = vpop.f32.mrf.mxu0
        %v6783 = vadd.f32 %v6694, %v6782
        %6784 = vmatmul.bf16.gmra.mxu0 %v655
        %v6785 = vpop.f32.mrf.mxu0
        %v6786 = vadd.f32 %v6697, %v6785
        %v6787 = vpop.f32.mrf.mxu0
        %v6788 = vadd.f32 %v6699, %v6787
        %6789 = vmatmul.bf16.gmra.mxu0 %v663
        %v6790 = vpop.f32.mrf.mxu0
        %v6791 = vadd.f32 %v6702, %v6790
        %v6792 = vpop.f32.mrf.mxu0
        %v6793 = vadd.f32 %v6704, %v6792
        %6794 = vmatmul.bf16.gmra.mxu0 %v671
        %v6795 = vpop.f32.mrf.mxu0
        %v6796 = vadd.f32 %v6707, %v6795
        %v6797 = vpop.f32.mrf.mxu0
        %v6798 = vadd.f32 %v6709, %v6797
        %6799 = vmatmul.bf16.gmra.mxu0 %v679
        %v6800 = vpop.f32.mrf.mxu0
        %v6801 = vadd.f32 %v6712, %v6800
        %v6802 = vpop.f32.mrf.mxu0
        %v6803 = vadd.f32 %v6714, %v6802
        %6804 = vmatmul.bf16.gmra.mxu0 %v687
        %v6805 = vpop.f32.mrf.mxu0
        %v6806 = vadd.f32 %v6717, %v6805
        %v6807 = vpop.f32.mrf.mxu0
        %v6808 = vadd.f32 %v6719, %v6807
        %6809 = vdwg.mxu0
        %6810 = vmatpush.bf16.msra.mxu0 %v2948
        %6811 = vmatpush.bf16.msra.mxu0 %v2940
        %6812 = vmatpush.bf16.msra.mxu0 %v2932
        %6813 = vmatpush.bf16.msra.mxu0 %v2924
        %6814 = vmatpush.bf16.msra.mxu0 %v2916
        %6815 = vmatpush.bf16.msra.mxu0 %v2908
        %6816 = vmatpush.bf16.msra.mxu0 %v2900
        %6817 = vmatpush.bf16.msra.mxu0 %v2892
        %6818 = vmatmul.bf16.gmra.mxu0 %v568
        %v6819 = vpop.f32.mrf.mxu0
        %v6820 = vadd.f32 %v6731, %v6819
        %v6821 = vpop.f32.mrf.mxu0
        %v6822 = vadd.f32 %v6733, %v6821
        %6823 = vmatmul.bf16.gmra.mxu0 %v576
        %v6824 = vpop.f32.mrf.mxu0
        %v6825 = vadd.f32 %v6736, %v6824
        %v6826 = vpop.f32.mrf.mxu0
        %v6827 = vadd.f32 %v6738, %v6826
        %6828 = vmatmul.bf16.gmra.mxu0 %v584
        %v6829 = vpop.f32.mrf.mxu0
        %v6830 = vadd.f32 %v6741, %v6829
        %v6831 = vpop.f32.mrf.mxu0
        %v6832 = vadd.f32 %v6743, %v6831
        %6833 = vmatmul.bf16.gmra.mxu0 %v592
        %v6834 = vpop.f32.mrf.mxu0
        %v6835 = vadd.f32 %v6746, %v6834
        %v6836 = vpop.f32.mrf.mxu0
        %v6837 = vadd.f32 %v6748, %v6836
        %6838 = vmatmul.bf16.gmra.mxu0 %v600
        %v6839 = vpop.f32.mrf.mxu0
        %v6840 = vadd.f32 %v6751, %v6839
        %v6841 = vpop.f32.mrf.mxu0
        %v6842 = vadd.f32 %v6753, %v6841
        %6843 = vmatmul.bf16.gmra.mxu0 %v608
        %v6844 = vpop.f32.mrf.mxu0
        %v6845 = vadd.f32 %v6756, %v6844
        %v6846 = vpop.f32.mrf.mxu0
        %v6847 = vadd.f32 %v6758, %v6846
        %6848 = vmatmul.bf16.gmra.mxu0 %v616
        %v6849 = vpop.f32.mrf.mxu0
        %v6850 = vadd.f32 %v6761, %v6849
        %v6851 = vpop.f32.mrf.mxu0
        %v6852 = vadd.f32 %v6763, %v6851
        %6853 = vmatmul.bf16.gmra.mxu0 %v624
        %v6854 = vpop.f32.mrf.mxu0
        %v6855 = vadd.f32 %v6766, %v6854
        %v6856 = vpop.f32.mrf.mxu0
        %v6857 = vadd.f32 %v6768, %v6856
        %6858 = vmatmul.bf16.gmra.mxu0 %v632
        %v6859 = vpop.f32.mrf.mxu0
        %v6860 = vadd.f32 %v6771, %v6859
        %v6861 = vpop.f32.mrf.mxu0
        %v6862 = vadd.f32 %v6773, %v6861
        %6863 = vmatmul.bf16.gmra.mxu0 %v640
        %v6864 = vpop.f32.mrf.mxu0
        %v6865 = vadd.f32 %v6776, %v6864
        %v6866 = vpop.f32.mrf.mxu0
        %v6867 = vadd.f32 %v6778, %v6866
        %6868 = vmatmul.bf16.gmra.mxu0 %v648
        %v6869 = vpop.f32.mrf.mxu0
        %v6870 = vadd.f32 %v6781, %v6869
        %v6871 = vpop.f32.mrf.mxu0
        %v6872 = vadd.f32 %v6783, %v6871
        %6873 = vmatmul.bf16.gmra.mxu0 %v656
        %v6874 = vpop.f32.mrf.mxu0
        %v6875 = vadd.f32 %v6786, %v6874
        %v6876 = vpop.f32.mrf.mxu0
        %v6877 = vadd.f32 %v6788, %v6876
        %6878 = vmatmul.bf16.gmra.mxu0 %v664
        %v6879 = vpop.f32.mrf.mxu0
        %v6880 = vadd.f32 %v6791, %v6879
        %v6881 = vpop.f32.mrf.mxu0
        %v6882 = vadd.f32 %v6793, %v6881
        %6883 = vmatmul.bf16.gmra.mxu0 %v672
        %v6884 = vpop.f32.mrf.mxu0
        %v6885 = vadd.f32 %v6796, %v6884
        %v6886 = vpop.f32.mrf.mxu0
        %v6887 = vadd.f32 %v6798, %v6886
        %6888 = vmatmul.bf16.gmra.mxu0 %v680
        %v6889 = vpop.f32.mrf.mxu0
        %v6890 = vadd.f32 %v6801, %v6889
        %v6891 = vpop.f32.mrf.mxu0
        %v6892 = vadd.f32 %v6803, %v6891
        %6893 = vmatmul.bf16.gmra.mxu0 %v688
        %v6894 = vpop.f32.mrf.mxu0
        %v6895 = vadd.f32 %v6806, %v6894
        %v6896 = vpop.f32.mrf.mxu0
        %v6897 = vadd.f32 %v6808, %v6896
        %6898 = vdwg.mxu0
        %6899 = vmatpush.bf16.msra.mxu0 %v3012
        %6900 = vmatpush.bf16.msra.mxu0 %v3004
        %6901 = vmatpush.bf16.msra.mxu0 %v2996
        %6902 = vmatpush.bf16.msra.mxu0 %v2988
        %6903 = vmatpush.bf16.msra.mxu0 %v2980
        %6904 = vmatpush.bf16.msra.mxu0 %v2972
        %6905 = vmatpush.bf16.msra.mxu0 %v2964
        %6906 = vmatpush.bf16.msra.mxu0 %v2956
        %6907 = vmatmul.bf16.gmra.mxu0 %v569
        %v6908 = vpop.f32.mrf.mxu0
        %v6909 = vadd.f32 %v6820, %v6908
        %v6910 = vpop.f32.mrf.mxu0
        %v6911 = vadd.f32 %v6822, %v6910
        %6912 = vmatmul.bf16.gmra.mxu0 %v577
        %v6913 = vpop.f32.mrf.mxu0
        %v6914 = vadd.f32 %v6825, %v6913
        %v6915 = vpop.f32.mrf.mxu0
        %v6916 = vadd.f32 %v6827, %v6915
        %6917 = vmatmul.bf16.gmra.mxu0 %v585
        %v6918 = vpop.f32.mrf.mxu0
        %v6919 = vadd.f32 %v6830, %v6918
        %v6920 = vpop.f32.mrf.mxu0
        %v6921 = vadd.f32 %v6832, %v6920
        %6922 = vmatmul.bf16.gmra.mxu0 %v593
        %v6923 = vpop.f32.mrf.mxu0
        %v6924 = vadd.f32 %v6835, %v6923
        %v6925 = vpop.f32.mrf.mxu0
        %v6926 = vadd.f32 %v6837, %v6925
        %6927 = vmatmul.bf16.gmra.mxu0 %v601
        %v6928 = vpop.f32.mrf.mxu0
        %v6929 = vadd.f32 %v6840, %v6928
        %v6930 = vpop.f32.mrf.mxu0
        %v6931 = vadd.f32 %v6842, %v6930
        %6932 = vmatmul.bf16.gmra.mxu0 %v609
        %v6933 = vpop.f32.mrf.mxu0
        %v6934 = vadd.f32 %v6845, %v6933
        %v6935 = vpop.f32.mrf.mxu0
        %v6936 = vadd.f32 %v6847, %v6935
        %6937 = vmatmul.bf16.gmra.mxu0 %v617
        %v6938 = vpop.f32.mrf.mxu0
        %v6939 = vadd.f32 %v6850, %v6938
        %v6940 = vpop.f32.mrf.mxu0
        %v6941 = vadd.f32 %v6852, %v6940
        %6942 = vmatmul.bf16.gmra.mxu0 %v625
        %v6943 = vpop.f32.mrf.mxu0
        %v6944 = vadd.f32 %v6855, %v6943
        %v6945 = vpop.f32.mrf.mxu0
        %v6946 = vadd.f32 %v6857, %v6945
        %6947 = vmatmul.bf16.gmra.mxu0 %v633
        %v6948 = vpop.f32.mrf.mxu0
        %v6949 = vadd.f32 %v6860, %v6948
        %v6950 = vpop.f32.mrf.mxu0
        %v6951 = vadd.f32 %v6862, %v6950
        %6952 = vmatmul.bf16.gmra.mxu0 %v641
        %v6953 = vpop.f32.mrf.mxu0
        %v6954 = vadd.f32 %v6865, %v6953
        %v6955 = vpop.f32.mrf.mxu0
        %v6956 = vadd.f32 %v6867, %v6955
        %6957 = vmatmul.bf16.gmra.mxu0 %v649
        %v6958 = vpop.f32.mrf.mxu0
        %v6959 = vadd.f32 %v6870, %v6958
        %v6960 = vpop.f32.mrf.mxu0
        %v6961 = vadd.f32 %v6872, %v6960
        %6962 = vmatmul.bf16.gmra.mxu0 %v657
        %v6963 = vpop.f32.mrf.mxu0
        %v6964 = vadd.f32 %v6875, %v6963
        %v6965 = vpop.f32.mrf.mxu0
        %v6966 = vadd.f32 %v6877, %v6965
        %6967 = vmatmul.bf16.gmra.mxu0 %v665
        %v6968 = vpop.f32.mrf.mxu0
        %v6969 = vadd.f32 %v6880, %v6968
        %v6970 = vpop.f32.mrf.mxu0
        %v6971 = vadd.f32 %v6882, %v6970
        %6972 = vmatmul.bf16.gmra.mxu0 %v673
        %v6973 = vpop.f32.mrf.mxu0
        %v6974 = vadd.f32 %v6885, %v6973
        %v6975 = vpop.f32.mrf.mxu0
        %v6976 = vadd.f32 %v6887, %v6975
        %6977 = vmatmul.bf16.gmra.mxu0 %v681
        %v6978 = vpop.f32.mrf.mxu0
        %v6979 = vadd.f32 %v6890, %v6978
        %v6980 = vpop.f32.mrf.mxu0
        %v6981 = vadd.f32 %v6892, %v6980
        %6982 = vmatmul.bf16.gmra.mxu0 %v689
        %v6983 = vpop.f32.mrf.mxu0
        %v6984 = vadd.f32 %v6895, %v6983
        %v6985 = vpop.f32.mrf.mxu0
        %v6986 = vadd.f32 %v6897, %v6985
        %6987 = vdwg.mxu0
        %6988 = vmatpush.bf16.msra.mxu0 %v3076
        %6989 = vmatpush.bf16.msra.mxu0 %v3068
        %6990 = vmatpush.bf16.msra.mxu0 %v3060
        %6991 = vmatpush.bf16.msra.mxu0 %v3052
        %6992 = vmatpush.bf16.msra.mxu0 %v3044
        %6993 = vmatpush.bf16.msra.mxu0 %v3036
        %6994 = vmatpush.bf16.msra.mxu0 %v3028
        %6995 = vmatpush.bf16.msra.mxu0 %v3020
        %6996 = vmatmul.bf16.gmra.mxu0 %v570
        %v6997 = vpop.f32.mrf.mxu0
        %v6998 = vadd.f32 %v6909, %v6997
        %v6999 = vpop.f32.mrf.mxu0
        %v7000 = vadd.f32 %v6911, %v6999
        %7001 = vmatmul.bf16.gmra.mxu0 %v578
        %v7002 = vpop.f32.mrf.mxu0
        %v7003 = vadd.f32 %v6914, %v7002
        %v7004 = vpop.f32.mrf.mxu0
        %v7005 = vadd.f32 %v6916, %v7004
        %7006 = vmatmul.bf16.gmra.mxu0 %v586
        %v7007 = vpop.f32.mrf.mxu0
        %v7008 = vadd.f32 %v6919, %v7007
        %v7009 = vpop.f32.mrf.mxu0
        %v7010 = vadd.f32 %v6921, %v7009
        %7011 = vmatmul.bf16.gmra.mxu0 %v594
        %v7012 = vpop.f32.mrf.mxu0
        %v7013 = vadd.f32 %v6924, %v7012
        %v7014 = vpop.f32.mrf.mxu0
        %v7015 = vadd.f32 %v6926, %v7014
        %7016 = vmatmul.bf16.gmra.mxu0 %v602
        %v7017 = vpop.f32.mrf.mxu0
        %v7018 = vadd.f32 %v6929, %v7017
        %v7019 = vpop.f32.mrf.mxu0
        %v7020 = vadd.f32 %v6931, %v7019
        %7021 = vmatmul.bf16.gmra.mxu0 %v610
        %v7022 = vpop.f32.mrf.mxu0
        %v7023 = vadd.f32 %v6934, %v7022
        %v7024 = vpop.f32.mrf.mxu0
        %v7025 = vadd.f32 %v6936, %v7024
        %7026 = vmatmul.bf16.gmra.mxu0 %v618
        %v7027 = vpop.f32.mrf.mxu0
        %v7028 = vadd.f32 %v6939, %v7027
        %v7029 = vpop.f32.mrf.mxu0
        %v7030 = vadd.f32 %v6941, %v7029
        %7031 = vmatmul.bf16.gmra.mxu0 %v626
        %v7032 = vpop.f32.mrf.mxu0
        %v7033 = vadd.f32 %v6944, %v7032
        %v7034 = vpop.f32.mrf.mxu0
        %v7035 = vadd.f32 %v6946, %v7034
        %7036 = vmatmul.bf16.gmra.mxu0 %v634
        %v7037 = vpop.f32.mrf.mxu0
        %v7038 = vadd.f32 %v6949, %v7037
        %v7039 = vpop.f32.mrf.mxu0
        %v7040 = vadd.f32 %v6951, %v7039
        %7041 = vmatmul.bf16.gmra.mxu0 %v642
        %v7042 = vpop.f32.mrf.mxu0
        %v7043 = vadd.f32 %v6954, %v7042
        %v7044 = vpop.f32.mrf.mxu0
        %v7045 = vadd.f32 %v6956, %v7044
        %7046 = vmatmul.bf16.gmra.mxu0 %v650
        %v7047 = vpop.f32.mrf.mxu0
        %v7048 = vadd.f32 %v6959, %v7047
        %v7049 = vpop.f32.mrf.mxu0
        %v7050 = vadd.f32 %v6961, %v7049
        %7051 = vmatmul.bf16.gmra.mxu0 %v658
        %v7052 = vpop.f32.mrf.mxu0
        %v7053 = vadd.f32 %v6964, %v7052
        %v7054 = vpop.f32.mrf.mxu0
        %v7055 = vadd.f32 %v6966, %v7054
        %7056 = vmatmul.bf16.gmra.mxu0 %v666
        %v7057 = vpop.f32.mrf.mxu0
        %v7058 = vadd.f32 %v6969, %v7057
        %v7059 = vpop.f32.mrf.mxu0
        %v7060 = vadd.f32 %v6971, %v7059
        %7061 = vmatmul.bf16.gmra.mxu0 %v674
        %v7062 = vpop.f32.mrf.mxu0
        %v7063 = vadd.f32 %v6974, %v7062
        %v7064 = vpop.f32.mrf.mxu0
        %v7065 = vadd.f32 %v6976, %v7064
        %7066 = vmatmul.bf16.gmra.mxu0 %v682
        %v7067 = vpop.f32.mrf.mxu0
        %v7068 = vadd.f32 %v6979, %v7067
        %v7069 = vpop.f32.mrf.mxu0
        %v7070 = vadd.f32 %v6981, %v7069
        %7071 = vmatmul.bf16.gmra.mxu0 %v690
        %v7072 = vpop.f32.mrf.mxu0
        %v7073 = vadd.f32 %v6984, %v7072
        %v7074 = vpop.f32.mrf.mxu0
        %v7075 = vadd.f32 %v6986, %v7074
        %7076 = vdwg.mxu0
        %7077 = vmatpush.bf16.msra.mxu0 %v3140
        %7078 = vmatpush.bf16.msra.mxu0 %v3132
        %7079 = vmatpush.bf16.msra.mxu0 %v3124
        %7080 = vmatpush.bf16.msra.mxu0 %v3116
        %7081 = vmatpush.bf16.msra.mxu0 %v3108
        %7082 = vmatpush.bf16.msra.mxu0 %v3100
        %7083 = vmatpush.bf16.msra.mxu0 %v3092
        %7084 = vmatpush.bf16.msra.mxu0 %v3084
        %7085 = vmatmul.bf16.gmra.mxu0 %v571
        %v7086 = vpop.f32.mrf.mxu0
        %v7087 = vadd.f32 %v6998, %v7086
        %v7088 = vpop.f32.mrf.mxu0
        %v7089 = vadd.f32 %v7000, %v7088
        %7090 = vmatmul.bf16.gmra.mxu0 %v579
        %v7091 = vpop.f32.mrf.mxu0
        %v7092 = vadd.f32 %v7003, %v7091
        %v7093 = vpop.f32.mrf.mxu0
        %v7094 = vadd.f32 %v7005, %v7093
        %7095 = vmatmul.bf16.gmra.mxu0 %v587
        %v7096 = vpop.f32.mrf.mxu0
        %v7097 = vadd.f32 %v7008, %v7096
        %v7098 = vpop.f32.mrf.mxu0
        %v7099 = vadd.f32 %v7010, %v7098
        %7100 = vmatmul.bf16.gmra.mxu0 %v595
        %v7101 = vpop.f32.mrf.mxu0
        %v7102 = vadd.f32 %v7013, %v7101
        %v7103 = vpop.f32.mrf.mxu0
        %v7104 = vadd.f32 %v7015, %v7103
        %7105 = vmatmul.bf16.gmra.mxu0 %v603
        %v7106 = vpop.f32.mrf.mxu0
        %v7107 = vadd.f32 %v7018, %v7106
        %v7108 = vpop.f32.mrf.mxu0
        %v7109 = vadd.f32 %v7020, %v7108
        %7110 = vmatmul.bf16.gmra.mxu0 %v611
        %v7111 = vpop.f32.mrf.mxu0
        %v7112 = vadd.f32 %v7023, %v7111
        %v7113 = vpop.f32.mrf.mxu0
        %v7114 = vadd.f32 %v7025, %v7113
        %7115 = vmatmul.bf16.gmra.mxu0 %v619
        %v7116 = vpop.f32.mrf.mxu0
        %v7117 = vadd.f32 %v7028, %v7116
        %v7118 = vpop.f32.mrf.mxu0
        %v7119 = vadd.f32 %v7030, %v7118
        %7120 = vmatmul.bf16.gmra.mxu0 %v627
        %v7121 = vpop.f32.mrf.mxu0
        %v7122 = vadd.f32 %v7033, %v7121
        %v7123 = vpop.f32.mrf.mxu0
        %v7124 = vadd.f32 %v7035, %v7123
        %7125 = vmatmul.bf16.gmra.mxu0 %v635
        %v7126 = vpop.f32.mrf.mxu0
        %v7127 = vadd.f32 %v7038, %v7126
        %v7128 = vpop.f32.mrf.mxu0
        %v7129 = vadd.f32 %v7040, %v7128
        %7130 = vmatmul.bf16.gmra.mxu0 %v643
        %v7131 = vpop.f32.mrf.mxu0
        %v7132 = vadd.f32 %v7043, %v7131
        %v7133 = vpop.f32.mrf.mxu0
        %v7134 = vadd.f32 %v7045, %v7133
        %7135 = vmatmul.bf16.gmra.mxu0 %v651
        %v7136 = vpop.f32.mrf.mxu0
        %v7137 = vadd.f32 %v7048, %v7136
        %v7138 = vpop.f32.mrf.mxu0
        %v7139 = vadd.f32 %v7050, %v7138
        %7140 = vmatmul.bf16.gmra.mxu0 %v659
        %v7141 = vpop.f32.mrf.mxu0
        %v7142 = vadd.f32 %v7053, %v7141
        %v7143 = vpop.f32.mrf.mxu0
        %v7144 = vadd.f32 %v7055, %v7143
        %7145 = vmatmul.bf16.gmra.mxu0 %v667
        %v7146 = vpop.f32.mrf.mxu0
        %v7147 = vadd.f32 %v7058, %v7146
        %v7148 = vpop.f32.mrf.mxu0
        %v7149 = vadd.f32 %v7060, %v7148
        %7150 = vmatmul.bf16.gmra.mxu0 %v675
        %v7151 = vpop.f32.mrf.mxu0
        %v7152 = vadd.f32 %v7063, %v7151
        %v7153 = vpop.f32.mrf.mxu0
        %v7154 = vadd.f32 %v7065, %v7153
        %7155 = vmatmul.bf16.gmra.mxu0 %v683
        %v7156 = vpop.f32.mrf.mxu0
        %v7157 = vadd.f32 %v7068, %v7156
        %v7158 = vpop.f32.mrf.mxu0
        %v7159 = vadd.f32 %v7070, %v7158
        %7160 = vmatmul.bf16.gmra.mxu0 %v691
        %v7161 = vpop.f32.mrf.mxu0
        %v7162 = vadd.f32 %v7073, %v7161
        %v7163 = vpop.f32.mrf.mxu0
        %v7164 = vadd.f32 %v7075, %v7163
        %7165 = vdwg.mxu0
        %7166 = vmatpush.bf16.msra.mxu0 %v3204
        %7167 = vmatpush.bf16.msra.mxu0 %v3196
        %7168 = vmatpush.bf16.msra.mxu0 %v3188
        %7169 = vmatpush.bf16.msra.mxu0 %v3180
        %7170 = vmatpush.bf16.msra.mxu0 %v3172
        %7171 = vmatpush.bf16.msra.mxu0 %v3164
        %7172 = vmatpush.bf16.msra.mxu0 %v3156
        %7173 = vmatpush.bf16.msra.mxu0 %v3148
        %7174 = vmatmul.bf16.gmra.mxu0 %v572
        %v7175 = vpop.f32.mrf.mxu0
        %v7176 = vadd.f32 %v7087, %v7175
        %v7177 = vpop.f32.mrf.mxu0
        %v7178 = vadd.f32 %v7089, %v7177
        %7179 = vmatmul.bf16.gmra.mxu0 %v580
        %v7180 = vpop.f32.mrf.mxu0
        %v7181 = vadd.f32 %v7092, %v7180
        %v7182 = vpop.f32.mrf.mxu0
        %v7183 = vadd.f32 %v7094, %v7182
        %7184 = vmatmul.bf16.gmra.mxu0 %v588
        %v7185 = vpop.f32.mrf.mxu0
        %v7186 = vadd.f32 %v7097, %v7185
        %v7187 = vpop.f32.mrf.mxu0
        %v7188 = vadd.f32 %v7099, %v7187
        %7189 = vmatmul.bf16.gmra.mxu0 %v596
        %v7190 = vpop.f32.mrf.mxu0
        %v7191 = vadd.f32 %v7102, %v7190
        %v7192 = vpop.f32.mrf.mxu0
        %v7193 = vadd.f32 %v7104, %v7192
        %7194 = vmatmul.bf16.gmra.mxu0 %v604
        %v7195 = vpop.f32.mrf.mxu0
        %v7196 = vadd.f32 %v7107, %v7195
        %v7197 = vpop.f32.mrf.mxu0
        %v7198 = vadd.f32 %v7109, %v7197
        %7199 = vmatmul.bf16.gmra.mxu0 %v612
        %v7200 = vpop.f32.mrf.mxu0
        %v7201 = vadd.f32 %v7112, %v7200
        %v7202 = vpop.f32.mrf.mxu0
        %v7203 = vadd.f32 %v7114, %v7202
        %7204 = vmatmul.bf16.gmra.mxu0 %v620
        %v7205 = vpop.f32.mrf.mxu0
        %v7206 = vadd.f32 %v7117, %v7205
        %v7207 = vpop.f32.mrf.mxu0
        %v7208 = vadd.f32 %v7119, %v7207
        %7209 = vmatmul.bf16.gmra.mxu0 %v628
        %v7210 = vpop.f32.mrf.mxu0
        %v7211 = vadd.f32 %v7122, %v7210
        %v7212 = vpop.f32.mrf.mxu0
        %v7213 = vadd.f32 %v7124, %v7212
        %7214 = vmatmul.bf16.gmra.mxu0 %v636
        %v7215 = vpop.f32.mrf.mxu0
        %v7216 = vadd.f32 %v7127, %v7215
        %v7217 = vpop.f32.mrf.mxu0
        %v7218 = vadd.f32 %v7129, %v7217
        %7219 = vmatmul.bf16.gmra.mxu0 %v644
        %v7220 = vpop.f32.mrf.mxu0
        %v7221 = vadd.f32 %v7132, %v7220
        %v7222 = vpop.f32.mrf.mxu0
        %v7223 = vadd.f32 %v7134, %v7222
        %7224 = vmatmul.bf16.gmra.mxu0 %v652
        %v7225 = vpop.f32.mrf.mxu0
        %v7226 = vadd.f32 %v7137, %v7225
        %v7227 = vpop.f32.mrf.mxu0
        %v7228 = vadd.f32 %v7139, %v7227
        %7229 = vmatmul.bf16.gmra.mxu0 %v660
        %v7230 = vpop.f32.mrf.mxu0
        %v7231 = vadd.f32 %v7142, %v7230
        %v7232 = vpop.f32.mrf.mxu0
        %v7233 = vadd.f32 %v7144, %v7232
        %7234 = vmatmul.bf16.gmra.mxu0 %v668
        %v7235 = vpop.f32.mrf.mxu0
        %v7236 = vadd.f32 %v7147, %v7235
        %v7237 = vpop.f32.mrf.mxu0
        %v7238 = vadd.f32 %v7149, %v7237
        %7239 = vmatmul.bf16.gmra.mxu0 %v676
        %v7240 = vpop.f32.mrf.mxu0
        %v7241 = vadd.f32 %v7152, %v7240
        %v7242 = vpop.f32.mrf.mxu0
        %v7243 = vadd.f32 %v7154, %v7242
        %7244 = vmatmul.bf16.gmra.mxu0 %v684
        %v7245 = vpop.f32.mrf.mxu0
        %v7246 = vadd.f32 %v7157, %v7245
        %v7247 = vpop.f32.mrf.mxu0
        %v7248 = vadd.f32 %v7159, %v7247
        %7249 = vmatmul.bf16.gmra.mxu0 %v692
        %v7250 = vpop.f32.mrf.mxu0
        %v7251 = vadd.f32 %v7162, %v7250
        %v7252 = vpop.f32.mrf.mxu0
        %v7253 = vadd.f32 %v7164, %v7252
        %7254 = vdwg.mxu0
        %7255 = vmatpush.bf16.msra.mxu0 %v3268
        %7256 = vmatpush.bf16.msra.mxu0 %v3260
        %7257 = vmatpush.bf16.msra.mxu0 %v3252
        %7258 = vmatpush.bf16.msra.mxu0 %v3244
        %7259 = vmatpush.bf16.msra.mxu0 %v3236
        %7260 = vmatpush.bf16.msra.mxu0 %v3228
        %7261 = vmatpush.bf16.msra.mxu0 %v3220
        %7262 = vmatpush.bf16.msra.mxu0 %v3212
        %7263 = vmatmul.bf16.gmra.mxu0 %v573
        %v7264 = vpop.f32.mrf.mxu0
        %v7265 = vadd.f32 %v7176, %v7264
        %v7266 = vpop.f32.mrf.mxu0
        %v7267 = vadd.f32 %v7178, %v7266
        %7268 = vmatmul.bf16.gmra.mxu0 %v581
        %v7269 = vpop.f32.mrf.mxu0
        %v7270 = vadd.f32 %v7181, %v7269
        %v7271 = vpop.f32.mrf.mxu0
        %v7272 = vadd.f32 %v7183, %v7271
        %7273 = vmatmul.bf16.gmra.mxu0 %v589
        %v7274 = vpop.f32.mrf.mxu0
        %v7275 = vadd.f32 %v7186, %v7274
        %v7276 = vpop.f32.mrf.mxu0
        %v7277 = vadd.f32 %v7188, %v7276
        %7278 = vmatmul.bf16.gmra.mxu0 %v597
        %v7279 = vpop.f32.mrf.mxu0
        %v7280 = vadd.f32 %v7191, %v7279
        %v7281 = vpop.f32.mrf.mxu0
        %v7282 = vadd.f32 %v7193, %v7281
        %7283 = vmatmul.bf16.gmra.mxu0 %v605
        %v7284 = vpop.f32.mrf.mxu0
        %v7285 = vadd.f32 %v7196, %v7284
        %v7286 = vpop.f32.mrf.mxu0
        %v7287 = vadd.f32 %v7198, %v7286
        %7288 = vmatmul.bf16.gmra.mxu0 %v613
        %v7289 = vpop.f32.mrf.mxu0
        %v7290 = vadd.f32 %v7201, %v7289
        %v7291 = vpop.f32.mrf.mxu0
        %v7292 = vadd.f32 %v7203, %v7291
        %7293 = vmatmul.bf16.gmra.mxu0 %v621
        %v7294 = vpop.f32.mrf.mxu0
        %v7295 = vadd.f32 %v7206, %v7294
        %v7296 = vpop.f32.mrf.mxu0
        %v7297 = vadd.f32 %v7208, %v7296
        %7298 = vmatmul.bf16.gmra.mxu0 %v629
        %v7299 = vpop.f32.mrf.mxu0
        %v7300 = vadd.f32 %v7211, %v7299
        %v7301 = vpop.f32.mrf.mxu0
        %v7302 = vadd.f32 %v7213, %v7301
        %7303 = vmatmul.bf16.gmra.mxu0 %v637
        %v7304 = vpop.f32.mrf.mxu0
        %v7305 = vadd.f32 %v7216, %v7304
        %v7306 = vpop.f32.mrf.mxu0
        %v7307 = vadd.f32 %v7218, %v7306
        %7308 = vmatmul.bf16.gmra.mxu0 %v645
        %v7309 = vpop.f32.mrf.mxu0
        %v7310 = vadd.f32 %v7221, %v7309
        %v7311 = vpop.f32.mrf.mxu0
        %v7312 = vadd.f32 %v7223, %v7311
        %7313 = vmatmul.bf16.gmra.mxu0 %v653
        %v7314 = vpop.f32.mrf.mxu0
        %v7315 = vadd.f32 %v7226, %v7314
        %v7316 = vpop.f32.mrf.mxu0
        %v7317 = vadd.f32 %v7228, %v7316
        %7318 = vmatmul.bf16.gmra.mxu0 %v661
        %v7319 = vpop.f32.mrf.mxu0
        %v7320 = vadd.f32 %v7231, %v7319
        %v7321 = vpop.f32.mrf.mxu0
        %v7322 = vadd.f32 %v7233, %v7321
        %7323 = vmatmul.bf16.gmra.mxu0 %v669
        %v7324 = vpop.f32.mrf.mxu0
        %v7325 = vadd.f32 %v7236, %v7324
        %v7326 = vpop.f32.mrf.mxu0
        %v7327 = vadd.f32 %v7238, %v7326
        %7328 = vmatmul.bf16.gmra.mxu0 %v677
        %v7329 = vpop.f32.mrf.mxu0
        %v7330 = vadd.f32 %v7241, %v7329
        %v7331 = vpop.f32.mrf.mxu0
        %v7332 = vadd.f32 %v7243, %v7331
        %7333 = vmatmul.bf16.gmra.mxu0 %v685
        %v7334 = vpop.f32.mrf.mxu0
        %v7335 = vadd.f32 %v7246, %v7334
        %v7336 = vpop.f32.mrf.mxu0
        %v7337 = vadd.f32 %v7248, %v7336
        %7338 = vmatmul.bf16.gmra.mxu0 %v693
        %v7339 = vpop.f32.mrf.mxu0
        %v7340 = vadd.f32 %v7251, %v7339
        %v7341 = vpop.f32.mrf.mxu0
        %v7342 = vadd.f32 %v7253, %v7341
        %7343 = vdwg.mxu0
        %7344 = vmatpush.bf16.msra.mxu0 %v2821
        %7345 = vmatpush.bf16.msra.mxu0 %v2813
        %7346 = vmatpush.bf16.msra.mxu0 %v2805
        %7347 = vmatpush.bf16.msra.mxu0 %v2797
        %7348 = vmatpush.bf16.msra.mxu0 %v2789
        %7349 = vmatpush.bf16.msra.mxu0 %v2781
        %7350 = vmatpush.bf16.msra.mxu0 %v2773
        %7351 = vmatpush.bf16.msra.mxu0 %v2765
        %7352 = vmatmul.bf16.gmra.mxu0 %v566
        %v7353 = vpop.f32.mrf.mxu0
        %v7354 = vadd.f32 %v1213, %v7353
        %v7355 = vpop.f32.mrf.mxu0
        %v7356 = vadd.f32 %v1213, %v7355
        %7357 = vmatmul.bf16.gmra.mxu0 %v574
        %v7358 = vpop.f32.mrf.mxu0
        %v7359 = vadd.f32 %v1213, %v7358
        %v7360 = vpop.f32.mrf.mxu0
        %v7361 = vadd.f32 %v1213, %v7360
        %7362 = vmatmul.bf16.gmra.mxu0 %v582
        %v7363 = vpop.f32.mrf.mxu0
        %v7364 = vadd.f32 %v1213, %v7363
        %v7365 = vpop.f32.mrf.mxu0
        %v7366 = vadd.f32 %v1213, %v7365
        %7367 = vmatmul.bf16.gmra.mxu0 %v590
        %v7368 = vpop.f32.mrf.mxu0
        %v7369 = vadd.f32 %v1213, %v7368
        %v7370 = vpop.f32.mrf.mxu0
        %v7371 = vadd.f32 %v1213, %v7370
        %7372 = vmatmul.bf16.gmra.mxu0 %v598
        %v7373 = vpop.f32.mrf.mxu0
        %v7374 = vadd.f32 %v1213, %v7373
        %v7375 = vpop.f32.mrf.mxu0
        %v7376 = vadd.f32 %v1213, %v7375
        %7377 = vmatmul.bf16.gmra.mxu0 %v606
        %v7378 = vpop.f32.mrf.mxu0
        %v7379 = vadd.f32 %v1213, %v7378
        %v7380 = vpop.f32.mrf.mxu0
        %v7381 = vadd.f32 %v1213, %v7380
        %7382 = vmatmul.bf16.gmra.mxu0 %v614
        %v7383 = vpop.f32.mrf.mxu0
        %v7384 = vadd.f32 %v1213, %v7383
        %v7385 = vpop.f32.mrf.mxu0
        %v7386 = vadd.f32 %v1213, %v7385
        %7387 = vmatmul.bf16.gmra.mxu0 %v622
        %v7388 = vpop.f32.mrf.mxu0
        %v7389 = vadd.f32 %v1213, %v7388
        %v7390 = vpop.f32.mrf.mxu0
        %v7391 = vadd.f32 %v1213, %v7390
        %7392 = vmatmul.bf16.gmra.mxu0 %v630
        %v7393 = vpop.f32.mrf.mxu0
        %v7394 = vadd.f32 %v1213, %v7393
        %v7395 = vpop.f32.mrf.mxu0
        %v7396 = vadd.f32 %v1213, %v7395
        %7397 = vmatmul.bf16.gmra.mxu0 %v638
        %v7398 = vpop.f32.mrf.mxu0
        %v7399 = vadd.f32 %v1213, %v7398
        %v7400 = vpop.f32.mrf.mxu0
        %v7401 = vadd.f32 %v1213, %v7400
        %7402 = vmatmul.bf16.gmra.mxu0 %v646
        %v7403 = vpop.f32.mrf.mxu0
        %v7404 = vadd.f32 %v1213, %v7403
        %v7405 = vpop.f32.mrf.mxu0
        %v7406 = vadd.f32 %v1213, %v7405
        %7407 = vmatmul.bf16.gmra.mxu0 %v654
        %v7408 = vpop.f32.mrf.mxu0
        %v7409 = vadd.f32 %v1213, %v7408
        %v7410 = vpop.f32.mrf.mxu0
        %v7411 = vadd.f32 %v1213, %v7410
        %7412 = vmatmul.bf16.gmra.mxu0 %v662
        %v7413 = vpop.f32.mrf.mxu0
        %v7414 = vadd.f32 %v1213, %v7413
        %v7415 = vpop.f32.mrf.mxu0
        %v7416 = vadd.f32 %v1213, %v7415
        %7417 = vmatmul.bf16.gmra.mxu0 %v670
        %v7418 = vpop.f32.mrf.mxu0
        %v7419 = vadd.f32 %v1213, %v7418
        %v7420 = vpop.f32.mrf.mxu0
        %v7421 = vadd.f32 %v1213, %v7420
        %7422 = vmatmul.bf16.gmra.mxu0 %v678
        %v7423 = vpop.f32.mrf.mxu0
        %v7424 = vadd.f32 %v1213, %v7423
        %v7425 = vpop.f32.mrf.mxu0
        %v7426 = vadd.f32 %v1213, %v7425
        %7427 = vmatmul.bf16.gmra.mxu0 %v686
        %v7428 = vpop.f32.mrf.mxu0
        %v7429 = vadd.f32 %v1213, %v7428
        %v7430 = vpop.f32.mrf.mxu0
        %v7431 = vadd.f32 %v1213, %v7430
        %7432 = vdwg.mxu0
        %7433 = vmatpush.bf16.msra.mxu0 %v2885
        %7434 = vmatpush.bf16.msra.mxu0 %v2877
        %7435 = vmatpush.bf16.msra.mxu0 %v2869
        %7436 = vmatpush.bf16.msra.mxu0 %v2861
        %7437 = vmatpush.bf16.msra.mxu0 %v2853
        %7438 = vmatpush.bf16.msra.mxu0 %v2845
        %7439 = vmatpush.bf16.msra.mxu0 %v2837
        %7440 = vmatpush.bf16.msra.mxu0 %v2829
        %7441 = vmatmul.bf16.gmra.mxu0 %v567
        %v7442 = vpop.f32.mrf.mxu0
        %v7443 = vadd.f32 %v7354, %v7442
        %v7444 = vpop.f32.mrf.mxu0
        %v7445 = vadd.f32 %v7356, %v7444
        %7446 = vmatmul.bf16.gmra.mxu0 %v575
        %v7447 = vpop.f32.mrf.mxu0
        %v7448 = vadd.f32 %v7359, %v7447
        %v7449 = vpop.f32.mrf.mxu0
        %v7450 = vadd.f32 %v7361, %v7449
        %7451 = vmatmul.bf16.gmra.mxu0 %v583
        %v7452 = vpop.f32.mrf.mxu0
        %v7453 = vadd.f32 %v7364, %v7452
        %v7454 = vpop.f32.mrf.mxu0
        %v7455 = vadd.f32 %v7366, %v7454
        %7456 = vmatmul.bf16.gmra.mxu0 %v591
        %v7457 = vpop.f32.mrf.mxu0
        %v7458 = vadd.f32 %v7369, %v7457
        %v7459 = vpop.f32.mrf.mxu0
        %v7460 = vadd.f32 %v7371, %v7459
        %7461 = vmatmul.bf16.gmra.mxu0 %v599
        %v7462 = vpop.f32.mrf.mxu0
        %v7463 = vadd.f32 %v7374, %v7462
        %v7464 = vpop.f32.mrf.mxu0
        %v7465 = vadd.f32 %v7376, %v7464
        %7466 = vmatmul.bf16.gmra.mxu0 %v607
        %v7467 = vpop.f32.mrf.mxu0
        %v7468 = vadd.f32 %v7379, %v7467
        %v7469 = vpop.f32.mrf.mxu0
        %v7470 = vadd.f32 %v7381, %v7469
        %7471 = vmatmul.bf16.gmra.mxu0 %v615
        %v7472 = vpop.f32.mrf.mxu0
        %v7473 = vadd.f32 %v7384, %v7472
        %v7474 = vpop.f32.mrf.mxu0
        %v7475 = vadd.f32 %v7386, %v7474
        %7476 = vmatmul.bf16.gmra.mxu0 %v623
        %v7477 = vpop.f32.mrf.mxu0
        %v7478 = vadd.f32 %v7389, %v7477
        %v7479 = vpop.f32.mrf.mxu0
        %v7480 = vadd.f32 %v7391, %v7479
        %7481 = vmatmul.bf16.gmra.mxu0 %v631
        %v7482 = vpop.f32.mrf.mxu0
        %v7483 = vadd.f32 %v7394, %v7482
        %v7484 = vpop.f32.mrf.mxu0
        %v7485 = vadd.f32 %v7396, %v7484
        %7486 = vmatmul.bf16.gmra.mxu0 %v639
        %v7487 = vpop.f32.mrf.mxu0
        %v7488 = vadd.f32 %v7399, %v7487
        %v7489 = vpop.f32.mrf.mxu0
        %v7490 = vadd.f32 %v7401, %v7489
        %7491 = vmatmul.bf16.gmra.mxu0 %v647
        %v7492 = vpop.f32.mrf.mxu0
        %v7493 = vadd.f32 %v7404, %v7492
        %v7494 = vpop.f32.mrf.mxu0
        %v7495 = vadd.f32 %v7406, %v7494
        %7496 = vmatmul.bf16.gmra.mxu0 %v655
        %v7497 = vpop.f32.mrf.mxu0
        %v7498 = vadd.f32 %v7409, %v7497
        %v7499 = vpop.f32.mrf.mxu0
        %v7500 = vadd.f32 %v7411, %v7499
        %7501 = vmatmul.bf16.gmra.mxu0 %v663
        %v7502 = vpop.f32.mrf.mxu0
        %v7503 = vadd.f32 %v7414, %v7502
        %v7504 = vpop.f32.mrf.mxu0
        %v7505 = vadd.f32 %v7416, %v7504
        %7506 = vmatmul.bf16.gmra.mxu0 %v671
        %v7507 = vpop.f32.mrf.mxu0
        %v7508 = vadd.f32 %v7419, %v7507
        %v7509 = vpop.f32.mrf.mxu0
        %v7510 = vadd.f32 %v7421, %v7509
        %7511 = vmatmul.bf16.gmra.mxu0 %v679
        %v7512 = vpop.f32.mrf.mxu0
        %v7513 = vadd.f32 %v7424, %v7512
        %v7514 = vpop.f32.mrf.mxu0
        %v7515 = vadd.f32 %v7426, %v7514
        %7516 = vmatmul.bf16.gmra.mxu0 %v687
        %v7517 = vpop.f32.mrf.mxu0
        %v7518 = vadd.f32 %v7429, %v7517
        %v7519 = vpop.f32.mrf.mxu0
        %v7520 = vadd.f32 %v7431, %v7519
        %7521 = vdwg.mxu0
        %7522 = vmatpush.bf16.msra.mxu0 %v2949
        %7523 = vmatpush.bf16.msra.mxu0 %v2941
        %7524 = vmatpush.bf16.msra.mxu0 %v2933
        %7525 = vmatpush.bf16.msra.mxu0 %v2925
        %7526 = vmatpush.bf16.msra.mxu0 %v2917
        %7527 = vmatpush.bf16.msra.mxu0 %v2909
        %7528 = vmatpush.bf16.msra.mxu0 %v2901
        %7529 = vmatpush.bf16.msra.mxu0 %v2893
        %7530 = vmatmul.bf16.gmra.mxu0 %v568
        %v7531 = vpop.f32.mrf.mxu0
        %v7532 = vadd.f32 %v7443, %v7531
        %v7533 = vpop.f32.mrf.mxu0
        %v7534 = vadd.f32 %v7445, %v7533
        %7535 = vmatmul.bf16.gmra.mxu0 %v576
        %v7536 = vpop.f32.mrf.mxu0
        %v7537 = vadd.f32 %v7448, %v7536
        %v7538 = vpop.f32.mrf.mxu0
        %v7539 = vadd.f32 %v7450, %v7538
        %7540 = vmatmul.bf16.gmra.mxu0 %v584
        %v7541 = vpop.f32.mrf.mxu0
        %v7542 = vadd.f32 %v7453, %v7541
        %v7543 = vpop.f32.mrf.mxu0
        %v7544 = vadd.f32 %v7455, %v7543
        %7545 = vmatmul.bf16.gmra.mxu0 %v592
        %v7546 = vpop.f32.mrf.mxu0
        %v7547 = vadd.f32 %v7458, %v7546
        %v7548 = vpop.f32.mrf.mxu0
        %v7549 = vadd.f32 %v7460, %v7548
        %7550 = vmatmul.bf16.gmra.mxu0 %v600
        %v7551 = vpop.f32.mrf.mxu0
        %v7552 = vadd.f32 %v7463, %v7551
        %v7553 = vpop.f32.mrf.mxu0
        %v7554 = vadd.f32 %v7465, %v7553
        %7555 = vmatmul.bf16.gmra.mxu0 %v608
        %v7556 = vpop.f32.mrf.mxu0
        %v7557 = vadd.f32 %v7468, %v7556
        %v7558 = vpop.f32.mrf.mxu0
        %v7559 = vadd.f32 %v7470, %v7558
        %7560 = vmatmul.bf16.gmra.mxu0 %v616
        %v7561 = vpop.f32.mrf.mxu0
        %v7562 = vadd.f32 %v7473, %v7561
        %v7563 = vpop.f32.mrf.mxu0
        %v7564 = vadd.f32 %v7475, %v7563
        %7565 = vmatmul.bf16.gmra.mxu0 %v624
        %v7566 = vpop.f32.mrf.mxu0
        %v7567 = vadd.f32 %v7478, %v7566
        %v7568 = vpop.f32.mrf.mxu0
        %v7569 = vadd.f32 %v7480, %v7568
        %7570 = vmatmul.bf16.gmra.mxu0 %v632
        %v7571 = vpop.f32.mrf.mxu0
        %v7572 = vadd.f32 %v7483, %v7571
        %v7573 = vpop.f32.mrf.mxu0
        %v7574 = vadd.f32 %v7485, %v7573
        %7575 = vmatmul.bf16.gmra.mxu0 %v640
        %v7576 = vpop.f32.mrf.mxu0
        %v7577 = vadd.f32 %v7488, %v7576
        %v7578 = vpop.f32.mrf.mxu0
        %v7579 = vadd.f32 %v7490, %v7578
        %7580 = vmatmul.bf16.gmra.mxu0 %v648
        %v7581 = vpop.f32.mrf.mxu0
        %v7582 = vadd.f32 %v7493, %v7581
        %v7583 = vpop.f32.mrf.mxu0
        %v7584 = vadd.f32 %v7495, %v7583
        %7585 = vmatmul.bf16.gmra.mxu0 %v656
        %v7586 = vpop.f32.mrf.mxu0
        %v7587 = vadd.f32 %v7498, %v7586
        %v7588 = vpop.f32.mrf.mxu0
        %v7589 = vadd.f32 %v7500, %v7588
        %7590 = vmatmul.bf16.gmra.mxu0 %v664
        %v7591 = vpop.f32.mrf.mxu0
        %v7592 = vadd.f32 %v7503, %v7591
        %v7593 = vpop.f32.mrf.mxu0
        %v7594 = vadd.f32 %v7505, %v7593
        %7595 = vmatmul.bf16.gmra.mxu0 %v672
        %v7596 = vpop.f32.mrf.mxu0
        %v7597 = vadd.f32 %v7508, %v7596
        %v7598 = vpop.f32.mrf.mxu0
        %v7599 = vadd.f32 %v7510, %v7598
        %7600 = vmatmul.bf16.gmra.mxu0 %v680
        %v7601 = vpop.f32.mrf.mxu0
        %v7602 = vadd.f32 %v7513, %v7601
        %v7603 = vpop.f32.mrf.mxu0
        %v7604 = vadd.f32 %v7515, %v7603
        %7605 = vmatmul.bf16.gmra.mxu0 %v688
        %v7606 = vpop.f32.mrf.mxu0
        %v7607 = vadd.f32 %v7518, %v7606
        %v7608 = vpop.f32.mrf.mxu0
        %v7609 = vadd.f32 %v7520, %v7608
        %7610 = vdwg.mxu0
        %7611 = vmatpush.bf16.msra.mxu0 %v3013
        %7612 = vmatpush.bf16.msra.mxu0 %v3005
        %7613 = vmatpush.bf16.msra.mxu0 %v2997
        %7614 = vmatpush.bf16.msra.mxu0 %v2989
        %7615 = vmatpush.bf16.msra.mxu0 %v2981
        %7616 = vmatpush.bf16.msra.mxu0 %v2973
        %7617 = vmatpush.bf16.msra.mxu0 %v2965
        %7618 = vmatpush.bf16.msra.mxu0 %v2957
        %7619 = vmatmul.bf16.gmra.mxu0 %v569
        %v7620 = vpop.f32.mrf.mxu0
        %v7621 = vadd.f32 %v7532, %v7620
        %v7622 = vpop.f32.mrf.mxu0
        %v7623 = vadd.f32 %v7534, %v7622
        %7624 = vmatmul.bf16.gmra.mxu0 %v577
        %v7625 = vpop.f32.mrf.mxu0
        %v7626 = vadd.f32 %v7537, %v7625
        %v7627 = vpop.f32.mrf.mxu0
        %v7628 = vadd.f32 %v7539, %v7627
        %7629 = vmatmul.bf16.gmra.mxu0 %v585
        %v7630 = vpop.f32.mrf.mxu0
        %v7631 = vadd.f32 %v7542, %v7630
        %v7632 = vpop.f32.mrf.mxu0
        %v7633 = vadd.f32 %v7544, %v7632
        %7634 = vmatmul.bf16.gmra.mxu0 %v593
        %v7635 = vpop.f32.mrf.mxu0
        %v7636 = vadd.f32 %v7547, %v7635
        %v7637 = vpop.f32.mrf.mxu0
        %v7638 = vadd.f32 %v7549, %v7637
        %7639 = vmatmul.bf16.gmra.mxu0 %v601
        %v7640 = vpop.f32.mrf.mxu0
        %v7641 = vadd.f32 %v7552, %v7640
        %v7642 = vpop.f32.mrf.mxu0
        %v7643 = vadd.f32 %v7554, %v7642
        %7644 = vmatmul.bf16.gmra.mxu0 %v609
        %v7645 = vpop.f32.mrf.mxu0
        %v7646 = vadd.f32 %v7557, %v7645
        %v7647 = vpop.f32.mrf.mxu0
        %v7648 = vadd.f32 %v7559, %v7647
        %7649 = vmatmul.bf16.gmra.mxu0 %v617
        %v7650 = vpop.f32.mrf.mxu0
        %v7651 = vadd.f32 %v7562, %v7650
        %v7652 = vpop.f32.mrf.mxu0
        %v7653 = vadd.f32 %v7564, %v7652
        %7654 = vmatmul.bf16.gmra.mxu0 %v625
        %v7655 = vpop.f32.mrf.mxu0
        %v7656 = vadd.f32 %v7567, %v7655
        %v7657 = vpop.f32.mrf.mxu0
        %v7658 = vadd.f32 %v7569, %v7657
        %7659 = vmatmul.bf16.gmra.mxu0 %v633
        %v7660 = vpop.f32.mrf.mxu0
        %v7661 = vadd.f32 %v7572, %v7660
        %v7662 = vpop.f32.mrf.mxu0
        %v7663 = vadd.f32 %v7574, %v7662
        %7664 = vmatmul.bf16.gmra.mxu0 %v641
        %v7665 = vpop.f32.mrf.mxu0
        %v7666 = vadd.f32 %v7577, %v7665
        %v7667 = vpop.f32.mrf.mxu0
        %v7668 = vadd.f32 %v7579, %v7667
        %7669 = vmatmul.bf16.gmra.mxu0 %v649
        %v7670 = vpop.f32.mrf.mxu0
        %v7671 = vadd.f32 %v7582, %v7670
        %v7672 = vpop.f32.mrf.mxu0
        %v7673 = vadd.f32 %v7584, %v7672
        %7674 = vmatmul.bf16.gmra.mxu0 %v657
        %v7675 = vpop.f32.mrf.mxu0
        %v7676 = vadd.f32 %v7587, %v7675
        %v7677 = vpop.f32.mrf.mxu0
        %v7678 = vadd.f32 %v7589, %v7677
        %7679 = vmatmul.bf16.gmra.mxu0 %v665
        %v7680 = vpop.f32.mrf.mxu0
        %v7681 = vadd.f32 %v7592, %v7680
        %v7682 = vpop.f32.mrf.mxu0
        %v7683 = vadd.f32 %v7594, %v7682
        %7684 = vmatmul.bf16.gmra.mxu0 %v673
        %v7685 = vpop.f32.mrf.mxu0
        %v7686 = vadd.f32 %v7597, %v7685
        %v7687 = vpop.f32.mrf.mxu0
        %v7688 = vadd.f32 %v7599, %v7687
        %7689 = vmatmul.bf16.gmra.mxu0 %v681
        %v7690 = vpop.f32.mrf.mxu0
        %v7691 = vadd.f32 %v7602, %v7690
        %v7692 = vpop.f32.mrf.mxu0
        %v7693 = vadd.f32 %v7604, %v7692
        %7694 = vmatmul.bf16.gmra.mxu0 %v689
        %v7695 = vpop.f32.mrf.mxu0
        %v7696 = vadd.f32 %v7607, %v7695
        %v7697 = vpop.f32.mrf.mxu0
        %v7698 = vadd.f32 %v7609, %v7697
        %7699 = vdwg.mxu0
        %7700 = vmatpush.bf16.msra.mxu0 %v3077
        %7701 = vmatpush.bf16.msra.mxu0 %v3069
        %7702 = vmatpush.bf16.msra.mxu0 %v3061
        %7703 = vmatpush.bf16.msra.mxu0 %v3053
        %7704 = vmatpush.bf16.msra.mxu0 %v3045
        %7705 = vmatpush.bf16.msra.mxu0 %v3037
        %7706 = vmatpush.bf16.msra.mxu0 %v3029
        %7707 = vmatpush.bf16.msra.mxu0 %v3021
        %7708 = vmatmul.bf16.gmra.mxu0 %v570
        %v7709 = vpop.f32.mrf.mxu0
        %v7710 = vadd.f32 %v7621, %v7709
        %v7711 = vpop.f32.mrf.mxu0
        %v7712 = vadd.f32 %v7623, %v7711
        %7713 = vmatmul.bf16.gmra.mxu0 %v578
        %v7714 = vpop.f32.mrf.mxu0
        %v7715 = vadd.f32 %v7626, %v7714
        %v7716 = vpop.f32.mrf.mxu0
        %v7717 = vadd.f32 %v7628, %v7716
        %7718 = vmatmul.bf16.gmra.mxu0 %v586
        %v7719 = vpop.f32.mrf.mxu0
        %v7720 = vadd.f32 %v7631, %v7719
        %v7721 = vpop.f32.mrf.mxu0
        %v7722 = vadd.f32 %v7633, %v7721
        %7723 = vmatmul.bf16.gmra.mxu0 %v594
        %v7724 = vpop.f32.mrf.mxu0
        %v7725 = vadd.f32 %v7636, %v7724
        %v7726 = vpop.f32.mrf.mxu0
        %v7727 = vadd.f32 %v7638, %v7726
        %7728 = vmatmul.bf16.gmra.mxu0 %v602
        %v7729 = vpop.f32.mrf.mxu0
        %v7730 = vadd.f32 %v7641, %v7729
        %v7731 = vpop.f32.mrf.mxu0
        %v7732 = vadd.f32 %v7643, %v7731
        %7733 = vmatmul.bf16.gmra.mxu0 %v610
        %v7734 = vpop.f32.mrf.mxu0
        %v7735 = vadd.f32 %v7646, %v7734
        %v7736 = vpop.f32.mrf.mxu0
        %v7737 = vadd.f32 %v7648, %v7736
        %7738 = vmatmul.bf16.gmra.mxu0 %v618
        %v7739 = vpop.f32.mrf.mxu0
        %v7740 = vadd.f32 %v7651, %v7739
        %v7741 = vpop.f32.mrf.mxu0
        %v7742 = vadd.f32 %v7653, %v7741
        %7743 = vmatmul.bf16.gmra.mxu0 %v626
        %v7744 = vpop.f32.mrf.mxu0
        %v7745 = vadd.f32 %v7656, %v7744
        %v7746 = vpop.f32.mrf.mxu0
        %v7747 = vadd.f32 %v7658, %v7746
        %7748 = vmatmul.bf16.gmra.mxu0 %v634
        %v7749 = vpop.f32.mrf.mxu0
        %v7750 = vadd.f32 %v7661, %v7749
        %v7751 = vpop.f32.mrf.mxu0
        %v7752 = vadd.f32 %v7663, %v7751
        %7753 = vmatmul.bf16.gmra.mxu0 %v642
        %v7754 = vpop.f32.mrf.mxu0
        %v7755 = vadd.f32 %v7666, %v7754
        %v7756 = vpop.f32.mrf.mxu0
        %v7757 = vadd.f32 %v7668, %v7756
        %7758 = vmatmul.bf16.gmra.mxu0 %v650
        %v7759 = vpop.f32.mrf.mxu0
        %v7760 = vadd.f32 %v7671, %v7759
        %v7761 = vpop.f32.mrf.mxu0
        %v7762 = vadd.f32 %v7673, %v7761
        %7763 = vmatmul.bf16.gmra.mxu0 %v658
        %v7764 = vpop.f32.mrf.mxu0
        %v7765 = vadd.f32 %v7676, %v7764
        %v7766 = vpop.f32.mrf.mxu0
        %v7767 = vadd.f32 %v7678, %v7766
        %7768 = vmatmul.bf16.gmra.mxu0 %v666
        %v7769 = vpop.f32.mrf.mxu0
        %v7770 = vadd.f32 %v7681, %v7769
        %v7771 = vpop.f32.mrf.mxu0
        %v7772 = vadd.f32 %v7683, %v7771
        %7773 = vmatmul.bf16.gmra.mxu0 %v674
        %v7774 = vpop.f32.mrf.mxu0
        %v7775 = vadd.f32 %v7686, %v7774
        %v7776 = vpop.f32.mrf.mxu0
        %v7777 = vadd.f32 %v7688, %v7776
        %7778 = vmatmul.bf16.gmra.mxu0 %v682
        %v7779 = vpop.f32.mrf.mxu0
        %v7780 = vadd.f32 %v7691, %v7779
        %v7781 = vpop.f32.mrf.mxu0
        %v7782 = vadd.f32 %v7693, %v7781
        %7783 = vmatmul.bf16.gmra.mxu0 %v690
        %v7784 = vpop.f32.mrf.mxu0
        %v7785 = vadd.f32 %v7696, %v7784
        %v7786 = vpop.f32.mrf.mxu0
        %v7787 = vadd.f32 %v7698, %v7786
        %7788 = vdwg.mxu0
        %7789 = vmatpush.bf16.msra.mxu0 %v3141
        %7790 = vmatpush.bf16.msra.mxu0 %v3133
        %7791 = vmatpush.bf16.msra.mxu0 %v3125
        %7792 = vmatpush.bf16.msra.mxu0 %v3117
        %7793 = vmatpush.bf16.msra.mxu0 %v3109
        %7794 = vmatpush.bf16.msra.mxu0 %v3101
        %7795 = vmatpush.bf16.msra.mxu0 %v3093
        %7796 = vmatpush.bf16.msra.mxu0 %v3085
        %7797 = vmatmul.bf16.gmra.mxu0 %v571
        %v7798 = vpop.f32.mrf.mxu0
        %v7799 = vadd.f32 %v7710, %v7798
        %v7800 = vpop.f32.mrf.mxu0
        %v7801 = vadd.f32 %v7712, %v7800
        %7802 = vmatmul.bf16.gmra.mxu0 %v579
        %v7803 = vpop.f32.mrf.mxu0
        %v7804 = vadd.f32 %v7715, %v7803
        %v7805 = vpop.f32.mrf.mxu0
        %v7806 = vadd.f32 %v7717, %v7805
        %7807 = vmatmul.bf16.gmra.mxu0 %v587
        %v7808 = vpop.f32.mrf.mxu0
        %v7809 = vadd.f32 %v7720, %v7808
        %v7810 = vpop.f32.mrf.mxu0
        %v7811 = vadd.f32 %v7722, %v7810
        %7812 = vmatmul.bf16.gmra.mxu0 %v595
        %v7813 = vpop.f32.mrf.mxu0
        %v7814 = vadd.f32 %v7725, %v7813
        %v7815 = vpop.f32.mrf.mxu0
        %v7816 = vadd.f32 %v7727, %v7815
        %7817 = vmatmul.bf16.gmra.mxu0 %v603
        %v7818 = vpop.f32.mrf.mxu0
        %v7819 = vadd.f32 %v7730, %v7818
        %v7820 = vpop.f32.mrf.mxu0
        %v7821 = vadd.f32 %v7732, %v7820
        %7822 = vmatmul.bf16.gmra.mxu0 %v611
        %v7823 = vpop.f32.mrf.mxu0
        %v7824 = vadd.f32 %v7735, %v7823
        %v7825 = vpop.f32.mrf.mxu0
        %v7826 = vadd.f32 %v7737, %v7825
        %7827 = vmatmul.bf16.gmra.mxu0 %v619
        %v7828 = vpop.f32.mrf.mxu0
        %v7829 = vadd.f32 %v7740, %v7828
        %v7830 = vpop.f32.mrf.mxu0
        %v7831 = vadd.f32 %v7742, %v7830
        %7832 = vmatmul.bf16.gmra.mxu0 %v627
        %v7833 = vpop.f32.mrf.mxu0
        %v7834 = vadd.f32 %v7745, %v7833
        %v7835 = vpop.f32.mrf.mxu0
        %v7836 = vadd.f32 %v7747, %v7835
        %7837 = vmatmul.bf16.gmra.mxu0 %v635
        %v7838 = vpop.f32.mrf.mxu0
        %v7839 = vadd.f32 %v7750, %v7838
        %v7840 = vpop.f32.mrf.mxu0
        %v7841 = vadd.f32 %v7752, %v7840
        %7842 = vmatmul.bf16.gmra.mxu0 %v643
        %v7843 = vpop.f32.mrf.mxu0
        %v7844 = vadd.f32 %v7755, %v7843
        %v7845 = vpop.f32.mrf.mxu0
        %v7846 = vadd.f32 %v7757, %v7845
        %7847 = vmatmul.bf16.gmra.mxu0 %v651
        %v7848 = vpop.f32.mrf.mxu0
        %v7849 = vadd.f32 %v7760, %v7848
        %v7850 = vpop.f32.mrf.mxu0
        %v7851 = vadd.f32 %v7762, %v7850
        %7852 = vmatmul.bf16.gmra.mxu0 %v659
        %v7853 = vpop.f32.mrf.mxu0
        %v7854 = vadd.f32 %v7765, %v7853
        %v7855 = vpop.f32.mrf.mxu0
        %v7856 = vadd.f32 %v7767, %v7855
        %7857 = vmatmul.bf16.gmra.mxu0 %v667
        %v7858 = vpop.f32.mrf.mxu0
        %v7859 = vadd.f32 %v7770, %v7858
        %v7860 = vpop.f32.mrf.mxu0
        %v7861 = vadd.f32 %v7772, %v7860
        %7862 = vmatmul.bf16.gmra.mxu0 %v675
        %v7863 = vpop.f32.mrf.mxu0
        %v7864 = vadd.f32 %v7775, %v7863
        %v7865 = vpop.f32.mrf.mxu0
        %v7866 = vadd.f32 %v7777, %v7865
        %7867 = vmatmul.bf16.gmra.mxu0 %v683
        %v7868 = vpop.f32.mrf.mxu0
        %v7869 = vadd.f32 %v7780, %v7868
        %v7870 = vpop.f32.mrf.mxu0
        %v7871 = vadd.f32 %v7782, %v7870
        %7872 = vmatmul.bf16.gmra.mxu0 %v691
        %v7873 = vpop.f32.mrf.mxu0
        %v7874 = vadd.f32 %v7785, %v7873
        %v7875 = vpop.f32.mrf.mxu0
        %v7876 = vadd.f32 %v7787, %v7875
        %7877 = vdwg.mxu0
        %7878 = vmatpush.bf16.msra.mxu0 %v3205
        %7879 = vmatpush.bf16.msra.mxu0 %v3197
        %7880 = vmatpush.bf16.msra.mxu0 %v3189
        %7881 = vmatpush.bf16.msra.mxu0 %v3181
        %7882 = vmatpush.bf16.msra.mxu0 %v3173
        %7883 = vmatpush.bf16.msra.mxu0 %v3165
        %7884 = vmatpush.bf16.msra.mxu0 %v3157
        %7885 = vmatpush.bf16.msra.mxu0 %v3149
        %7886 = vmatmul.bf16.gmra.mxu0 %v572
        %v7887 = vpop.f32.mrf.mxu0
        %v7888 = vadd.f32 %v7799, %v7887
        %v7889 = vpop.f32.mrf.mxu0
        %v7890 = vadd.f32 %v7801, %v7889
        %7891 = vmatmul.bf16.gmra.mxu0 %v580
        %v7892 = vpop.f32.mrf.mxu0
        %v7893 = vadd.f32 %v7804, %v7892
        %v7894 = vpop.f32.mrf.mxu0
        %v7895 = vadd.f32 %v7806, %v7894
        %7896 = vmatmul.bf16.gmra.mxu0 %v588
        %v7897 = vpop.f32.mrf.mxu0
        %v7898 = vadd.f32 %v7809, %v7897
        %v7899 = vpop.f32.mrf.mxu0
        %v7900 = vadd.f32 %v7811, %v7899
        %7901 = vmatmul.bf16.gmra.mxu0 %v596
        %v7902 = vpop.f32.mrf.mxu0
        %v7903 = vadd.f32 %v7814, %v7902
        %v7904 = vpop.f32.mrf.mxu0
        %v7905 = vadd.f32 %v7816, %v7904
        %7906 = vmatmul.bf16.gmra.mxu0 %v604
        %v7907 = vpop.f32.mrf.mxu0
        %v7908 = vadd.f32 %v7819, %v7907
        %v7909 = vpop.f32.mrf.mxu0
        %v7910 = vadd.f32 %v7821, %v7909
        %7911 = vmatmul.bf16.gmra.mxu0 %v612
        %v7912 = vpop.f32.mrf.mxu0
        %v7913 = vadd.f32 %v7824, %v7912
        %v7914 = vpop.f32.mrf.mxu0
        %v7915 = vadd.f32 %v7826, %v7914
        %7916 = vmatmul.bf16.gmra.mxu0 %v620
        %v7917 = vpop.f32.mrf.mxu0
        %v7918 = vadd.f32 %v7829, %v7917
        %v7919 = vpop.f32.mrf.mxu0
        %v7920 = vadd.f32 %v7831, %v7919
        %7921 = vmatmul.bf16.gmra.mxu0 %v628
        %v7922 = vpop.f32.mrf.mxu0
        %v7923 = vadd.f32 %v7834, %v7922
        %v7924 = vpop.f32.mrf.mxu0
        %v7925 = vadd.f32 %v7836, %v7924
        %7926 = vmatmul.bf16.gmra.mxu0 %v636
        %v7927 = vpop.f32.mrf.mxu0
        %v7928 = vadd.f32 %v7839, %v7927
        %v7929 = vpop.f32.mrf.mxu0
        %v7930 = vadd.f32 %v7841, %v7929
        %7931 = vmatmul.bf16.gmra.mxu0 %v644
        %v7932 = vpop.f32.mrf.mxu0
        %v7933 = vadd.f32 %v7844, %v7932
        %v7934 = vpop.f32.mrf.mxu0
        %v7935 = vadd.f32 %v7846, %v7934
        %7936 = vmatmul.bf16.gmra.mxu0 %v652
        %v7937 = vpop.f32.mrf.mxu0
        %v7938 = vadd.f32 %v7849, %v7937
        %v7939 = vpop.f32.mrf.mxu0
        %v7940 = vadd.f32 %v7851, %v7939
        %7941 = vmatmul.bf16.gmra.mxu0 %v660
        %v7942 = vpop.f32.mrf.mxu0
        %v7943 = vadd.f32 %v7854, %v7942
        %v7944 = vpop.f32.mrf.mxu0
        %v7945 = vadd.f32 %v7856, %v7944
        %7946 = vmatmul.bf16.gmra.mxu0 %v668
        %v7947 = vpop.f32.mrf.mxu0
        %v7948 = vadd.f32 %v7859, %v7947
        %v7949 = vpop.f32.mrf.mxu0
        %v7950 = vadd.f32 %v7861, %v7949
        %7951 = vmatmul.bf16.gmra.mxu0 %v676
        %v7952 = vpop.f32.mrf.mxu0
        %v7953 = vadd.f32 %v7864, %v7952
        %v7954 = vpop.f32.mrf.mxu0
        %v7955 = vadd.f32 %v7866, %v7954
        %7956 = vmatmul.bf16.gmra.mxu0 %v684
        %v7957 = vpop.f32.mrf.mxu0
        %v7958 = vadd.f32 %v7869, %v7957
        %v7959 = vpop.f32.mrf.mxu0
        %v7960 = vadd.f32 %v7871, %v7959
        %7961 = vmatmul.bf16.gmra.mxu0 %v692
        %v7962 = vpop.f32.mrf.mxu0
        %v7963 = vadd.f32 %v7874, %v7962
        %v7964 = vpop.f32.mrf.mxu0
        %v7965 = vadd.f32 %v7876, %v7964
        %7966 = vdwg.mxu0
        %7967 = vmatpush.bf16.msra.mxu0 %v3269
        %7968 = vmatpush.bf16.msra.mxu0 %v3261
        %7969 = vmatpush.bf16.msra.mxu0 %v3253
        %7970 = vmatpush.bf16.msra.mxu0 %v3245
        %7971 = vmatpush.bf16.msra.mxu0 %v3237
        %7972 = vmatpush.bf16.msra.mxu0 %v3229
        %7973 = vmatpush.bf16.msra.mxu0 %v3221
        %7974 = vmatpush.bf16.msra.mxu0 %v3213
        %7975 = vmatmul.bf16.gmra.mxu0 %v573
        %v7976 = vpop.f32.mrf.mxu0
        %v7977 = vadd.f32 %v7888, %v7976
        %v7978 = vpop.f32.mrf.mxu0
        %v7979 = vadd.f32 %v7890, %v7978
        %7980 = vmatmul.bf16.gmra.mxu0 %v581
        %v7981 = vpop.f32.mrf.mxu0
        %v7982 = vadd.f32 %v7893, %v7981
        %v7983 = vpop.f32.mrf.mxu0
        %v7984 = vadd.f32 %v7895, %v7983
        %7985 = vmatmul.bf16.gmra.mxu0 %v589
        %v7986 = vpop.f32.mrf.mxu0
        %v7987 = vadd.f32 %v7898, %v7986
        %v7988 = vpop.f32.mrf.mxu0
        %v7989 = vadd.f32 %v7900, %v7988
        %7990 = vmatmul.bf16.gmra.mxu0 %v597
        %v7991 = vpop.f32.mrf.mxu0
        %v7992 = vadd.f32 %v7903, %v7991
        %v7993 = vpop.f32.mrf.mxu0
        %v7994 = vadd.f32 %v7905, %v7993
        %7995 = vmatmul.bf16.gmra.mxu0 %v605
        %v7996 = vpop.f32.mrf.mxu0
        %v7997 = vadd.f32 %v7908, %v7996
        %v7998 = vpop.f32.mrf.mxu0
        %v7999 = vadd.f32 %v7910, %v7998
        %8000 = vmatmul.bf16.gmra.mxu0 %v613
        %v8001 = vpop.f32.mrf.mxu0
        %v8002 = vadd.f32 %v7913, %v8001
        %v8003 = vpop.f32.mrf.mxu0
        %v8004 = vadd.f32 %v7915, %v8003
        %8005 = vmatmul.bf16.gmra.mxu0 %v621
        %v8006 = vpop.f32.mrf.mxu0
        %v8007 = vadd.f32 %v7918, %v8006
        %v8008 = vpop.f32.mrf.mxu0
        %v8009 = vadd.f32 %v7920, %v8008
        %8010 = vmatmul.bf16.gmra.mxu0 %v629
        %v8011 = vpop.f32.mrf.mxu0
        %v8012 = vadd.f32 %v7923, %v8011
        %v8013 = vpop.f32.mrf.mxu0
        %v8014 = vadd.f32 %v7925, %v8013
        %8015 = vmatmul.bf16.gmra.mxu0 %v637
        %v8016 = vpop.f32.mrf.mxu0
        %v8017 = vadd.f32 %v7928, %v8016
        %v8018 = vpop.f32.mrf.mxu0
        %v8019 = vadd.f32 %v7930, %v8018
        %8020 = vmatmul.bf16.gmra.mxu0 %v645
        %v8021 = vpop.f32.mrf.mxu0
        %v8022 = vadd.f32 %v7933, %v8021
        %v8023 = vpop.f32.mrf.mxu0
        %v8024 = vadd.f32 %v7935, %v8023
        %8025 = vmatmul.bf16.gmra.mxu0 %v653
        %v8026 = vpop.f32.mrf.mxu0
        %v8027 = vadd.f32 %v7938, %v8026
        %v8028 = vpop.f32.mrf.mxu0
        %v8029 = vadd.f32 %v7940, %v8028
        %8030 = vmatmul.bf16.gmra.mxu0 %v661
        %v8031 = vpop.f32.mrf.mxu0
        %v8032 = vadd.f32 %v7943, %v8031
        %v8033 = vpop.f32.mrf.mxu0
        %v8034 = vadd.f32 %v7945, %v8033
        %8035 = vmatmul.bf16.gmra.mxu0 %v669
        %v8036 = vpop.f32.mrf.mxu0
        %v8037 = vadd.f32 %v7948, %v8036
        %v8038 = vpop.f32.mrf.mxu0
        %v8039 = vadd.f32 %v7950, %v8038
        %8040 = vmatmul.bf16.gmra.mxu0 %v677
        %v8041 = vpop.f32.mrf.mxu0
        %v8042 = vadd.f32 %v7953, %v8041
        %v8043 = vpop.f32.mrf.mxu0
        %v8044 = vadd.f32 %v7955, %v8043
        %8045 = vmatmul.bf16.gmra.mxu0 %v685
        %v8046 = vpop.f32.mrf.mxu0
        %v8047 = vadd.f32 %v7958, %v8046
        %v8048 = vpop.f32.mrf.mxu0
        %v8049 = vadd.f32 %v7960, %v8048
        %8050 = vmatmul.bf16.gmra.mxu0 %v693
        %v8051 = vpop.f32.mrf.mxu0
        %v8052 = vadd.f32 %v7963, %v8051
        %v8053 = vpop.f32.mrf.mxu0
        %v8054 = vadd.f32 %v7965, %v8053
        %8055 = vdwg.mxu0
        %8056 = vmatpush.bf16.msra.mxu0 %v2822
        %8057 = vmatpush.bf16.msra.mxu0 %v2814
        %8058 = vmatpush.bf16.msra.mxu0 %v2806
        %8059 = vmatpush.bf16.msra.mxu0 %v2798
        %8060 = vmatpush.bf16.msra.mxu0 %v2790
        %8061 = vmatpush.bf16.msra.mxu0 %v2782
        %8062 = vmatpush.bf16.msra.mxu0 %v2774
        %8063 = vmatpush.bf16.msra.mxu0 %v2766
        %8064 = vmatmul.bf16.gmra.mxu0 %v566
        %v8065 = vpop.f32.mrf.mxu0
        %v8066 = vadd.f32 %v1214, %v8065
        %v8067 = vpop.f32.mrf.mxu0
        %v8068 = vadd.f32 %v1214, %v8067
        %8069 = vmatmul.bf16.gmra.mxu0 %v574
        %v8070 = vpop.f32.mrf.mxu0
        %v8071 = vadd.f32 %v1214, %v8070
        %v8072 = vpop.f32.mrf.mxu0
        %v8073 = vadd.f32 %v1214, %v8072
        %8074 = vmatmul.bf16.gmra.mxu0 %v582
        %v8075 = vpop.f32.mrf.mxu0
        %v8076 = vadd.f32 %v1214, %v8075
        %v8077 = vpop.f32.mrf.mxu0
        %v8078 = vadd.f32 %v1214, %v8077
        %8079 = vmatmul.bf16.gmra.mxu0 %v590
        %v8080 = vpop.f32.mrf.mxu0
        %v8081 = vadd.f32 %v1214, %v8080
        %v8082 = vpop.f32.mrf.mxu0
        %v8083 = vadd.f32 %v1214, %v8082
        %8084 = vmatmul.bf16.gmra.mxu0 %v598
        %v8085 = vpop.f32.mrf.mxu0
        %v8086 = vadd.f32 %v1214, %v8085
        %v8087 = vpop.f32.mrf.mxu0
        %v8088 = vadd.f32 %v1214, %v8087
        %8089 = vmatmul.bf16.gmra.mxu0 %v606
        %v8090 = vpop.f32.mrf.mxu0
        %v8091 = vadd.f32 %v1214, %v8090
        %v8092 = vpop.f32.mrf.mxu0
        %v8093 = vadd.f32 %v1214, %v8092
        %8094 = vmatmul.bf16.gmra.mxu0 %v614
        %v8095 = vpop.f32.mrf.mxu0
        %v8096 = vadd.f32 %v1214, %v8095
        %v8097 = vpop.f32.mrf.mxu0
        %v8098 = vadd.f32 %v1214, %v8097
        %8099 = vmatmul.bf16.gmra.mxu0 %v622
        %v8100 = vpop.f32.mrf.mxu0
        %v8101 = vadd.f32 %v1214, %v8100
        %v8102 = vpop.f32.mrf.mxu0
        %v8103 = vadd.f32 %v1214, %v8102
        %8104 = vmatmul.bf16.gmra.mxu0 %v630
        %v8105 = vpop.f32.mrf.mxu0
        %v8106 = vadd.f32 %v1214, %v8105
        %v8107 = vpop.f32.mrf.mxu0
        %v8108 = vadd.f32 %v1214, %v8107
        %8109 = vmatmul.bf16.gmra.mxu0 %v638
        %v8110 = vpop.f32.mrf.mxu0
        %v8111 = vadd.f32 %v1214, %v8110
        %v8112 = vpop.f32.mrf.mxu0
        %v8113 = vadd.f32 %v1214, %v8112
        %8114 = vmatmul.bf16.gmra.mxu0 %v646
        %v8115 = vpop.f32.mrf.mxu0
        %v8116 = vadd.f32 %v1214, %v8115
        %v8117 = vpop.f32.mrf.mxu0
        %v8118 = vadd.f32 %v1214, %v8117
        %8119 = vmatmul.bf16.gmra.mxu0 %v654
        %v8120 = vpop.f32.mrf.mxu0
        %v8121 = vadd.f32 %v1214, %v8120
        %v8122 = vpop.f32.mrf.mxu0
        %v8123 = vadd.f32 %v1214, %v8122
        %8124 = vmatmul.bf16.gmra.mxu0 %v662
        %v8125 = vpop.f32.mrf.mxu0
        %v8126 = vadd.f32 %v1214, %v8125
        %v8127 = vpop.f32.mrf.mxu0
        %v8128 = vadd.f32 %v1214, %v8127
        %8129 = vmatmul.bf16.gmra.mxu0 %v670
        %v8130 = vpop.f32.mrf.mxu0
        %v8131 = vadd.f32 %v1214, %v8130
        %v8132 = vpop.f32.mrf.mxu0
        %v8133 = vadd.f32 %v1214, %v8132
        %8134 = vmatmul.bf16.gmra.mxu0 %v678
        %v8135 = vpop.f32.mrf.mxu0
        %v8136 = vadd.f32 %v1214, %v8135
        %v8137 = vpop.f32.mrf.mxu0
        %v8138 = vadd.f32 %v1214, %v8137
        %8139 = vmatmul.bf16.gmra.mxu0 %v686
        %v8140 = vpop.f32.mrf.mxu0
        %v8141 = vadd.f32 %v1214, %v8140
        %v8142 = vpop.f32.mrf.mxu0
        %v8143 = vadd.f32 %v1214, %v8142
        %8144 = vdwg.mxu0
        %8145 = vmatpush.bf16.msra.mxu0 %v2886
        %8146 = vmatpush.bf16.msra.mxu0 %v2878
        %8147 = vmatpush.bf16.msra.mxu0 %v2870
        %8148 = vmatpush.bf16.msra.mxu0 %v2862
        %8149 = vmatpush.bf16.msra.mxu0 %v2854
        %8150 = vmatpush.bf16.msra.mxu0 %v2846
        %8151 = vmatpush.bf16.msra.mxu0 %v2838
        %8152 = vmatpush.bf16.msra.mxu0 %v2830
        %8153 = vmatmul.bf16.gmra.mxu0 %v567
        %v8154 = vpop.f32.mrf.mxu0
        %v8155 = vadd.f32 %v8066, %v8154
        %v8156 = vpop.f32.mrf.mxu0
        %v8157 = vadd.f32 %v8068, %v8156
        %8158 = vmatmul.bf16.gmra.mxu0 %v575
        %v8159 = vpop.f32.mrf.mxu0
        %v8160 = vadd.f32 %v8071, %v8159
        %v8161 = vpop.f32.mrf.mxu0
        %v8162 = vadd.f32 %v8073, %v8161
        %8163 = vmatmul.bf16.gmra.mxu0 %v583
        %v8164 = vpop.f32.mrf.mxu0
        %v8165 = vadd.f32 %v8076, %v8164
        %v8166 = vpop.f32.mrf.mxu0
        %v8167 = vadd.f32 %v8078, %v8166
        %8168 = vmatmul.bf16.gmra.mxu0 %v591
        %v8169 = vpop.f32.mrf.mxu0
        %v8170 = vadd.f32 %v8081, %v8169
        %v8171 = vpop.f32.mrf.mxu0
        %v8172 = vadd.f32 %v8083, %v8171
        %8173 = vmatmul.bf16.gmra.mxu0 %v599
        %v8174 = vpop.f32.mrf.mxu0
        %v8175 = vadd.f32 %v8086, %v8174
        %v8176 = vpop.f32.mrf.mxu0
        %v8177 = vadd.f32 %v8088, %v8176
        %8178 = vmatmul.bf16.gmra.mxu0 %v607
        %v8179 = vpop.f32.mrf.mxu0
        %v8180 = vadd.f32 %v8091, %v8179
        %v8181 = vpop.f32.mrf.mxu0
        %v8182 = vadd.f32 %v8093, %v8181
        %8183 = vmatmul.bf16.gmra.mxu0 %v615
        %v8184 = vpop.f32.mrf.mxu0
        %v8185 = vadd.f32 %v8096, %v8184
        %v8186 = vpop.f32.mrf.mxu0
        %v8187 = vadd.f32 %v8098, %v8186
        %8188 = vmatmul.bf16.gmra.mxu0 %v623
        %v8189 = vpop.f32.mrf.mxu0
        %v8190 = vadd.f32 %v8101, %v8189
        %v8191 = vpop.f32.mrf.mxu0
        %v8192 = vadd.f32 %v8103, %v8191
        %8193 = vmatmul.bf16.gmra.mxu0 %v631
        %v8194 = vpop.f32.mrf.mxu0
        %v8195 = vadd.f32 %v8106, %v8194
        %v8196 = vpop.f32.mrf.mxu0
        %v8197 = vadd.f32 %v8108, %v8196
        %8198 = vmatmul.bf16.gmra.mxu0 %v639
        %v8199 = vpop.f32.mrf.mxu0
        %v8200 = vadd.f32 %v8111, %v8199
        %v8201 = vpop.f32.mrf.mxu0
        %v8202 = vadd.f32 %v8113, %v8201
        %8203 = vmatmul.bf16.gmra.mxu0 %v647
        %v8204 = vpop.f32.mrf.mxu0
        %v8205 = vadd.f32 %v8116, %v8204
        %v8206 = vpop.f32.mrf.mxu0
        %v8207 = vadd.f32 %v8118, %v8206
        %8208 = vmatmul.bf16.gmra.mxu0 %v655
        %v8209 = vpop.f32.mrf.mxu0
        %v8210 = vadd.f32 %v8121, %v8209
        %v8211 = vpop.f32.mrf.mxu0
        %v8212 = vadd.f32 %v8123, %v8211
        %8213 = vmatmul.bf16.gmra.mxu0 %v663
        %v8214 = vpop.f32.mrf.mxu0
        %v8215 = vadd.f32 %v8126, %v8214
        %v8216 = vpop.f32.mrf.mxu0
        %v8217 = vadd.f32 %v8128, %v8216
        %8218 = vmatmul.bf16.gmra.mxu0 %v671
        %v8219 = vpop.f32.mrf.mxu0
        %v8220 = vadd.f32 %v8131, %v8219
        %v8221 = vpop.f32.mrf.mxu0
        %v8222 = vadd.f32 %v8133, %v8221
        %8223 = vmatmul.bf16.gmra.mxu0 %v679
        %v8224 = vpop.f32.mrf.mxu0
        %v8225 = vadd.f32 %v8136, %v8224
        %v8226 = vpop.f32.mrf.mxu0
        %v8227 = vadd.f32 %v8138, %v8226
        %8228 = vmatmul.bf16.gmra.mxu0 %v687
        %v8229 = vpop.f32.mrf.mxu0
        %v8230 = vadd.f32 %v8141, %v8229
        %v8231 = vpop.f32.mrf.mxu0
        %v8232 = vadd.f32 %v8143, %v8231
        %8233 = vdwg.mxu0
        %8234 = vmatpush.bf16.msra.mxu0 %v2950
        %8235 = vmatpush.bf16.msra.mxu0 %v2942
        %8236 = vmatpush.bf16.msra.mxu0 %v2934
        %8237 = vmatpush.bf16.msra.mxu0 %v2926
        %8238 = vmatpush.bf16.msra.mxu0 %v2918
        %8239 = vmatpush.bf16.msra.mxu0 %v2910
        %8240 = vmatpush.bf16.msra.mxu0 %v2902
        %8241 = vmatpush.bf16.msra.mxu0 %v2894
        %8242 = vmatmul.bf16.gmra.mxu0 %v568
        %v8243 = vpop.f32.mrf.mxu0
        %v8244 = vadd.f32 %v8155, %v8243
        %v8245 = vpop.f32.mrf.mxu0
        %v8246 = vadd.f32 %v8157, %v8245
        %8247 = vmatmul.bf16.gmra.mxu0 %v576
        %v8248 = vpop.f32.mrf.mxu0
        %v8249 = vadd.f32 %v8160, %v8248
        %v8250 = vpop.f32.mrf.mxu0
        %v8251 = vadd.f32 %v8162, %v8250
        %8252 = vmatmul.bf16.gmra.mxu0 %v584
        %v8253 = vpop.f32.mrf.mxu0
        %v8254 = vadd.f32 %v8165, %v8253
        %v8255 = vpop.f32.mrf.mxu0
        %v8256 = vadd.f32 %v8167, %v8255
        %8257 = vmatmul.bf16.gmra.mxu0 %v592
        %v8258 = vpop.f32.mrf.mxu0
        %v8259 = vadd.f32 %v8170, %v8258
        %v8260 = vpop.f32.mrf.mxu0
        %v8261 = vadd.f32 %v8172, %v8260
        %8262 = vmatmul.bf16.gmra.mxu0 %v600
        %v8263 = vpop.f32.mrf.mxu0
        %v8264 = vadd.f32 %v8175, %v8263
        %v8265 = vpop.f32.mrf.mxu0
        %v8266 = vadd.f32 %v8177, %v8265
        %8267 = vmatmul.bf16.gmra.mxu0 %v608
        %v8268 = vpop.f32.mrf.mxu0
        %v8269 = vadd.f32 %v8180, %v8268
        %v8270 = vpop.f32.mrf.mxu0
        %v8271 = vadd.f32 %v8182, %v8270
        %8272 = vmatmul.bf16.gmra.mxu0 %v616
        %v8273 = vpop.f32.mrf.mxu0
        %v8274 = vadd.f32 %v8185, %v8273
        %v8275 = vpop.f32.mrf.mxu0
        %v8276 = vadd.f32 %v8187, %v8275
        %8277 = vmatmul.bf16.gmra.mxu0 %v624
        %v8278 = vpop.f32.mrf.mxu0
        %v8279 = vadd.f32 %v8190, %v8278
        %v8280 = vpop.f32.mrf.mxu0
        %v8281 = vadd.f32 %v8192, %v8280
        %8282 = vmatmul.bf16.gmra.mxu0 %v632
        %v8283 = vpop.f32.mrf.mxu0
        %v8284 = vadd.f32 %v8195, %v8283
        %v8285 = vpop.f32.mrf.mxu0
        %v8286 = vadd.f32 %v8197, %v8285
        %8287 = vmatmul.bf16.gmra.mxu0 %v640
        %v8288 = vpop.f32.mrf.mxu0
        %v8289 = vadd.f32 %v8200, %v8288
        %v8290 = vpop.f32.mrf.mxu0
        %v8291 = vadd.f32 %v8202, %v8290
        %8292 = vmatmul.bf16.gmra.mxu0 %v648
        %v8293 = vpop.f32.mrf.mxu0
        %v8294 = vadd.f32 %v8205, %v8293
        %v8295 = vpop.f32.mrf.mxu0
        %v8296 = vadd.f32 %v8207, %v8295
        %8297 = vmatmul.bf16.gmra.mxu0 %v656
        %v8298 = vpop.f32.mrf.mxu0
        %v8299 = vadd.f32 %v8210, %v8298
        %v8300 = vpop.f32.mrf.mxu0
        %v8301 = vadd.f32 %v8212, %v8300
        %8302 = vmatmul.bf16.gmra.mxu0 %v664
        %v8303 = vpop.f32.mrf.mxu0
        %v8304 = vadd.f32 %v8215, %v8303
        %v8305 = vpop.f32.mrf.mxu0
        %v8306 = vadd.f32 %v8217, %v8305
        %8307 = vmatmul.bf16.gmra.mxu0 %v672
        %v8308 = vpop.f32.mrf.mxu0
        %v8309 = vadd.f32 %v8220, %v8308
        %v8310 = vpop.f32.mrf.mxu0
        %v8311 = vadd.f32 %v8222, %v8310
        %8312 = vmatmul.bf16.gmra.mxu0 %v680
        %v8313 = vpop.f32.mrf.mxu0
        %v8314 = vadd.f32 %v8225, %v8313
        %v8315 = vpop.f32.mrf.mxu0
        %v8316 = vadd.f32 %v8227, %v8315
        %8317 = vmatmul.bf16.gmra.mxu0 %v688
        %v8318 = vpop.f32.mrf.mxu0
        %v8319 = vadd.f32 %v8230, %v8318
        %v8320 = vpop.f32.mrf.mxu0
        %v8321 = vadd.f32 %v8232, %v8320
        %8322 = vdwg.mxu0
        %8323 = vmatpush.bf16.msra.mxu0 %v3014
        %8324 = vmatpush.bf16.msra.mxu0 %v3006
        %8325 = vmatpush.bf16.msra.mxu0 %v2998
        %8326 = vmatpush.bf16.msra.mxu0 %v2990
        %8327 = vmatpush.bf16.msra.mxu0 %v2982
        %8328 = vmatpush.bf16.msra.mxu0 %v2974
        %8329 = vmatpush.bf16.msra.mxu0 %v2966
        %8330 = vmatpush.bf16.msra.mxu0 %v2958
        %8331 = vmatmul.bf16.gmra.mxu0 %v569
        %v8332 = vpop.f32.mrf.mxu0
        %v8333 = vadd.f32 %v8244, %v8332
        %v8334 = vpop.f32.mrf.mxu0
        %v8335 = vadd.f32 %v8246, %v8334
        %8336 = vmatmul.bf16.gmra.mxu0 %v577
        %v8337 = vpop.f32.mrf.mxu0
        %v8338 = vadd.f32 %v8249, %v8337
        %v8339 = vpop.f32.mrf.mxu0
        %v8340 = vadd.f32 %v8251, %v8339
        %8341 = vmatmul.bf16.gmra.mxu0 %v585
        %v8342 = vpop.f32.mrf.mxu0
        %v8343 = vadd.f32 %v8254, %v8342
        %v8344 = vpop.f32.mrf.mxu0
        %v8345 = vadd.f32 %v8256, %v8344
        %8346 = vmatmul.bf16.gmra.mxu0 %v593
        %v8347 = vpop.f32.mrf.mxu0
        %v8348 = vadd.f32 %v8259, %v8347
        %v8349 = vpop.f32.mrf.mxu0
        %v8350 = vadd.f32 %v8261, %v8349
        %8351 = vmatmul.bf16.gmra.mxu0 %v601
        %v8352 = vpop.f32.mrf.mxu0
        %v8353 = vadd.f32 %v8264, %v8352
        %v8354 = vpop.f32.mrf.mxu0
        %v8355 = vadd.f32 %v8266, %v8354
        %8356 = vmatmul.bf16.gmra.mxu0 %v609
        %v8357 = vpop.f32.mrf.mxu0
        %v8358 = vadd.f32 %v8269, %v8357
        %v8359 = vpop.f32.mrf.mxu0
        %v8360 = vadd.f32 %v8271, %v8359
        %8361 = vmatmul.bf16.gmra.mxu0 %v617
        %v8362 = vpop.f32.mrf.mxu0
        %v8363 = vadd.f32 %v8274, %v8362
        %v8364 = vpop.f32.mrf.mxu0
        %v8365 = vadd.f32 %v8276, %v8364
        %8366 = vmatmul.bf16.gmra.mxu0 %v625
        %v8367 = vpop.f32.mrf.mxu0
        %v8368 = vadd.f32 %v8279, %v8367
        %v8369 = vpop.f32.mrf.mxu0
        %v8370 = vadd.f32 %v8281, %v8369
        %8371 = vmatmul.bf16.gmra.mxu0 %v633
        %v8372 = vpop.f32.mrf.mxu0
        %v8373 = vadd.f32 %v8284, %v8372
        %v8374 = vpop.f32.mrf.mxu0
        %v8375 = vadd.f32 %v8286, %v8374
        %8376 = vmatmul.bf16.gmra.mxu0 %v641
        %v8377 = vpop.f32.mrf.mxu0
        %v8378 = vadd.f32 %v8289, %v8377
        %v8379 = vpop.f32.mrf.mxu0
        %v8380 = vadd.f32 %v8291, %v8379
        %8381 = vmatmul.bf16.gmra.mxu0 %v649
        %v8382 = vpop.f32.mrf.mxu0
        %v8383 = vadd.f32 %v8294, %v8382
        %v8384 = vpop.f32.mrf.mxu0
        %v8385 = vadd.f32 %v8296, %v8384
        %8386 = vmatmul.bf16.gmra.mxu0 %v657
        %v8387 = vpop.f32.mrf.mxu0
        %v8388 = vadd.f32 %v8299, %v8387
        %v8389 = vpop.f32.mrf.mxu0
        %v8390 = vadd.f32 %v8301, %v8389
        %8391 = vmatmul.bf16.gmra.mxu0 %v665
        %v8392 = vpop.f32.mrf.mxu0
        %v8393 = vadd.f32 %v8304, %v8392
        %v8394 = vpop.f32.mrf.mxu0
        %v8395 = vadd.f32 %v8306, %v8394
        %8396 = vmatmul.bf16.gmra.mxu0 %v673
        %v8397 = vpop.f32.mrf.mxu0
        %v8398 = vadd.f32 %v8309, %v8397
        %v8399 = vpop.f32.mrf.mxu0
        %v8400 = vadd.f32 %v8311, %v8399
        %8401 = vmatmul.bf16.gmra.mxu0 %v681
        %v8402 = vpop.f32.mrf.mxu0
        %v8403 = vadd.f32 %v8314, %v8402
        %v8404 = vpop.f32.mrf.mxu0
        %v8405 = vadd.f32 %v8316, %v8404
        %8406 = vmatmul.bf16.gmra.mxu0 %v689
        %v8407 = vpop.f32.mrf.mxu0
        %v8408 = vadd.f32 %v8319, %v8407
        %v8409 = vpop.f32.mrf.mxu0
        %v8410 = vadd.f32 %v8321, %v8409
        %8411 = vdwg.mxu0
        %8412 = vmatpush.bf16.msra.mxu0 %v3078
        %8413 = vmatpush.bf16.msra.mxu0 %v3070
        %8414 = vmatpush.bf16.msra.mxu0 %v3062
        %8415 = vmatpush.bf16.msra.mxu0 %v3054
        %8416 = vmatpush.bf16.msra.mxu0 %v3046
        %8417 = vmatpush.bf16.msra.mxu0 %v3038
        %8418 = vmatpush.bf16.msra.mxu0 %v3030
        %8419 = vmatpush.bf16.msra.mxu0 %v3022
        %8420 = vmatmul.bf16.gmra.mxu0 %v570
        %v8421 = vpop.f32.mrf.mxu0
        %v8422 = vadd.f32 %v8333, %v8421
        %v8423 = vpop.f32.mrf.mxu0
        %v8424 = vadd.f32 %v8335, %v8423
        %8425 = vmatmul.bf16.gmra.mxu0 %v578
        %v8426 = vpop.f32.mrf.mxu0
        %v8427 = vadd.f32 %v8338, %v8426
        %v8428 = vpop.f32.mrf.mxu0
        %v8429 = vadd.f32 %v8340, %v8428
        %8430 = vmatmul.bf16.gmra.mxu0 %v586
        %v8431 = vpop.f32.mrf.mxu0
        %v8432 = vadd.f32 %v8343, %v8431
        %v8433 = vpop.f32.mrf.mxu0
        %v8434 = vadd.f32 %v8345, %v8433
        %8435 = vmatmul.bf16.gmra.mxu0 %v594
        %v8436 = vpop.f32.mrf.mxu0
        %v8437 = vadd.f32 %v8348, %v8436
        %v8438 = vpop.f32.mrf.mxu0
        %v8439 = vadd.f32 %v8350, %v8438
        %8440 = vmatmul.bf16.gmra.mxu0 %v602
        %v8441 = vpop.f32.mrf.mxu0
        %v8442 = vadd.f32 %v8353, %v8441
        %v8443 = vpop.f32.mrf.mxu0
        %v8444 = vadd.f32 %v8355, %v8443
        %8445 = vmatmul.bf16.gmra.mxu0 %v610
        %v8446 = vpop.f32.mrf.mxu0
        %v8447 = vadd.f32 %v8358, %v8446
        %v8448 = vpop.f32.mrf.mxu0
        %v8449 = vadd.f32 %v8360, %v8448
        %8450 = vmatmul.bf16.gmra.mxu0 %v618
        %v8451 = vpop.f32.mrf.mxu0
        %v8452 = vadd.f32 %v8363, %v8451
        %v8453 = vpop.f32.mrf.mxu0
        %v8454 = vadd.f32 %v8365, %v8453
        %8455 = vmatmul.bf16.gmra.mxu0 %v626
        %v8456 = vpop.f32.mrf.mxu0
        %v8457 = vadd.f32 %v8368, %v8456
        %v8458 = vpop.f32.mrf.mxu0
        %v8459 = vadd.f32 %v8370, %v8458
        %8460 = vmatmul.bf16.gmra.mxu0 %v634
        %v8461 = vpop.f32.mrf.mxu0
        %v8462 = vadd.f32 %v8373, %v8461
        %v8463 = vpop.f32.mrf.mxu0
        %v8464 = vadd.f32 %v8375, %v8463
        %8465 = vmatmul.bf16.gmra.mxu0 %v642
        %v8466 = vpop.f32.mrf.mxu0
        %v8467 = vadd.f32 %v8378, %v8466
        %v8468 = vpop.f32.mrf.mxu0
        %v8469 = vadd.f32 %v8380, %v8468
        %8470 = vmatmul.bf16.gmra.mxu0 %v650
        %v8471 = vpop.f32.mrf.mxu0
        %v8472 = vadd.f32 %v8383, %v8471
        %v8473 = vpop.f32.mrf.mxu0
        %v8474 = vadd.f32 %v8385, %v8473
        %8475 = vmatmul.bf16.gmra.mxu0 %v658
        %v8476 = vpop.f32.mrf.mxu0
        %v8477 = vadd.f32 %v8388, %v8476
        %v8478 = vpop.f32.mrf.mxu0
        %v8479 = vadd.f32 %v8390, %v8478
        %8480 = vmatmul.bf16.gmra.mxu0 %v666
        %v8481 = vpop.f32.mrf.mxu0
        %v8482 = vadd.f32 %v8393, %v8481
        %v8483 = vpop.f32.mrf.mxu0
        %v8484 = vadd.f32 %v8395, %v8483
        %8485 = vmatmul.bf16.gmra.mxu0 %v674
        %v8486 = vpop.f32.mrf.mxu0
        %v8487 = vadd.f32 %v8398, %v8486
        %v8488 = vpop.f32.mrf.mxu0
        %v8489 = vadd.f32 %v8400, %v8488
        %8490 = vmatmul.bf16.gmra.mxu0 %v682
        %v8491 = vpop.f32.mrf.mxu0
        %v8492 = vadd.f32 %v8403, %v8491
        %v8493 = vpop.f32.mrf.mxu0
        %v8494 = vadd.f32 %v8405, %v8493
        %8495 = vmatmul.bf16.gmra.mxu0 %v690
        %v8496 = vpop.f32.mrf.mxu0
        %v8497 = vadd.f32 %v8408, %v8496
        %v8498 = vpop.f32.mrf.mxu0
        %v8499 = vadd.f32 %v8410, %v8498
        %8500 = vdwg.mxu0
        %8501 = vmatpush.bf16.msra.mxu0 %v3142
        %8502 = vmatpush.bf16.msra.mxu0 %v3134
        %8503 = vmatpush.bf16.msra.mxu0 %v3126
        %8504 = vmatpush.bf16.msra.mxu0 %v3118
        %8505 = vmatpush.bf16.msra.mxu0 %v3110
        %8506 = vmatpush.bf16.msra.mxu0 %v3102
        %8507 = vmatpush.bf16.msra.mxu0 %v3094
        %8508 = vmatpush.bf16.msra.mxu0 %v3086
        %8509 = vmatmul.bf16.gmra.mxu0 %v571
        %v8510 = vpop.f32.mrf.mxu0
        %v8511 = vadd.f32 %v8422, %v8510
        %v8512 = vpop.f32.mrf.mxu0
        %v8513 = vadd.f32 %v8424, %v8512
        %8514 = vmatmul.bf16.gmra.mxu0 %v579
        %v8515 = vpop.f32.mrf.mxu0
        %v8516 = vadd.f32 %v8427, %v8515
        %v8517 = vpop.f32.mrf.mxu0
        %v8518 = vadd.f32 %v8429, %v8517
        %8519 = vmatmul.bf16.gmra.mxu0 %v587
        %v8520 = vpop.f32.mrf.mxu0
        %v8521 = vadd.f32 %v8432, %v8520
        %v8522 = vpop.f32.mrf.mxu0
        %v8523 = vadd.f32 %v8434, %v8522
        %8524 = vmatmul.bf16.gmra.mxu0 %v595
        %v8525 = vpop.f32.mrf.mxu0
        %v8526 = vadd.f32 %v8437, %v8525
        %v8527 = vpop.f32.mrf.mxu0
        %v8528 = vadd.f32 %v8439, %v8527
        %8529 = vmatmul.bf16.gmra.mxu0 %v603
        %v8530 = vpop.f32.mrf.mxu0
        %v8531 = vadd.f32 %v8442, %v8530
        %v8532 = vpop.f32.mrf.mxu0
        %v8533 = vadd.f32 %v8444, %v8532
        %8534 = vmatmul.bf16.gmra.mxu0 %v611
        %v8535 = vpop.f32.mrf.mxu0
        %v8536 = vadd.f32 %v8447, %v8535
        %v8537 = vpop.f32.mrf.mxu0
        %v8538 = vadd.f32 %v8449, %v8537
        %8539 = vmatmul.bf16.gmra.mxu0 %v619
        %v8540 = vpop.f32.mrf.mxu0
        %v8541 = vadd.f32 %v8452, %v8540
        %v8542 = vpop.f32.mrf.mxu0
        %v8543 = vadd.f32 %v8454, %v8542
        %8544 = vmatmul.bf16.gmra.mxu0 %v627
        %v8545 = vpop.f32.mrf.mxu0
        %v8546 = vadd.f32 %v8457, %v8545
        %v8547 = vpop.f32.mrf.mxu0
        %v8548 = vadd.f32 %v8459, %v8547
        %8549 = vmatmul.bf16.gmra.mxu0 %v635
        %v8550 = vpop.f32.mrf.mxu0
        %v8551 = vadd.f32 %v8462, %v8550
        %v8552 = vpop.f32.mrf.mxu0
        %v8553 = vadd.f32 %v8464, %v8552
        %8554 = vmatmul.bf16.gmra.mxu0 %v643
        %v8555 = vpop.f32.mrf.mxu0
        %v8556 = vadd.f32 %v8467, %v8555
        %v8557 = vpop.f32.mrf.mxu0
        %v8558 = vadd.f32 %v8469, %v8557
        %8559 = vmatmul.bf16.gmra.mxu0 %v651
        %v8560 = vpop.f32.mrf.mxu0
        %v8561 = vadd.f32 %v8472, %v8560
        %v8562 = vpop.f32.mrf.mxu0
        %v8563 = vadd.f32 %v8474, %v8562
        %8564 = vmatmul.bf16.gmra.mxu0 %v659
        %v8565 = vpop.f32.mrf.mxu0
        %v8566 = vadd.f32 %v8477, %v8565
        %v8567 = vpop.f32.mrf.mxu0
        %v8568 = vadd.f32 %v8479, %v8567
        %8569 = vmatmul.bf16.gmra.mxu0 %v667
        %v8570 = vpop.f32.mrf.mxu0
        %v8571 = vadd.f32 %v8482, %v8570
        %v8572 = vpop.f32.mrf.mxu0
        %v8573 = vadd.f32 %v8484, %v8572
        %8574 = vmatmul.bf16.gmra.mxu0 %v675
        %v8575 = vpop.f32.mrf.mxu0
        %v8576 = vadd.f32 %v8487, %v8575
        %v8577 = vpop.f32.mrf.mxu0
        %v8578 = vadd.f32 %v8489, %v8577
        %8579 = vmatmul.bf16.gmra.mxu0 %v683
        %v8580 = vpop.f32.mrf.mxu0
        %v8581 = vadd.f32 %v8492, %v8580
        %v8582 = vpop.f32.mrf.mxu0
        %v8583 = vadd.f32 %v8494, %v8582
        %8584 = vmatmul.bf16.gmra.mxu0 %v691
        %v8585 = vpop.f32.mrf.mxu0
        %v8586 = vadd.f32 %v8497, %v8585
        %v8587 = vpop.f32.mrf.mxu0
        %v8588 = vadd.f32 %v8499, %v8587
        %8589 = vdwg.mxu0
        %8590 = vmatpush.bf16.msra.mxu0 %v3206
        %8591 = vmatpush.bf16.msra.mxu0 %v3198
        %8592 = vmatpush.bf16.msra.mxu0 %v3190
        %8593 = vmatpush.bf16.msra.mxu0 %v3182
        %8594 = vmatpush.bf16.msra.mxu0 %v3174
        %8595 = vmatpush.bf16.msra.mxu0 %v3166
        %8596 = vmatpush.bf16.msra.mxu0 %v3158
        %8597 = vmatpush.bf16.msra.mxu0 %v3150
        %8598 = vmatmul.bf16.gmra.mxu0 %v572
        %v8599 = vpop.f32.mrf.mxu0
        %v8600 = vadd.f32 %v8511, %v8599
        %v8601 = vpop.f32.mrf.mxu0
        %v8602 = vadd.f32 %v8513, %v8601
        %8603 = vmatmul.bf16.gmra.mxu0 %v580
        %v8604 = vpop.f32.mrf.mxu0
        %v8605 = vadd.f32 %v8516, %v8604
        %v8606 = vpop.f32.mrf.mxu0
        %v8607 = vadd.f32 %v8518, %v8606
        %8608 = vmatmul.bf16.gmra.mxu0 %v588
        %v8609 = vpop.f32.mrf.mxu0
        %v8610 = vadd.f32 %v8521, %v8609
        %v8611 = vpop.f32.mrf.mxu0
        %v8612 = vadd.f32 %v8523, %v8611
        %8613 = vmatmul.bf16.gmra.mxu0 %v596
        %v8614 = vpop.f32.mrf.mxu0
        %v8615 = vadd.f32 %v8526, %v8614
        %v8616 = vpop.f32.mrf.mxu0
        %v8617 = vadd.f32 %v8528, %v8616
        %8618 = vmatmul.bf16.gmra.mxu0 %v604
        %v8619 = vpop.f32.mrf.mxu0
        %v8620 = vadd.f32 %v8531, %v8619
        %v8621 = vpop.f32.mrf.mxu0
        %v8622 = vadd.f32 %v8533, %v8621
        %8623 = vmatmul.bf16.gmra.mxu0 %v612
        %v8624 = vpop.f32.mrf.mxu0
        %v8625 = vadd.f32 %v8536, %v8624
        %v8626 = vpop.f32.mrf.mxu0
        %v8627 = vadd.f32 %v8538, %v8626
        %8628 = vmatmul.bf16.gmra.mxu0 %v620
        %v8629 = vpop.f32.mrf.mxu0
        %v8630 = vadd.f32 %v8541, %v8629
        %v8631 = vpop.f32.mrf.mxu0
        %v8632 = vadd.f32 %v8543, %v8631
        %8633 = vmatmul.bf16.gmra.mxu0 %v628
        %v8634 = vpop.f32.mrf.mxu0
        %v8635 = vadd.f32 %v8546, %v8634
        %v8636 = vpop.f32.mrf.mxu0
        %v8637 = vadd.f32 %v8548, %v8636
        %8638 = vmatmul.bf16.gmra.mxu0 %v636
        %v8639 = vpop.f32.mrf.mxu0
        %v8640 = vadd.f32 %v8551, %v8639
        %v8641 = vpop.f32.mrf.mxu0
        %v8642 = vadd.f32 %v8553, %v8641
        %8643 = vmatmul.bf16.gmra.mxu0 %v644
        %v8644 = vpop.f32.mrf.mxu0
        %v8645 = vadd.f32 %v8556, %v8644
        %v8646 = vpop.f32.mrf.mxu0
        %v8647 = vadd.f32 %v8558, %v8646
        %8648 = vmatmul.bf16.gmra.mxu0 %v652
        %v8649 = vpop.f32.mrf.mxu0
        %v8650 = vadd.f32 %v8561, %v8649
        %v8651 = vpop.f32.mrf.mxu0
        %v8652 = vadd.f32 %v8563, %v8651
        %8653 = vmatmul.bf16.gmra.mxu0 %v660
        %v8654 = vpop.f32.mrf.mxu0
        %v8655 = vadd.f32 %v8566, %v8654
        %v8656 = vpop.f32.mrf.mxu0
        %v8657 = vadd.f32 %v8568, %v8656
        %8658 = vmatmul.bf16.gmra.mxu0 %v668
        %v8659 = vpop.f32.mrf.mxu0
        %v8660 = vadd.f32 %v8571, %v8659
        %v8661 = vpop.f32.mrf.mxu0
        %v8662 = vadd.f32 %v8573, %v8661
        %8663 = vmatmul.bf16.gmra.mxu0 %v676
        %v8664 = vpop.f32.mrf.mxu0
        %v8665 = vadd.f32 %v8576, %v8664
        %v8666 = vpop.f32.mrf.mxu0
        %v8667 = vadd.f32 %v8578, %v8666
        %8668 = vmatmul.bf16.gmra.mxu0 %v684
        %v8669 = vpop.f32.mrf.mxu0
        %v8670 = vadd.f32 %v8581, %v8669
        %v8671 = vpop.f32.mrf.mxu0
        %v8672 = vadd.f32 %v8583, %v8671
        %8673 = vmatmul.bf16.gmra.mxu0 %v692
        %v8674 = vpop.f32.mrf.mxu0
        %v8675 = vadd.f32 %v8586, %v8674
        %v8676 = vpop.f32.mrf.mxu0
        %v8677 = vadd.f32 %v8588, %v8676
        %8678 = vdwg.mxu0
        %8679 = vmatpush.bf16.msra.mxu0 %v3270
        %8680 = vmatpush.bf16.msra.mxu0 %v3262
        %8681 = vmatpush.bf16.msra.mxu0 %v3254
        %8682 = vmatpush.bf16.msra.mxu0 %v3246
        %8683 = vmatpush.bf16.msra.mxu0 %v3238
        %8684 = vmatpush.bf16.msra.mxu0 %v3230
        %8685 = vmatpush.bf16.msra.mxu0 %v3222
        %8686 = vmatpush.bf16.msra.mxu0 %v3214
        %8687 = vmatmul.bf16.gmra.mxu0 %v573
        %v8688 = vpop.f32.mrf.mxu0
        %v8689 = vadd.f32 %v8600, %v8688
        %v8690 = vpop.f32.mrf.mxu0
        %v8691 = vadd.f32 %v8602, %v8690
        %8692 = vmatmul.bf16.gmra.mxu0 %v581
        %v8693 = vpop.f32.mrf.mxu0
        %v8694 = vadd.f32 %v8605, %v8693
        %v8695 = vpop.f32.mrf.mxu0
        %v8696 = vadd.f32 %v8607, %v8695
        %8697 = vmatmul.bf16.gmra.mxu0 %v589
        %v8698 = vpop.f32.mrf.mxu0
        %v8699 = vadd.f32 %v8610, %v8698
        %v8700 = vpop.f32.mrf.mxu0
        %v8701 = vadd.f32 %v8612, %v8700
        %8702 = vmatmul.bf16.gmra.mxu0 %v597
        %v8703 = vpop.f32.mrf.mxu0
        %v8704 = vadd.f32 %v8615, %v8703
        %v8705 = vpop.f32.mrf.mxu0
        %v8706 = vadd.f32 %v8617, %v8705
        %8707 = vmatmul.bf16.gmra.mxu0 %v605
        %v8708 = vpop.f32.mrf.mxu0
        %v8709 = vadd.f32 %v8620, %v8708
        %v8710 = vpop.f32.mrf.mxu0
        %v8711 = vadd.f32 %v8622, %v8710
        %8712 = vmatmul.bf16.gmra.mxu0 %v613
        %v8713 = vpop.f32.mrf.mxu0
        %v8714 = vadd.f32 %v8625, %v8713
        %v8715 = vpop.f32.mrf.mxu0
        %v8716 = vadd.f32 %v8627, %v8715
        %8717 = vmatmul.bf16.gmra.mxu0 %v621
        %v8718 = vpop.f32.mrf.mxu0
        %v8719 = vadd.f32 %v8630, %v8718
        %v8720 = vpop.f32.mrf.mxu0
        %v8721 = vadd.f32 %v8632, %v8720
        %8722 = vmatmul.bf16.gmra.mxu0 %v629
        %v8723 = vpop.f32.mrf.mxu0
        %v8724 = vadd.f32 %v8635, %v8723
        %v8725 = vpop.f32.mrf.mxu0
        %v8726 = vadd.f32 %v8637, %v8725
        %8727 = vmatmul.bf16.gmra.mxu0 %v637
        %v8728 = vpop.f32.mrf.mxu0
        %v8729 = vadd.f32 %v8640, %v8728
        %v8730 = vpop.f32.mrf.mxu0
        %v8731 = vadd.f32 %v8642, %v8730
        %8732 = vmatmul.bf16.gmra.mxu0 %v645
        %v8733 = vpop.f32.mrf.mxu0
        %v8734 = vadd.f32 %v8645, %v8733
        %v8735 = vpop.f32.mrf.mxu0
        %v8736 = vadd.f32 %v8647, %v8735
        %8737 = vmatmul.bf16.gmra.mxu0 %v653
        %v8738 = vpop.f32.mrf.mxu0
        %v8739 = vadd.f32 %v8650, %v8738
        %v8740 = vpop.f32.mrf.mxu0
        %v8741 = vadd.f32 %v8652, %v8740
        %8742 = vmatmul.bf16.gmra.mxu0 %v661
        %v8743 = vpop.f32.mrf.mxu0
        %v8744 = vadd.f32 %v8655, %v8743
        %v8745 = vpop.f32.mrf.mxu0
        %v8746 = vadd.f32 %v8657, %v8745
        %8747 = vmatmul.bf16.gmra.mxu0 %v669
        %v8748 = vpop.f32.mrf.mxu0
        %v8749 = vadd.f32 %v8660, %v8748
        %v8750 = vpop.f32.mrf.mxu0
        %v8751 = vadd.f32 %v8662, %v8750
        %8752 = vmatmul.bf16.gmra.mxu0 %v677
        %v8753 = vpop.f32.mrf.mxu0
        %v8754 = vadd.f32 %v8665, %v8753
        %v8755 = vpop.f32.mrf.mxu0
        %v8756 = vadd.f32 %v8667, %v8755
        %8757 = vmatmul.bf16.gmra.mxu0 %v685
        %v8758 = vpop.f32.mrf.mxu0
        %v8759 = vadd.f32 %v8670, %v8758
        %v8760 = vpop.f32.mrf.mxu0
        %v8761 = vadd.f32 %v8672, %v8760
        %8762 = vmatmul.bf16.gmra.mxu0 %v693
        %v8763 = vpop.f32.mrf.mxu0
        %v8764 = vadd.f32 %v8675, %v8763
        %v8765 = vpop.f32.mrf.mxu0
        %v8766 = vadd.f32 %v8677, %v8765
        %8767 = vdwg.mxu0
        %8768 = vmatpush.bf16.msra.mxu0 %v2823
        %8769 = vmatpush.bf16.msra.mxu0 %v2815
        %8770 = vmatpush.bf16.msra.mxu0 %v2807
        %8771 = vmatpush.bf16.msra.mxu0 %v2799
        %8772 = vmatpush.bf16.msra.mxu0 %v2791
        %8773 = vmatpush.bf16.msra.mxu0 %v2783
        %8774 = vmatpush.bf16.msra.mxu0 %v2775
        %8775 = vmatpush.bf16.msra.mxu0 %v2767
        %8776 = vmatmul.bf16.gmra.mxu0 %v566
        %v8777 = vpop.f32.mrf.mxu0
        %v8778 = vadd.f32 %v1215, %v8777
        %v8779 = vpop.f32.mrf.mxu0
        %v8780 = vadd.f32 %v1215, %v8779
        %8781 = vmatmul.bf16.gmra.mxu0 %v574
        %v8782 = vpop.f32.mrf.mxu0
        %v8783 = vadd.f32 %v1215, %v8782
        %v8784 = vpop.f32.mrf.mxu0
        %v8785 = vadd.f32 %v1215, %v8784
        %8786 = vmatmul.bf16.gmra.mxu0 %v582
        %v8787 = vpop.f32.mrf.mxu0
        %v8788 = vadd.f32 %v1215, %v8787
        %v8789 = vpop.f32.mrf.mxu0
        %v8790 = vadd.f32 %v1215, %v8789
        %8791 = vmatmul.bf16.gmra.mxu0 %v590
        %v8792 = vpop.f32.mrf.mxu0
        %v8793 = vadd.f32 %v1215, %v8792
        %v8794 = vpop.f32.mrf.mxu0
        %v8795 = vadd.f32 %v1215, %v8794
        %8796 = vmatmul.bf16.gmra.mxu0 %v598
        %v8797 = vpop.f32.mrf.mxu0
        %v8798 = vadd.f32 %v1215, %v8797
        %v8799 = vpop.f32.mrf.mxu0
        %v8800 = vadd.f32 %v1215, %v8799
        %8801 = vmatmul.bf16.gmra.mxu0 %v606
        %v8802 = vpop.f32.mrf.mxu0
        %v8803 = vadd.f32 %v1215, %v8802
        %v8804 = vpop.f32.mrf.mxu0
        %v8805 = vadd.f32 %v1215, %v8804
        %8806 = vmatmul.bf16.gmra.mxu0 %v614
        %v8807 = vpop.f32.mrf.mxu0
        %v8808 = vadd.f32 %v1215, %v8807
        %v8809 = vpop.f32.mrf.mxu0
        %v8810 = vadd.f32 %v1215, %v8809
        %8811 = vmatmul.bf16.gmra.mxu0 %v622
        %v8812 = vpop.f32.mrf.mxu0
        %v8813 = vadd.f32 %v1215, %v8812
        %v8814 = vpop.f32.mrf.mxu0
        %v8815 = vadd.f32 %v1215, %v8814
        %8816 = vmatmul.bf16.gmra.mxu0 %v630
        %v8817 = vpop.f32.mrf.mxu0
        %v8818 = vadd.f32 %v1215, %v8817
        %v8819 = vpop.f32.mrf.mxu0
        %v8820 = vadd.f32 %v1215, %v8819
        %8821 = vmatmul.bf16.gmra.mxu0 %v638
        %v8822 = vpop.f32.mrf.mxu0
        %v8823 = vadd.f32 %v1215, %v8822
        %v8824 = vpop.f32.mrf.mxu0
        %v8825 = vadd.f32 %v1215, %v8824
        %8826 = vmatmul.bf16.gmra.mxu0 %v646
        %v8827 = vpop.f32.mrf.mxu0
        %v8828 = vadd.f32 %v1215, %v8827
        %v8829 = vpop.f32.mrf.mxu0
        %v8830 = vadd.f32 %v1215, %v8829
        %8831 = vmatmul.bf16.gmra.mxu0 %v654
        %v8832 = vpop.f32.mrf.mxu0
        %v8833 = vadd.f32 %v1215, %v8832
        %v8834 = vpop.f32.mrf.mxu0
        %v8835 = vadd.f32 %v1215, %v8834
        %8836 = vmatmul.bf16.gmra.mxu0 %v662
        %v8837 = vpop.f32.mrf.mxu0
        %v8838 = vadd.f32 %v1215, %v8837
        %v8839 = vpop.f32.mrf.mxu0
        %v8840 = vadd.f32 %v1215, %v8839
        %8841 = vmatmul.bf16.gmra.mxu0 %v670
        %v8842 = vpop.f32.mrf.mxu0
        %v8843 = vadd.f32 %v1215, %v8842
        %v8844 = vpop.f32.mrf.mxu0
        %v8845 = vadd.f32 %v1215, %v8844
        %8846 = vmatmul.bf16.gmra.mxu0 %v678
        %v8847 = vpop.f32.mrf.mxu0
        %v8848 = vadd.f32 %v1215, %v8847
        %v8849 = vpop.f32.mrf.mxu0
        %v8850 = vadd.f32 %v1215, %v8849
        %8851 = vmatmul.bf16.gmra.mxu0 %v686
        %v8852 = vpop.f32.mrf.mxu0
        %v8853 = vadd.f32 %v1215, %v8852
        %v8854 = vpop.f32.mrf.mxu0
        %v8855 = vadd.f32 %v1215, %v8854
        %8856 = vdwg.mxu0
        %8857 = vmatpush.bf16.msra.mxu0 %v2887
        %8858 = vmatpush.bf16.msra.mxu0 %v2879
        %8859 = vmatpush.bf16.msra.mxu0 %v2871
        %8860 = vmatpush.bf16.msra.mxu0 %v2863
        %8861 = vmatpush.bf16.msra.mxu0 %v2855
        %8862 = vmatpush.bf16.msra.mxu0 %v2847
        %8863 = vmatpush.bf16.msra.mxu0 %v2839
        %8864 = vmatpush.bf16.msra.mxu0 %v2831
        %8865 = vmatmul.bf16.gmra.mxu0 %v567
        %v8866 = vpop.f32.mrf.mxu0
        %v8867 = vadd.f32 %v8778, %v8866
        %v8868 = vpop.f32.mrf.mxu0
        %v8869 = vadd.f32 %v8780, %v8868
        %8870 = vmatmul.bf16.gmra.mxu0 %v575
        %v8871 = vpop.f32.mrf.mxu0
        %v8872 = vadd.f32 %v8783, %v8871
        %v8873 = vpop.f32.mrf.mxu0
        %v8874 = vadd.f32 %v8785, %v8873
        %8875 = vmatmul.bf16.gmra.mxu0 %v583
        %v8876 = vpop.f32.mrf.mxu0
        %v8877 = vadd.f32 %v8788, %v8876
        %v8878 = vpop.f32.mrf.mxu0
        %v8879 = vadd.f32 %v8790, %v8878
        %8880 = vmatmul.bf16.gmra.mxu0 %v591
        %v8881 = vpop.f32.mrf.mxu0
        %v8882 = vadd.f32 %v8793, %v8881
        %v8883 = vpop.f32.mrf.mxu0
        %v8884 = vadd.f32 %v8795, %v8883
        %8885 = vmatmul.bf16.gmra.mxu0 %v599
        %v8886 = vpop.f32.mrf.mxu0
        %v8887 = vadd.f32 %v8798, %v8886
        %v8888 = vpop.f32.mrf.mxu0
        %v8889 = vadd.f32 %v8800, %v8888
        %8890 = vmatmul.bf16.gmra.mxu0 %v607
        %v8891 = vpop.f32.mrf.mxu0
        %v8892 = vadd.f32 %v8803, %v8891
        %v8893 = vpop.f32.mrf.mxu0
        %v8894 = vadd.f32 %v8805, %v8893
        %8895 = vmatmul.bf16.gmra.mxu0 %v615
        %v8896 = vpop.f32.mrf.mxu0
        %v8897 = vadd.f32 %v8808, %v8896
        %v8898 = vpop.f32.mrf.mxu0
        %v8899 = vadd.f32 %v8810, %v8898
        %8900 = vmatmul.bf16.gmra.mxu0 %v623
        %v8901 = vpop.f32.mrf.mxu0
        %v8902 = vadd.f32 %v8813, %v8901
        %v8903 = vpop.f32.mrf.mxu0
        %v8904 = vadd.f32 %v8815, %v8903
        %8905 = vmatmul.bf16.gmra.mxu0 %v631
        %v8906 = vpop.f32.mrf.mxu0
        %v8907 = vadd.f32 %v8818, %v8906
        %v8908 = vpop.f32.mrf.mxu0
        %v8909 = vadd.f32 %v8820, %v8908
        %8910 = vmatmul.bf16.gmra.mxu0 %v639
        %v8911 = vpop.f32.mrf.mxu0
        %v8912 = vadd.f32 %v8823, %v8911
        %v8913 = vpop.f32.mrf.mxu0
        %v8914 = vadd.f32 %v8825, %v8913
        %8915 = vmatmul.bf16.gmra.mxu0 %v647
        %v8916 = vpop.f32.mrf.mxu0
        %v8917 = vadd.f32 %v8828, %v8916
        %v8918 = vpop.f32.mrf.mxu0
        %v8919 = vadd.f32 %v8830, %v8918
        %8920 = vmatmul.bf16.gmra.mxu0 %v655
        %v8921 = vpop.f32.mrf.mxu0
        %v8922 = vadd.f32 %v8833, %v8921
        %v8923 = vpop.f32.mrf.mxu0
        %v8924 = vadd.f32 %v8835, %v8923
        %8925 = vmatmul.bf16.gmra.mxu0 %v663
        %v8926 = vpop.f32.mrf.mxu0
        %v8927 = vadd.f32 %v8838, %v8926
        %v8928 = vpop.f32.mrf.mxu0
        %v8929 = vadd.f32 %v8840, %v8928
        %8930 = vmatmul.bf16.gmra.mxu0 %v671
        %v8931 = vpop.f32.mrf.mxu0
        %v8932 = vadd.f32 %v8843, %v8931
        %v8933 = vpop.f32.mrf.mxu0
        %v8934 = vadd.f32 %v8845, %v8933
        %8935 = vmatmul.bf16.gmra.mxu0 %v679
        %v8936 = vpop.f32.mrf.mxu0
        %v8937 = vadd.f32 %v8848, %v8936
        %v8938 = vpop.f32.mrf.mxu0
        %v8939 = vadd.f32 %v8850, %v8938
        %8940 = vmatmul.bf16.gmra.mxu0 %v687
        %v8941 = vpop.f32.mrf.mxu0
        %v8942 = vadd.f32 %v8853, %v8941
        %v8943 = vpop.f32.mrf.mxu0
        %v8944 = vadd.f32 %v8855, %v8943
        %8945 = vdwg.mxu0
        %8946 = vmatpush.bf16.msra.mxu0 %v2951
        %8947 = vmatpush.bf16.msra.mxu0 %v2943
        %8948 = vmatpush.bf16.msra.mxu0 %v2935
        %8949 = vmatpush.bf16.msra.mxu0 %v2927
        %8950 = vmatpush.bf16.msra.mxu0 %v2919
        %8951 = vmatpush.bf16.msra.mxu0 %v2911
        %8952 = vmatpush.bf16.msra.mxu0 %v2903
        %8953 = vmatpush.bf16.msra.mxu0 %v2895
        %8954 = vmatmul.bf16.gmra.mxu0 %v568
        %v8955 = vpop.f32.mrf.mxu0
        %v8956 = vadd.f32 %v8867, %v8955
        %v8957 = vpop.f32.mrf.mxu0
        %v8958 = vadd.f32 %v8869, %v8957
        %8959 = vmatmul.bf16.gmra.mxu0 %v576
        %v8960 = vpop.f32.mrf.mxu0
        %v8961 = vadd.f32 %v8872, %v8960
        %v8962 = vpop.f32.mrf.mxu0
        %v8963 = vadd.f32 %v8874, %v8962
        %8964 = vmatmul.bf16.gmra.mxu0 %v584
        %v8965 = vpop.f32.mrf.mxu0
        %v8966 = vadd.f32 %v8877, %v8965
        %v8967 = vpop.f32.mrf.mxu0
        %v8968 = vadd.f32 %v8879, %v8967
        %8969 = vmatmul.bf16.gmra.mxu0 %v592
        %v8970 = vpop.f32.mrf.mxu0
        %v8971 = vadd.f32 %v8882, %v8970
        %v8972 = vpop.f32.mrf.mxu0
        %v8973 = vadd.f32 %v8884, %v8972
        %8974 = vmatmul.bf16.gmra.mxu0 %v600
        %v8975 = vpop.f32.mrf.mxu0
        %v8976 = vadd.f32 %v8887, %v8975
        %v8977 = vpop.f32.mrf.mxu0
        %v8978 = vadd.f32 %v8889, %v8977
        %8979 = vmatmul.bf16.gmra.mxu0 %v608
        %v8980 = vpop.f32.mrf.mxu0
        %v8981 = vadd.f32 %v8892, %v8980
        %v8982 = vpop.f32.mrf.mxu0
        %v8983 = vadd.f32 %v8894, %v8982
        %8984 = vmatmul.bf16.gmra.mxu0 %v616
        %v8985 = vpop.f32.mrf.mxu0
        %v8986 = vadd.f32 %v8897, %v8985
        %v8987 = vpop.f32.mrf.mxu0
        %v8988 = vadd.f32 %v8899, %v8987
        %8989 = vmatmul.bf16.gmra.mxu0 %v624
        %v8990 = vpop.f32.mrf.mxu0
        %v8991 = vadd.f32 %v8902, %v8990
        %v8992 = vpop.f32.mrf.mxu0
        %v8993 = vadd.f32 %v8904, %v8992
        %8994 = vmatmul.bf16.gmra.mxu0 %v632
        %v8995 = vpop.f32.mrf.mxu0
        %v8996 = vadd.f32 %v8907, %v8995
        %v8997 = vpop.f32.mrf.mxu0
        %v8998 = vadd.f32 %v8909, %v8997
        %8999 = vmatmul.bf16.gmra.mxu0 %v640
        %v9000 = vpop.f32.mrf.mxu0
        %v9001 = vadd.f32 %v8912, %v9000
        %v9002 = vpop.f32.mrf.mxu0
        %v9003 = vadd.f32 %v8914, %v9002
        %9004 = vmatmul.bf16.gmra.mxu0 %v648
        %v9005 = vpop.f32.mrf.mxu0
        %v9006 = vadd.f32 %v8917, %v9005
        %v9007 = vpop.f32.mrf.mxu0
        %v9008 = vadd.f32 %v8919, %v9007
        %9009 = vmatmul.bf16.gmra.mxu0 %v656
        %v9010 = vpop.f32.mrf.mxu0
        %v9011 = vadd.f32 %v8922, %v9010
        %v9012 = vpop.f32.mrf.mxu0
        %v9013 = vadd.f32 %v8924, %v9012
        %9014 = vmatmul.bf16.gmra.mxu0 %v664
        %v9015 = vpop.f32.mrf.mxu0
        %v9016 = vadd.f32 %v8927, %v9015
        %v9017 = vpop.f32.mrf.mxu0
        %v9018 = vadd.f32 %v8929, %v9017
        %9019 = vmatmul.bf16.gmra.mxu0 %v672
        %v9020 = vpop.f32.mrf.mxu0
        %v9021 = vadd.f32 %v8932, %v9020
        %v9022 = vpop.f32.mrf.mxu0
        %v9023 = vadd.f32 %v8934, %v9022
        %9024 = vmatmul.bf16.gmra.mxu0 %v680
        %v9025 = vpop.f32.mrf.mxu0
        %v9026 = vadd.f32 %v8937, %v9025
        %v9027 = vpop.f32.mrf.mxu0
        %v9028 = vadd.f32 %v8939, %v9027
        %9029 = vmatmul.bf16.gmra.mxu0 %v688
        %v9030 = vpop.f32.mrf.mxu0
        %v9031 = vadd.f32 %v8942, %v9030
        %v9032 = vpop.f32.mrf.mxu0
        %v9033 = vadd.f32 %v8944, %v9032
        %9034 = vdwg.mxu0
        %9035 = vmatpush.bf16.msra.mxu0 %v3015
        %9036 = vmatpush.bf16.msra.mxu0 %v3007
        %9037 = vmatpush.bf16.msra.mxu0 %v2999
        %9038 = vmatpush.bf16.msra.mxu0 %v2991
        %9039 = vmatpush.bf16.msra.mxu0 %v2983
        %9040 = vmatpush.bf16.msra.mxu0 %v2975
        %9041 = vmatpush.bf16.msra.mxu0 %v2967
        %9042 = vmatpush.bf16.msra.mxu0 %v2959
        %9043 = vmatmul.bf16.gmra.mxu0 %v569
        %v9044 = vpop.f32.mrf.mxu0
        %v9045 = vadd.f32 %v8956, %v9044
        %v9046 = vpop.f32.mrf.mxu0
        %v9047 = vadd.f32 %v8958, %v9046
        %9048 = vmatmul.bf16.gmra.mxu0 %v577
        %v9049 = vpop.f32.mrf.mxu0
        %v9050 = vadd.f32 %v8961, %v9049
        %v9051 = vpop.f32.mrf.mxu0
        %v9052 = vadd.f32 %v8963, %v9051
        %9053 = vmatmul.bf16.gmra.mxu0 %v585
        %v9054 = vpop.f32.mrf.mxu0
        %v9055 = vadd.f32 %v8966, %v9054
        %v9056 = vpop.f32.mrf.mxu0
        %v9057 = vadd.f32 %v8968, %v9056
        %9058 = vmatmul.bf16.gmra.mxu0 %v593
        %v9059 = vpop.f32.mrf.mxu0
        %v9060 = vadd.f32 %v8971, %v9059
        %v9061 = vpop.f32.mrf.mxu0
        %v9062 = vadd.f32 %v8973, %v9061
        %9063 = vmatmul.bf16.gmra.mxu0 %v601
        %v9064 = vpop.f32.mrf.mxu0
        %v9065 = vadd.f32 %v8976, %v9064
        %v9066 = vpop.f32.mrf.mxu0
        %v9067 = vadd.f32 %v8978, %v9066
        %9068 = vmatmul.bf16.gmra.mxu0 %v609
        %v9069 = vpop.f32.mrf.mxu0
        %v9070 = vadd.f32 %v8981, %v9069
        %v9071 = vpop.f32.mrf.mxu0
        %v9072 = vadd.f32 %v8983, %v9071
        %9073 = vmatmul.bf16.gmra.mxu0 %v617
        %v9074 = vpop.f32.mrf.mxu0
        %v9075 = vadd.f32 %v8986, %v9074
        %v9076 = vpop.f32.mrf.mxu0
        %v9077 = vadd.f32 %v8988, %v9076
        %9078 = vmatmul.bf16.gmra.mxu0 %v625
        %v9079 = vpop.f32.mrf.mxu0
        %v9080 = vadd.f32 %v8991, %v9079
        %v9081 = vpop.f32.mrf.mxu0
        %v9082 = vadd.f32 %v8993, %v9081
        %9083 = vmatmul.bf16.gmra.mxu0 %v633
        %v9084 = vpop.f32.mrf.mxu0
        %v9085 = vadd.f32 %v8996, %v9084
        %v9086 = vpop.f32.mrf.mxu0
        %v9087 = vadd.f32 %v8998, %v9086
        %9088 = vmatmul.bf16.gmra.mxu0 %v641
        %v9089 = vpop.f32.mrf.mxu0
        %v9090 = vadd.f32 %v9001, %v9089
        %v9091 = vpop.f32.mrf.mxu0
        %v9092 = vadd.f32 %v9003, %v9091
        %9093 = vmatmul.bf16.gmra.mxu0 %v649
        %v9094 = vpop.f32.mrf.mxu0
        %v9095 = vadd.f32 %v9006, %v9094
        %v9096 = vpop.f32.mrf.mxu0
        %v9097 = vadd.f32 %v9008, %v9096
        %9098 = vmatmul.bf16.gmra.mxu0 %v657
        %v9099 = vpop.f32.mrf.mxu0
        %v9100 = vadd.f32 %v9011, %v9099
        %v9101 = vpop.f32.mrf.mxu0
        %v9102 = vadd.f32 %v9013, %v9101
        %9103 = vmatmul.bf16.gmra.mxu0 %v665
        %v9104 = vpop.f32.mrf.mxu0
        %v9105 = vadd.f32 %v9016, %v9104
        %v9106 = vpop.f32.mrf.mxu0
        %v9107 = vadd.f32 %v9018, %v9106
        %9108 = vmatmul.bf16.gmra.mxu0 %v673
        %v9109 = vpop.f32.mrf.mxu0
        %v9110 = vadd.f32 %v9021, %v9109
        %v9111 = vpop.f32.mrf.mxu0
        %v9112 = vadd.f32 %v9023, %v9111
        %9113 = vmatmul.bf16.gmra.mxu0 %v681
        %v9114 = vpop.f32.mrf.mxu0
        %v9115 = vadd.f32 %v9026, %v9114
        %v9116 = vpop.f32.mrf.mxu0
        %v9117 = vadd.f32 %v9028, %v9116
        %9118 = vmatmul.bf16.gmra.mxu0 %v689
        %v9119 = vpop.f32.mrf.mxu0
        %v9120 = vadd.f32 %v9031, %v9119
        %v9121 = vpop.f32.mrf.mxu0
        %v9122 = vadd.f32 %v9033, %v9121
        %9123 = vdwg.mxu0
        %9124 = vmatpush.bf16.msra.mxu0 %v3079
        %9125 = vmatpush.bf16.msra.mxu0 %v3071
        %9126 = vmatpush.bf16.msra.mxu0 %v3063
        %9127 = vmatpush.bf16.msra.mxu0 %v3055
        %9128 = vmatpush.bf16.msra.mxu0 %v3047
        %9129 = vmatpush.bf16.msra.mxu0 %v3039
        %9130 = vmatpush.bf16.msra.mxu0 %v3031
        %9131 = vmatpush.bf16.msra.mxu0 %v3023
        %9132 = vmatmul.bf16.gmra.mxu0 %v570
        %v9133 = vpop.f32.mrf.mxu0
        %v9134 = vadd.f32 %v9045, %v9133
        %v9135 = vpop.f32.mrf.mxu0
        %v9136 = vadd.f32 %v9047, %v9135
        %9137 = vmatmul.bf16.gmra.mxu0 %v578
        %v9138 = vpop.f32.mrf.mxu0
        %v9139 = vadd.f32 %v9050, %v9138
        %v9140 = vpop.f32.mrf.mxu0
        %v9141 = vadd.f32 %v9052, %v9140
        %9142 = vmatmul.bf16.gmra.mxu0 %v586
        %v9143 = vpop.f32.mrf.mxu0
        %v9144 = vadd.f32 %v9055, %v9143
        %v9145 = vpop.f32.mrf.mxu0
        %v9146 = vadd.f32 %v9057, %v9145
        %9147 = vmatmul.bf16.gmra.mxu0 %v594
        %v9148 = vpop.f32.mrf.mxu0
        %v9149 = vadd.f32 %v9060, %v9148
        %v9150 = vpop.f32.mrf.mxu0
        %v9151 = vadd.f32 %v9062, %v9150
        %9152 = vmatmul.bf16.gmra.mxu0 %v602
        %v9153 = vpop.f32.mrf.mxu0
        %v9154 = vadd.f32 %v9065, %v9153
        %v9155 = vpop.f32.mrf.mxu0
        %v9156 = vadd.f32 %v9067, %v9155
        %9157 = vmatmul.bf16.gmra.mxu0 %v610
        %v9158 = vpop.f32.mrf.mxu0
        %v9159 = vadd.f32 %v9070, %v9158
        %v9160 = vpop.f32.mrf.mxu0
        %v9161 = vadd.f32 %v9072, %v9160
        %9162 = vmatmul.bf16.gmra.mxu0 %v618
        %v9163 = vpop.f32.mrf.mxu0
        %v9164 = vadd.f32 %v9075, %v9163
        %v9165 = vpop.f32.mrf.mxu0
        %v9166 = vadd.f32 %v9077, %v9165
        %9167 = vmatmul.bf16.gmra.mxu0 %v626
        %v9168 = vpop.f32.mrf.mxu0
        %v9169 = vadd.f32 %v9080, %v9168
        %v9170 = vpop.f32.mrf.mxu0
        %v9171 = vadd.f32 %v9082, %v9170
        %9172 = vmatmul.bf16.gmra.mxu0 %v634
        %v9173 = vpop.f32.mrf.mxu0
        %v9174 = vadd.f32 %v9085, %v9173
        %v9175 = vpop.f32.mrf.mxu0
        %v9176 = vadd.f32 %v9087, %v9175
        %9177 = vmatmul.bf16.gmra.mxu0 %v642
        %v9178 = vpop.f32.mrf.mxu0
        %v9179 = vadd.f32 %v9090, %v9178
        %v9180 = vpop.f32.mrf.mxu0
        %v9181 = vadd.f32 %v9092, %v9180
        %9182 = vmatmul.bf16.gmra.mxu0 %v650
        %v9183 = vpop.f32.mrf.mxu0
        %v9184 = vadd.f32 %v9095, %v9183
        %v9185 = vpop.f32.mrf.mxu0
        %v9186 = vadd.f32 %v9097, %v9185
        %9187 = vmatmul.bf16.gmra.mxu0 %v658
        %v9188 = vpop.f32.mrf.mxu0
        %v9189 = vadd.f32 %v9100, %v9188
        %v9190 = vpop.f32.mrf.mxu0
        %v9191 = vadd.f32 %v9102, %v9190
        %9192 = vmatmul.bf16.gmra.mxu0 %v666
        %v9193 = vpop.f32.mrf.mxu0
        %v9194 = vadd.f32 %v9105, %v9193
        %v9195 = vpop.f32.mrf.mxu0
        %v9196 = vadd.f32 %v9107, %v9195
        %9197 = vmatmul.bf16.gmra.mxu0 %v674
        %v9198 = vpop.f32.mrf.mxu0
        %v9199 = vadd.f32 %v9110, %v9198
        %v9200 = vpop.f32.mrf.mxu0
        %v9201 = vadd.f32 %v9112, %v9200
        %9202 = vmatmul.bf16.gmra.mxu0 %v682
        %v9203 = vpop.f32.mrf.mxu0
        %v9204 = vadd.f32 %v9115, %v9203
        %v9205 = vpop.f32.mrf.mxu0
        %v9206 = vadd.f32 %v9117, %v9205
        %9207 = vmatmul.bf16.gmra.mxu0 %v690
        %v9208 = vpop.f32.mrf.mxu0
        %v9209 = vadd.f32 %v9120, %v9208
        %v9210 = vpop.f32.mrf.mxu0
        %v9211 = vadd.f32 %v9122, %v9210
        %9212 = vdwg.mxu0
        %9213 = vmatpush.bf16.msra.mxu0 %v3143
        %9214 = vmatpush.bf16.msra.mxu0 %v3135
        %9215 = vmatpush.bf16.msra.mxu0 %v3127
        %9216 = vmatpush.bf16.msra.mxu0 %v3119
        %9217 = vmatpush.bf16.msra.mxu0 %v3111
        %9218 = vmatpush.bf16.msra.mxu0 %v3103
        %9219 = vmatpush.bf16.msra.mxu0 %v3095
        %9220 = vmatpush.bf16.msra.mxu0 %v3087
        %9221 = vmatmul.bf16.gmra.mxu0 %v571
        %v9222 = vpop.f32.mrf.mxu0
        %v9223 = vadd.f32 %v9134, %v9222
        %v9224 = vpop.f32.mrf.mxu0
        %v9225 = vadd.f32 %v9136, %v9224
        %9226 = vmatmul.bf16.gmra.mxu0 %v579
        %v9227 = vpop.f32.mrf.mxu0
        %v9228 = vadd.f32 %v9139, %v9227
        %v9229 = vpop.f32.mrf.mxu0
        %v9230 = vadd.f32 %v9141, %v9229
        %9231 = vmatmul.bf16.gmra.mxu0 %v587
        %v9232 = vpop.f32.mrf.mxu0
        %v9233 = vadd.f32 %v9144, %v9232
        %v9234 = vpop.f32.mrf.mxu0
        %v9235 = vadd.f32 %v9146, %v9234
        %9236 = vmatmul.bf16.gmra.mxu0 %v595
        %v9237 = vpop.f32.mrf.mxu0
        %v9238 = vadd.f32 %v9149, %v9237
        %v9239 = vpop.f32.mrf.mxu0
        %v9240 = vadd.f32 %v9151, %v9239
        %9241 = vmatmul.bf16.gmra.mxu0 %v603
        %v9242 = vpop.f32.mrf.mxu0
        %v9243 = vadd.f32 %v9154, %v9242
        %v9244 = vpop.f32.mrf.mxu0
        %v9245 = vadd.f32 %v9156, %v9244
        %9246 = vmatmul.bf16.gmra.mxu0 %v611
        %v9247 = vpop.f32.mrf.mxu0
        %v9248 = vadd.f32 %v9159, %v9247
        %v9249 = vpop.f32.mrf.mxu0
        %v9250 = vadd.f32 %v9161, %v9249
        %9251 = vmatmul.bf16.gmra.mxu0 %v619
        %v9252 = vpop.f32.mrf.mxu0
        %v9253 = vadd.f32 %v9164, %v9252
        %v9254 = vpop.f32.mrf.mxu0
        %v9255 = vadd.f32 %v9166, %v9254
        %9256 = vmatmul.bf16.gmra.mxu0 %v627
        %v9257 = vpop.f32.mrf.mxu0
        %v9258 = vadd.f32 %v9169, %v9257
        %v9259 = vpop.f32.mrf.mxu0
        %v9260 = vadd.f32 %v9171, %v9259
        %9261 = vmatmul.bf16.gmra.mxu0 %v635
        %v9262 = vpop.f32.mrf.mxu0
        %v9263 = vadd.f32 %v9174, %v9262
        %v9264 = vpop.f32.mrf.mxu0
        %v9265 = vadd.f32 %v9176, %v9264
        %9266 = vmatmul.bf16.gmra.mxu0 %v643
        %v9267 = vpop.f32.mrf.mxu0
        %v9268 = vadd.f32 %v9179, %v9267
        %v9269 = vpop.f32.mrf.mxu0
        %v9270 = vadd.f32 %v9181, %v9269
        %9271 = vmatmul.bf16.gmra.mxu0 %v651
        %v9272 = vpop.f32.mrf.mxu0
        %v9273 = vadd.f32 %v9184, %v9272
        %v9274 = vpop.f32.mrf.mxu0
        %v9275 = vadd.f32 %v9186, %v9274
        %9276 = vmatmul.bf16.gmra.mxu0 %v659
        %v9277 = vpop.f32.mrf.mxu0
        %v9278 = vadd.f32 %v9189, %v9277
        %v9279 = vpop.f32.mrf.mxu0
        %v9280 = vadd.f32 %v9191, %v9279
        %9281 = vmatmul.bf16.gmra.mxu0 %v667
        %v9282 = vpop.f32.mrf.mxu0
        %v9283 = vadd.f32 %v9194, %v9282
        %v9284 = vpop.f32.mrf.mxu0
        %v9285 = vadd.f32 %v9196, %v9284
        %9286 = vmatmul.bf16.gmra.mxu0 %v675
        %v9287 = vpop.f32.mrf.mxu0
        %v9288 = vadd.f32 %v9199, %v9287
        %v9289 = vpop.f32.mrf.mxu0
        %v9290 = vadd.f32 %v9201, %v9289
        %9291 = vmatmul.bf16.gmra.mxu0 %v683
        %v9292 = vpop.f32.mrf.mxu0
        %v9293 = vadd.f32 %v9204, %v9292
        %v9294 = vpop.f32.mrf.mxu0
        %v9295 = vadd.f32 %v9206, %v9294
        %9296 = vmatmul.bf16.gmra.mxu0 %v691
        %v9297 = vpop.f32.mrf.mxu0
        %v9298 = vadd.f32 %v9209, %v9297
        %v9299 = vpop.f32.mrf.mxu0
        %v9300 = vadd.f32 %v9211, %v9299
        %9301 = vdwg.mxu0
        %9302 = vmatpush.bf16.msra.mxu0 %v3207
        %9303 = vmatpush.bf16.msra.mxu0 %v3199
        %9304 = vmatpush.bf16.msra.mxu0 %v3191
        %9305 = vmatpush.bf16.msra.mxu0 %v3183
        %9306 = vmatpush.bf16.msra.mxu0 %v3175
        %9307 = vmatpush.bf16.msra.mxu0 %v3167
        %9308 = vmatpush.bf16.msra.mxu0 %v3159
        %9309 = vmatpush.bf16.msra.mxu0 %v3151
        %9310 = vmatmul.bf16.gmra.mxu0 %v572
        %v9311 = vpop.f32.mrf.mxu0
        %v9312 = vadd.f32 %v9223, %v9311
        %v9313 = vpop.f32.mrf.mxu0
        %v9314 = vadd.f32 %v9225, %v9313
        %9315 = vmatmul.bf16.gmra.mxu0 %v580
        %v9316 = vpop.f32.mrf.mxu0
        %v9317 = vadd.f32 %v9228, %v9316
        %v9318 = vpop.f32.mrf.mxu0
        %v9319 = vadd.f32 %v9230, %v9318
        %9320 = vmatmul.bf16.gmra.mxu0 %v588
        %v9321 = vpop.f32.mrf.mxu0
        %v9322 = vadd.f32 %v9233, %v9321
        %v9323 = vpop.f32.mrf.mxu0
        %v9324 = vadd.f32 %v9235, %v9323
        %9325 = vmatmul.bf16.gmra.mxu0 %v596
        %v9326 = vpop.f32.mrf.mxu0
        %v9327 = vadd.f32 %v9238, %v9326
        %v9328 = vpop.f32.mrf.mxu0
        %v9329 = vadd.f32 %v9240, %v9328
        %9330 = vmatmul.bf16.gmra.mxu0 %v604
        %v9331 = vpop.f32.mrf.mxu0
        %v9332 = vadd.f32 %v9243, %v9331
        %v9333 = vpop.f32.mrf.mxu0
        %v9334 = vadd.f32 %v9245, %v9333
        %9335 = vmatmul.bf16.gmra.mxu0 %v612
        %v9336 = vpop.f32.mrf.mxu0
        %v9337 = vadd.f32 %v9248, %v9336
        %v9338 = vpop.f32.mrf.mxu0
        %v9339 = vadd.f32 %v9250, %v9338
        %9340 = vmatmul.bf16.gmra.mxu0 %v620
        %v9341 = vpop.f32.mrf.mxu0
        %v9342 = vadd.f32 %v9253, %v9341
        %v9343 = vpop.f32.mrf.mxu0
        %v9344 = vadd.f32 %v9255, %v9343
        %9345 = vmatmul.bf16.gmra.mxu0 %v628
        %v9346 = vpop.f32.mrf.mxu0
        %v9347 = vadd.f32 %v9258, %v9346
        %v9348 = vpop.f32.mrf.mxu0
        %v9349 = vadd.f32 %v9260, %v9348
        %9350 = vmatmul.bf16.gmra.mxu0 %v636
        %v9351 = vpop.f32.mrf.mxu0
        %v9352 = vadd.f32 %v9263, %v9351
        %v9353 = vpop.f32.mrf.mxu0
        %v9354 = vadd.f32 %v9265, %v9353
        %9355 = vmatmul.bf16.gmra.mxu0 %v644
        %v9356 = vpop.f32.mrf.mxu0
        %v9357 = vadd.f32 %v9268, %v9356
        %v9358 = vpop.f32.mrf.mxu0
        %v9359 = vadd.f32 %v9270, %v9358
        %9360 = vmatmul.bf16.gmra.mxu0 %v652
        %v9361 = vpop.f32.mrf.mxu0
        %v9362 = vadd.f32 %v9273, %v9361
        %v9363 = vpop.f32.mrf.mxu0
        %v9364 = vadd.f32 %v9275, %v9363
        %9365 = vmatmul.bf16.gmra.mxu0 %v660
        %v9366 = vpop.f32.mrf.mxu0
        %v9367 = vadd.f32 %v9278, %v9366
        %v9368 = vpop.f32.mrf.mxu0
        %v9369 = vadd.f32 %v9280, %v9368
        %9370 = vmatmul.bf16.gmra.mxu0 %v668
        %v9371 = vpop.f32.mrf.mxu0
        %v9372 = vadd.f32 %v9283, %v9371
        %v9373 = vpop.f32.mrf.mxu0
        %v9374 = vadd.f32 %v9285, %v9373
        %9375 = vmatmul.bf16.gmra.mxu0 %v676
        %v9376 = vpop.f32.mrf.mxu0
        %v9377 = vadd.f32 %v9288, %v9376
        %v9378 = vpop.f32.mrf.mxu0
        %v9379 = vadd.f32 %v9290, %v9378
        %9380 = vmatmul.bf16.gmra.mxu0 %v684
        %v9381 = vpop.f32.mrf.mxu0
        %v9382 = vadd.f32 %v9293, %v9381
        %v9383 = vpop.f32.mrf.mxu0
        %v9384 = vadd.f32 %v9295, %v9383
        %9385 = vmatmul.bf16.gmra.mxu0 %v692
        %v9386 = vpop.f32.mrf.mxu0
        %v9387 = vadd.f32 %v9298, %v9386
        %v9388 = vpop.f32.mrf.mxu0
        %v9389 = vadd.f32 %v9300, %v9388
        %9390 = vdwg.mxu0
        %9391 = vmatpush.bf16.msra.mxu0 %v3271
        %9392 = vmatpush.bf16.msra.mxu0 %v3263
        %9393 = vmatpush.bf16.msra.mxu0 %v3255
        %9394 = vmatpush.bf16.msra.mxu0 %v3247
        %9395 = vmatpush.bf16.msra.mxu0 %v3239
        %9396 = vmatpush.bf16.msra.mxu0 %v3231
        %9397 = vmatpush.bf16.msra.mxu0 %v3223
        %9398 = vmatpush.bf16.msra.mxu0 %v3215
        %9399 = vmatmul.bf16.gmra.mxu0 %v573
        %v9400 = vpop.f32.mrf.mxu0
        %v9401 = vadd.f32 %v9312, %v9400
        %v9402 = vpop.f32.mrf.mxu0
        %v9403 = vadd.f32 %v9314, %v9402
        %9404 = vmatmul.bf16.gmra.mxu0 %v581
        %v9405 = vpop.f32.mrf.mxu0
        %v9406 = vadd.f32 %v9317, %v9405
        %v9407 = vpop.f32.mrf.mxu0
        %v9408 = vadd.f32 %v9319, %v9407
        %9409 = vmatmul.bf16.gmra.mxu0 %v589
        %v9410 = vpop.f32.mrf.mxu0
        %v9411 = vadd.f32 %v9322, %v9410
        %v9412 = vpop.f32.mrf.mxu0
        %v9413 = vadd.f32 %v9324, %v9412
        %9414 = vmatmul.bf16.gmra.mxu0 %v597
        %v9415 = vpop.f32.mrf.mxu0
        %v9416 = vadd.f32 %v9327, %v9415
        %v9417 = vpop.f32.mrf.mxu0
        %v9418 = vadd.f32 %v9329, %v9417
        %9419 = vmatmul.bf16.gmra.mxu0 %v605
        %v9420 = vpop.f32.mrf.mxu0
        %v9421 = vadd.f32 %v9332, %v9420
        %v9422 = vpop.f32.mrf.mxu0
        %v9423 = vadd.f32 %v9334, %v9422
        %9424 = vmatmul.bf16.gmra.mxu0 %v613
        %v9425 = vpop.f32.mrf.mxu0
        %v9426 = vadd.f32 %v9337, %v9425
        %v9427 = vpop.f32.mrf.mxu0
        %v9428 = vadd.f32 %v9339, %v9427
        %9429 = vmatmul.bf16.gmra.mxu0 %v621
        %v9430 = vpop.f32.mrf.mxu0
        %v9431 = vadd.f32 %v9342, %v9430
        %v9432 = vpop.f32.mrf.mxu0
        %v9433 = vadd.f32 %v9344, %v9432
        %9434 = vmatmul.bf16.gmra.mxu0 %v629
        %v9435 = vpop.f32.mrf.mxu0
        %v9436 = vadd.f32 %v9347, %v9435
        %v9437 = vpop.f32.mrf.mxu0
        %v9438 = vadd.f32 %v9349, %v9437
        %9439 = vmatmul.bf16.gmra.mxu0 %v637
        %v9440 = vpop.f32.mrf.mxu0
        %v9441 = vadd.f32 %v9352, %v9440
        %v9442 = vpop.f32.mrf.mxu0
        %v9443 = vadd.f32 %v9354, %v9442
        %9444 = vmatmul.bf16.gmra.mxu0 %v645
        %v9445 = vpop.f32.mrf.mxu0
        %v9446 = vadd.f32 %v9357, %v9445
        %v9447 = vpop.f32.mrf.mxu0
        %v9448 = vadd.f32 %v9359, %v9447
        %9449 = vmatmul.bf16.gmra.mxu0 %v653
        %v9450 = vpop.f32.mrf.mxu0
        %v9451 = vadd.f32 %v9362, %v9450
        %v9452 = vpop.f32.mrf.mxu0
        %v9453 = vadd.f32 %v9364, %v9452
        %9454 = vmatmul.bf16.gmra.mxu0 %v661
        %v9455 = vpop.f32.mrf.mxu0
        %v9456 = vadd.f32 %v9367, %v9455
        %v9457 = vpop.f32.mrf.mxu0
        %v9458 = vadd.f32 %v9369, %v9457
        %9459 = vmatmul.bf16.gmra.mxu0 %v669
        %v9460 = vpop.f32.mrf.mxu0
        %v9461 = vadd.f32 %v9372, %v9460
        %v9462 = vpop.f32.mrf.mxu0
        %v9463 = vadd.f32 %v9374, %v9462
        %9464 = vmatmul.bf16.gmra.mxu0 %v677
        %v9465 = vpop.f32.mrf.mxu0
        %v9466 = vadd.f32 %v9377, %v9465
        %v9467 = vpop.f32.mrf.mxu0
        %v9468 = vadd.f32 %v9379, %v9467
        %9469 = vmatmul.bf16.gmra.mxu0 %v685
        %v9470 = vpop.f32.mrf.mxu0
        %v9471 = vadd.f32 %v9382, %v9470
        %v9472 = vpop.f32.mrf.mxu0
        %v9473 = vadd.f32 %v9384, %v9472
        %9474 = vmatmul.bf16.gmra.mxu0 %v693
        %v9475 = vpop.f32.mrf.mxu0
        %v9476 = vadd.f32 %v9387, %v9475
        %v9477 = vpop.f32.mrf.mxu0
        %v9478 = vadd.f32 %v9389, %v9477
        %9479 = vdwg.mxu0
        %v9480 = vmax.f32 %v4417, 0.0
        %v9481 = vmax.f32 %v5129, 0.0
        %v9482 = vmax.f32 %v5841, 0.0
        %v9483 = vmax.f32 %v6553, 0.0
        %v9484 = vmax.f32 %v7265, 0.0
        %v9485 = vmax.f32 %v7977, 0.0
        %v9486 = vmax.f32 %v8689, 0.0
        %v9487 = vmax.f32 %v9401, 0.0
        %v9488 = vmax.f32 %v4419, 0.0
        %v9489 = vmax.f32 %v5131, 0.0
        %v9490 = vmax.f32 %v5843, 0.0
        %v9491 = vmax.f32 %v6555, 0.0
        %v9492 = vmax.f32 %v7267, 0.0
        %v9493 = vmax.f32 %v7979, 0.0
        %v9494 = vmax.f32 %v8691, 0.0
        %v9495 = vmax.f32 %v9403, 0.0
        %v9496 = vmax.f32 %v4422, 0.0
        %v9497 = vmax.f32 %v5134, 0.0
        %v9498 = vmax.f32 %v5846, 0.0
        %v9499 = vmax.f32 %v6558, 0.0
        %v9500 = vmax.f32 %v7270, 0.0
        %v9501 = vmax.f32 %v7982, 0.0
        %v9502 = vmax.f32 %v8694, 0.0
        %v9503 = vmax.f32 %v9406, 0.0
        %v9504 = vmax.f32 %v4424, 0.0
        %v9505 = vmax.f32 %v5136, 0.0
        %v9506 = vmax.f32 %v5848, 0.0
        %v9507 = vmax.f32 %v6560, 0.0
        %v9508 = vmax.f32 %v7272, 0.0
        %v9509 = vmax.f32 %v7984, 0.0
        %v9510 = vmax.f32 %v8696, 0.0
        %v9511 = vmax.f32 %v9408, 0.0
        %v9512 = vmax.f32 %v4427, 0.0
        %v9513 = vmax.f32 %v5139, 0.0
        %v9514 = vmax.f32 %v5851, 0.0
        %v9515 = vmax.f32 %v6563, 0.0
        %v9516 = vmax.f32 %v7275, 0.0
        %v9517 = vmax.f32 %v7987, 0.0
        %v9518 = vmax.f32 %v8699, 0.0
        %v9519 = vmax.f32 %v9411, 0.0
        %v9520 = vmax.f32 %v4429, 0.0
        %v9521 = vmax.f32 %v5141, 0.0
        %v9522 = vmax.f32 %v5853, 0.0
        %v9523 = vmax.f32 %v6565, 0.0
        %v9524 = vmax.f32 %v7277, 0.0
        %v9525 = vmax.f32 %v7989, 0.0
        %v9526 = vmax.f32 %v8701, 0.0
        %v9527 = vmax.f32 %v9413, 0.0
        %v9528 = vmax.f32 %v4432, 0.0
        %v9529 = vmax.f32 %v5144, 0.0
        %v9530 = vmax.f32 %v5856, 0.0
        %v9531 = vmax.f32 %v6568, 0.0
        %v9532 = vmax.f32 %v7280, 0.0
        %v9533 = vmax.f32 %v7992, 0.0
        %v9534 = vmax.f32 %v8704, 0.0
        %v9535 = vmax.f32 %v9416, 0.0
        %v9536 = vmax.f32 %v4434, 0.0
        %v9537 = vmax.f32 %v5146, 0.0
        %v9538 = vmax.f32 %v5858, 0.0
        %v9539 = vmax.f32 %v6570, 0.0
        %v9540 = vmax.f32 %v7282, 0.0
        %v9541 = vmax.f32 %v7994, 0.0
        %v9542 = vmax.f32 %v8706, 0.0
        %v9543 = vmax.f32 %v9418, 0.0
        %v9544 = vmax.f32 %v4437, 0.0
        %v9545 = vmax.f32 %v5149, 0.0
        %v9546 = vmax.f32 %v5861, 0.0
        %v9547 = vmax.f32 %v6573, 0.0
        %v9548 = vmax.f32 %v7285, 0.0
        %v9549 = vmax.f32 %v7997, 0.0
        %v9550 = vmax.f32 %v8709, 0.0
        %v9551 = vmax.f32 %v9421, 0.0
        %v9552 = vmax.f32 %v4439, 0.0
        %v9553 = vmax.f32 %v5151, 0.0
        %v9554 = vmax.f32 %v5863, 0.0
        %v9555 = vmax.f32 %v6575, 0.0
        %v9556 = vmax.f32 %v7287, 0.0
        %v9557 = vmax.f32 %v7999, 0.0
        %v9558 = vmax.f32 %v8711, 0.0
        %v9559 = vmax.f32 %v9423, 0.0
        %v9560 = vmax.f32 %v4442, 0.0
        %v9561 = vmax.f32 %v5154, 0.0
        %v9562 = vmax.f32 %v5866, 0.0
        %v9563 = vmax.f32 %v6578, 0.0
        %v9564 = vmax.f32 %v7290, 0.0
        %v9565 = vmax.f32 %v8002, 0.0
        %v9566 = vmax.f32 %v8714, 0.0
        %v9567 = vmax.f32 %v9426, 0.0
        %v9568 = vmax.f32 %v4444, 0.0
        %v9569 = vmax.f32 %v5156, 0.0
        %v9570 = vmax.f32 %v5868, 0.0
        %v9571 = vmax.f32 %v6580, 0.0
        %v9572 = vmax.f32 %v7292, 0.0
        %v9573 = vmax.f32 %v8004, 0.0
        %v9574 = vmax.f32 %v8716, 0.0
        %v9575 = vmax.f32 %v9428, 0.0
        %v9576 = vmax.f32 %v4447, 0.0
        %v9577 = vmax.f32 %v5159, 0.0
        %v9578 = vmax.f32 %v5871, 0.0
        %v9579 = vmax.f32 %v6583, 0.0
        %v9580 = vmax.f32 %v7295, 0.0
        %v9581 = vmax.f32 %v8007, 0.0
        %v9582 = vmax.f32 %v8719, 0.0
        %v9583 = vmax.f32 %v9431, 0.0
        %v9584 = vmax.f32 %v4449, 0.0
        %v9585 = vmax.f32 %v5161, 0.0
        %v9586 = vmax.f32 %v5873, 0.0
        %v9587 = vmax.f32 %v6585, 0.0
        %v9588 = vmax.f32 %v7297, 0.0
        %v9589 = vmax.f32 %v8009, 0.0
        %v9590 = vmax.f32 %v8721, 0.0
        %v9591 = vmax.f32 %v9433, 0.0
        %v9592 = vmax.f32 %v4452, 0.0
        %v9593 = vmax.f32 %v5164, 0.0
        %v9594 = vmax.f32 %v5876, 0.0
        %v9595 = vmax.f32 %v6588, 0.0
        %v9596 = vmax.f32 %v7300, 0.0
        %v9597 = vmax.f32 %v8012, 0.0
        %v9598 = vmax.f32 %v8724, 0.0
        %v9599 = vmax.f32 %v9436, 0.0
        %v9600 = vmax.f32 %v4454, 0.0
        %v9601 = vmax.f32 %v5166, 0.0
        %v9602 = vmax.f32 %v5878, 0.0
        %v9603 = vmax.f32 %v6590, 0.0
        %v9604 = vmax.f32 %v7302, 0.0
        %v9605 = vmax.f32 %v8014, 0.0
        %v9606 = vmax.f32 %v8726, 0.0
        %v9607 = vmax.f32 %v9438, 0.0
        %v9608 = vmax.f32 %v4457, 0.0
        %v9609 = vmax.f32 %v5169, 0.0
        %v9610 = vmax.f32 %v5881, 0.0
        %v9611 = vmax.f32 %v6593, 0.0
        %v9612 = vmax.f32 %v7305, 0.0
        %v9613 = vmax.f32 %v8017, 0.0
        %v9614 = vmax.f32 %v8729, 0.0
        %v9615 = vmax.f32 %v9441, 0.0
        %v9616 = vmax.f32 %v4459, 0.0
        %v9617 = vmax.f32 %v5171, 0.0
        %v9618 = vmax.f32 %v5883, 0.0
        %v9619 = vmax.f32 %v6595, 0.0
        %v9620 = vmax.f32 %v7307, 0.0
        %v9621 = vmax.f32 %v8019, 0.0
        %v9622 = vmax.f32 %v8731, 0.0
        %v9623 = vmax.f32 %v9443, 0.0
        %v9624 = vmax.f32 %v4462, 0.0
        %v9625 = vmax.f32 %v5174, 0.0
        %v9626 = vmax.f32 %v5886, 0.0
        %v9627 = vmax.f32 %v6598, 0.0
        %v9628 = vmax.f32 %v7310, 0.0
        %v9629 = vmax.f32 %v8022, 0.0
        %v9630 = vmax.f32 %v8734, 0.0
        %v9631 = vmax.f32 %v9446, 0.0
        %v9632 = vmax.f32 %v4464, 0.0
        %v9633 = vmax.f32 %v5176, 0.0
        %v9634 = vmax.f32 %v5888, 0.0
        %v9635 = vmax.f32 %v6600, 0.0
        %v9636 = vmax.f32 %v7312, 0.0
        %v9637 = vmax.f32 %v8024, 0.0
        %v9638 = vmax.f32 %v8736, 0.0
        %v9639 = vmax.f32 %v9448, 0.0
        %v9640 = vmax.f32 %v4467, 0.0
        %v9641 = vmax.f32 %v5179, 0.0
        %v9642 = vmax.f32 %v5891, 0.0
        %v9643 = vmax.f32 %v6603, 0.0
        %v9644 = vmax.f32 %v7315, 0.0
        %v9645 = vmax.f32 %v8027, 0.0
        %v9646 = vmax.f32 %v8739, 0.0
        %v9647 = vmax.f32 %v9451, 0.0
        %v9648 = vmax.f32 %v4469, 0.0
        %v9649 = vmax.f32 %v5181, 0.0
        %v9650 = vmax.f32 %v5893, 0.0
        %v9651 = vmax.f32 %v6605, 0.0
        %v9652 = vmax.f32 %v7317, 0.0
        %v9653 = vmax.f32 %v8029, 0.0
        %v9654 = vmax.f32 %v8741, 0.0
        %v9655 = vmax.f32 %v9453, 0.0
        %v9656 = vmax.f32 %v4472, 0.0
        %v9657 = vmax.f32 %v5184, 0.0
        %v9658 = vmax.f32 %v5896, 0.0
        %v9659 = vmax.f32 %v6608, 0.0
        %v9660 = vmax.f32 %v7320, 0.0
        %v9661 = vmax.f32 %v8032, 0.0
        %v9662 = vmax.f32 %v8744, 0.0
        %v9663 = vmax.f32 %v9456, 0.0
        %v9664 = vmax.f32 %v4474, 0.0
        %v9665 = vmax.f32 %v5186, 0.0
        %v9666 = vmax.f32 %v5898, 0.0
        %v9667 = vmax.f32 %v6610, 0.0
        %v9668 = vmax.f32 %v7322, 0.0
        %v9669 = vmax.f32 %v8034, 0.0
        %v9670 = vmax.f32 %v8746, 0.0
        %v9671 = vmax.f32 %v9458, 0.0
        %v9672 = vmax.f32 %v4477, 0.0
        %v9673 = vmax.f32 %v5189, 0.0
        %v9674 = vmax.f32 %v5901, 0.0
        %v9675 = vmax.f32 %v6613, 0.0
        %v9676 = vmax.f32 %v7325, 0.0
        %v9677 = vmax.f32 %v8037, 0.0
        %v9678 = vmax.f32 %v8749, 0.0
        %v9679 = vmax.f32 %v9461, 0.0
        %v9680 = vmax.f32 %v4479, 0.0
        %v9681 = vmax.f32 %v5191, 0.0
        %v9682 = vmax.f32 %v5903, 0.0
        %v9683 = vmax.f32 %v6615, 0.0
        %v9684 = vmax.f32 %v7327, 0.0
        %v9685 = vmax.f32 %v8039, 0.0
        %v9686 = vmax.f32 %v8751, 0.0
        %v9687 = vmax.f32 %v9463, 0.0
        %v9688 = vmax.f32 %v4482, 0.0
        %v9689 = vmax.f32 %v5194, 0.0
        %v9690 = vmax.f32 %v5906, 0.0
        %v9691 = vmax.f32 %v6618, 0.0
        %v9692 = vmax.f32 %v7330, 0.0
        %v9693 = vmax.f32 %v8042, 0.0
        %v9694 = vmax.f32 %v8754, 0.0
        %v9695 = vmax.f32 %v9466, 0.0
        %v9696 = vmax.f32 %v4484, 0.0
        %v9697 = vmax.f32 %v5196, 0.0
        %v9698 = vmax.f32 %v5908, 0.0
        %v9699 = vmax.f32 %v6620, 0.0
        %v9700 = vmax.f32 %v7332, 0.0
        %v9701 = vmax.f32 %v8044, 0.0
        %v9702 = vmax.f32 %v8756, 0.0
        %v9703 = vmax.f32 %v9468, 0.0
        %v9704 = vmax.f32 %v4487, 0.0
        %v9705 = vmax.f32 %v5199, 0.0
        %v9706 = vmax.f32 %v5911, 0.0
        %v9707 = vmax.f32 %v6623, 0.0
        %v9708 = vmax.f32 %v7335, 0.0
        %v9709 = vmax.f32 %v8047, 0.0
        %v9710 = vmax.f32 %v8759, 0.0
        %v9711 = vmax.f32 %v9471, 0.0
        %v9712 = vmax.f32 %v4489, 0.0
        %v9713 = vmax.f32 %v5201, 0.0
        %v9714 = vmax.f32 %v5913, 0.0
        %v9715 = vmax.f32 %v6625, 0.0
        %v9716 = vmax.f32 %v7337, 0.0
        %v9717 = vmax.f32 %v8049, 0.0
        %v9718 = vmax.f32 %v8761, 0.0
        %v9719 = vmax.f32 %v9473, 0.0
        %v9720 = vmax.f32 %v4492, 0.0
        %v9721 = vmax.f32 %v5204, 0.0
        %v9722 = vmax.f32 %v5916, 0.0
        %v9723 = vmax.f32 %v6628, 0.0
        %v9724 = vmax.f32 %v7340, 0.0
        %v9725 = vmax.f32 %v8052, 0.0
        %v9726 = vmax.f32 %v8764, 0.0
        %v9727 = vmax.f32 %v9476, 0.0
        %v9728 = vmax.f32 %v4494, 0.0
        %v9729 = vmax.f32 %v5206, 0.0
        %v9730 = vmax.f32 %v5918, 0.0
        %v9731 = vmax.f32 %v6630, 0.0
        %v9732 = vmax.f32 %v7342, 0.0
        %v9733 = vmax.f32 %v8054, 0.0
        %v9734 = vmax.f32 %v8766, 0.0
        %v9735 = vmax.f32 %v9478, 0.0
        %v9736 = vpack.c.bf16 %v9488, %v9480
        %v9737 = vpack.c.bf16 %v9489, %v9481
        %v9738 = vpack.c.bf16 %v9490, %v9482
        %v9739 = vpack.c.bf16 %v9491, %v9483
        %v9740 = vpack.c.bf16 %v9492, %v9484
        %v9741 = vpack.c.bf16 %v9493, %v9485
        %v9742 = vpack.c.bf16 %v9494, %v9486
        %v9743 = vpack.c.bf16 %v9495, %v9487
        %v9744 = vpack.c.bf16 %v9504, %v9496
        %v9745 = vpack.c.bf16 %v9505, %v9497
        %v9746 = vpack.c.bf16 %v9506, %v9498
        %v9747 = vpack.c.bf16 %v9507, %v9499
        %v9748 = vpack.c.bf16 %v9508, %v9500
        %v9749 = vpack.c.bf16 %v9509, %v9501
        %v9750 = vpack.c.bf16 %v9510, %v9502
        %v9751 = vpack.c.bf16 %v9511, %v9503
        %v9752 = vpack.c.bf16 %v9520, %v9512
        %v9753 = vpack.c.bf16 %v9521, %v9513
        %v9754 = vpack.c.bf16 %v9522, %v9514
        %v9755 = vpack.c.bf16 %v9523, %v9515
        %v9756 = vpack.c.bf16 %v9524, %v9516
        %v9757 = vpack.c.bf16 %v9525, %v9517
        %v9758 = vpack.c.bf16 %v9526, %v9518
        %v9759 = vpack.c.bf16 %v9527, %v9519
        %v9760 = vpack.c.bf16 %v9536, %v9528
        %v9761 = vpack.c.bf16 %v9537, %v9529
        %v9762 = vpack.c.bf16 %v9538, %v9530
        %v9763 = vpack.c.bf16 %v9539, %v9531
        %v9764 = vpack.c.bf16 %v9540, %v9532
        %v9765 = vpack.c.bf16 %v9541, %v9533
        %v9766 = vpack.c.bf16 %v9542, %v9534
        %v9767 = vpack.c.bf16 %v9543, %v9535
        %v9768 = vpack.c.bf16 %v9552, %v9544
        %v9769 = vpack.c.bf16 %v9553, %v9545
        %v9770 = vpack.c.bf16 %v9554, %v9546
        %v9771 = vpack.c.bf16 %v9555, %v9547
        %v9772 = vpack.c.bf16 %v9556, %v9548
        %v9773 = vpack.c.bf16 %v9557, %v9549
        %v9774 = vpack.c.bf16 %v9558, %v9550
        %v9775 = vpack.c.bf16 %v9559, %v9551
        %v9776 = vpack.c.bf16 %v9568, %v9560
        %v9777 = vpack.c.bf16 %v9569, %v9561
        %v9778 = vpack.c.bf16 %v9570, %v9562
        %v9779 = vpack.c.bf16 %v9571, %v9563
        %v9780 = vpack.c.bf16 %v9572, %v9564
        %v9781 = vpack.c.bf16 %v9573, %v9565
        %v9782 = vpack.c.bf16 %v9574, %v9566
        %v9783 = vpack.c.bf16 %v9575, %v9567
        %v9784 = vpack.c.bf16 %v9584, %v9576
        %v9785 = vpack.c.bf16 %v9585, %v9577
        %v9786 = vpack.c.bf16 %v9586, %v9578
        %v9787 = vpack.c.bf16 %v9587, %v9579
        %v9788 = vpack.c.bf16 %v9588, %v9580
        %v9789 = vpack.c.bf16 %v9589, %v9581
        %v9790 = vpack.c.bf16 %v9590, %v9582
        %v9791 = vpack.c.bf16 %v9591, %v9583
        %v9792 = vpack.c.bf16 %v9600, %v9592
        %v9793 = vpack.c.bf16 %v9601, %v9593
        %v9794 = vpack.c.bf16 %v9602, %v9594
        %v9795 = vpack.c.bf16 %v9603, %v9595
        %v9796 = vpack.c.bf16 %v9604, %v9596
        %v9797 = vpack.c.bf16 %v9605, %v9597
        %v9798 = vpack.c.bf16 %v9606, %v9598
        %v9799 = vpack.c.bf16 %v9607, %v9599
        %v9800 = vpack.c.bf16 %v9616, %v9608
        %v9801 = vpack.c.bf16 %v9617, %v9609
        %v9802 = vpack.c.bf16 %v9618, %v9610
        %v9803 = vpack.c.bf16 %v9619, %v9611
        %v9804 = vpack.c.bf16 %v9620, %v9612
        %v9805 = vpack.c.bf16 %v9621, %v9613
        %v9806 = vpack.c.bf16 %v9622, %v9614
        %v9807 = vpack.c.bf16 %v9623, %v9615
        %v9808 = vpack.c.bf16 %v9632, %v9624
        %v9809 = vpack.c.bf16 %v9633, %v9625
        %v9810 = vpack.c.bf16 %v9634, %v9626
        %v9811 = vpack.c.bf16 %v9635, %v9627
        %v9812 = vpack.c.bf16 %v9636, %v9628
        %v9813 = vpack.c.bf16 %v9637, %v9629
        %v9814 = vpack.c.bf16 %v9638, %v9630
        %v9815 = vpack.c.bf16 %v9639, %v9631
        %v9816 = vpack.c.bf16 %v9648, %v9640
        %v9817 = vpack.c.bf16 %v9649, %v9641
        %v9818 = vpack.c.bf16 %v9650, %v9642
        %v9819 = vpack.c.bf16 %v9651, %v9643
        %v9820 = vpack.c.bf16 %v9652, %v9644
        %v9821 = vpack.c.bf16 %v9653, %v9645
        %v9822 = vpack.c.bf16 %v9654, %v9646
        %v9823 = vpack.c.bf16 %v9655, %v9647
        %v9824 = vpack.c.bf16 %v9664, %v9656
        %v9825 = vpack.c.bf16 %v9665, %v9657
        %v9826 = vpack.c.bf16 %v9666, %v9658
        %v9827 = vpack.c.bf16 %v9667, %v9659
        %v9828 = vpack.c.bf16 %v9668, %v9660
        %v9829 = vpack.c.bf16 %v9669, %v9661
        %v9830 = vpack.c.bf16 %v9670, %v9662
        %v9831 = vpack.c.bf16 %v9671, %v9663
        %v9832 = vpack.c.bf16 %v9680, %v9672
        %v9833 = vpack.c.bf16 %v9681, %v9673
        %v9834 = vpack.c.bf16 %v9682, %v9674
        %v9835 = vpack.c.bf16 %v9683, %v9675
        %v9836 = vpack.c.bf16 %v9684, %v9676
        %v9837 = vpack.c.bf16 %v9685, %v9677
        %v9838 = vpack.c.bf16 %v9686, %v9678
        %v9839 = vpack.c.bf16 %v9687, %v9679
        %v9840 = vpack.c.bf16 %v9696, %v9688
        %v9841 = vpack.c.bf16 %v9697, %v9689
        %v9842 = vpack.c.bf16 %v9698, %v9690
        %v9843 = vpack.c.bf16 %v9699, %v9691
        %v9844 = vpack.c.bf16 %v9700, %v9692
        %v9845 = vpack.c.bf16 %v9701, %v9693
        %v9846 = vpack.c.bf16 %v9702, %v9694
        %v9847 = vpack.c.bf16 %v9703, %v9695
        %v9848 = vpack.c.bf16 %v9712, %v9704
        %v9849 = vpack.c.bf16 %v9713, %v9705
        %v9850 = vpack.c.bf16 %v9714, %v9706
        %v9851 = vpack.c.bf16 %v9715, %v9707
        %v9852 = vpack.c.bf16 %v9716, %v9708
        %v9853 = vpack.c.bf16 %v9717, %v9709
        %v9854 = vpack.c.bf16 %v9718, %v9710
        %v9855 = vpack.c.bf16 %v9719, %v9711
        %v9856 = vpack.c.bf16 %v9728, %v9720
        %v9857 = vpack.c.bf16 %v9729, %v9721
        %v9858 = vpack.c.bf16 %v9730, %v9722
        %v9859 = vpack.c.bf16 %v9731, %v9723
        %v9860 = vpack.c.bf16 %v9732, %v9724
        %v9861 = vpack.c.bf16 %v9733, %v9725
        %v9862 = vpack.c.bf16 %v9734, %v9726
        %v9863 = vpack.c.bf16 %v9735, %v9727
        %v9864 = vld [vmem:[#allocation8] sm:$0xf]
        %v9865 = vld [vmem:[#allocation8 + $0x4] sm:$0xf]
        %v9866 = vld [vmem:[#allocation8 + $0x8] sm:$0xf]
        %v9867 = vld [vmem:[#allocation8 + $0xc] sm:$0xf]
        %v9868 = vld [vmem:[#allocation8 + $0x10] sm:$0xf]
        %v9869 = vld [vmem:[#allocation8 + $0x14] sm:$0xf]
        %v9870 = vld [vmem:[#allocation8 + $0x18] sm:$0xf]
        %v9871 = vld [vmem:[#allocation8 + $0x1c] sm:$0xf]
        %v9872 = vld [vmem:[#allocation8 + $0x20] sm:$0xf]
        %v9873 = vld [vmem:[#allocation8 + $0x24] sm:$0xf]
        %v9874 = vld [vmem:[#allocation8 + $0x28] sm:$0xf]
        %v9875 = vld [vmem:[#allocation8 + $0x2c] sm:$0xf]
        %v9876 = vld [vmem:[#allocation8 + $0x30] sm:$0xf]
        %v9877 = vld [vmem:[#allocation8 + $0x34] sm:$0xf]
        %v9878 = vld [vmem:[#allocation8 + $0x38] sm:$0xf]
        %v9879 = vld [vmem:[#allocation8 + $0x3c] sm:$0xf]
        %v9880 = vld [vmem:[#allocation8 + $0x40] sm:$0xf]
        %v9881 = vld [vmem:[#allocation8 + $0x44] sm:$0xf]
        %v9882 = vld [vmem:[#allocation8 + $0x48] sm:$0xf]
        %v9883 = vld [vmem:[#allocation8 + $0x4c] sm:$0xf]
        %v9884 = vld [vmem:[#allocation8 + $0x50] sm:$0xf]
        %v9885 = vld [vmem:[#allocation8 + $0x54] sm:$0xf]
        %v9886 = vld [vmem:[#allocation8 + $0x58] sm:$0xf]
        %v9887 = vld [vmem:[#allocation8 + $0x5c] sm:$0xf]
        %v9888 = vld [vmem:[#allocation8 + $0x60] sm:$0xf]
        %v9889 = vld [vmem:[#allocation8 + $0x64] sm:$0xf]
        %v9890 = vld [vmem:[#allocation8 + $0x68] sm:$0xf]
        %v9891 = vld [vmem:[#allocation8 + $0x6c] sm:$0xf]
        %v9892 = vld [vmem:[#allocation8 + $0x70] sm:$0xf]
        %v9893 = vld [vmem:[#allocation8 + $0x74] sm:$0xf]
        %v9894 = vld [vmem:[#allocation8 + $0x78] sm:$0xf]
        %v9895 = vld [vmem:[#allocation8 + $0x7c] sm:$0xf]
        %v9896 = vld [vmem:[#allocation8 + $0x80] sm:$0xf]
        %v9897 = vld [vmem:[#allocation8 + $0x84] sm:$0xf]
        %v9898 = vld [vmem:[#allocation8 + $0x88] sm:$0xf]
        %v9899 = vld [vmem:[#allocation8 + $0x8c] sm:$0xf]
        %v9900 = vld [vmem:[#allocation8 + $0x90] sm:$0xf]
        %v9901 = vld [vmem:[#allocation8 + $0x94] sm:$0xf]
        %v9902 = vld [vmem:[#allocation8 + $0x98] sm:$0xf]
        %v9903 = vld [vmem:[#allocation8 + $0x9c] sm:$0xf]
        %v9904 = vld [vmem:[#allocation8 + $0xa0] sm:$0xf]
        %v9905 = vld [vmem:[#allocation8 + $0xa4] sm:$0xf]
        %v9906 = vld [vmem:[#allocation8 + $0xa8] sm:$0xf]
        %v9907 = vld [vmem:[#allocation8 + $0xac] sm:$0xf]
        %v9908 = vld [vmem:[#allocation8 + $0xb0] sm:$0xf]
        %v9909 = vld [vmem:[#allocation8 + $0xb4] sm:$0xf]
        %v9910 = vld [vmem:[#allocation8 + $0xb8] sm:$0xf]
        %v9911 = vld [vmem:[#allocation8 + $0xbc] sm:$0xf]
        %v9912 = vld [vmem:[#allocation8 + $0xc0] sm:$0xf]
        %v9913 = vld [vmem:[#allocation8 + $0xc4] sm:$0xf]
        %v9914 = vld [vmem:[#allocation8 + $0xc8] sm:$0xf]
        %v9915 = vld [vmem:[#allocation8 + $0xcc] sm:$0xf]
        %v9916 = vld [vmem:[#allocation8 + $0xd0] sm:$0xf]
        %v9917 = vld [vmem:[#allocation8 + $0xd4] sm:$0xf]
        %v9918 = vld [vmem:[#allocation8 + $0xd8] sm:$0xf]
        %v9919 = vld [vmem:[#allocation8 + $0xdc] sm:$0xf]
        %v9920 = vld [vmem:[#allocation8 + $0xe0] sm:$0xf]
        %v9921 = vld [vmem:[#allocation8 + $0xe4] sm:$0xf]
        %v9922 = vld [vmem:[#allocation8 + $0xe8] sm:$0xf]
        %v9923 = vld [vmem:[#allocation8 + $0xec] sm:$0xf]
        %v9924 = vld [vmem:[#allocation8 + $0xf0] sm:$0xf]
        %v9925 = vld [vmem:[#allocation8 + $0xf4] sm:$0xf]
        %v9926 = vld [vmem:[#allocation8 + $0xf8] sm:$0xf]
        %v9927 = vld [vmem:[#allocation8 + $0xfc] sm:$0xf]
        %v9928 = vld [vmem:[#allocation8 + $0x100] sm:$0xf]
        %v9929 = vld [vmem:[#allocation8 + $0x104] sm:$0xf]
        %v9930 = vld [vmem:[#allocation8 + $0x108] sm:$0xf]
        %v9931 = vld [vmem:[#allocation8 + $0x10c] sm:$0xf]
        %v9932 = vld [vmem:[#allocation8 + $0x110] sm:$0xf]
        %v9933 = vld [vmem:[#allocation8 + $0x114] sm:$0xf]
        %v9934 = vld [vmem:[#allocation8 + $0x118] sm:$0xf]
        %v9935 = vld [vmem:[#allocation8 + $0x11c] sm:$0xf]
        %v9936 = vld [vmem:[#allocation8 + $0x120] sm:$0xf]
        %v9937 = vld [vmem:[#allocation8 + $0x124] sm:$0xf]
        %v9938 = vld [vmem:[#allocation8 + $0x128] sm:$0xf]
        %v9939 = vld [vmem:[#allocation8 + $0x12c] sm:$0xf]
        %v9940 = vld [vmem:[#allocation8 + $0x130] sm:$0xf]
        %v9941 = vld [vmem:[#allocation8 + $0x134] sm:$0xf]
        %v9942 = vld [vmem:[#allocation8 + $0x138] sm:$0xf]
        %v9943 = vld [vmem:[#allocation8 + $0x13c] sm:$0xf]
        %v9944 = vld [vmem:[#allocation8 + $0x140] sm:$0xf]
        %v9945 = vld [vmem:[#allocation8 + $0x144] sm:$0xf]
        %v9946 = vld [vmem:[#allocation8 + $0x148] sm:$0xf]
        %v9947 = vld [vmem:[#allocation8 + $0x14c] sm:$0xf]
        %v9948 = vld [vmem:[#allocation8 + $0x150] sm:$0xf]
        %v9949 = vld [vmem:[#allocation8 + $0x154] sm:$0xf]
        %v9950 = vld [vmem:[#allocation8 + $0x158] sm:$0xf]
        %v9951 = vld [vmem:[#allocation8 + $0x15c] sm:$0xf]
        %v9952 = vld [vmem:[#allocation8 + $0x160] sm:$0xf]
        %v9953 = vld [vmem:[#allocation8 + $0x164] sm:$0xf]
        %v9954 = vld [vmem:[#allocation8 + $0x168] sm:$0xf]
        %v9955 = vld [vmem:[#allocation8 + $0x16c] sm:$0xf]
        %v9956 = vld [vmem:[#allocation8 + $0x170] sm:$0xf]
        %v9957 = vld [vmem:[#allocation8 + $0x174] sm:$0xf]
        %v9958 = vld [vmem:[#allocation8 + $0x178] sm:$0xf]
        %v9959 = vld [vmem:[#allocation8 + $0x17c] sm:$0xf]
        %v9960 = vld [vmem:[#allocation8 + $0x180] sm:$0xf]
        %v9961 = vld [vmem:[#allocation8 + $0x184] sm:$0xf]
        %v9962 = vld [vmem:[#allocation8 + $0x188] sm:$0xf]
        %v9963 = vld [vmem:[#allocation8 + $0x18c] sm:$0xf]
        %v9964 = vld [vmem:[#allocation8 + $0x190] sm:$0xf]
        %v9965 = vld [vmem:[#allocation8 + $0x194] sm:$0xf]
        %v9966 = vld [vmem:[#allocation8 + $0x198] sm:$0xf]
        %v9967 = vld [vmem:[#allocation8 + $0x19c] sm:$0xf]
        %v9968 = vld [vmem:[#allocation8 + $0x1a0] sm:$0xf]
        %v9969 = vld [vmem:[#allocation8 + $0x1a4] sm:$0xf]
        %v9970 = vld [vmem:[#allocation8 + $0x1a8] sm:$0xf]
        %v9971 = vld [vmem:[#allocation8 + $0x1ac] sm:$0xf]
        %v9972 = vld [vmem:[#allocation8 + $0x1b0] sm:$0xf]
        %v9973 = vld [vmem:[#allocation8 + $0x1b4] sm:$0xf]
        %v9974 = vld [vmem:[#allocation8 + $0x1b8] sm:$0xf]
        %v9975 = vld [vmem:[#allocation8 + $0x1bc] sm:$0xf]
        %v9976 = vld [vmem:[#allocation8 + $0x1c0] sm:$0xf]
        %v9977 = vld [vmem:[#allocation8 + $0x1c4] sm:$0xf]
        %v9978 = vld [vmem:[#allocation8 + $0x1c8] sm:$0xf]
        %v9979 = vld [vmem:[#allocation8 + $0x1cc] sm:$0xf]
        %v9980 = vld [vmem:[#allocation8 + $0x1d0] sm:$0xf]
        %v9981 = vld [vmem:[#allocation8 + $0x1d4] sm:$0xf]
        %v9982 = vld [vmem:[#allocation8 + $0x1d8] sm:$0xf]
        %v9983 = vld [vmem:[#allocation8 + $0x1dc] sm:$0xf]
        %v9984 = vld [vmem:[#allocation8 + $0x1e0] sm:$0xf]
        %v9985 = vld [vmem:[#allocation8 + $0x1e4] sm:$0xf]
        %v9986 = vld [vmem:[#allocation8 + $0x1e8] sm:$0xf]
        %v9987 = vld [vmem:[#allocation8 + $0x1ec] sm:$0xf]
        %v9988 = vld [vmem:[#allocation8 + $0x1f0] sm:$0xf]
        %v9989 = vld [vmem:[#allocation8 + $0x1f4] sm:$0xf]
        %v9990 = vld [vmem:[#allocation8 + $0x1f8] sm:$0xf]
        %v9991 = vld [vmem:[#allocation8 + $0x1fc] sm:$0xf]
        %v9992 = vld [vmem:[#allocation10] sm:$0x1]
        %v9994 = vperm.slane %v9992, 0
        %v10124 = vunpack.c.l.b16 %v9864
        %v10125 = vunpack.c.l.b16 %v9865
        %v10126 = vunpack.c.l.b16 %v9866
        %v10127 = vunpack.c.l.b16 %v9867
        %v10128 = vunpack.c.l.b16 %v9868
        %v10129 = vunpack.c.l.b16 %v9869
        %v10130 = vunpack.c.l.b16 %v9870
        %v10131 = vunpack.c.l.b16 %v9871
        %v10132 = vunpack.c.l.b16 %v9872
        %v10133 = vunpack.c.l.b16 %v9873
        %v10134 = vunpack.c.l.b16 %v9874
        %v10135 = vunpack.c.l.b16 %v9875
        %v10136 = vunpack.c.l.b16 %v9876
        %v10137 = vunpack.c.l.b16 %v9877
        %v10138 = vunpack.c.l.b16 %v9878
        %v10139 = vunpack.c.l.b16 %v9879
        %v10140 = vunpack.c.l.b16 %v9880
        %v10141 = vunpack.c.l.b16 %v9881
        %v10142 = vunpack.c.l.b16 %v9882
        %v10143 = vunpack.c.l.b16 %v9883
        %v10144 = vunpack.c.l.b16 %v9884
        %v10145 = vunpack.c.l.b16 %v9885
        %v10146 = vunpack.c.l.b16 %v9886
        %v10147 = vunpack.c.l.b16 %v9887
        %v10148 = vunpack.c.l.b16 %v9888
        %v10149 = vunpack.c.l.b16 %v9889
        %v10150 = vunpack.c.l.b16 %v9890
        %v10151 = vunpack.c.l.b16 %v9891
        %v10152 = vunpack.c.l.b16 %v9892
        %v10153 = vunpack.c.l.b16 %v9893
        %v10154 = vunpack.c.l.b16 %v9894
        %v10155 = vunpack.c.l.b16 %v9895
        %v10156 = vunpack.c.l.b16 %v9896
        %v10157 = vunpack.c.l.b16 %v9897
        %v10158 = vunpack.c.l.b16 %v9898
        %v10159 = vunpack.c.l.b16 %v9899
        %v10160 = vunpack.c.l.b16 %v9900
        %v10161 = vunpack.c.l.b16 %v9901
        %v10162 = vunpack.c.l.b16 %v9902
        %v10163 = vunpack.c.l.b16 %v9903
        %v10164 = vunpack.c.l.b16 %v9904
        %v10165 = vunpack.c.l.b16 %v9905
        %v10166 = vunpack.c.l.b16 %v9906
        %v10167 = vunpack.c.l.b16 %v9907
        %v10168 = vunpack.c.l.b16 %v9908
        %v10169 = vunpack.c.l.b16 %v9909
        %v10170 = vunpack.c.l.b16 %v9910
        %v10171 = vunpack.c.l.b16 %v9911
        %v10172 = vunpack.c.l.b16 %v9912
        %v10173 = vunpack.c.l.b16 %v9913
        %v10174 = vunpack.c.l.b16 %v9914
        %v10175 = vunpack.c.l.b16 %v9915
        %v10176 = vunpack.c.l.b16 %v9916
        %v10177 = vunpack.c.l.b16 %v9917
        %v10178 = vunpack.c.l.b16 %v9918
        %v10179 = vunpack.c.l.b16 %v9919
        %v10180 = vunpack.c.l.b16 %v9920
        %v10181 = vunpack.c.l.b16 %v9921
        %v10182 = vunpack.c.l.b16 %v9922
        %v10183 = vunpack.c.l.b16 %v9923
        %v10184 = vunpack.c.l.b16 %v9924
        %v10185 = vunpack.c.l.b16 %v9925
        %v10186 = vunpack.c.l.b16 %v9926
        %v10187 = vunpack.c.l.b16 %v9927
        %v10188 = vunpack.c.l.b16 %v9928
        %v10189 = vunpack.c.l.b16 %v9929
        %v10190 = vunpack.c.l.b16 %v9930
        %v10191 = vunpack.c.l.b16 %v9931
        %v10192 = vunpack.c.l.b16 %v9932
        %v10193 = vunpack.c.l.b16 %v9933
        %v10194 = vunpack.c.l.b16 %v9934
        %v10195 = vunpack.c.l.b16 %v9935
        %v10196 = vunpack.c.l.b16 %v9936
        %v10197 = vunpack.c.l.b16 %v9937
        %v10198 = vunpack.c.l.b16 %v9938
        %v10199 = vunpack.c.l.b16 %v9939
        %v10200 = vunpack.c.l.b16 %v9940
        %v10201 = vunpack.c.l.b16 %v9941
        %v10202 = vunpack.c.l.b16 %v9942
        %v10203 = vunpack.c.l.b16 %v9943
        %v10204 = vunpack.c.l.b16 %v9944
        %v10205 = vunpack.c.l.b16 %v9945
        %v10206 = vunpack.c.l.b16 %v9946
        %v10207 = vunpack.c.l.b16 %v9947
        %v10208 = vunpack.c.l.b16 %v9948
        %v10209 = vunpack.c.l.b16 %v9949
        %v10210 = vunpack.c.l.b16 %v9950
        %v10211 = vunpack.c.l.b16 %v9951
        %v10212 = vunpack.c.l.b16 %v9952
        %v10213 = vunpack.c.l.b16 %v9953
        %v10214 = vunpack.c.l.b16 %v9954
        %v10215 = vunpack.c.l.b16 %v9955
        %v10216 = vunpack.c.l.b16 %v9956
        %v10217 = vunpack.c.l.b16 %v9957
        %v10218 = vunpack.c.l.b16 %v9958
        %v10219 = vunpack.c.l.b16 %v9959
        %v10220 = vunpack.c.l.b16 %v9960
        %v10221 = vunpack.c.l.b16 %v9961
        %v10222 = vunpack.c.l.b16 %v9962
        %v10223 = vunpack.c.l.b16 %v9963
        %v10224 = vunpack.c.l.b16 %v9964
        %v10225 = vunpack.c.l.b16 %v9965
        %v10226 = vunpack.c.l.b16 %v9966
        %v10227 = vunpack.c.l.b16 %v9967
        %v10228 = vunpack.c.l.b16 %v9968
        %v10229 = vunpack.c.l.b16 %v9969
        %v10230 = vunpack.c.l.b16 %v9970
        %v10231 = vunpack.c.l.b16 %v9971
        %v10232 = vunpack.c.l.b16 %v9972
        %v10233 = vunpack.c.l.b16 %v9973
        %v10234 = vunpack.c.l.b16 %v9974
        %v10235 = vunpack.c.l.b16 %v9975
        %v10236 = vunpack.c.l.b16 %v9976
        %v10237 = vunpack.c.l.b16 %v9977
        %v10238 = vunpack.c.l.b16 %v9978
        %v10239 = vunpack.c.l.b16 %v9979
        %v10240 = vunpack.c.l.b16 %v9980
        %v10241 = vunpack.c.l.b16 %v9981
        %v10242 = vunpack.c.l.b16 %v9982
        %v10243 = vunpack.c.l.b16 %v9983
        %v10244 = vunpack.c.l.b16 %v9984
        %v10245 = vunpack.c.l.b16 %v9985
        %v10246 = vunpack.c.l.b16 %v9986
        %v10247 = vunpack.c.l.b16 %v9987
        %v10248 = vunpack.c.l.b16 %v9988
        %v10249 = vunpack.c.l.b16 %v9989
        %v10250 = vunpack.c.l.b16 %v9990
        %v10251 = vunpack.c.l.b16 %v9991
        %v10252 = vpack.c.b16 %v10125, %v10124
        %v10253 = vpack.c.b16 %v10127, %v10126
        %v10254 = vpack.c.b16 %v10129, %v10128
        %v10255 = vpack.c.b16 %v10131, %v10130
        %v10256 = vpack.c.b16 %v10133, %v10132
        %v10257 = vpack.c.b16 %v10135, %v10134
        %v10258 = vpack.c.b16 %v10137, %v10136
        %v10259 = vpack.c.b16 %v10139, %v10138
        %v10260 = vpack.c.b16 %v10141, %v10140
        %v10261 = vpack.c.b16 %v10143, %v10142
        %v10262 = vpack.c.b16 %v10145, %v10144
        %v10263 = vpack.c.b16 %v10147, %v10146
        %v10264 = vpack.c.b16 %v10149, %v10148
        %v10265 = vpack.c.b16 %v10151, %v10150
        %v10266 = vpack.c.b16 %v10153, %v10152
        %v10267 = vpack.c.b16 %v10155, %v10154
        %v10268 = vpack.c.b16 %v10157, %v10156
        %v10269 = vpack.c.b16 %v10159, %v10158
        %v10270 = vpack.c.b16 %v10161, %v10160
        %v10271 = vpack.c.b16 %v10163, %v10162
        %v10272 = vpack.c.b16 %v10165, %v10164
        %v10273 = vpack.c.b16 %v10167, %v10166
        %v10274 = vpack.c.b16 %v10169, %v10168
        %v10275 = vpack.c.b16 %v10171, %v10170
        %v10276 = vpack.c.b16 %v10173, %v10172
        %v10277 = vpack.c.b16 %v10175, %v10174
        %v10278 = vpack.c.b16 %v10177, %v10176
        %v10279 = vpack.c.b16 %v10179, %v10178
        %v10280 = vpack.c.b16 %v10181, %v10180
        %v10281 = vpack.c.b16 %v10183, %v10182
        %v10282 = vpack.c.b16 %v10185, %v10184
        %v10283 = vpack.c.b16 %v10187, %v10186
        %v10284 = vpack.c.b16 %v10189, %v10188
        %v10285 = vpack.c.b16 %v10191, %v10190
        %v10286 = vpack.c.b16 %v10193, %v10192
        %v10287 = vpack.c.b16 %v10195, %v10194
        %v10288 = vpack.c.b16 %v10197, %v10196
        %v10289 = vpack.c.b16 %v10199, %v10198
        %v10290 = vpack.c.b16 %v10201, %v10200
        %v10291 = vpack.c.b16 %v10203, %v10202
        %v10292 = vpack.c.b16 %v10205, %v10204
        %v10293 = vpack.c.b16 %v10207, %v10206
        %v10294 = vpack.c.b16 %v10209, %v10208
        %v10295 = vpack.c.b16 %v10211, %v10210
        %v10296 = vpack.c.b16 %v10213, %v10212
        %v10297 = vpack.c.b16 %v10215, %v10214
        %v10298 = vpack.c.b16 %v10217, %v10216
        %v10299 = vpack.c.b16 %v10219, %v10218
        %v10300 = vpack.c.b16 %v10221, %v10220
        %v10301 = vpack.c.b16 %v10223, %v10222
        %v10302 = vpack.c.b16 %v10225, %v10224
        %v10303 = vpack.c.b16 %v10227, %v10226
        %v10304 = vpack.c.b16 %v10229, %v10228
        %v10305 = vpack.c.b16 %v10231, %v10230
        %v10306 = vpack.c.b16 %v10233, %v10232
        %v10307 = vpack.c.b16 %v10235, %v10234
        %v10308 = vpack.c.b16 %v10237, %v10236
        %v10309 = vpack.c.b16 %v10239, %v10238
        %v10310 = vpack.c.b16 %v10241, %v10240
        %v10311 = vpack.c.b16 %v10243, %v10242
        %v10312 = vpack.c.b16 %v10245, %v10244
        %v10313 = vpack.c.b16 %v10247, %v10246
        %v10314 = vpack.c.b16 %v10249, %v10248
        %v10315 = vpack.c.b16 %v10251, %v10250
        %10380 = vmatpush.bf16.msra.mxu0 %v10259
        %10381 = vmatpush.bf16.msra.mxu0 %v10258
        %10382 = vmatpush.bf16.msra.mxu0 %v10257
        %10383 = vmatpush.bf16.msra.mxu0 %v10256
        %10384 = vmatpush.bf16.msra.mxu0 %v10255
        %10385 = vmatpush.bf16.msra.mxu0 %v10254
        %10386 = vmatpush.bf16.msra.mxu0 %v10253
        %10387 = vmatpush.bf16.msra.mxu0 %v10252
        %10388 = vmatmul.bf16.gmra.mxu0 %v9736
        %v10389 = vpop.f32.mrf.mxu0
        %v10390 = vadd.f32 %v9994, %v10389
        %v10391 = vpop.f32.mrf.mxu0
        %v10392 = vadd.f32 %v9994, %v10391
        %10393 = vmatmul.bf16.gmra.mxu0 %v9744
        %v10394 = vpop.f32.mrf.mxu0
        %v10395 = vadd.f32 %v9994, %v10394
        %v10396 = vpop.f32.mrf.mxu0
        %v10397 = vadd.f32 %v9994, %v10396
        %10398 = vmatmul.bf16.gmra.mxu0 %v9752
        %v10399 = vpop.f32.mrf.mxu0
        %v10400 = vadd.f32 %v9994, %v10399
        %v10401 = vpop.f32.mrf.mxu0
        %v10402 = vadd.f32 %v9994, %v10401
        %10403 = vmatmul.bf16.gmra.mxu0 %v9760
        %v10404 = vpop.f32.mrf.mxu0
        %v10405 = vadd.f32 %v9994, %v10404
        %v10406 = vpop.f32.mrf.mxu0
        %v10407 = vadd.f32 %v9994, %v10406
        %10408 = vmatmul.bf16.gmra.mxu0 %v9768
        %v10409 = vpop.f32.mrf.mxu0
        %v10410 = vadd.f32 %v9994, %v10409
        %v10411 = vpop.f32.mrf.mxu0
        %v10412 = vadd.f32 %v9994, %v10411
        %10413 = vmatmul.bf16.gmra.mxu0 %v9776
        %v10414 = vpop.f32.mrf.mxu0
        %v10415 = vadd.f32 %v9994, %v10414
        %v10416 = vpop.f32.mrf.mxu0
        %v10417 = vadd.f32 %v9994, %v10416
        %10418 = vmatmul.bf16.gmra.mxu0 %v9784
        %v10419 = vpop.f32.mrf.mxu0
        %v10420 = vadd.f32 %v9994, %v10419
        %v10421 = vpop.f32.mrf.mxu0
        %v10422 = vadd.f32 %v9994, %v10421
        %10423 = vmatmul.bf16.gmra.mxu0 %v9792
        %v10424 = vpop.f32.mrf.mxu0
        %v10425 = vadd.f32 %v9994, %v10424
        %v10426 = vpop.f32.mrf.mxu0
        %v10427 = vadd.f32 %v9994, %v10426
        %10428 = vmatmul.bf16.gmra.mxu0 %v9800
        %v10429 = vpop.f32.mrf.mxu0
        %v10430 = vadd.f32 %v9994, %v10429
        %v10431 = vpop.f32.mrf.mxu0
        %v10432 = vadd.f32 %v9994, %v10431
        %10433 = vmatmul.bf16.gmra.mxu0 %v9808
        %v10434 = vpop.f32.mrf.mxu0
        %v10435 = vadd.f32 %v9994, %v10434
        %v10436 = vpop.f32.mrf.mxu0
        %v10437 = vadd.f32 %v9994, %v10436
        %10438 = vmatmul.bf16.gmra.mxu0 %v9816
        %v10439 = vpop.f32.mrf.mxu0
        %v10440 = vadd.f32 %v9994, %v10439
        %v10441 = vpop.f32.mrf.mxu0
        %v10442 = vadd.f32 %v9994, %v10441
        %10443 = vmatmul.bf16.gmra.mxu0 %v9824
        %v10444 = vpop.f32.mrf.mxu0
        %v10445 = vadd.f32 %v9994, %v10444
        %v10446 = vpop.f32.mrf.mxu0
        %v10447 = vadd.f32 %v9994, %v10446
        %10448 = vmatmul.bf16.gmra.mxu0 %v9832
        %v10449 = vpop.f32.mrf.mxu0
        %v10450 = vadd.f32 %v9994, %v10449
        %v10451 = vpop.f32.mrf.mxu0
        %v10452 = vadd.f32 %v9994, %v10451
        %10453 = vmatmul.bf16.gmra.mxu0 %v9840
        %v10454 = vpop.f32.mrf.mxu0
        %v10455 = vadd.f32 %v9994, %v10454
        %v10456 = vpop.f32.mrf.mxu0
        %v10457 = vadd.f32 %v9994, %v10456
        %10458 = vmatmul.bf16.gmra.mxu0 %v9848
        %v10459 = vpop.f32.mrf.mxu0
        %v10460 = vadd.f32 %v9994, %v10459
        %v10461 = vpop.f32.mrf.mxu0
        %v10462 = vadd.f32 %v9994, %v10461
        %10463 = vmatmul.bf16.gmra.mxu0 %v9856
        %v10464 = vpop.f32.mrf.mxu0
        %v10465 = vadd.f32 %v9994, %v10464
        %v10466 = vpop.f32.mrf.mxu0
        %v10467 = vadd.f32 %v9994, %v10466
        %10468 = vdwg.mxu0
        %10469 = vmatpush.bf16.msra.mxu0 %v10267
        %10470 = vmatpush.bf16.msra.mxu0 %v10266
        %10471 = vmatpush.bf16.msra.mxu0 %v10265
        %10472 = vmatpush.bf16.msra.mxu0 %v10264
        %10473 = vmatpush.bf16.msra.mxu0 %v10263
        %10474 = vmatpush.bf16.msra.mxu0 %v10262
        %10475 = vmatpush.bf16.msra.mxu0 %v10261
        %10476 = vmatpush.bf16.msra.mxu0 %v10260
        %10477 = vmatmul.bf16.gmra.mxu0 %v9737
        %v10478 = vpop.f32.mrf.mxu0
        %v10479 = vadd.f32 %v10390, %v10478
        %v10480 = vpop.f32.mrf.mxu0
        %v10481 = vadd.f32 %v10392, %v10480
        %10482 = vmatmul.bf16.gmra.mxu0 %v9745
        %v10483 = vpop.f32.mrf.mxu0
        %v10484 = vadd.f32 %v10395, %v10483
        %v10485 = vpop.f32.mrf.mxu0
        %v10486 = vadd.f32 %v10397, %v10485
        %10487 = vmatmul.bf16.gmra.mxu0 %v9753
        %v10488 = vpop.f32.mrf.mxu0
        %v10489 = vadd.f32 %v10400, %v10488
        %v10490 = vpop.f32.mrf.mxu0
        %v10491 = vadd.f32 %v10402, %v10490
        %10492 = vmatmul.bf16.gmra.mxu0 %v9761
        %v10493 = vpop.f32.mrf.mxu0
        %v10494 = vadd.f32 %v10405, %v10493
        %v10495 = vpop.f32.mrf.mxu0
        %v10496 = vadd.f32 %v10407, %v10495
        %10497 = vmatmul.bf16.gmra.mxu0 %v9769
        %v10498 = vpop.f32.mrf.mxu0
        %v10499 = vadd.f32 %v10410, %v10498
        %v10500 = vpop.f32.mrf.mxu0
        %v10501 = vadd.f32 %v10412, %v10500
        %10502 = vmatmul.bf16.gmra.mxu0 %v9777
        %v10503 = vpop.f32.mrf.mxu0
        %v10504 = vadd.f32 %v10415, %v10503
        %v10505 = vpop.f32.mrf.mxu0
        %v10506 = vadd.f32 %v10417, %v10505
        %10507 = vmatmul.bf16.gmra.mxu0 %v9785
        %v10508 = vpop.f32.mrf.mxu0
        %v10509 = vadd.f32 %v10420, %v10508
        %v10510 = vpop.f32.mrf.mxu0
        %v10511 = vadd.f32 %v10422, %v10510
        %10512 = vmatmul.bf16.gmra.mxu0 %v9793
        %v10513 = vpop.f32.mrf.mxu0
        %v10514 = vadd.f32 %v10425, %v10513
        %v10515 = vpop.f32.mrf.mxu0
        %v10516 = vadd.f32 %v10427, %v10515
        %10517 = vmatmul.bf16.gmra.mxu0 %v9801
        %v10518 = vpop.f32.mrf.mxu0
        %v10519 = vadd.f32 %v10430, %v10518
        %v10520 = vpop.f32.mrf.mxu0
        %v10521 = vadd.f32 %v10432, %v10520
        %10522 = vmatmul.bf16.gmra.mxu0 %v9809
        %v10523 = vpop.f32.mrf.mxu0
        %v10524 = vadd.f32 %v10435, %v10523
        %v10525 = vpop.f32.mrf.mxu0
        %v10526 = vadd.f32 %v10437, %v10525
        %10527 = vmatmul.bf16.gmra.mxu0 %v9817
        %v10528 = vpop.f32.mrf.mxu0
        %v10529 = vadd.f32 %v10440, %v10528
        %v10530 = vpop.f32.mrf.mxu0
        %v10531 = vadd.f32 %v10442, %v10530
        %10532 = vmatmul.bf16.gmra.mxu0 %v9825
        %v10533 = vpop.f32.mrf.mxu0
        %v10534 = vadd.f32 %v10445, %v10533
        %v10535 = vpop.f32.mrf.mxu0
        %v10536 = vadd.f32 %v10447, %v10535
        %10537 = vmatmul.bf16.gmra.mxu0 %v9833
        %v10538 = vpop.f32.mrf.mxu0
        %v10539 = vadd.f32 %v10450, %v10538
        %v10540 = vpop.f32.mrf.mxu0
        %v10541 = vadd.f32 %v10452, %v10540
        %10542 = vmatmul.bf16.gmra.mxu0 %v9841
        %v10543 = vpop.f32.mrf.mxu0
        %v10544 = vadd.f32 %v10455, %v10543
        %v10545 = vpop.f32.mrf.mxu0
        %v10546 = vadd.f32 %v10457, %v10545
        %10547 = vmatmul.bf16.gmra.mxu0 %v9849
        %v10548 = vpop.f32.mrf.mxu0
        %v10549 = vadd.f32 %v10460, %v10548
        %v10550 = vpop.f32.mrf.mxu0
        %v10551 = vadd.f32 %v10462, %v10550
        %10552 = vmatmul.bf16.gmra.mxu0 %v9857
        %v10553 = vpop.f32.mrf.mxu0
        %v10554 = vadd.f32 %v10465, %v10553
        %v10555 = vpop.f32.mrf.mxu0
        %v10556 = vadd.f32 %v10467, %v10555
        %10557 = vdwg.mxu0
        %10558 = vmatpush.bf16.msra.mxu0 %v10275
        %10559 = vmatpush.bf16.msra.mxu0 %v10274
        %10560 = vmatpush.bf16.msra.mxu0 %v10273
        %10561 = vmatpush.bf16.msra.mxu0 %v10272
        %10562 = vmatpush.bf16.msra.mxu0 %v10271
        %10563 = vmatpush.bf16.msra.mxu0 %v10270
        %10564 = vmatpush.bf16.msra.mxu0 %v10269
        %10565 = vmatpush.bf16.msra.mxu0 %v10268
        %10566 = vmatmul.bf16.gmra.mxu0 %v9738
        %v10567 = vpop.f32.mrf.mxu0
        %v10568 = vadd.f32 %v10479, %v10567
        %v10569 = vpop.f32.mrf.mxu0
        %v10570 = vadd.f32 %v10481, %v10569
        %10571 = vmatmul.bf16.gmra.mxu0 %v9746
        %v10572 = vpop.f32.mrf.mxu0
        %v10573 = vadd.f32 %v10484, %v10572
        %v10574 = vpop.f32.mrf.mxu0
        %v10575 = vadd.f32 %v10486, %v10574
        %10576 = vmatmul.bf16.gmra.mxu0 %v9754
        %v10577 = vpop.f32.mrf.mxu0
        %v10578 = vadd.f32 %v10489, %v10577
        %v10579 = vpop.f32.mrf.mxu0
        %v10580 = vadd.f32 %v10491, %v10579
        %10581 = vmatmul.bf16.gmra.mxu0 %v9762
        %v10582 = vpop.f32.mrf.mxu0
        %v10583 = vadd.f32 %v10494, %v10582
        %v10584 = vpop.f32.mrf.mxu0
        %v10585 = vadd.f32 %v10496, %v10584
        %10586 = vmatmul.bf16.gmra.mxu0 %v9770
        %v10587 = vpop.f32.mrf.mxu0
        %v10588 = vadd.f32 %v10499, %v10587
        %v10589 = vpop.f32.mrf.mxu0
        %v10590 = vadd.f32 %v10501, %v10589
        %10591 = vmatmul.bf16.gmra.mxu0 %v9778
        %v10592 = vpop.f32.mrf.mxu0
        %v10593 = vadd.f32 %v10504, %v10592
        %v10594 = vpop.f32.mrf.mxu0
        %v10595 = vadd.f32 %v10506, %v10594
        %10596 = vmatmul.bf16.gmra.mxu0 %v9786
        %v10597 = vpop.f32.mrf.mxu0
        %v10598 = vadd.f32 %v10509, %v10597
        %v10599 = vpop.f32.mrf.mxu0
        %v10600 = vadd.f32 %v10511, %v10599
        %10601 = vmatmul.bf16.gmra.mxu0 %v9794
        %v10602 = vpop.f32.mrf.mxu0
        %v10603 = vadd.f32 %v10514, %v10602
        %v10604 = vpop.f32.mrf.mxu0
        %v10605 = vadd.f32 %v10516, %v10604
        %10606 = vmatmul.bf16.gmra.mxu0 %v9802
        %v10607 = vpop.f32.mrf.mxu0
        %v10608 = vadd.f32 %v10519, %v10607
        %v10609 = vpop.f32.mrf.mxu0
        %v10610 = vadd.f32 %v10521, %v10609
        %10611 = vmatmul.bf16.gmra.mxu0 %v9810
        %v10612 = vpop.f32.mrf.mxu0
        %v10613 = vadd.f32 %v10524, %v10612
        %v10614 = vpop.f32.mrf.mxu0
        %v10615 = vadd.f32 %v10526, %v10614
        %10616 = vmatmul.bf16.gmra.mxu0 %v9818
        %v10617 = vpop.f32.mrf.mxu0
        %v10618 = vadd.f32 %v10529, %v10617
        %v10619 = vpop.f32.mrf.mxu0
        %v10620 = vadd.f32 %v10531, %v10619
        %10621 = vmatmul.bf16.gmra.mxu0 %v9826
        %v10622 = vpop.f32.mrf.mxu0
        %v10623 = vadd.f32 %v10534, %v10622
        %v10624 = vpop.f32.mrf.mxu0
        %v10625 = vadd.f32 %v10536, %v10624
        %10626 = vmatmul.bf16.gmra.mxu0 %v9834
        %v10627 = vpop.f32.mrf.mxu0
        %v10628 = vadd.f32 %v10539, %v10627
        %v10629 = vpop.f32.mrf.mxu0
        %v10630 = vadd.f32 %v10541, %v10629
        %10631 = vmatmul.bf16.gmra.mxu0 %v9842
        %v10632 = vpop.f32.mrf.mxu0
        %v10633 = vadd.f32 %v10544, %v10632
        %v10634 = vpop.f32.mrf.mxu0
        %v10635 = vadd.f32 %v10546, %v10634
        %10636 = vmatmul.bf16.gmra.mxu0 %v9850
        %v10637 = vpop.f32.mrf.mxu0
        %v10638 = vadd.f32 %v10549, %v10637
        %v10639 = vpop.f32.mrf.mxu0
        %v10640 = vadd.f32 %v10551, %v10639
        %10641 = vmatmul.bf16.gmra.mxu0 %v9858
        %v10642 = vpop.f32.mrf.mxu0
        %v10643 = vadd.f32 %v10554, %v10642
        %v10644 = vpop.f32.mrf.mxu0
        %v10645 = vadd.f32 %v10556, %v10644
        %10646 = vdwg.mxu0
        %10647 = vmatpush.bf16.msra.mxu0 %v10283
        %10648 = vmatpush.bf16.msra.mxu0 %v10282
        %10649 = vmatpush.bf16.msra.mxu0 %v10281
        %10650 = vmatpush.bf16.msra.mxu0 %v10280
        %10651 = vmatpush.bf16.msra.mxu0 %v10279
        %10652 = vmatpush.bf16.msra.mxu0 %v10278
        %10653 = vmatpush.bf16.msra.mxu0 %v10277
        %10654 = vmatpush.bf16.msra.mxu0 %v10276
        %10655 = vmatmul.bf16.gmra.mxu0 %v9739
        %v10656 = vpop.f32.mrf.mxu0
        %v10657 = vadd.f32 %v10568, %v10656
        %v10658 = vpop.f32.mrf.mxu0
        %v10659 = vadd.f32 %v10570, %v10658
        %10660 = vmatmul.bf16.gmra.mxu0 %v9747
        %v10661 = vpop.f32.mrf.mxu0
        %v10662 = vadd.f32 %v10573, %v10661
        %v10663 = vpop.f32.mrf.mxu0
        %v10664 = vadd.f32 %v10575, %v10663
        %10665 = vmatmul.bf16.gmra.mxu0 %v9755
        %v10666 = vpop.f32.mrf.mxu0
        %v10667 = vadd.f32 %v10578, %v10666
        %v10668 = vpop.f32.mrf.mxu0
        %v10669 = vadd.f32 %v10580, %v10668
        %10670 = vmatmul.bf16.gmra.mxu0 %v9763
        %v10671 = vpop.f32.mrf.mxu0
        %v10672 = vadd.f32 %v10583, %v10671
        %v10673 = vpop.f32.mrf.mxu0
        %v10674 = vadd.f32 %v10585, %v10673
        %10675 = vmatmul.bf16.gmra.mxu0 %v9771
        %v10676 = vpop.f32.mrf.mxu0
        %v10677 = vadd.f32 %v10588, %v10676
        %v10678 = vpop.f32.mrf.mxu0
        %v10679 = vadd.f32 %v10590, %v10678
        %10680 = vmatmul.bf16.gmra.mxu0 %v9779
        %v10681 = vpop.f32.mrf.mxu0
        %v10682 = vadd.f32 %v10593, %v10681
        %v10683 = vpop.f32.mrf.mxu0
        %v10684 = vadd.f32 %v10595, %v10683
        %10685 = vmatmul.bf16.gmra.mxu0 %v9787
        %v10686 = vpop.f32.mrf.mxu0
        %v10687 = vadd.f32 %v10598, %v10686
        %v10688 = vpop.f32.mrf.mxu0
        %v10689 = vadd.f32 %v10600, %v10688
        %10690 = vmatmul.bf16.gmra.mxu0 %v9795
        %v10691 = vpop.f32.mrf.mxu0
        %v10692 = vadd.f32 %v10603, %v10691
        %v10693 = vpop.f32.mrf.mxu0
        %v10694 = vadd.f32 %v10605, %v10693
        %10695 = vmatmul.bf16.gmra.mxu0 %v9803
        %v10696 = vpop.f32.mrf.mxu0
        %v10697 = vadd.f32 %v10608, %v10696
        %v10698 = vpop.f32.mrf.mxu0
        %v10699 = vadd.f32 %v10610, %v10698
        %10700 = vmatmul.bf16.gmra.mxu0 %v9811
        %v10701 = vpop.f32.mrf.mxu0
        %v10702 = vadd.f32 %v10613, %v10701
        %v10703 = vpop.f32.mrf.mxu0
        %v10704 = vadd.f32 %v10615, %v10703
        %10705 = vmatmul.bf16.gmra.mxu0 %v9819
        %v10706 = vpop.f32.mrf.mxu0
        %v10707 = vadd.f32 %v10618, %v10706
        %v10708 = vpop.f32.mrf.mxu0
        %v10709 = vadd.f32 %v10620, %v10708
        %10710 = vmatmul.bf16.gmra.mxu0 %v9827
        %v10711 = vpop.f32.mrf.mxu0
        %v10712 = vadd.f32 %v10623, %v10711
        %v10713 = vpop.f32.mrf.mxu0
        %v10714 = vadd.f32 %v10625, %v10713
        %10715 = vmatmul.bf16.gmra.mxu0 %v9835
        %v10716 = vpop.f32.mrf.mxu0
        %v10717 = vadd.f32 %v10628, %v10716
        %v10718 = vpop.f32.mrf.mxu0
        %v10719 = vadd.f32 %v10630, %v10718
        %10720 = vmatmul.bf16.gmra.mxu0 %v9843
        %v10721 = vpop.f32.mrf.mxu0
        %v10722 = vadd.f32 %v10633, %v10721
        %v10723 = vpop.f32.mrf.mxu0
        %v10724 = vadd.f32 %v10635, %v10723
        %10725 = vmatmul.bf16.gmra.mxu0 %v9851
        %v10726 = vpop.f32.mrf.mxu0
        %v10727 = vadd.f32 %v10638, %v10726
        %v10728 = vpop.f32.mrf.mxu0
        %v10729 = vadd.f32 %v10640, %v10728
        %10730 = vmatmul.bf16.gmra.mxu0 %v9859
        %v10731 = vpop.f32.mrf.mxu0
        %v10732 = vadd.f32 %v10643, %v10731
        %v10733 = vpop.f32.mrf.mxu0
        %v10734 = vadd.f32 %v10645, %v10733
        %10735 = vdwg.mxu0
        %10736 = vmatpush.bf16.msra.mxu0 %v10291
        %10737 = vmatpush.bf16.msra.mxu0 %v10290
        %10738 = vmatpush.bf16.msra.mxu0 %v10289
        %10739 = vmatpush.bf16.msra.mxu0 %v10288
        %10740 = vmatpush.bf16.msra.mxu0 %v10287
        %10741 = vmatpush.bf16.msra.mxu0 %v10286
        %10742 = vmatpush.bf16.msra.mxu0 %v10285
        %10743 = vmatpush.bf16.msra.mxu0 %v10284
        %10744 = vmatmul.bf16.gmra.mxu0 %v9740
        %v10745 = vpop.f32.mrf.mxu0
        %v10746 = vadd.f32 %v10657, %v10745
        %v10747 = vpop.f32.mrf.mxu0
        %v10748 = vadd.f32 %v10659, %v10747
        %10749 = vmatmul.bf16.gmra.mxu0 %v9748
        %v10750 = vpop.f32.mrf.mxu0
        %v10751 = vadd.f32 %v10662, %v10750
        %v10752 = vpop.f32.mrf.mxu0
        %v10753 = vadd.f32 %v10664, %v10752
        %10754 = vmatmul.bf16.gmra.mxu0 %v9756
        %v10755 = vpop.f32.mrf.mxu0
        %v10756 = vadd.f32 %v10667, %v10755
        %v10757 = vpop.f32.mrf.mxu0
        %v10758 = vadd.f32 %v10669, %v10757
        %10759 = vmatmul.bf16.gmra.mxu0 %v9764
        %v10760 = vpop.f32.mrf.mxu0
        %v10761 = vadd.f32 %v10672, %v10760
        %v10762 = vpop.f32.mrf.mxu0
        %v10763 = vadd.f32 %v10674, %v10762
        %10764 = vmatmul.bf16.gmra.mxu0 %v9772
        %v10765 = vpop.f32.mrf.mxu0
        %v10766 = vadd.f32 %v10677, %v10765
        %v10767 = vpop.f32.mrf.mxu0
        %v10768 = vadd.f32 %v10679, %v10767
        %10769 = vmatmul.bf16.gmra.mxu0 %v9780
        %v10770 = vpop.f32.mrf.mxu0
        %v10771 = vadd.f32 %v10682, %v10770
        %v10772 = vpop.f32.mrf.mxu0
        %v10773 = vadd.f32 %v10684, %v10772
        %10774 = vmatmul.bf16.gmra.mxu0 %v9788
        %v10775 = vpop.f32.mrf.mxu0
        %v10776 = vadd.f32 %v10687, %v10775
        %v10777 = vpop.f32.mrf.mxu0
        %v10778 = vadd.f32 %v10689, %v10777
        %10779 = vmatmul.bf16.gmra.mxu0 %v9796
        %v10780 = vpop.f32.mrf.mxu0
        %v10781 = vadd.f32 %v10692, %v10780
        %v10782 = vpop.f32.mrf.mxu0
        %v10783 = vadd.f32 %v10694, %v10782
        %10784 = vmatmul.bf16.gmra.mxu0 %v9804
        %v10785 = vpop.f32.mrf.mxu0
        %v10786 = vadd.f32 %v10697, %v10785
        %v10787 = vpop.f32.mrf.mxu0
        %v10788 = vadd.f32 %v10699, %v10787
        %10789 = vmatmul.bf16.gmra.mxu0 %v9812
        %v10790 = vpop.f32.mrf.mxu0
        %v10791 = vadd.f32 %v10702, %v10790
        %v10792 = vpop.f32.mrf.mxu0
        %v10793 = vadd.f32 %v10704, %v10792
        %10794 = vmatmul.bf16.gmra.mxu0 %v9820
        %v10795 = vpop.f32.mrf.mxu0
        %v10796 = vadd.f32 %v10707, %v10795
        %v10797 = vpop.f32.mrf.mxu0
        %v10798 = vadd.f32 %v10709, %v10797
        %10799 = vmatmul.bf16.gmra.mxu0 %v9828
        %v10800 = vpop.f32.mrf.mxu0
        %v10801 = vadd.f32 %v10712, %v10800
        %v10802 = vpop.f32.mrf.mxu0
        %v10803 = vadd.f32 %v10714, %v10802
        %10804 = vmatmul.bf16.gmra.mxu0 %v9836
        %v10805 = vpop.f32.mrf.mxu0
        %v10806 = vadd.f32 %v10717, %v10805
        %v10807 = vpop.f32.mrf.mxu0
        %v10808 = vadd.f32 %v10719, %v10807
        %10809 = vmatmul.bf16.gmra.mxu0 %v9844
        %v10810 = vpop.f32.mrf.mxu0
        %v10811 = vadd.f32 %v10722, %v10810
        %v10812 = vpop.f32.mrf.mxu0
        %v10813 = vadd.f32 %v10724, %v10812
        %10814 = vmatmul.bf16.gmra.mxu0 %v9852
        %v10815 = vpop.f32.mrf.mxu0
        %v10816 = vadd.f32 %v10727, %v10815
        %v10817 = vpop.f32.mrf.mxu0
        %v10818 = vadd.f32 %v10729, %v10817
        %10819 = vmatmul.bf16.gmra.mxu0 %v9860
        %v10820 = vpop.f32.mrf.mxu0
        %v10821 = vadd.f32 %v10732, %v10820
        %v10822 = vpop.f32.mrf.mxu0
        %v10823 = vadd.f32 %v10734, %v10822
        %10824 = vdwg.mxu0
        %10825 = vmatpush.bf16.msra.mxu0 %v10299
        %10826 = vmatpush.bf16.msra.mxu0 %v10298
        %10827 = vmatpush.bf16.msra.mxu0 %v10297
        %10828 = vmatpush.bf16.msra.mxu0 %v10296
        %10829 = vmatpush.bf16.msra.mxu0 %v10295
        %10830 = vmatpush.bf16.msra.mxu0 %v10294
        %10831 = vmatpush.bf16.msra.mxu0 %v10293
        %10832 = vmatpush.bf16.msra.mxu0 %v10292
        %10833 = vmatmul.bf16.gmra.mxu0 %v9741
        %v10834 = vpop.f32.mrf.mxu0
        %v10835 = vadd.f32 %v10746, %v10834
        %v10836 = vpop.f32.mrf.mxu0
        %v10837 = vadd.f32 %v10748, %v10836
        %10838 = vmatmul.bf16.gmra.mxu0 %v9749
        %v10839 = vpop.f32.mrf.mxu0
        %v10840 = vadd.f32 %v10751, %v10839
        %v10841 = vpop.f32.mrf.mxu0
        %v10842 = vadd.f32 %v10753, %v10841
        %10843 = vmatmul.bf16.gmra.mxu0 %v9757
        %v10844 = vpop.f32.mrf.mxu0
        %v10845 = vadd.f32 %v10756, %v10844
        %v10846 = vpop.f32.mrf.mxu0
        %v10847 = vadd.f32 %v10758, %v10846
        %10848 = vmatmul.bf16.gmra.mxu0 %v9765
        %v10849 = vpop.f32.mrf.mxu0
        %v10850 = vadd.f32 %v10761, %v10849
        %v10851 = vpop.f32.mrf.mxu0
        %v10852 = vadd.f32 %v10763, %v10851
        %10853 = vmatmul.bf16.gmra.mxu0 %v9773
        %v10854 = vpop.f32.mrf.mxu0
        %v10855 = vadd.f32 %v10766, %v10854
        %v10856 = vpop.f32.mrf.mxu0
        %v10857 = vadd.f32 %v10768, %v10856
        %10858 = vmatmul.bf16.gmra.mxu0 %v9781
        %v10859 = vpop.f32.mrf.mxu0
        %v10860 = vadd.f32 %v10771, %v10859
        %v10861 = vpop.f32.mrf.mxu0
        %v10862 = vadd.f32 %v10773, %v10861
        %10863 = vmatmul.bf16.gmra.mxu0 %v9789
        %v10864 = vpop.f32.mrf.mxu0
        %v10865 = vadd.f32 %v10776, %v10864
        %v10866 = vpop.f32.mrf.mxu0
        %v10867 = vadd.f32 %v10778, %v10866
        %10868 = vmatmul.bf16.gmra.mxu0 %v9797
        %v10869 = vpop.f32.mrf.mxu0
        %v10870 = vadd.f32 %v10781, %v10869
        %v10871 = vpop.f32.mrf.mxu0
        %v10872 = vadd.f32 %v10783, %v10871
        %10873 = vmatmul.bf16.gmra.mxu0 %v9805
        %v10874 = vpop.f32.mrf.mxu0
        %v10875 = vadd.f32 %v10786, %v10874
        %v10876 = vpop.f32.mrf.mxu0
        %v10877 = vadd.f32 %v10788, %v10876
        %10878 = vmatmul.bf16.gmra.mxu0 %v9813
        %v10879 = vpop.f32.mrf.mxu0
        %v10880 = vadd.f32 %v10791, %v10879
        %v10881 = vpop.f32.mrf.mxu0
        %v10882 = vadd.f32 %v10793, %v10881
        %10883 = vmatmul.bf16.gmra.mxu0 %v9821
        %v10884 = vpop.f32.mrf.mxu0
        %v10885 = vadd.f32 %v10796, %v10884
        %v10886 = vpop.f32.mrf.mxu0
        %v10887 = vadd.f32 %v10798, %v10886
        %10888 = vmatmul.bf16.gmra.mxu0 %v9829
        %v10889 = vpop.f32.mrf.mxu0
        %v10890 = vadd.f32 %v10801, %v10889
        %v10891 = vpop.f32.mrf.mxu0
        %v10892 = vadd.f32 %v10803, %v10891
        %10893 = vmatmul.bf16.gmra.mxu0 %v9837
        %v10894 = vpop.f32.mrf.mxu0
        %v10895 = vadd.f32 %v10806, %v10894
        %v10896 = vpop.f32.mrf.mxu0
        %v10897 = vadd.f32 %v10808, %v10896
        %10898 = vmatmul.bf16.gmra.mxu0 %v9845
        %v10899 = vpop.f32.mrf.mxu0
        %v10900 = vadd.f32 %v10811, %v10899
        %v10901 = vpop.f32.mrf.mxu0
        %v10902 = vadd.f32 %v10813, %v10901
        %10903 = vmatmul.bf16.gmra.mxu0 %v9853
        %v10904 = vpop.f32.mrf.mxu0
        %v10905 = vadd.f32 %v10816, %v10904
        %v10906 = vpop.f32.mrf.mxu0
        %v10907 = vadd.f32 %v10818, %v10906
        %10908 = vmatmul.bf16.gmra.mxu0 %v9861
        %v10909 = vpop.f32.mrf.mxu0
        %v10910 = vadd.f32 %v10821, %v10909
        %v10911 = vpop.f32.mrf.mxu0
        %v10912 = vadd.f32 %v10823, %v10911
        %10913 = vdwg.mxu0
        %10914 = vmatpush.bf16.msra.mxu0 %v10307
        %10915 = vmatpush.bf16.msra.mxu0 %v10306
        %10916 = vmatpush.bf16.msra.mxu0 %v10305
        %10917 = vmatpush.bf16.msra.mxu0 %v10304
        %10918 = vmatpush.bf16.msra.mxu0 %v10303
        %10919 = vmatpush.bf16.msra.mxu0 %v10302
        %10920 = vmatpush.bf16.msra.mxu0 %v10301
        %10921 = vmatpush.bf16.msra.mxu0 %v10300
        %10922 = vmatmul.bf16.gmra.mxu0 %v9742
        %v10923 = vpop.f32.mrf.mxu0
        %v10924 = vadd.f32 %v10835, %v10923
        %v10925 = vpop.f32.mrf.mxu0
        %v10926 = vadd.f32 %v10837, %v10925
        %10927 = vmatmul.bf16.gmra.mxu0 %v9750
        %v10928 = vpop.f32.mrf.mxu0
        %v10929 = vadd.f32 %v10840, %v10928
        %v10930 = vpop.f32.mrf.mxu0
        %v10931 = vadd.f32 %v10842, %v10930
        %10932 = vmatmul.bf16.gmra.mxu0 %v9758
        %v10933 = vpop.f32.mrf.mxu0
        %v10934 = vadd.f32 %v10845, %v10933
        %v10935 = vpop.f32.mrf.mxu0
        %v10936 = vadd.f32 %v10847, %v10935
        %10937 = vmatmul.bf16.gmra.mxu0 %v9766
        %v10938 = vpop.f32.mrf.mxu0
        %v10939 = vadd.f32 %v10850, %v10938
        %v10940 = vpop.f32.mrf.mxu0
        %v10941 = vadd.f32 %v10852, %v10940
        %10942 = vmatmul.bf16.gmra.mxu0 %v9774
        %v10943 = vpop.f32.mrf.mxu0
        %v10944 = vadd.f32 %v10855, %v10943
        %v10945 = vpop.f32.mrf.mxu0
        %v10946 = vadd.f32 %v10857, %v10945
        %10947 = vmatmul.bf16.gmra.mxu0 %v9782
        %v10948 = vpop.f32.mrf.mxu0
        %v10949 = vadd.f32 %v10860, %v10948
        %v10950 = vpop.f32.mrf.mxu0
        %v10951 = vadd.f32 %v10862, %v10950
        %10952 = vmatmul.bf16.gmra.mxu0 %v9790
        %v10953 = vpop.f32.mrf.mxu0
        %v10954 = vadd.f32 %v10865, %v10953
        %v10955 = vpop.f32.mrf.mxu0
        %v10956 = vadd.f32 %v10867, %v10955
        %10957 = vmatmul.bf16.gmra.mxu0 %v9798
        %v10958 = vpop.f32.mrf.mxu0
        %v10959 = vadd.f32 %v10870, %v10958
        %v10960 = vpop.f32.mrf.mxu0
        %v10961 = vadd.f32 %v10872, %v10960
        %10962 = vmatmul.bf16.gmra.mxu0 %v9806
        %v10963 = vpop.f32.mrf.mxu0
        %v10964 = vadd.f32 %v10875, %v10963
        %v10965 = vpop.f32.mrf.mxu0
        %v10966 = vadd.f32 %v10877, %v10965
        %10967 = vmatmul.bf16.gmra.mxu0 %v9814
        %v10968 = vpop.f32.mrf.mxu0
        %v10969 = vadd.f32 %v10880, %v10968
        %v10970 = vpop.f32.mrf.mxu0
        %v10971 = vadd.f32 %v10882, %v10970
        %10972 = vmatmul.bf16.gmra.mxu0 %v9822
        %v10973 = vpop.f32.mrf.mxu0
        %v10974 = vadd.f32 %v10885, %v10973
        %v10975 = vpop.f32.mrf.mxu0
        %v10976 = vadd.f32 %v10887, %v10975
        %10977 = vmatmul.bf16.gmra.mxu0 %v9830
        %v10978 = vpop.f32.mrf.mxu0
        %v10979 = vadd.f32 %v10890, %v10978
        %v10980 = vpop.f32.mrf.mxu0
        %v10981 = vadd.f32 %v10892, %v10980
        %10982 = vmatmul.bf16.gmra.mxu0 %v9838
        %v10983 = vpop.f32.mrf.mxu0
        %v10984 = vadd.f32 %v10895, %v10983
        %v10985 = vpop.f32.mrf.mxu0
        %v10986 = vadd.f32 %v10897, %v10985
        %10987 = vmatmul.bf16.gmra.mxu0 %v9846
        %v10988 = vpop.f32.mrf.mxu0
        %v10989 = vadd.f32 %v10900, %v10988
        %v10990 = vpop.f32.mrf.mxu0
        %v10991 = vadd.f32 %v10902, %v10990
        %10992 = vmatmul.bf16.gmra.mxu0 %v9854
        %v10993 = vpop.f32.mrf.mxu0
        %v10994 = vadd.f32 %v10905, %v10993
        %v10995 = vpop.f32.mrf.mxu0
        %v10996 = vadd.f32 %v10907, %v10995
        %10997 = vmatmul.bf16.gmra.mxu0 %v9862
        %v10998 = vpop.f32.mrf.mxu0
        %v10999 = vadd.f32 %v10910, %v10998
        %v11000 = vpop.f32.mrf.mxu0
        %v11001 = vadd.f32 %v10912, %v11000
        %11002 = vdwg.mxu0
        %11003 = vmatpush.bf16.msra.mxu0 %v10315
        %11004 = vmatpush.bf16.msra.mxu0 %v10314
        %11005 = vmatpush.bf16.msra.mxu0 %v10313
        %11006 = vmatpush.bf16.msra.mxu0 %v10312
        %11007 = vmatpush.bf16.msra.mxu0 %v10311
        %11008 = vmatpush.bf16.msra.mxu0 %v10310
        %11009 = vmatpush.bf16.msra.mxu0 %v10309
        %11010 = vmatpush.bf16.msra.mxu0 %v10308
        %11011 = vmatmul.bf16.gmra.mxu0 %v9743
        %v11012 = vpop.f32.mrf.mxu0
        %v11013 = vadd.f32 %v10924, %v11012
        %v11014 = vpop.f32.mrf.mxu0
        %v11015 = vadd.f32 %v10926, %v11014
        %11016 = vmatmul.bf16.gmra.mxu0 %v9751
        %v11017 = vpop.f32.mrf.mxu0
        %v11018 = vadd.f32 %v10929, %v11017
        %v11019 = vpop.f32.mrf.mxu0
        %v11020 = vadd.f32 %v10931, %v11019
        %11021 = vmatmul.bf16.gmra.mxu0 %v9759
        %v11022 = vpop.f32.mrf.mxu0
        %v11023 = vadd.f32 %v10934, %v11022
        %v11024 = vpop.f32.mrf.mxu0
        %v11025 = vadd.f32 %v10936, %v11024
        %11026 = vmatmul.bf16.gmra.mxu0 %v9767
        %v11027 = vpop.f32.mrf.mxu0
        %v11028 = vadd.f32 %v10939, %v11027
        %v11029 = vpop.f32.mrf.mxu0
        %v11030 = vadd.f32 %v10941, %v11029
        %11031 = vmatmul.bf16.gmra.mxu0 %v9775
        %v11032 = vpop.f32.mrf.mxu0
        %v11033 = vadd.f32 %v10944, %v11032
        %v11034 = vpop.f32.mrf.mxu0
        %v11035 = vadd.f32 %v10946, %v11034
        %11036 = vmatmul.bf16.gmra.mxu0 %v9783
        %v11037 = vpop.f32.mrf.mxu0
        %v11038 = vadd.f32 %v10949, %v11037
        %v11039 = vpop.f32.mrf.mxu0
        %v11040 = vadd.f32 %v10951, %v11039
        %11041 = vmatmul.bf16.gmra.mxu0 %v9791
        %v11042 = vpop.f32.mrf.mxu0
        %v11043 = vadd.f32 %v10954, %v11042
        %v11044 = vpop.f32.mrf.mxu0
        %v11045 = vadd.f32 %v10956, %v11044
        %11046 = vmatmul.bf16.gmra.mxu0 %v9799
        %v11047 = vpop.f32.mrf.mxu0
        %v11048 = vadd.f32 %v10959, %v11047
        %v11049 = vpop.f32.mrf.mxu0
        %v11050 = vadd.f32 %v10961, %v11049
        %11051 = vmatmul.bf16.gmra.mxu0 %v9807
        %v11052 = vpop.f32.mrf.mxu0
        %v11053 = vadd.f32 %v10964, %v11052
        %v11054 = vpop.f32.mrf.mxu0
        %v11055 = vadd.f32 %v10966, %v11054
        %11056 = vmatmul.bf16.gmra.mxu0 %v9815
        %v11057 = vpop.f32.mrf.mxu0
        %v11058 = vadd.f32 %v10969, %v11057
        %v11059 = vpop.f32.mrf.mxu0
        %v11060 = vadd.f32 %v10971, %v11059
        %11061 = vmatmul.bf16.gmra.mxu0 %v9823
        %v11062 = vpop.f32.mrf.mxu0
        %v11063 = vadd.f32 %v10974, %v11062
        %v11064 = vpop.f32.mrf.mxu0
        %v11065 = vadd.f32 %v10976, %v11064
        %11066 = vmatmul.bf16.gmra.mxu0 %v9831
        %v11067 = vpop.f32.mrf.mxu0
        %v11068 = vadd.f32 %v10979, %v11067
        %v11069 = vpop.f32.mrf.mxu0
        %v11070 = vadd.f32 %v10981, %v11069
        %11071 = vmatmul.bf16.gmra.mxu0 %v9839
        %v11072 = vpop.f32.mrf.mxu0
        %v11073 = vadd.f32 %v10984, %v11072
        %v11074 = vpop.f32.mrf.mxu0
        %v11075 = vadd.f32 %v10986, %v11074
        %11076 = vmatmul.bf16.gmra.mxu0 %v9847
        %v11077 = vpop.f32.mrf.mxu0
        %v11078 = vadd.f32 %v10989, %v11077
        %v11079 = vpop.f32.mrf.mxu0
        %v11080 = vadd.f32 %v10991, %v11079
        %11081 = vmatmul.bf16.gmra.mxu0 %v9855
        %v11082 = vpop.f32.mrf.mxu0
        %v11083 = vadd.f32 %v10994, %v11082
        %v11084 = vpop.f32.mrf.mxu0
        %v11085 = vadd.f32 %v10996, %v11084
        %11086 = vmatmul.bf16.gmra.mxu0 %v9863
        %v11087 = vpop.f32.mrf.mxu0
        %v11088 = vadd.f32 %v10999, %v11087
        %v11089 = vpop.f32.mrf.mxu0
        %v11090 = vadd.f32 %v11001, %v11089
        %11091 = vdwg.mxu0
        %11092 = vst [vmem:[%s307] sm:$0xff] %v11013
        %11093 = vst [vmem:[%s307 + $0x8] sm:$0xff] %v11015
        %11094 = vst [vmem:[%s307 + $0x10] sm:$0xff] %v11018
        %11095 = vst [vmem:[%s307 + $0x18] sm:$0xff] %v11020
        %11096 = vst [vmem:[%s307 + $0x20] sm:$0xff] %v11023
        %11097 = vst [vmem:[%s307 + $0x28] sm:$0xff] %v11025
        %11098 = vst [vmem:[%s307 + $0x30] sm:$0xff] %v11028
        %11099 = vst [vmem:[%s307 + $0x38] sm:$0xff] %v11030
        %11100 = vst [vmem:[%s307 + $0x40] sm:$0xff] %v11033
        %11101 = vst [vmem:[%s307 + $0x48] sm:$0xff] %v11035
        %11102 = vst [vmem:[%s307 + $0x50] sm:$0xff] %v11038
        %11103 = vst [vmem:[%s307 + $0x58] sm:$0xff] %v11040
        %11104 = vst [vmem:[%s307 + $0x60] sm:$0xff] %v11043
        %11105 = vst [vmem:[%s307 + $0x68] sm:$0xff] %v11045
        %11106 = vst [vmem:[%s307 + $0x70] sm:$0xff] %v11048
        %11107 = vst [vmem:[%s307 + $0x78] sm:$0xff] %v11050
        %11108 = vst [vmem:[%s307 + $0x80] sm:$0xff] %v11053
        %11109 = vst [vmem:[%s307 + $0x88] sm:$0xff] %v11055
        %11110 = vst [vmem:[%s307 + $0x90] sm:$0xff] %v11058
        %11111 = vst [vmem:[%s307 + $0x98] sm:$0xff] %v11060
        %11112 = vst [vmem:[%s307 + $0xa0] sm:$0xff] %v11063
        %11113 = vst [vmem:[%s307 + $0xa8] sm:$0xff] %v11065
        %11114 = vst [vmem:[%s307 + $0xb0] sm:$0xff] %v11068
        %11115 = vst [vmem:[%s307 + $0xb8] sm:$0xff] %v11070
        %11116 = vst [vmem:[%s307 + $0xc0] sm:$0xff] %v11073
        %11117 = vst [vmem:[%s307 + $0xc8] sm:$0xff] %v11075
        %11118 = vst [vmem:[%s307 + $0xd0] sm:$0xff] %v11078
        %11119 = vst [vmem:[%s307 + $0xd8] sm:$0xff] %v11080
        %11120 = vst [vmem:[%s307 + $0xe0] sm:$0xff] %v11083
        %11121 = vst [vmem:[%s307 + $0xe8] sm:$0xff] %v11085
        %11122 = vst [vmem:[%s307 + $0xf0] sm:$0xff] %v11088
        %11123 = vst [vmem:[%s307 + $0xf8] sm:$0xff] %v11090
        %s11124 = sand.u32 %s142, 1
        %s11125 = scalar_lea.sflag [#allocation4], %s11124
        %s11126 = sand.u32 %s142, 1
        %s11127 = smul.addr %s11126, 256
        %s11128 = scalar_lea.vmem [#allocation11], %s11127
        // Predicated region
        $region61: #{tpu_custom_call.1} parent=39 // pred_check
          %p11129 = pneg %p152
        $region62: #{tpu_custom_call.1} parent=39 // pred_check_branch
          %11131 = sbr.rel (%p11129) target = $region64
        $region63: #{tpu_custom_call.1} parent=39 // pred_region
          %s11132 = smul.u32 32, %s24
          %11134 = vsyncadd %s11125, 0
          %s11135 = smul.addr %s11132, 8
          %s11136 = scalar_lea.hbm %s5, %s11135
          %s11137 = sshll.u32 %s11128, 4
          %s11138 = int_to_ptr.vmem [resolvable:$true] %s11137
          %s11139 = sshll.u32 %s11136, 4
          %s11140 = int_to_ptr.hbm [resolvable:$true] %s11139
          %11145 = dma.vmem_to_hbm [thread:$0]  %s11138, 4096, %s11140, %s11125, 128, 128, 8
        $region64: #{tpu_custom_call.1} parent=39 // pred_fallthru
          _
      $region40: #{tpu_custom_call.1} parent=5 // pred_fallthru
        _
      %p11146 = scmp.le.s32.totalorder 2, %s19
      // Predicated region
      $region65: #{tpu_custom_call.1} parent=5 // pred_check
        %p11147 = pneg %p11146
      $region66: #{tpu_custom_call.1} parent=5 // pred_check_branch
        %11149 = sbr.rel (%p11147) target = $region68
      $region67: #{tpu_custom_call.1} parent=5 // pred_region
        %s11150 = ssub.s32 %s19, 2
        // Predicated region
        $region69: #{tpu_custom_call.1} parent=67 // pred_check
          %p11151 = pneg %p158
        $region70: #{tpu_custom_call.1} parent=67 // pred_check_branch
          %11153 = sbr.rel (%p11151) target = $region72
        $region71: #{tpu_custom_call.1} parent=67 // pred_region
          %s11154 = sand.u32 %s143, 1
          %s11155 = scalar_lea.sflag [#allocation4], %s11154
          %s11156 = sand.u32 %s143, 1
          %s11157 = smul.addr %s11156, 256
          %s11158 = scalar_lea.vmem [#allocation11], %s11157
          %11160 = dma.done %s11155, 4096
        $region72: #{tpu_custom_call.1} parent=67 // pred_fallthru
          _
      $region68: #{tpu_custom_call.1} parent=5 // pred_fallthru
        _
    $region6: #{tpu_custom_call.1} parent=1 // loop_footer
      %s23 = sadd.s32 1, %s19
    $region7: #{tpu_custom_call.1} parent=1 // loop_footer_branch
      %18 = sbr.rel target = $region3
    $region8: #{tpu_custom_call.1} parent=1 // loop_exit
      _
    %11161 = vsyncpa [#allocation3], 1
    %s11162 = scalar_lea.sflag [#allocation3], 1
    %11163 = vsyncpa %s11162, 1
    %11164 = vsyncpa [#allocation6], 1
    %11165 = vsyncpa [#allocation9], 1
    %11166 = vsyncpa [#allocation4], 1
    %s11167 = scalar_lea.sflag [#allocation4], 1
    %11168 = vsyncpa %s11167, 1

</llo_original>
